<compile_context>
chip_gen: v7x
topology: tpu7x:2x2x1
jax: 0.10.0
libtpu: 0.0.40
codegen_flags: <defaults>
</compile_context>

<pallas_src>
from functools import partial

import numpy as np
import jax
import jax.numpy as jnp
from jax import lax
from jax.experimental import pallas as pl
from jax.experimental.pallas import tpu as pltpu


# ----------------------------------------------------------------------------
# In-kernel math helpers
# ----------------------------------------------------------------------------
def _gelu(x):
    # tanh-approx GELU (EUP tanh); deviation from exact erf-GELU <~1e-3, well
    # inside the 2e-2 test tolerance.
    c = np.float32(np.sqrt(2.0 / np.pi))
    return 0.5 * x * (1.0 + jnp.tanh(c * (x + np.float32(0.044715) * x * x * x)))


# ----------------------------------------------------------------------------
# Pallas kernel: whole encoder (4 folded convs + GELU + Linear epilogue).
# Runs once per batch tile; the weight refs point at VMEM-resident blocks that
# are identical across grid steps (constant index_map).
# ----------------------------------------------------------------------------
def encoder_kernel(x_ref,
                   m1_ref, v1_ref, m2_ref, v2_ref,
                   m3_ref, v3_ref, m4_ref, v4_ref,
                   wl_ref, bl_ref,
                   o_ref):
    def layer(h, m_ref, b_ref):
        y = jnp.dot(h.astype(jnp.bfloat16), m_ref[...],
                    preferred_element_type=jnp.float32) + b_ref[...]
        return _gelu(y)

    h = x_ref[...]                       # (TB, H*W*Cin) f32
    h = layer(h, m1_ref, v1_ref)         # (TB, 512)
    h = layer(h, m2_ref, v2_ref)         # (TB, 512)
    h = layer(h, m3_ref, v3_ref)         # (TB, 256)
    h = layer(h, m4_ref, v4_ref)         # (TB, 256)
    out = jnp.dot(h.astype(jnp.bfloat16), wl_ref[...],
                  preferred_element_type=jnp.float32) + bl_ref[...]
    o_ref[...] = out.astype(o_ref.dtype)


# ----------------------------------------------------------------------------
# Host-side constant folding (done once, outside the per-call path)
# ----------------------------------------------------------------------------
def make_shift_mats(H, W, stride):
    """0/1 gather matrices encoding 3x3 conv with padding=1 and given stride."""
    Ho = (H + 2 - 3) // stride + 1
    Wo = (W + 2 - 3) // stride + 1
    T = np.zeros((3, 3, Ho * Wo, H * W), np.float32)
    for kh in range(3):
        for kw in range(3):
            for i in range(Ho):
                hi = i * stride + kh - 1
                if not (0 <= hi < H):
                    continue
                for j in range(Wo):
                    wj = j * stride + kw - 1
                    if 0 <= wj < W:
                        T[kh, kw, i * Wo + j, hi * W + wj] = 1.0
    return T, Ho, Wo


def fold_conv(T, w):
    """M[(p*Cin+c), (q*Cout+o)] = sum_{kh,kw} T[kh,kw,q,p] * w[kh,kw,c,o]."""
    M = None
    for kh in range(3):
        for kw in range(3):
            term = np.kron(T[kh, kw].T, w[kh, kw])
            M = term if M is None else M + term
    return M


def prepare_encoder_params(conv_params, wl_torch, bl, H, W):
    """Fold convs into dense per-layer matrices; permute Linear weight to the
    pixel-major flatten; cast matmul operands to bf16 (accumulation stays f32)."""
    strides = (2, 1, 2, 1)
    folded = []
    h, w = H, W
    for (wk, bk), s in zip(conv_params, strides):
        T, ho, wo = make_shift_mats(h, w, s)
        M = fold_conv(T, np.asarray(wk, np.float32))
        bias = np.tile(np.asarray(bk, np.float32), ho * wo).reshape(1, -1)
        folded.append((jnp.asarray(M, jnp.bfloat16), jnp.asarray(bias, jnp.float32)))
        h, w = ho, wo

    c_out = conv_params[-1][0].shape[-1]
    hw4 = h * w
    out_dim = wl_torch.shape[0]
    # torch flatten is channel-major (c, h, w); kernel layout is pixel-major
    # (h, w, c):  wl_k[p*C + c, o] = wl_torch[o, c*HW + p]
    wl_np = np.asarray(wl_torch, np.float32)
    wl_k = (wl_np.reshape(out_dim, c_out, hw4)
            .transpose(2, 1, 0)
            .reshape(hw4 * c_out, out_dim))
    folded.append((jnp.asarray(wl_k, jnp.bfloat16),
                   jnp.asarray(np.asarray(bl, np.float32).reshape(1, -1))))
    return tuple(folded)


# ----------------------------------------------------------------------------
# BlockSpec helpers
# ----------------------------------------------------------------------------
def _const_block_spec(shape, pipeline_mode=None):
    """Full-array block, constant index_map -> stays VMEM-resident across the
    batch grid (Pallas elides re-DMA when the block index is unchanged).
    NOTE: (1, N) bias blocks are legal only because they equal the full array."""
    nd = len(shape)
    index_map = lambda i, _nd=nd: (0,) * _nd
    if pipeline_mode is not None:
        return pl.BlockSpec(shape, index_map, pipeline_mode=pipeline_mode)
    return pl.BlockSpec(shape, index_map)


# ----------------------------------------------------------------------------
# Wrapper: batch-tiled fused forward
# ----------------------------------------------------------------------------
@partial(jax.jit, static_argnames=("tb", "single_buffer_weights"))
def local_conv_encoder(x, folded, tb=256, single_buffer_weights=True):
    """x: (B, H, W, C) f32 -> (B, output_dim) f32."""
    B = x.shape[0]
    x_flat = x.reshape(B, -1).astype(jnp.float32)   # pixel-major (h, w, c) flatten
    feat_in = x_flat.shape[1]
    (m1, v1), (m2, v2), (m3, v3), (m4, v4), (wl, bl) = folded
    out_dim = wl.shape[1]

    # Batch tiling: TB rows per grid step (fills the MXU M dimension for large
    # B); pad the batch to a multiple of TB and slice the result back.
    TB = min(tb, B)
    Bp = -(-B // TB) * TB
    if Bp != B:
        x_flat = jnp.pad(x_flat, ((0, Bp - B), (0, 0)))
    n_tiles = Bp // TB

    weights = (m1, v1, m2, v2, m3, v3, m4, v4, wl, bl)
    weight_mode = pl.Buffered(1) if single_buffer_weights else None

    in_specs = [pl.BlockSpec((TB, feat_in), lambda i: (i, 0))] + [
        _const_block_spec(w.shape, weight_mode) for w in weights
    ]
    out_spec = pl.BlockSpec((TB, out_dim), lambda i: (i, 0))

    # Advisory cost estimate so XLA can overlap this tiny custom call.
    mats = (m1, m2, m3, m4, wl)
    flops = int(2 * Bp * sum(int(m.shape[0]) * int(m.shape[1]) for m in mats))
    transcendentals = int(Bp * sum(int(m.shape[1]) for m in (m1, m2, m3, m4)))
    bytes_accessed = int(sum(int(w.size) * w.dtype.itemsize for w in weights)
                         + Bp * feat_in * 4 + Bp * out_dim * 4)

    out = pl.pallas_call(
        encoder_kernel,
        out_shape=jax.ShapeDtypeStruct((Bp, out_dim), jnp.float32),
        grid=(n_tiles,),
        in_specs=in_specs,
        out_specs=out_spec,
        compiler_params=pltpu.CompilerParams(
            # batch axis is independent -> shard across both v7x TensorCores
            dimension_semantics=("parallel",),
            # explicit limit, sized well inside v7x's 64 MiB physical VMEM
            vmem_limit_bytes=32 * 1024 * 1024,
        ),
        cost_estimate=pl.CostEstimate(
            flops=flops,
            transcendentals=transcendentals,
            bytes_accessed=bytes_accessed),
    )(x_flat, *weights)

    return out[:B] if Bp != B else out


# ----------------------------------------------------------------------------
# Pure-JAX reference (mirrors the PyTorch forward semantics exactly)
# ----------------------------------------------------------------------------
def reference_forward(x, conv_params, wl_torch, bl):
    strides = (2, 1, 2, 1)
    h = x
    for (w, b), s in zip(conv_params, strides):
        h = lax.conv_general_dilated(
            h, w, window_strides=(s, s), padding=((1, 1), (1, 1)),
            dimension_numbers=("NHWC", "HWIO", "NHWC"),
            precision=lax.Precision.HIGHEST)
        h = jax.nn.gelu(h + b.reshape(1, 1, 1, -1), approximate=False)
    # Rearrange 'b c h w -> b (c h w)'  (channel-major flatten)
    flat = jnp.transpose(h, (0, 3, 1, 2)).reshape(h.shape[0], -1)
    return (jnp.dot(flat, wl_torch.T, precision=lax.Precision.HIGHEST)
            + bl.reshape(1, -1))


# ----------------------------------------------------------------------------
# Main
# ----------------------------------------------------------------------------
if __name__ == "__main__":
    # Module config
    B, H, W, Cin = 2, 16, 16, 4
    channels_factor = 2
    output_dim = 32
    c_hid = channels_factor * Cin                 # 8
    c_out = channels_factor * c_hid               # 16
    cnn_output_dim = H * W * Cin // 4             # 256 (= 4*4*16)

    key = jax.random.PRNGKey(0)
    ks = jax.random.split(key, 12)

    def winit(k, shape):
        fan_in = int(np.prod(shape[:-1]))
        return (jax.random.normal(k, shape, jnp.float32) / np.sqrt(fan_in)).astype(jnp.float32)

    # Conv weights in HWIO layout (math-identical to torch OIHW).
    w1 = winit(ks[0], (3, 3, Cin, c_hid));   b1 = 0.01 * jax.random.normal(ks[1], (c_hid,), jnp.float32)
    w2 = winit(ks[2], (3, 3, c_hid, c_hid)); b2 = 0.01 * jax.random.normal(ks[3], (c_hid,), jnp.float32)
    w3 = winit(ks[4], (3, 3, c_hid, c_out)); b3 = 0.01 * jax.random.normal(ks[5], (c_out,), jnp.float32)
    w4 = winit(ks[6], (3, 3, c_out, c_out)); b4 = 0.01 * jax.random.normal(ks[7], (c_out,), jnp.float32)

    # Linear weight in torch layout (output_dim, cnn_output_dim), c-major flatten.
    wl_torch = (jax.random.normal(ks[8], (output_dim, cnn_output_dim), jnp.float32)
                / np.sqrt(cnn_output_dim)).astype(jnp.float32)
    bl = 0.01 * jax.random.normal(ks[9], (output_dim,), jnp.float32)

    conv_params = [(w1, b1), (w2, b2), (w3, b3), (w4, b4)]

    # One-time host-side folding + upload (hoisted out of the call path).
    folded = prepare_encoder_params(conv_params, wl_torch, bl, H, W)

    # Inputs as the module's forward expects: 'b h w c'
    x = jax.random.normal(ks[10], (B, H, W, Cin), jnp.float32)            # small spec case
    xb = jax.random.normal(ks[11], (16, H, W, Cin), jnp.float32)          # exercises grid > 1

    z_ref = np.asarray(reference_forward(x, conv_params, wl_torch, bl))
    zb_ref = np.asarray(reference_forward(xb, conv_params, wl_torch, bl))

    def run_and_check(single_buffer_weights):
        z = jax.block_until_ready(
            local_conv_encoder(x, folded, single_buffer_weights=single_buffer_weights))
        assert z.shape == (B, output_dim), z.shape
        np.testing.assert_allclose(np.asarray(z), z_ref, rtol=2e-2, atol=2e-2)
        # Multi-tile path: batch 16, TB=8 -> grid=(2,), weights stay VMEM-resident.
        zb = jax.block_until_ready(
            local_conv_encoder(xb, folded, tb=8,
                               single_buffer_weights=single_buffer_weights))
        np.testing.assert_allclose(np.asarray(zb), zb_ref, rtol=2e-2, atol=2e-2)
        return z

    try:
        # Preferred config: single-buffered (VMEM-resident) weight blocks.
        z = run_and_check(True)
    except Exception:
        # Fallback: default double-buffered specs (known-good baseline).
        z = run_and_check(False)

    print("KERNEL_OK")
</pallas_src>

<mosaic_0001>
module attributes {stable_mosaic.version = 11 : i64} {
  func.func @encoder_kernel(%arg0: i32, %arg1: memref<2x1024xf32, #tpu.memory_space<vmem>>, %arg2: memref<1024x512xbf16, #tpu.memory_space<vmem>>, %arg3: memref<1x512xf32, #tpu.memory_space<vmem>>, %arg4: memref<512x512xbf16, #tpu.memory_space<vmem>>, %arg5: memref<1x512xf32, #tpu.memory_space<vmem>>, %arg6: memref<512x256xbf16, #tpu.memory_space<vmem>>, %arg7: memref<1x256xf32, #tpu.memory_space<vmem>>, %arg8: memref<256x256xbf16, #tpu.memory_space<vmem>>, %arg9: memref<1x256xf32, #tpu.memory_space<vmem>>, %arg10: memref<256x32xbf16, #tpu.memory_space<vmem>>, %arg11: memref<1x32xf32, #tpu.memory_space<vmem>>, %arg12: memref<2x32xf32, #tpu.memory_space<vmem>>) attributes {dimension_semantics = [#tpu.dimension_semantics<parallel>], iteration_bounds = array<i64: 1>, scalar_prefetch = 0 : i64, scratch_operands = 0 : i64, tpu.core_type = #tpu.core_type<tc>, window_params = [{transform_indices = @transform_0, window_bounds = array<i64: 2, 1024>}, {pipeline_mode = #tpu.pipeline_mode<synchronous>, transform_indices = @transform_1, window_bounds = array<i64: 1024, 512>}, {pipeline_mode = #tpu.pipeline_mode<synchronous>, transform_indices = @transform_2, window_bounds = array<i64: 1, 512>}, {pipeline_mode = #tpu.pipeline_mode<synchronous>, transform_indices = @transform_3, window_bounds = array<i64: 512, 512>}, {pipeline_mode = #tpu.pipeline_mode<synchronous>, transform_indices = @transform_4, window_bounds = array<i64: 1, 512>}, {pipeline_mode = #tpu.pipeline_mode<synchronous>, transform_indices = @transform_5, window_bounds = array<i64: 512, 256>}, {pipeline_mode = #tpu.pipeline_mode<synchronous>, transform_indices = @transform_6, window_bounds = array<i64: 1, 256>}, {pipeline_mode = #tpu.pipeline_mode<synchronous>, transform_indices = @transform_7, window_bounds = array<i64: 256, 256>}, {pipeline_mode = #tpu.pipeline_mode<synchronous>, transform_indices = @transform_8, window_bounds = array<i64: 1, 256>}, {pipeline_mode = #tpu.pipeline_mode<synchronous>, transform_indices = @transform_9, window_bounds = array<i64: 256, 32>}, {pipeline_mode = #tpu.pipeline_mode<synchronous>, transform_indices = @transform_10, window_bounds = array<i64: 1, 32>}, {transform_indices = @transform_11, window_bounds = array<i64: 2, 32>}]} {
    %c0 = arith.constant 0 : index
    %c0_0 = arith.constant 0 : index
    %0 = vector.load %arg1[%c0, %c0_0] : memref<2x1024xf32, #tpu.memory_space<vmem>>, vector<2x1024xf32>
    %1 = arith.truncf %0 : vector<2x1024xf32> to vector<2x1024xbf16>
    %c0_1 = arith.constant 0 : index
    %c0_2 = arith.constant 0 : index
    %2 = vector.load %arg2[%c0_1, %c0_2] : memref<1024x512xbf16, #tpu.memory_space<vmem>>, vector<1024x512xbf16>
    %cst = arith.constant dense<0.000000e+00> : vector<2x512xf32>
    %3 = tpu.matmul %1, %2, %cst {dimension_numbers = #tpu.dot_dimension_numbers<[1], [0], [0], [1], [0, 0, 1, 1], [], []>} : vector<2x1024xbf16>, vector<1024x512xbf16>, vector<2x512xf32> -> vector<2x512xf32>
    %c0_3 = arith.constant 0 : index
    %c0_4 = arith.constant 0 : index
    %4 = vector.load %arg3[%c0_3, %c0_4] : memref<1x512xf32, #tpu.memory_space<vmem>>, vector<1x512xf32>
    %5 = vector.broadcast %4 : vector<1x512xf32> to vector<2x512xf32>
    %6 = arith.addf %3, %5 : vector<2x512xf32>
    %cst_5 = arith.constant 5.000000e-01 : f32
    %7 = vector.broadcast %cst_5 : f32 to vector<2x512xf32>
    %8 = arith.mulf %7, %6 : vector<2x512xf32>
    %cst_6 = arith.constant 4.471500e-02 : f32
    %9 = vector.broadcast %cst_6 : f32 to vector<2x512xf32>
    %10 = arith.mulf %9, %6 : vector<2x512xf32>
    %11 = arith.mulf %10, %6 : vector<2x512xf32>
    %12 = arith.mulf %11, %6 : vector<2x512xf32>
    %13 = arith.addf %6, %12 : vector<2x512xf32>
    %cst_7 = arith.constant 0.797884583 : f32
    %14 = vector.broadcast %cst_7 : f32 to vector<2x512xf32>
    %15 = arith.mulf %14, %13 : vector<2x512xf32>
    %16 = math.tanh %15 : vector<2x512xf32>
    %cst_8 = arith.constant 1.000000e+00 : f32
    %17 = vector.broadcast %cst_8 : f32 to vector<2x512xf32>
    %18 = arith.addf %17, %16 : vector<2x512xf32>
    %19 = arith.mulf %8, %18 : vector<2x512xf32>
    %20 = arith.truncf %19 : vector<2x512xf32> to vector<2x512xbf16>
    %c0_9 = arith.constant 0 : index
    %c0_10 = arith.constant 0 : index
    %21 = vector.load %arg4[%c0_9, %c0_10] : memref<512x512xbf16, #tpu.memory_space<vmem>>, vector<512x512xbf16>
    %cst_11 = arith.constant dense<0.000000e+00> : vector<2x512xf32>
    %22 = tpu.matmul %20, %21, %cst_11 {dimension_numbers = #tpu.dot_dimension_numbers<[1], [0], [0], [1], [0, 0, 1, 1], [], []>} : vector<2x512xbf16>, vector<512x512xbf16>, vector<2x512xf32> -> vector<2x512xf32>
    %c0_12 = arith.constant 0 : index
    %c0_13 = arith.constant 0 : index
    %23 = vector.load %arg5[%c0_12, %c0_13] : memref<1x512xf32, #tpu.memory_space<vmem>>, vector<1x512xf32>
    %24 = vector.broadcast %23 : vector<1x512xf32> to vector<2x512xf32>
    %25 = arith.addf %22, %24 : vector<2x512xf32>
    %cst_14 = arith.constant 5.000000e-01 : f32
    %26 = vector.broadcast %cst_14 : f32 to vector<2x512xf32>
    %27 = arith.mulf %26, %25 : vector<2x512xf32>
    %cst_15 = arith.constant 4.471500e-02 : f32
    %28 = vector.broadcast %cst_15 : f32 to vector<2x512xf32>
    %29 = arith.mulf %28, %25 : vector<2x512xf32>
    %30 = arith.mulf %29, %25 : vector<2x512xf32>
    %31 = arith.mulf %30, %25 : vector<2x512xf32>
    %32 = arith.addf %25, %31 : vector<2x512xf32>
    %cst_16 = arith.constant 0.797884583 : f32
    %33 = vector.broadcast %cst_16 : f32 to vector<2x512xf32>
    %34 = arith.mulf %33, %32 : vector<2x512xf32>
    %35 = math.tanh %34 : vector<2x512xf32>
    %cst_17 = arith.constant 1.000000e+00 : f32
    %36 = vector.broadcast %cst_17 : f32 to vector<2x512xf32>
    %37 = arith.addf %36, %35 : vector<2x512xf32>
    %38 = arith.mulf %27, %37 : vector<2x512xf32>
    %39 = arith.truncf %38 : vector<2x512xf32> to vector<2x512xbf16>
    %c0_18 = arith.constant 0 : index
    %c0_19 = arith.constant 0 : index
    %40 = vector.load %arg6[%c0_18, %c0_19] : memref<512x256xbf16, #tpu.memory_space<vmem>>, vector<512x256xbf16>
    %cst_20 = arith.constant dense<0.000000e+00> : vector<2x256xf32>
    %41 = tpu.matmul %39, %40, %cst_20 {dimension_numbers = #tpu.dot_dimension_numbers<[1], [0], [0], [1], [0, 0, 1, 1], [], []>} : vector<2x512xbf16>, vector<512x256xbf16>, vector<2x256xf32> -> vector<2x256xf32>
    %c0_21 = arith.constant 0 : index
    %c0_22 = arith.constant 0 : index
    %42 = vector.load %arg7[%c0_21, %c0_22] : memref<1x256xf32, #tpu.memory_space<vmem>>, vector<1x256xf32>
    %43 = vector.broadcast %42 : vector<1x256xf32> to vector<2x256xf32>
    %44 = arith.addf %41, %43 : vector<2x256xf32>
    %cst_23 = arith.constant 5.000000e-01 : f32
    %45 = vector.broadcast %cst_23 : f32 to vector<2x256xf32>
    %46 = arith.mulf %45, %44 : vector<2x256xf32>
    %cst_24 = arith.constant 4.471500e-02 : f32
    %47 = vector.broadcast %cst_24 : f32 to vector<2x256xf32>
    %48 = arith.mulf %47, %44 : vector<2x256xf32>
    %49 = arith.mulf %48, %44 : vector<2x256xf32>
    %50 = arith.mulf %49, %44 : vector<2x256xf32>
    %51 = arith.addf %44, %50 : vector<2x256xf32>
    %cst_25 = arith.constant 0.797884583 : f32
    %52 = vector.broadcast %cst_25 : f32 to vector<2x256xf32>
    %53 = arith.mulf %52, %51 : vector<2x256xf32>
    %54 = math.tanh %53 : vector<2x256xf32>
    %cst_26 = arith.constant 1.000000e+00 : f32
    %55 = vector.broadcast %cst_26 : f32 to vector<2x256xf32>
    %56 = arith.addf %55, %54 : vector<2x256xf32>
    %57 = arith.mulf %46, %56 : vector<2x256xf32>
    %58 = arith.truncf %57 : vector<2x256xf32> to vector<2x256xbf16>
    %c0_27 = arith.constant 0 : index
    %c0_28 = arith.constant 0 : index
    %59 = vector.load %arg8[%c0_27, %c0_28] : memref<256x256xbf16, #tpu.memory_space<vmem>>, vector<256x256xbf16>
    %cst_29 = arith.constant dense<0.000000e+00> : vector<2x256xf32>
    %60 = tpu.matmul %58, %59, %cst_29 {dimension_numbers = #tpu.dot_dimension_numbers<[1], [0], [0], [1], [0, 0, 1, 1], [], []>} : vector<2x256xbf16>, vector<256x256xbf16>, vector<2x256xf32> -> vector<2x256xf32>
    %c0_30 = arith.constant 0 : index
    %c0_31 = arith.constant 0 : index
    %61 = vector.load %arg9[%c0_30, %c0_31] : memref<1x256xf32, #tpu.memory_space<vmem>>, vector<1x256xf32>
    %62 = vector.broadcast %61 : vector<1x256xf32> to vector<2x256xf32>
    %63 = arith.addf %60, %62 : vector<2x256xf32>
    %cst_32 = arith.constant 5.000000e-01 : f32
    %64 = vector.broadcast %cst_32 : f32 to vector<2x256xf32>
    %65 = arith.mulf %64, %63 : vector<2x256xf32>
    %cst_33 = arith.constant 4.471500e-02 : f32
    %66 = vector.broadcast %cst_33 : f32 to vector<2x256xf32>
    %67 = arith.mulf %66, %63 : vector<2x256xf32>
    %68 = arith.mulf %67, %63 : vector<2x256xf32>
    %69 = arith.mulf %68, %63 : vector<2x256xf32>
    %70 = arith.addf %63, %69 : vector<2x256xf32>
    %cst_34 = arith.constant 0.797884583 : f32
    %71 = vector.broadcast %cst_34 : f32 to vector<2x256xf32>
    %72 = arith.mulf %71, %70 : vector<2x256xf32>
    %73 = math.tanh %72 : vector<2x256xf32>
    %cst_35 = arith.constant 1.000000e+00 : f32
    %74 = vector.broadcast %cst_35 : f32 to vector<2x256xf32>
    %75 = arith.addf %74, %73 : vector<2x256xf32>
    %76 = arith.mulf %65, %75 : vector<2x256xf32>
    %77 = arith.truncf %76 : vector<2x256xf32> to vector<2x256xbf16>
    %c0_36 = arith.constant 0 : index
    %c0_37 = arith.constant 0 : index
    %78 = vector.load %arg10[%c0_36, %c0_37] : memref<256x32xbf16, #tpu.memory_space<vmem>>, vector<256x32xbf16>
    %cst_38 = arith.constant dense<0.000000e+00> : vector<2x32xf32>
    %79 = tpu.matmul %77, %78, %cst_38 {dimension_numbers = #tpu.dot_dimension_numbers<[1], [0], [0], [1], [0, 0, 1, 1], [], []>} : vector<2x256xbf16>, vector<256x32xbf16>, vector<2x32xf32> -> vector<2x32xf32>
    %c0_39 = arith.constant 0 : index
    %c0_40 = arith.constant 0 : index
    %80 = vector.load %arg11[%c0_39, %c0_40] : memref<1x32xf32, #tpu.memory_space<vmem>>, vector<1x32xf32>
    %81 = vector.broadcast %80 : vector<1x32xf32> to vector<2x32xf32>
    %82 = arith.addf %79, %81 : vector<2x32xf32>
    %c0_41 = arith.constant 0 : index
    %c0_42 = arith.constant 0 : index
    %83 = vector.load %arg12[%c0_41, %c0_42] : memref<2x32xf32, #tpu.memory_space<vmem>>, vector<2x32xf32>
    tpu.vector_store %arg12[%c0_41, %c0_42], %82 {strides = array<i32>} : memref<2x32xf32, #tpu.memory_space<vmem>>, vector<2x32xf32>,
    return
  }
  func.func @transform_0(%arg0: i32) -> (i32, i32) {
    %c0_i32 = arith.constant 0 : i32
    %c0_i32_0 = arith.constant 0 : i32
    return %arg0, %c0_i32 : i32, i32
  }
  func.func @transform_1(%arg0: i32) -> (i32, i32) {
    %c0_i32 = arith.constant 0 : i32
    %c0_i32_0 = arith.constant 0 : i32
    %c0_i32_1 = arith.constant 0 : i32
    return %c0_i32, %c0_i32_0 : i32, i32
  }
  func.func @transform_2(%arg0: i32) -> (i32, i32) {
    %c0_i32 = arith.constant 0 : i32
    %c0_i32_0 = arith.constant 0 : i32
    %c0_i32_1 = arith.constant 0 : i32
    return %c0_i32, %c0_i32_0 : i32, i32
  }
  func.func @transform_3(%arg0: i32) -> (i32, i32) {
    %c0_i32 = arith.constant 0 : i32
    %c0_i32_0 = arith.constant 0 : i32
    %c0_i32_1 = arith.constant 0 : i32
    return %c0_i32, %c0_i32_0 : i32, i32
  }
  func.func @transform_4(%arg0: i32) -> (i32, i32) {
    %c0_i32 = arith.constant 0 : i32
    %c0_i32_0 = arith.constant 0 : i32
    %c0_i32_1 = arith.constant 0 : i32
    return %c0_i32, %c0_i32_0 : i32, i32
  }
  func.func @transform_5(%arg0: i32) -> (i32, i32) {
    %c0_i32 = arith.constant 0 : i32
    %c0_i32_0 = arith.constant 0 : i32
    %c0_i32_1 = arith.constant 0 : i32
    return %c0_i32, %c0_i32_0 : i32, i32
  }
  func.func @transform_6(%arg0: i32) -> (i32, i32) {
    %c0_i32 = arith.constant 0 : i32
    %c0_i32_0 = arith.constant 0 : i32
    %c0_i32_1 = arith.constant 0 : i32
    return %c0_i32, %c0_i32_0 : i32, i32
  }
  func.func @transform_7(%arg0: i32) -> (i32, i32) {
    %c0_i32 = arith.constant 0 : i32
    %c0_i32_0 = arith.constant 0 : i32
    %c0_i32_1 = arith.constant 0 : i32
    return %c0_i32, %c0_i32_0 : i32, i32
  }
  func.func @transform_8(%arg0: i32) -> (i32, i32) {
    %c0_i32 = arith.constant 0 : i32
    %c0_i32_0 = arith.constant 0 : i32
    %c0_i32_1 = arith.constant 0 : i32
    return %c0_i32, %c0_i32_0 : i32, i32
  }
  func.func @transform_9(%arg0: i32) -> (i32, i32) {
    %c0_i32 = arith.constant 0 : i32
    %c0_i32_0 = arith.constant 0 : i32
    %c0_i32_1 = arith.constant 0 : i32
    return %c0_i32, %c0_i32_0 : i32, i32
  }
  func.func @transform_10(%arg0: i32) -> (i32, i32) {
    %c0_i32 = arith.constant 0 : i32
    %c0_i32_0 = arith.constant 0 : i32
    %c0_i32_1 = arith.constant 0 : i32
    return %c0_i32, %c0_i32_0 : i32, i32
  }
  func.func @transform_11(%arg0: i32) -> (i32, i32) {
    %c0_i32 = arith.constant 0 : i32
    %c0_i32_0 = arith.constant 0 : i32
    return %arg0, %c0_i32 : i32, i32
  }
}

module attributes {stable_mosaic.version = 11 : i64} {
  func.func @encoder_kernel(%arg0: i32, %arg1: memref<2x1024xf32, #tpu.memory_space<vmem>>, %arg2: memref<1024x512xbf16, #tpu.memory_space<vmem>>, %arg3: memref<1x512xf32, #tpu.memory_space<vmem>>, %arg4: memref<512x512xbf16, #tpu.memory_space<vmem>>, %arg5: memref<1x512xf32, #tpu.memory_space<vmem>>, %arg6: memref<512x256xbf16, #tpu.memory_space<vmem>>, %arg7: memref<1x256xf32, #tpu.memory_space<vmem>>, %arg8: memref<256x256xbf16, #tpu.memory_space<vmem>>, %arg9: memref<1x256xf32, #tpu.memory_space<vmem>>, %arg10: memref<256x32xbf16, #tpu.memory_space<vmem>>, %arg11: memref<1x32xf32, #tpu.memory_space<vmem>>, %arg12: memref<2x32xf32, #tpu.memory_space<vmem>>) attributes {dimension_semantics = [#tpu.dimension_semantics<parallel>], iteration_bounds = array<i64: 1>, scalar_prefetch = 0 : i64, scratch_operands = 0 : i64, tpu.core_type = #tpu.core_type<tc>, window_params = [{transform_indices = @transform_0, window_bounds = array<i64: 2, 1024>}, {pipeline_mode = #tpu.pipeline_mode<synchronous>, transform_indices = @transform_1, window_bounds = array<i64: 1024, 512>}, {pipeline_mode = #tpu.pipeline_mode<synchronous>, transform_indices = @transform_2, window_bounds = array<i64: 1, 512>}, {pipeline_mode = #tpu.pipeline_mode<synchronous>, transform_indices = @transform_3, window_bounds = array<i64: 512, 512>}, {pipeline_mode = #tpu.pipeline_mode<synchronous>, transform_indices = @transform_4, window_bounds = array<i64: 1, 512>}, {pipeline_mode = #tpu.pipeline_mode<synchronous>, transform_indices = @transform_5, window_bounds = array<i64: 512, 256>}, {pipeline_mode = #tpu.pipeline_mode<synchronous>, transform_indices = @transform_6, window_bounds = array<i64: 1, 256>}, {pipeline_mode = #tpu.pipeline_mode<synchronous>, transform_indices = @transform_7, window_bounds = array<i64: 256, 256>}, {pipeline_mode = #tpu.pipeline_mode<synchronous>, transform_indices = @transform_8, window_bounds = array<i64: 1, 256>}, {pipeline_mode = #tpu.pipeline_mode<synchronous>, transform_indices = @transform_9, window_bounds = array<i64: 256, 32>}, {pipeline_mode = #tpu.pipeline_mode<synchronous>, transform_indices = @transform_10, window_bounds = array<i64: 1, 32>}, {transform_indices = @transform_11, window_bounds = array<i64: 2, 32>}]} {
    %c0 = arith.constant 0 : index
    %c0_0 = arith.constant 0 : index
    %0 = vector.load %arg1[%c0, %c0_0] : memref<2x1024xf32, #tpu.memory_space<vmem>>, vector<2x1024xf32>
    %1 = arith.truncf %0 : vector<2x1024xf32> to vector<2x1024xbf16>
    %c0_1 = arith.constant 0 : index
    %c0_2 = arith.constant 0 : index
    %2 = vector.load %arg2[%c0_1, %c0_2] : memref<1024x512xbf16, #tpu.memory_space<vmem>>, vector<1024x512xbf16>
    %cst = arith.constant dense<0.000000e+00> : vector<2x512xf32>
    %3 = tpu.matmul %1, %2, %cst {dimension_numbers = #tpu.dot_dimension_numbers<[1], [0], [0], [1], [0, 0, 1, 1], [], []>} : vector<2x1024xbf16>, vector<1024x512xbf16>, vector<2x512xf32> -> vector<2x512xf32>
    %c0_3 = arith.constant 0 : index
    %c0_4 = arith.constant 0 : index
    %4 = vector.load %arg3[%c0_3, %c0_4] : memref<1x512xf32, #tpu.memory_space<vmem>>, vector<1x512xf32>
    %5 = vector.broadcast %4 : vector<1x512xf32> to vector<2x512xf32>
    %6 = arith.addf %3, %5 : vector<2x512xf32>
    %cst_5 = arith.constant 5.000000e-01 : f32
    %7 = vector.broadcast %cst_5 : f32 to vector<2x512xf32>
    %8 = arith.mulf %7, %6 : vector<2x512xf32>
    %cst_6 = arith.constant 4.471500e-02 : f32
    %9 = vector.broadcast %cst_6 : f32 to vector<2x512xf32>
    %10 = arith.mulf %9, %6 : vector<2x512xf32>
    %11 = arith.mulf %10, %6 : vector<2x512xf32>
    %12 = arith.mulf %11, %6 : vector<2x512xf32>
    %13 = arith.addf %6, %12 : vector<2x512xf32>
    %cst_7 = arith.constant 0.797884583 : f32
    %14 = vector.broadcast %cst_7 : f32 to vector<2x512xf32>
    %15 = arith.mulf %14, %13 : vector<2x512xf32>
    %16 = math.tanh %15 : vector<2x512xf32>
    %cst_8 = arith.constant 1.000000e+00 : f32
    %17 = vector.broadcast %cst_8 : f32 to vector<2x512xf32>
    %18 = arith.addf %17, %16 : vector<2x512xf32>
    %19 = arith.mulf %8, %18 : vector<2x512xf32>
    %20 = arith.truncf %19 : vector<2x512xf32> to vector<2x512xbf16>
    %c0_9 = arith.constant 0 : index
    %c0_10 = arith.constant 0 : index
    %21 = vector.load %arg4[%c0_9, %c0_10] : memref<512x512xbf16, #tpu.memory_space<vmem>>, vector<512x512xbf16>
    %cst_11 = arith.constant dense<0.000000e+00> : vector<2x512xf32>
    %22 = tpu.matmul %20, %21, %cst_11 {dimension_numbers = #tpu.dot_dimension_numbers<[1], [0], [0], [1], [0, 0, 1, 1], [], []>} : vector<2x512xbf16>, vector<512x512xbf16>, vector<2x512xf32> -> vector<2x512xf32>
    %c0_12 = arith.constant 0 : index
    %c0_13 = arith.constant 0 : index
    %23 = vector.load %arg5[%c0_12, %c0_13] : memref<1x512xf32, #tpu.memory_space<vmem>>, vector<1x512xf32>
    %24 = vector.broadcast %23 : vector<1x512xf32> to vector<2x512xf32>
    %25 = arith.addf %22, %24 : vector<2x512xf32>
    %cst_14 = arith.constant 5.000000e-01 : f32
    %26 = vector.broadcast %cst_14 : f32 to vector<2x512xf32>
    %27 = arith.mulf %26, %25 : vector<2x512xf32>
    %cst_15 = arith.constant 4.471500e-02 : f32
    %28 = vector.broadcast %cst_15 : f32 to vector<2x512xf32>
    %29 = arith.mulf %28, %25 : vector<2x512xf32>
    %30 = arith.mulf %29, %25 : vector<2x512xf32>
    %31 = arith.mulf %30, %25 : vector<2x512xf32>
    %32 = arith.addf %25, %31 : vector<2x512xf32>
    %cst_16 = arith.constant 0.797884583 : f32
    %33 = vector.broadcast %cst_16 : f32 to vector<2x512xf32>
    %34 = arith.mulf %33, %32 : vector<2x512xf32>
    %35 = math.tanh %34 : vector<2x512xf32>
    %cst_17 = arith.constant 1.000000e+00 : f32
    %36 = vector.broadcast %cst_17 : f32 to vector<2x512xf32>
    %37 = arith.addf %36, %35 : vector<2x512xf32>
    %38 = arith.mulf %27, %37 : vector<2x512xf32>
    %39 = arith.truncf %38 : vector<2x512xf32> to vector<2x512xbf16>
    %c0_18 = arith.constant 0 : index
    %c0_19 = arith.constant 0 : index
    %40 = vector.load %arg6[%c0_18, %c0_19] : memref<512x256xbf16, #tpu.memory_space<vmem>>, vector<512x256xbf16>
    %cst_20 = arith.constant dense<0.000000e+00> : vector<2x256xf32>
    %41 = tpu.matmul %39, %40, %cst_20 {dimension_numbers = #tpu.dot_dimension_numbers<[1], [0], [0], [1], [0, 0, 1, 1], [], []>} : vector<2x512xbf16>, vector<512x256xbf16>, vector<2x256xf32> -> vector<2x256xf32>
    %c0_21 = arith.constant 0 : index
    %c0_22 = arith.constant 0 : index
    %42 = vector.load %arg7[%c0_21, %c0_22] : memref<1x256xf32, #tpu.memory_space<vmem>>, vector<1x256xf32>
    %43 = vector.broadcast %42 : vector<1x256xf32> to vector<2x256xf32>
    %44 = arith.addf %41, %43 : vector<2x256xf32>
    %cst_23 = arith.constant 5.000000e-01 : f32
    %45 = vector.broadcast %cst_23 : f32 to vector<2x256xf32>
    %46 = arith.mulf %45, %44 : vector<2x256xf32>
    %cst_24 = arith.constant 4.471500e-02 : f32
    %47 = vector.broadcast %cst_24 : f32 to vector<2x256xf32>
    %48 = arith.mulf %47, %44 : vector<2x256xf32>
    %49 = arith.mulf %48, %44 : vector<2x256xf32>
    %50 = arith.mulf %49, %44 : vector<2x256xf32>
    %51 = arith.addf %44, %50 : vector<2x256xf32>
    %cst_25 = arith.constant 0.797884583 : f32
    %52 = vector.broadcast %cst_25 : f32 to vector<2x256xf32>
    %53 = arith.mulf %52, %51 : vector<2x256xf32>
    %54 = math.tanh %53 : vector<2x256xf32>
    %cst_26 = arith.constant 1.000000e+00 : f32
    %55 = vector.broadcast %cst_26 : f32 to vector<2x256xf32>
    %56 = arith.addf %55, %54 : vector<2x256xf32>
    %57 = arith.mulf %46, %56 : vector<2x256xf32>
    %58 = arith.truncf %57 : vector<2x256xf32> to vector<2x256xbf16>
    %c0_27 = arith.constant 0 : index
    %c0_28 = arith.constant 0 : index
    %59 = vector.load %arg8[%c0_27, %c0_28] : memref<256x256xbf16, #tpu.memory_space<vmem>>, vector<256x256xbf16>
    %cst_29 = arith.constant dense<0.000000e+00> : vector<2x256xf32>
    %60 = tpu.matmul %58, %59, %cst_29 {dimension_numbers = #tpu.dot_dimension_numbers<[1], [0], [0], [1], [0, 0, 1, 1], [], []>} : vector<2x256xbf16>, vector<256x256xbf16>, vector<2x256xf32> -> vector<2x256xf32>
    %c0_30 = arith.constant 0 : index
    %c0_31 = arith.constant 0 : index
    %61 = vector.load %arg9[%c0_30, %c0_31] : memref<1x256xf32, #tpu.memory_space<vmem>>, vector<1x256xf32>
    %62 = vector.broadcast %61 : vector<1x256xf32> to vector<2x256xf32>
    %63 = arith.addf %60, %62 : vector<2x256xf32>
    %cst_32 = arith.constant 5.000000e-01 : f32
    %64 = vector.broadcast %cst_32 : f32 to vector<2x256xf32>
    %65 = arith.mulf %64, %63 : vector<2x256xf32>
    %cst_33 = arith.constant 4.471500e-02 : f32
    %66 = vector.broadcast %cst_33 : f32 to vector<2x256xf32>
    %67 = arith.mulf %66, %63 : vector<2x256xf32>
    %68 = arith.mulf %67, %63 : vector<2x256xf32>
    %69 = arith.mulf %68, %63 : vector<2x256xf32>
    %70 = arith.addf %63, %69 : vector<2x256xf32>
    %cst_34 = arith.constant 0.797884583 : f32
    %71 = vector.broadcast %cst_34 : f32 to vector<2x256xf32>
    %72 = arith.mulf %71, %70 : vector<2x256xf32>
    %73 = math.tanh %72 : vector<2x256xf32>
    %cst_35 = arith.constant 1.000000e+00 : f32
    %74 = vector.broadcast %cst_35 : f32 to vector<2x256xf32>
    %75 = arith.addf %74, %73 : vector<2x256xf32>
    %76 = arith.mulf %65, %75 : vector<2x256xf32>
    %77 = arith.truncf %76 : vector<2x256xf32> to vector<2x256xbf16>
    %c0_36 = arith.constant 0 : index
    %c0_37 = arith.constant 0 : index
    %78 = vector.load %arg10[%c0_36, %c0_37] : memref<256x32xbf16, #tpu.memory_space<vmem>>, vector<256x32xbf16>
    %cst_38 = arith.constant dense<0.000000e+00> : vector<2x32xf32>
    %79 = tpu.matmul %77, %78, %cst_38 {dimension_numbers = #tpu.dot_dimension_numbers<[1], [0], [0], [1], [0, 0, 1, 1], [], []>} : vector<2x256xbf16>, vector<256x32xbf16>, vector<2x32xf32> -> vector<2x32xf32>
    %c0_39 = arith.constant 0 : index
    %c0_40 = arith.constant 0 : index
    %80 = vector.load %arg11[%c0_39, %c0_40] : memref<1x32xf32, #tpu.memory_space<vmem>>, vector<1x32xf32>
    %81 = vector.broadcast %80 : vector<1x32xf32> to vector<2x32xf32>
    %82 = arith.addf %79, %81 : vector<2x32xf32>
    %c0_41 = arith.constant 0 : index
    %c0_42 = arith.constant 0 : index
    %83 = vector.load %arg12[%c0_41, %c0_42] : memref<2x32xf32, #tpu.memory_space<vmem>>, vector<2x32xf32>
    tpu.vector_store %arg12[%c0_41, %c0_42], %82 {strides = array<i32>} : memref<2x32xf32, #tpu.memory_space<vmem>>, vector<2x32xf32>,
    return
  }
  func.func @transform_0(%arg0: i32) -> (i32, i32) {
    %c0_i32 = arith.constant 0 : i32
    %c0_i32_0 = arith.constant 0 : i32
    return %arg0, %c0_i32 : i32, i32
  }
  func.func @transform_1(%arg0: i32) -> (i32, i32) {
    %c0_i32 = arith.constant 0 : i32
    %c0_i32_0 = arith.constant 0 : i32
    %c0_i32_1 = arith.constant 0 : i32
    return %c0_i32, %c0_i32_0 : i32, i32
  }
  func.func @transform_2(%arg0: i32) -> (i32, i32) {
    %c0_i32 = arith.constant 0 : i32
    %c0_i32_0 = arith.constant 0 : i32
    %c0_i32_1 = arith.constant 0 : i32
    return %c0_i32, %c0_i32_0 : i32, i32
  }
  func.func @transform_3(%arg0: i32) -> (i32, i32) {
    %c0_i32 = arith.constant 0 : i32
    %c0_i32_0 = arith.constant 0 : i32
    %c0_i32_1 = arith.constant 0 : i32
    return %c0_i32, %c0_i32_0 : i32, i32
  }
  func.func @transform_4(%arg0: i32) -> (i32, i32) {
    %c0_i32 = arith.constant 0 : i32
    %c0_i32_0 = arith.constant 0 : i32
    %c0_i32_1 = arith.constant 0 : i32
    return %c0_i32, %c0_i32_0 : i32, i32
  }
  func.func @transform_5(%arg0: i32) -> (i32, i32) {
    %c0_i32 = arith.constant 0 : i32
    %c0_i32_0 = arith.constant 0 : i32
    %c0_i32_1 = arith.constant 0 : i32
    return %c0_i32, %c0_i32_0 : i32, i32
  }
  func.func @transform_6(%arg0: i32) -> (i32, i32) {
    %c0_i32 = arith.constant 0 : i32
    %c0_i32_0 = arith.constant 0 : i32
    %c0_i32_1 = arith.constant 0 : i32
    return %c0_i32, %c0_i32_0 : i32, i32
  }
  func.func @transform_7(%arg0: i32) -> (i32, i32) {
    %c0_i32 = arith.constant 0 : i32
    %c0_i32_0 = arith.constant 0 : i32
    %c0_i32_1 = arith.constant 0 : i32
    return %c0_i32, %c0_i32_0 : i32, i32
  }
  func.func @transform_8(%arg0: i32) -> (i32, i32) {
    %c0_i32 = arith.constant 0 : i32
    %c0_i32_0 = arith.constant 0 : i32
    %c0_i32_1 = arith.constant 0 : i32
    return %c0_i32, %c0_i32_0 : i32, i32
  }
  func.func @transform_9(%arg0: i32) -> (i32, i32) {
    %c0_i32 = arith.constant 0 : i32
    %c0_i32_0 = arith.constant 0 : i32
    %c0_i32_1 = arith.constant 0 : i32
    return %c0_i32, %c0_i32_0 : i32, i32
  }
  func.func @transform_10(%arg0: i32) -> (i32, i32) {
    %c0_i32 = arith.constant 0 : i32
    %c0_i32_0 = arith.constant 0 : i32
    %c0_i32_1 = arith.constant 0 : i32
    return %c0_i32, %c0_i32_0 : i32, i32
  }
  func.func @transform_11(%arg0: i32) -> (i32, i32) {
    %c0_i32 = arith.constant 0 : i32
    %c0_i32_0 = arith.constant 0 : i32
    return %arg0, %c0_i32 : i32, i32
  }
}

</mosaic_0001>

<llo_original>
// kernel: local_conv_encoder.1
$region0: #{local_conv_encoder.1}
  #allocation0 [shape = 'u32[]', space=smem, size = 0x4, offset = 0x4, fixed_abs, tag = 'smem constant byte address 0x4 - core index']
  #allocation1 [shape = 'u32[144,128]{1,0:T(1,128)}', space=vmem, size = 0x12000, scoped, tag = 'internal scratch']
  %s0 = inlined_call_operand.vmem [shape: f32[2,1024], index: 0, kind: input, shape index: {}]
  %s1 = inlined_call_operand.hbm [shape: bf16[1024,512], index: 1, kind: input, shape index: {}]
  %s2 = inlined_call_operand.vmem [shape: f32[1,512], index: 2, kind: input, shape index: {}]
  %s3 = inlined_call_operand.vmem [shape: bf16[512,512], index: 3, kind: input, shape index: {}]
  %s4 = inlined_call_operand.vmem [shape: f32[1,512], index: 4, kind: input, shape index: {}]
  %s5 = inlined_call_operand.hbm [shape: bf16[512,256], index: 5, kind: input, shape index: {}]
  %s6 = inlined_call_operand.vmem [shape: f32[1,256], index: 6, kind: input, shape index: {}]
  %s7 = inlined_call_operand.vmem [shape: bf16[256,256], index: 7, kind: input, shape index: {}]
  %s8 = inlined_call_operand.vmem [shape: f32[1,256], index: 8, kind: input, shape index: {}]
  %s9 = inlined_call_operand.vmem [shape: bf16[256,32], index: 9, kind: input, shape index: {}]
  %s10 = inlined_call_operand.vmem [shape: f32[1,32], index: 10, kind: input, shape index: {}]
  %s11 = inlined_call_operand.hbm [shape: f32[2,32], index: 11, kind: output, shape index: {}]
  %s12 = sld [smem:[#allocation0]]
  $region62: #{local_conv_encoder.1} parent=0
    _
  %s14 = ssub.s32 1, %s12
  %s15 = scalar_select 0, %s14, %s12
  $region1: #{local_conv_encoder.1} parent=0
    #allocation2 [shape = 'u8[1048576]{0}', space=vmem, size = 0x100000, scoped, tag = 'input window, operand 1, single buffered']
    #allocation3 [shape = 's32[1]{0}', space=sflag, size = 0x4, scoped, tag = 'scoped memory for local_conv_encoder.1']
    #allocation4 [shape = 's32[1]{0}', space=sflag, size = 0x4, scoped, tag = 'scoped memory for local_conv_encoder.1']
    #allocation5 [shape = 'u8[262144]{0}', space=vmem, size = 0x40000, scoped, tag = 'input window, operand 5, single buffered']
    #allocation6 [shape = 's32[1]{0}', space=sflag, size = 0x4, scoped, tag = 'scoped memory for local_conv_encoder.1']
    #allocation7 [shape = 'u8[1024]{0}', space=vmem, size = 0x400, scoped, tag = 'output window, operand 0, single buffered']
    %16 = vsyncpa [#allocation3], 0
    %17 = vsyncpa [#allocation6], 0
    %18 = vsyncpa [#allocation4], 0
    // Predicated region
    $region2: #{local_conv_encoder.1} parent=1 // pred_check
      _
    $region3: #{local_conv_encoder.1} parent=1 // pred_check_branch
      %20 = sbr.rel (0) target = $region5
    $region4: #{local_conv_encoder.1} parent=1 // pred_region
      _
    $region5: #{local_conv_encoder.1} parent=1 // pred_fallthru
      _
    // Predicated region
    $region6: #{local_conv_encoder.1} parent=1 // pred_check
      _
    $region7: #{local_conv_encoder.1} parent=1 // pred_check_branch
      %22 = sbr.rel (0) target = $region9
    $region8: #{local_conv_encoder.1} parent=1 // pred_region
      %s24 = ssub.s32 32768, 32768
      %25 = vsyncadd [#allocation3], %s24
      %s26 = sshll.u32 [#allocation2], 4
      %s27 = int_to_ptr.vmem [resolvable:$true] %s26
      %32 = dma.hbm_to_vmem [thread:$0]  %s1, 32768, %s27, [#allocation3], 256, 256, 16
    $region9: #{local_conv_encoder.1} parent=1 // pred_fallthru
      _
    // Predicated region
    $region10: #{local_conv_encoder.1} parent=1 // pred_check
      _
    $region11: #{local_conv_encoder.1} parent=1 // pred_check_branch
      %34 = sbr.rel (0) target = $region13
    $region12: #{local_conv_encoder.1} parent=1 // pred_region
      _
    $region13: #{local_conv_encoder.1} parent=1 // pred_fallthru
      _
    // Predicated region
    $region14: #{local_conv_encoder.1} parent=1 // pred_check
      _
    $region15: #{local_conv_encoder.1} parent=1 // pred_check_branch
      %36 = sbr.rel (0) target = $region17
    $region16: #{local_conv_encoder.1} parent=1 // pred_region
      _
    $region17: #{local_conv_encoder.1} parent=1 // pred_fallthru
      _
    // Predicated region
    $region18: #{local_conv_encoder.1} parent=1 // pred_check
      _
    $region19: #{local_conv_encoder.1} parent=1 // pred_check_branch
      %38 = sbr.rel (0) target = $region21
    $region20: #{local_conv_encoder.1} parent=1 // pred_region
      _
    $region21: #{local_conv_encoder.1} parent=1 // pred_fallthru
      _
    // Predicated region
    $region22: #{local_conv_encoder.1} parent=1 // pred_check
      _
    $region23: #{local_conv_encoder.1} parent=1 // pred_check_branch
      %40 = sbr.rel (0) target = $region25
    $region24: #{local_conv_encoder.1} parent=1 // pred_region
      %s42 = ssub.s32 8192, 8192
      %43 = vsyncadd [#allocation6], %s42
      %s44 = sshll.u32 [#allocation5], 4
      %s45 = int_to_ptr.vmem [resolvable:$true] %s44
      %50 = dma.hbm_to_vmem [thread:$0]  %s5, 8192, %s45, [#allocation6], 128, 128, 8
    $region25: #{local_conv_encoder.1} parent=1 // pred_fallthru
      _
    // Predicated region
    $region26: #{local_conv_encoder.1} parent=1 // pred_check
      _
    $region27: #{local_conv_encoder.1} parent=1 // pred_check_branch
      %52 = sbr.rel (0) target = $region29
    $region28: #{local_conv_encoder.1} parent=1 // pred_region
      _
    $region29: #{local_conv_encoder.1} parent=1 // pred_fallthru
      _
    // Predicated region
    $region30: #{local_conv_encoder.1} parent=1 // pred_check
      _
    $region31: #{local_conv_encoder.1} parent=1 // pred_check_branch
      %54 = sbr.rel (0) target = $region33
    $region32: #{local_conv_encoder.1} parent=1 // pred_region
      _
    $region33: #{local_conv_encoder.1} parent=1 // pred_fallthru
      _
    // Predicated region
    $region34: #{local_conv_encoder.1} parent=1 // pred_check
      _
    $region35: #{local_conv_encoder.1} parent=1 // pred_check_branch
      %56 = sbr.rel (0) target = $region37
    $region36: #{local_conv_encoder.1} parent=1 // pred_region
      _
    $region37: #{local_conv_encoder.1} parent=1 // pred_fallthru
      _
    // Predicated region
    $region38: #{local_conv_encoder.1} parent=1 // pred_check
      _
    $region39: #{local_conv_encoder.1} parent=1 // pred_check_branch
      %58 = sbr.rel (0) target = $region41
    $region40: #{local_conv_encoder.1} parent=1 // pred_region
      _
    $region41: #{local_conv_encoder.1} parent=1 // pred_fallthru
      _
    // Predicated region
    $region42: #{local_conv_encoder.1} parent=1 // pred_check
      _
    $region43: #{local_conv_encoder.1} parent=1 // pred_check_branch
      %60 = sbr.rel (0) target = $region45
    $region44: #{local_conv_encoder.1} parent=1 // pred_region
      _
    $region45: #{local_conv_encoder.1} parent=1 // pred_fallthru
      _
    // Predicated region
    $region46: #{local_conv_encoder.1} parent=1 // pred_check
      _
    $region47: #{local_conv_encoder.1} parent=1 // pred_check_branch
      %62 = sbr.rel (0) target = $region49
    $region48: #{local_conv_encoder.1} parent=1 // pred_region
      %63 = dma.done [#allocation3], 32768
    $region49: #{local_conv_encoder.1} parent=1 // pred_fallthru
      _
    // Predicated region
    $region50: #{local_conv_encoder.1} parent=1 // pred_check
      _
    $region51: #{local_conv_encoder.1} parent=1 // pred_check_branch
      %65 = sbr.rel (0) target = $region53
    $region52: #{local_conv_encoder.1} parent=1 // pred_region
      %66 = dma.done [#allocation6], 8192
    $region53: #{local_conv_encoder.1} parent=1 // pred_fallthru
      _
    %v68 = vld [vmem:[%s0] sm:$0xff]
    %v69 = vld [vmem:[%s0 + $0x8] sm:$0xff]
    %v72 = vcombine.high %v68, %v68
    %v74 = vunpack.c.l.s4 1983009808
    %v75 = vunpack.c.0.s8 %v74
    %v76 = vlaneseq
    %v77 = vshrl.u32 %v76, 7
    %v78 = vsub.s32 %v75, %v77
    %v79 = vrot.slane %v68, %v78
    %v81 = vunpack.c.l.s4 1983009808
    %v82 = vunpack.c.0.s8 %v81
    %v83 = vlaneseq
    %v84 = vshrl.u32 %v83, 7
    %v85 = vsub.s32 %v82, %v84
    %v86 = vrot.slane %v72, %v85
    %v87 = vcombine.high %v79, %v79
    %v88 = vcombine.high %v86, %v86
    %v89 = vcombine.high %v69, %v69
    %v91 = vunpack.c.l.s4 1983009808
    %v92 = vunpack.c.0.s8 %v91
    %v93 = vlaneseq
    %v94 = vshrl.u32 %v93, 7
    %v95 = vsub.s32 %v92, %v94
    %v96 = vrot.slane %v69, %v95
    %v98 = vunpack.c.l.s4 1983009808
    %v99 = vunpack.c.0.s8 %v98
    %v100 = vlaneseq
    %v101 = vshrl.u32 %v100, 7
    %v102 = vsub.s32 %v99, %v101
    %v103 = vrot.slane %v89, %v102
    %v104 = vcombine.high %v96, %v96
    %v105 = vcombine.high %v103, %v103
    %v114 = vpack.c.bf16 %v79, %v79
    %v115 = vpack.c.bf16 %v87, %v87
    %v116 = vpack.c.bf16 %v86, %v86
    %v117 = vpack.c.bf16 %v88, %v88
    %v118 = vpack.c.bf16 %v96, %v96
    %v119 = vpack.c.bf16 %v104, %v104
    %v120 = vpack.c.bf16 %v103, %v103
    %v121 = vpack.c.bf16 %v105, %v105
    %v122 = vld [vmem:[#allocation2] sm:$0xff]
    %v123 = vld [vmem:[#allocation2 + $0x8] sm:$0xff]
    %v124 = vld [vmem:[#allocation2 + $0x10] sm:$0xff]
    %v125 = vld [vmem:[#allocation2 + $0x18] sm:$0xff]
    %v126 = vld [vmem:[#allocation2 + $0x20] sm:$0xff]
    %v127 = vld [vmem:[#allocation2 + $0x28] sm:$0xff]
    %v128 = vld [vmem:[#allocation2 + $0x30] sm:$0xff]
    %v129 = vld [vmem:[#allocation2 + $0x38] sm:$0xff]
    %v130 = vld [vmem:[#allocation2 + $0x40] sm:$0xff]
    %v131 = vld [vmem:[#allocation2 + $0x48] sm:$0xff]
    %v132 = vld [vmem:[#allocation2 + $0x50] sm:$0xff]
    %v133 = vld [vmem:[#allocation2 + $0x58] sm:$0xff]
    %v134 = vld [vmem:[#allocation2 + $0x60] sm:$0xff]
    %v135 = vld [vmem:[#allocation2 + $0x68] sm:$0xff]
    %v136 = vld [vmem:[#allocation2 + $0x70] sm:$0xff]
    %v137 = vld [vmem:[#allocation2 + $0x78] sm:$0xff]
    %v138 = vld [vmem:[#allocation2 + $0x80] sm:$0xff]
    %v139 = vld [vmem:[#allocation2 + $0x88] sm:$0xff]
    %v140 = vld [vmem:[#allocation2 + $0x90] sm:$0xff]
    %v141 = vld [vmem:[#allocation2 + $0x98] sm:$0xff]
    %v142 = vld [vmem:[#allocation2 + $0xa0] sm:$0xff]
    %v143 = vld [vmem:[#allocation2 + $0xa8] sm:$0xff]
    %v144 = vld [vmem:[#allocation2 + $0xb0] sm:$0xff]
    %v145 = vld [vmem:[#allocation2 + $0xb8] sm:$0xff]
    %v146 = vld [vmem:[#allocation2 + $0xc0] sm:$0xff]
    %v147 = vld [vmem:[#allocation2 + $0xc8] sm:$0xff]
    %v148 = vld [vmem:[#allocation2 + $0xd0] sm:$0xff]
    %v149 = vld [vmem:[#allocation2 + $0xd8] sm:$0xff]
    %v150 = vld [vmem:[#allocation2 + $0xe0] sm:$0xff]
    %v151 = vld [vmem:[#allocation2 + $0xe8] sm:$0xff]
    %v152 = vld [vmem:[#allocation2 + $0xf0] sm:$0xff]
    %v153 = vld [vmem:[#allocation2 + $0xf8] sm:$0xff]
    %v154 = vld [vmem:[#allocation2 + $0x100] sm:$0xff]
    %v155 = vld [vmem:[#allocation2 + $0x108] sm:$0xff]
    %v156 = vld [vmem:[#allocation2 + $0x110] sm:$0xff]
    %v157 = vld [vmem:[#allocation2 + $0x118] sm:$0xff]
    %v158 = vld [vmem:[#allocation2 + $0x120] sm:$0xff]
    %v159 = vld [vmem:[#allocation2 + $0x128] sm:$0xff]
    %v160 = vld [vmem:[#allocation2 + $0x130] sm:$0xff]
    %v161 = vld [vmem:[#allocation2 + $0x138] sm:$0xff]
    %v162 = vld [vmem:[#allocation2 + $0x140] sm:$0xff]
    %v163 = vld [vmem:[#allocation2 + $0x148] sm:$0xff]
    %v164 = vld [vmem:[#allocation2 + $0x150] sm:$0xff]
    %v165 = vld [vmem:[#allocation2 + $0x158] sm:$0xff]
    %v166 = vld [vmem:[#allocation2 + $0x160] sm:$0xff]
    %v167 = vld [vmem:[#allocation2 + $0x168] sm:$0xff]
    %v168 = vld [vmem:[#allocation2 + $0x170] sm:$0xff]
    %v169 = vld [vmem:[#allocation2 + $0x178] sm:$0xff]
    %v170 = vld [vmem:[#allocation2 + $0x180] sm:$0xff]
    %v171 = vld [vmem:[#allocation2 + $0x188] sm:$0xff]
    %v172 = vld [vmem:[#allocation2 + $0x190] sm:$0xff]
    %v173 = vld [vmem:[#allocation2 + $0x198] sm:$0xff]
    %v174 = vld [vmem:[#allocation2 + $0x1a0] sm:$0xff]
    %v175 = vld [vmem:[#allocation2 + $0x1a8] sm:$0xff]
    %v176 = vld [vmem:[#allocation2 + $0x1b0] sm:$0xff]
    %v177 = vld [vmem:[#allocation2 + $0x1b8] sm:$0xff]
    %v178 = vld [vmem:[#allocation2 + $0x1c0] sm:$0xff]
    %v179 = vld [vmem:[#allocation2 + $0x1c8] sm:$0xff]
    %v180 = vld [vmem:[#allocation2 + $0x1d0] sm:$0xff]
    %v181 = vld [vmem:[#allocation2 + $0x1d8] sm:$0xff]
    %v182 = vld [vmem:[#allocation2 + $0x1e0] sm:$0xff]
    %v183 = vld [vmem:[#allocation2 + $0x1e8] sm:$0xff]
    %v184 = vld [vmem:[#allocation2 + $0x1f0] sm:$0xff]
    %v185 = vld [vmem:[#allocation2 + $0x1f8] sm:$0xff]
    %v186 = vld [vmem:[#allocation2 + $0x200] sm:$0xff]
    %v187 = vld [vmem:[#allocation2 + $0x208] sm:$0xff]
    %v188 = vld [vmem:[#allocation2 + $0x210] sm:$0xff]
    %v189 = vld [vmem:[#allocation2 + $0x218] sm:$0xff]
    %v190 = vld [vmem:[#allocation2 + $0x220] sm:$0xff]
    %v191 = vld [vmem:[#allocation2 + $0x228] sm:$0xff]
    %v192 = vld [vmem:[#allocation2 + $0x230] sm:$0xff]
    %v193 = vld [vmem:[#allocation2 + $0x238] sm:$0xff]
    %v194 = vld [vmem:[#allocation2 + $0x240] sm:$0xff]
    %v195 = vld [vmem:[#allocation2 + $0x248] sm:$0xff]
    %v196 = vld [vmem:[#allocation2 + $0x250] sm:$0xff]
    %v197 = vld [vmem:[#allocation2 + $0x258] sm:$0xff]
    %v198 = vld [vmem:[#allocation2 + $0x260] sm:$0xff]
    %v199 = vld [vmem:[#allocation2 + $0x268] sm:$0xff]
    %v200 = vld [vmem:[#allocation2 + $0x270] sm:$0xff]
    %v201 = vld [vmem:[#allocation2 + $0x278] sm:$0xff]
    %v202 = vld [vmem:[#allocation2 + $0x280] sm:$0xff]
    %v203 = vld [vmem:[#allocation2 + $0x288] sm:$0xff]
    %v204 = vld [vmem:[#allocation2 + $0x290] sm:$0xff]
    %v205 = vld [vmem:[#allocation2 + $0x298] sm:$0xff]
    %v206 = vld [vmem:[#allocation2 + $0x2a0] sm:$0xff]
    %v207 = vld [vmem:[#allocation2 + $0x2a8] sm:$0xff]
    %v208 = vld [vmem:[#allocation2 + $0x2b0] sm:$0xff]
    %v209 = vld [vmem:[#allocation2 + $0x2b8] sm:$0xff]
    %v210 = vld [vmem:[#allocation2 + $0x2c0] sm:$0xff]
    %v211 = vld [vmem:[#allocation2 + $0x2c8] sm:$0xff]
    %v212 = vld [vmem:[#allocation2 + $0x2d0] sm:$0xff]
    %v213 = vld [vmem:[#allocation2 + $0x2d8] sm:$0xff]
    %v214 = vld [vmem:[#allocation2 + $0x2e0] sm:$0xff]
    %v215 = vld [vmem:[#allocation2 + $0x2e8] sm:$0xff]
    %v216 = vld [vmem:[#allocation2 + $0x2f0] sm:$0xff]
    %v217 = vld [vmem:[#allocation2 + $0x2f8] sm:$0xff]
    %v218 = vld [vmem:[#allocation2 + $0x300] sm:$0xff]
    %v219 = vld [vmem:[#allocation2 + $0x308] sm:$0xff]
    %v220 = vld [vmem:[#allocation2 + $0x310] sm:$0xff]
    %v221 = vld [vmem:[#allocation2 + $0x318] sm:$0xff]
    %v222 = vld [vmem:[#allocation2 + $0x320] sm:$0xff]
    %v223 = vld [vmem:[#allocation2 + $0x328] sm:$0xff]
    %v224 = vld [vmem:[#allocation2 + $0x330] sm:$0xff]
    %v225 = vld [vmem:[#allocation2 + $0x338] sm:$0xff]
    %v226 = vld [vmem:[#allocation2 + $0x340] sm:$0xff]
    %v227 = vld [vmem:[#allocation2 + $0x348] sm:$0xff]
    %v228 = vld [vmem:[#allocation2 + $0x350] sm:$0xff]
    %v229 = vld [vmem:[#allocation2 + $0x358] sm:$0xff]
    %v230 = vld [vmem:[#allocation2 + $0x360] sm:$0xff]
    %v231 = vld [vmem:[#allocation2 + $0x368] sm:$0xff]
    %v232 = vld [vmem:[#allocation2 + $0x370] sm:$0xff]
    %v233 = vld [vmem:[#allocation2 + $0x378] sm:$0xff]
    %v234 = vld [vmem:[#allocation2 + $0x380] sm:$0xff]
    %v235 = vld [vmem:[#allocation2 + $0x388] sm:$0xff]
    %v236 = vld [vmem:[#allocation2 + $0x390] sm:$0xff]
    %v237 = vld [vmem:[#allocation2 + $0x398] sm:$0xff]
    %v238 = vld [vmem:[#allocation2 + $0x3a0] sm:$0xff]
    %v239 = vld [vmem:[#allocation2 + $0x3a8] sm:$0xff]
    %v240 = vld [vmem:[#allocation2 + $0x3b0] sm:$0xff]
    %v241 = vld [vmem:[#allocation2 + $0x3b8] sm:$0xff]
    %v242 = vld [vmem:[#allocation2 + $0x3c0] sm:$0xff]
    %v243 = vld [vmem:[#allocation2 + $0x3c8] sm:$0xff]
    %v244 = vld [vmem:[#allocation2 + $0x3d0] sm:$0xff]
    %v245 = vld [vmem:[#allocation2 + $0x3d8] sm:$0xff]
    %v246 = vld [vmem:[#allocation2 + $0x3e0] sm:$0xff]
    %v247 = vld [vmem:[#allocation2 + $0x3e8] sm:$0xff]
    %v248 = vld [vmem:[#allocation2 + $0x3f0] sm:$0xff]
    %v249 = vld [vmem:[#allocation2 + $0x3f8] sm:$0xff]
    %v250 = vld [vmem:[#allocation2 + $0x400] sm:$0xff]
    %v251 = vld [vmem:[#allocation2 + $0x408] sm:$0xff]
    %v252 = vld [vmem:[#allocation2 + $0x410] sm:$0xff]
    %v253 = vld [vmem:[#allocation2 + $0x418] sm:$0xff]
    %v254 = vld [vmem:[#allocation2 + $0x420] sm:$0xff]
    %v255 = vld [vmem:[#allocation2 + $0x428] sm:$0xff]
    %v256 = vld [vmem:[#allocation2 + $0x430] sm:$0xff]
    %v257 = vld [vmem:[#allocation2 + $0x438] sm:$0xff]
    %v258 = vld [vmem:[#allocation2 + $0x440] sm:$0xff]
    %v259 = vld [vmem:[#allocation2 + $0x448] sm:$0xff]
    %v260 = vld [vmem:[#allocation2 + $0x450] sm:$0xff]
    %v261 = vld [vmem:[#allocation2 + $0x458] sm:$0xff]
    %v262 = vld [vmem:[#allocation2 + $0x460] sm:$0xff]
    %v263 = vld [vmem:[#allocation2 + $0x468] sm:$0xff]
    %v264 = vld [vmem:[#allocation2 + $0x470] sm:$0xff]
    %v265 = vld [vmem:[#allocation2 + $0x478] sm:$0xff]
    %v266 = vld [vmem:[#allocation2 + $0x480] sm:$0xff]
    %v267 = vld [vmem:[#allocation2 + $0x488] sm:$0xff]
    %v268 = vld [vmem:[#allocation2 + $0x490] sm:$0xff]
    %v269 = vld [vmem:[#allocation2 + $0x498] sm:$0xff]
    %v270 = vld [vmem:[#allocation2 + $0x4a0] sm:$0xff]
    %v271 = vld [vmem:[#allocation2 + $0x4a8] sm:$0xff]
    %v272 = vld [vmem:[#allocation2 + $0x4b0] sm:$0xff]
    %v273 = vld [vmem:[#allocation2 + $0x4b8] sm:$0xff]
    %v274 = vld [vmem:[#allocation2 + $0x4c0] sm:$0xff]
    %v275 = vld [vmem:[#allocation2 + $0x4c8] sm:$0xff]
    %v276 = vld [vmem:[#allocation2 + $0x4d0] sm:$0xff]
    %v277 = vld [vmem:[#allocation2 + $0x4d8] sm:$0xff]
    %v278 = vld [vmem:[#allocation2 + $0x4e0] sm:$0xff]
    %v279 = vld [vmem:[#allocation2 + $0x4e8] sm:$0xff]
    %v280 = vld [vmem:[#allocation2 + $0x4f0] sm:$0xff]
    %v281 = vld [vmem:[#allocation2 + $0x4f8] sm:$0xff]
    %v282 = vld [vmem:[#allocation2 + $0x500] sm:$0xff]
    %v283 = vld [vmem:[#allocation2 + $0x508] sm:$0xff]
    %v284 = vld [vmem:[#allocation2 + $0x510] sm:$0xff]
    %v285 = vld [vmem:[#allocation2 + $0x518] sm:$0xff]
    %v286 = vld [vmem:[#allocation2 + $0x520] sm:$0xff]
    %v287 = vld [vmem:[#allocation2 + $0x528] sm:$0xff]
    %v288 = vld [vmem:[#allocation2 + $0x530] sm:$0xff]
    %v289 = vld [vmem:[#allocation2 + $0x538] sm:$0xff]
    %v290 = vld [vmem:[#allocation2 + $0x540] sm:$0xff]
    %v291 = vld [vmem:[#allocation2 + $0x548] sm:$0xff]
    %v292 = vld [vmem:[#allocation2 + $0x550] sm:$0xff]
    %v293 = vld [vmem:[#allocation2 + $0x558] sm:$0xff]
    %v294 = vld [vmem:[#allocation2 + $0x560] sm:$0xff]
    %v295 = vld [vmem:[#allocation2 + $0x568] sm:$0xff]
    %v296 = vld [vmem:[#allocation2 + $0x570] sm:$0xff]
    %v297 = vld [vmem:[#allocation2 + $0x578] sm:$0xff]
    %v298 = vld [vmem:[#allocation2 + $0x580] sm:$0xff]
    %v299 = vld [vmem:[#allocation2 + $0x588] sm:$0xff]
    %v300 = vld [vmem:[#allocation2 + $0x590] sm:$0xff]
    %v301 = vld [vmem:[#allocation2 + $0x598] sm:$0xff]
    %v302 = vld [vmem:[#allocation2 + $0x5a0] sm:$0xff]
    %v303 = vld [vmem:[#allocation2 + $0x5a8] sm:$0xff]
    %v304 = vld [vmem:[#allocation2 + $0x5b0] sm:$0xff]
    %v305 = vld [vmem:[#allocation2 + $0x5b8] sm:$0xff]
    %v306 = vld [vmem:[#allocation2 + $0x5c0] sm:$0xff]
    %v307 = vld [vmem:[#allocation2 + $0x5c8] sm:$0xff]
    %v308 = vld [vmem:[#allocation2 + $0x5d0] sm:$0xff]
    %v309 = vld [vmem:[#allocation2 + $0x5d8] sm:$0xff]
    %v310 = vld [vmem:[#allocation2 + $0x5e0] sm:$0xff]
    %v311 = vld [vmem:[#allocation2 + $0x5e8] sm:$0xff]
    %v312 = vld [vmem:[#allocation2 + $0x5f0] sm:$0xff]
    %v313 = vld [vmem:[#allocation2 + $0x5f8] sm:$0xff]
    %v314 = vld [vmem:[#allocation2 + $0x600] sm:$0xff]
    %v315 = vld [vmem:[#allocation2 + $0x608] sm:$0xff]
    %v316 = vld [vmem:[#allocation2 + $0x610] sm:$0xff]
    %v317 = vld [vmem:[#allocation2 + $0x618] sm:$0xff]
    %v318 = vld [vmem:[#allocation2 + $0x620] sm:$0xff]
    %v319 = vld [vmem:[#allocation2 + $0x628] sm:$0xff]
    %v320 = vld [vmem:[#allocation2 + $0x630] sm:$0xff]
    %v321 = vld [vmem:[#allocation2 + $0x638] sm:$0xff]
    %v322 = vld [vmem:[#allocation2 + $0x640] sm:$0xff]
    %v323 = vld [vmem:[#allocation2 + $0x648] sm:$0xff]
    %v324 = vld [vmem:[#allocation2 + $0x650] sm:$0xff]
    %v325 = vld [vmem:[#allocation2 + $0x658] sm:$0xff]
    %v326 = vld [vmem:[#allocation2 + $0x660] sm:$0xff]
    %v327 = vld [vmem:[#allocation2 + $0x668] sm:$0xff]
    %v328 = vld [vmem:[#allocation2 + $0x670] sm:$0xff]
    %v329 = vld [vmem:[#allocation2 + $0x678] sm:$0xff]
    %v330 = vld [vmem:[#allocation2 + $0x680] sm:$0xff]
    %v331 = vld [vmem:[#allocation2 + $0x688] sm:$0xff]
    %v332 = vld [vmem:[#allocation2 + $0x690] sm:$0xff]
    %v333 = vld [vmem:[#allocation2 + $0x698] sm:$0xff]
    %v334 = vld [vmem:[#allocation2 + $0x6a0] sm:$0xff]
    %v335 = vld [vmem:[#allocation2 + $0x6a8] sm:$0xff]
    %v336 = vld [vmem:[#allocation2 + $0x6b0] sm:$0xff]
    %v337 = vld [vmem:[#allocation2 + $0x6b8] sm:$0xff]
    %v338 = vld [vmem:[#allocation2 + $0x6c0] sm:$0xff]
    %v339 = vld [vmem:[#allocation2 + $0x6c8] sm:$0xff]
    %v340 = vld [vmem:[#allocation2 + $0x6d0] sm:$0xff]
    %v341 = vld [vmem:[#allocation2 + $0x6d8] sm:$0xff]
    %v342 = vld [vmem:[#allocation2 + $0x6e0] sm:$0xff]
    %v343 = vld [vmem:[#allocation2 + $0x6e8] sm:$0xff]
    %v344 = vld [vmem:[#allocation2 + $0x6f0] sm:$0xff]
    %v345 = vld [vmem:[#allocation2 + $0x6f8] sm:$0xff]
    %v346 = vld [vmem:[#allocation2 + $0x700] sm:$0xff]
    %v347 = vld [vmem:[#allocation2 + $0x708] sm:$0xff]
    %v348 = vld [vmem:[#allocation2 + $0x710] sm:$0xff]
    %v349 = vld [vmem:[#allocation2 + $0x718] sm:$0xff]
    %v350 = vld [vmem:[#allocation2 + $0x720] sm:$0xff]
    %v351 = vld [vmem:[#allocation2 + $0x728] sm:$0xff]
    %v352 = vld [vmem:[#allocation2 + $0x730] sm:$0xff]
    %v353 = vld [vmem:[#allocation2 + $0x738] sm:$0xff]
    %v354 = vld [vmem:[#allocation2 + $0x740] sm:$0xff]
    %v355 = vld [vmem:[#allocation2 + $0x748] sm:$0xff]
    %v356 = vld [vmem:[#allocation2 + $0x750] sm:$0xff]
    %v357 = vld [vmem:[#allocation2 + $0x758] sm:$0xff]
    %v358 = vld [vmem:[#allocation2 + $0x760] sm:$0xff]
    %v359 = vld [vmem:[#allocation2 + $0x768] sm:$0xff]
    %v360 = vld [vmem:[#allocation2 + $0x770] sm:$0xff]
    %v361 = vld [vmem:[#allocation2 + $0x778] sm:$0xff]
    %v362 = vld [vmem:[#allocation2 + $0x780] sm:$0xff]
    %v363 = vld [vmem:[#allocation2 + $0x788] sm:$0xff]
    %v364 = vld [vmem:[#allocation2 + $0x790] sm:$0xff]
    %v365 = vld [vmem:[#allocation2 + $0x798] sm:$0xff]
    %v366 = vld [vmem:[#allocation2 + $0x7a0] sm:$0xff]
    %v367 = vld [vmem:[#allocation2 + $0x7a8] sm:$0xff]
    %v368 = vld [vmem:[#allocation2 + $0x7b0] sm:$0xff]
    %v369 = vld [vmem:[#allocation2 + $0x7b8] sm:$0xff]
    %v370 = vld [vmem:[#allocation2 + $0x7c0] sm:$0xff]
    %v371 = vld [vmem:[#allocation2 + $0x7c8] sm:$0xff]
    %v372 = vld [vmem:[#allocation2 + $0x7d0] sm:$0xff]
    %v373 = vld [vmem:[#allocation2 + $0x7d8] sm:$0xff]
    %v374 = vld [vmem:[#allocation2 + $0x7e0] sm:$0xff]
    %v375 = vld [vmem:[#allocation2 + $0x7e8] sm:$0xff]
    %v376 = vld [vmem:[#allocation2 + $0x7f0] sm:$0xff]
    %v377 = vld [vmem:[#allocation2 + $0x7f8] sm:$0xff]
    %v378 = vld [vmem:[%s2] sm:$0xf]
    %v380 = vlaneseq
    %v381 = vshrl.u32 %v380, 7
    %v382 = vsub.s32 0, %v381
    %v383 = vrot.slane %v378, %v382
    %v384 = vlaneseq
    %v385 = vshrl.u32 %v384, 7
    %v386 = vsub.s32 1, %v385
    %v387 = vrot.slane %v378, %v386
    %v388 = vlaneseq
    %v389 = vshrl.u32 %v388, 7
    %v390 = vsub.s32 2, %v389
    %v391 = vrot.slane %v378, %v390
    %v392 = vlaneseq
    %v393 = vshrl.u32 %v392, 7
    %v394 = vsub.s32 3, %v393
    %v395 = vrot.slane %v378, %v394
    %v656 = vunpack.c.l.b16 %v122
    %v657 = vunpack.c.h.b16 %v122
    %v658 = vunpack.c.l.b16 %v123
    %v659 = vunpack.c.h.b16 %v123
    %v660 = vunpack.c.l.b16 %v124
    %v661 = vunpack.c.h.b16 %v124
    %v662 = vunpack.c.l.b16 %v125
    %v663 = vunpack.c.h.b16 %v125
    %v664 = vunpack.c.l.b16 %v126
    %v665 = vunpack.c.h.b16 %v126
    %v666 = vunpack.c.l.b16 %v127
    %v667 = vunpack.c.h.b16 %v127
    %v668 = vunpack.c.l.b16 %v128
    %v669 = vunpack.c.h.b16 %v128
    %v670 = vunpack.c.l.b16 %v129
    %v671 = vunpack.c.h.b16 %v129
    %v672 = vunpack.c.l.b16 %v130
    %v673 = vunpack.c.h.b16 %v130
    %v674 = vunpack.c.l.b16 %v131
    %v675 = vunpack.c.h.b16 %v131
    %v676 = vunpack.c.l.b16 %v132
    %v677 = vunpack.c.h.b16 %v132
    %v678 = vunpack.c.l.b16 %v133
    %v679 = vunpack.c.h.b16 %v133
    %v680 = vunpack.c.l.b16 %v134
    %v681 = vunpack.c.h.b16 %v134
    %v682 = vunpack.c.l.b16 %v135
    %v683 = vunpack.c.h.b16 %v135
    %v684 = vunpack.c.l.b16 %v136
    %v685 = vunpack.c.h.b16 %v136
    %v686 = vunpack.c.l.b16 %v137
    %v687 = vunpack.c.h.b16 %v137
    %v688 = vunpack.c.l.b16 %v138
    %v689 = vunpack.c.h.b16 %v138
    %v690 = vunpack.c.l.b16 %v139
    %v691 = vunpack.c.h.b16 %v139
    %v692 = vunpack.c.l.b16 %v140
    %v693 = vunpack.c.h.b16 %v140
    %v694 = vunpack.c.l.b16 %v141
    %v695 = vunpack.c.h.b16 %v141
    %v696 = vunpack.c.l.b16 %v142
    %v697 = vunpack.c.h.b16 %v142
    %v698 = vunpack.c.l.b16 %v143
    %v699 = vunpack.c.h.b16 %v143
    %v700 = vunpack.c.l.b16 %v144
    %v701 = vunpack.c.h.b16 %v144
    %v702 = vunpack.c.l.b16 %v145
    %v703 = vunpack.c.h.b16 %v145
    %v704 = vunpack.c.l.b16 %v146
    %v705 = vunpack.c.h.b16 %v146
    %v706 = vunpack.c.l.b16 %v147
    %v707 = vunpack.c.h.b16 %v147
    %v708 = vunpack.c.l.b16 %v148
    %v709 = vunpack.c.h.b16 %v148
    %v710 = vunpack.c.l.b16 %v149
    %v711 = vunpack.c.h.b16 %v149
    %v712 = vunpack.c.l.b16 %v150
    %v713 = vunpack.c.h.b16 %v150
    %v714 = vunpack.c.l.b16 %v151
    %v715 = vunpack.c.h.b16 %v151
    %v716 = vunpack.c.l.b16 %v152
    %v717 = vunpack.c.h.b16 %v152
    %v718 = vunpack.c.l.b16 %v153
    %v719 = vunpack.c.h.b16 %v153
    %v720 = vunpack.c.l.b16 %v154
    %v721 = vunpack.c.h.b16 %v154
    %v722 = vunpack.c.l.b16 %v155
    %v723 = vunpack.c.h.b16 %v155
    %v724 = vunpack.c.l.b16 %v156
    %v725 = vunpack.c.h.b16 %v156
    %v726 = vunpack.c.l.b16 %v157
    %v727 = vunpack.c.h.b16 %v157
    %v728 = vunpack.c.l.b16 %v158
    %v729 = vunpack.c.h.b16 %v158
    %v730 = vunpack.c.l.b16 %v159
    %v731 = vunpack.c.h.b16 %v159
    %v732 = vunpack.c.l.b16 %v160
    %v733 = vunpack.c.h.b16 %v160
    %v734 = vunpack.c.l.b16 %v161
    %v735 = vunpack.c.h.b16 %v161
    %v736 = vunpack.c.l.b16 %v162
    %v737 = vunpack.c.h.b16 %v162
    %v738 = vunpack.c.l.b16 %v163
    %v739 = vunpack.c.h.b16 %v163
    %v740 = vunpack.c.l.b16 %v164
    %v741 = vunpack.c.h.b16 %v164
    %v742 = vunpack.c.l.b16 %v165
    %v743 = vunpack.c.h.b16 %v165
    %v744 = vunpack.c.l.b16 %v166
    %v745 = vunpack.c.h.b16 %v166
    %v746 = vunpack.c.l.b16 %v167
    %v747 = vunpack.c.h.b16 %v167
    %v748 = vunpack.c.l.b16 %v168
    %v749 = vunpack.c.h.b16 %v168
    %v750 = vunpack.c.l.b16 %v169
    %v751 = vunpack.c.h.b16 %v169
    %v752 = vunpack.c.l.b16 %v170
    %v753 = vunpack.c.h.b16 %v170
    %v754 = vunpack.c.l.b16 %v171
    %v755 = vunpack.c.h.b16 %v171
    %v756 = vunpack.c.l.b16 %v172
    %v757 = vunpack.c.h.b16 %v172
    %v758 = vunpack.c.l.b16 %v173
    %v759 = vunpack.c.h.b16 %v173
    %v760 = vunpack.c.l.b16 %v174
    %v761 = vunpack.c.h.b16 %v174
    %v762 = vunpack.c.l.b16 %v175
    %v763 = vunpack.c.h.b16 %v175
    %v764 = vunpack.c.l.b16 %v176
    %v765 = vunpack.c.h.b16 %v176
    %v766 = vunpack.c.l.b16 %v177
    %v767 = vunpack.c.h.b16 %v177
    %v768 = vunpack.c.l.b16 %v178
    %v769 = vunpack.c.h.b16 %v178
    %v770 = vunpack.c.l.b16 %v179
    %v771 = vunpack.c.h.b16 %v179
    %v772 = vunpack.c.l.b16 %v180
    %v773 = vunpack.c.h.b16 %v180
    %v774 = vunpack.c.l.b16 %v181
    %v775 = vunpack.c.h.b16 %v181
    %v776 = vunpack.c.l.b16 %v182
    %v777 = vunpack.c.h.b16 %v182
    %v778 = vunpack.c.l.b16 %v183
    %v779 = vunpack.c.h.b16 %v183
    %v780 = vunpack.c.l.b16 %v184
    %v781 = vunpack.c.h.b16 %v184
    %v782 = vunpack.c.l.b16 %v185
    %v783 = vunpack.c.h.b16 %v185
    %v784 = vunpack.c.l.b16 %v186
    %v785 = vunpack.c.h.b16 %v186
    %v786 = vunpack.c.l.b16 %v187
    %v787 = vunpack.c.h.b16 %v187
    %v788 = vunpack.c.l.b16 %v188
    %v789 = vunpack.c.h.b16 %v188
    %v790 = vunpack.c.l.b16 %v189
    %v791 = vunpack.c.h.b16 %v189
    %v792 = vunpack.c.l.b16 %v190
    %v793 = vunpack.c.h.b16 %v190
    %v794 = vunpack.c.l.b16 %v191
    %v795 = vunpack.c.h.b16 %v191
    %v796 = vunpack.c.l.b16 %v192
    %v797 = vunpack.c.h.b16 %v192
    %v798 = vunpack.c.l.b16 %v193
    %v799 = vunpack.c.h.b16 %v193
    %v800 = vunpack.c.l.b16 %v194
    %v801 = vunpack.c.h.b16 %v194
    %v802 = vunpack.c.l.b16 %v195
    %v803 = vunpack.c.h.b16 %v195
    %v804 = vunpack.c.l.b16 %v196
    %v805 = vunpack.c.h.b16 %v196
    %v806 = vunpack.c.l.b16 %v197
    %v807 = vunpack.c.h.b16 %v197
    %v808 = vunpack.c.l.b16 %v198
    %v809 = vunpack.c.h.b16 %v198
    %v810 = vunpack.c.l.b16 %v199
    %v811 = vunpack.c.h.b16 %v199
    %v812 = vunpack.c.l.b16 %v200
    %v813 = vunpack.c.h.b16 %v200
    %v814 = vunpack.c.l.b16 %v201
    %v815 = vunpack.c.h.b16 %v201
    %v816 = vunpack.c.l.b16 %v202
    %v817 = vunpack.c.h.b16 %v202
    %v818 = vunpack.c.l.b16 %v203
    %v819 = vunpack.c.h.b16 %v203
    %v820 = vunpack.c.l.b16 %v204
    %v821 = vunpack.c.h.b16 %v204
    %v822 = vunpack.c.l.b16 %v205
    %v823 = vunpack.c.h.b16 %v205
    %v824 = vunpack.c.l.b16 %v206
    %v825 = vunpack.c.h.b16 %v206
    %v826 = vunpack.c.l.b16 %v207
    %v827 = vunpack.c.h.b16 %v207
    %v828 = vunpack.c.l.b16 %v208
    %v829 = vunpack.c.h.b16 %v208
    %v830 = vunpack.c.l.b16 %v209
    %v831 = vunpack.c.h.b16 %v209
    %v832 = vunpack.c.l.b16 %v210
    %v833 = vunpack.c.h.b16 %v210
    %v834 = vunpack.c.l.b16 %v211
    %v835 = vunpack.c.h.b16 %v211
    %v836 = vunpack.c.l.b16 %v212
    %v837 = vunpack.c.h.b16 %v212
    %v838 = vunpack.c.l.b16 %v213
    %v839 = vunpack.c.h.b16 %v213
    %v840 = vunpack.c.l.b16 %v214
    %v841 = vunpack.c.h.b16 %v214
    %v842 = vunpack.c.l.b16 %v215
    %v843 = vunpack.c.h.b16 %v215
    %v844 = vunpack.c.l.b16 %v216
    %v845 = vunpack.c.h.b16 %v216
    %v846 = vunpack.c.l.b16 %v217
    %v847 = vunpack.c.h.b16 %v217
    %v848 = vunpack.c.l.b16 %v218
    %v849 = vunpack.c.h.b16 %v218
    %v850 = vunpack.c.l.b16 %v219
    %v851 = vunpack.c.h.b16 %v219
    %v852 = vunpack.c.l.b16 %v220
    %v853 = vunpack.c.h.b16 %v220
    %v854 = vunpack.c.l.b16 %v221
    %v855 = vunpack.c.h.b16 %v221
    %v856 = vunpack.c.l.b16 %v222
    %v857 = vunpack.c.h.b16 %v222
    %v858 = vunpack.c.l.b16 %v223
    %v859 = vunpack.c.h.b16 %v223
    %v860 = vunpack.c.l.b16 %v224
    %v861 = vunpack.c.h.b16 %v224
    %v862 = vunpack.c.l.b16 %v225
    %v863 = vunpack.c.h.b16 %v225
    %v864 = vunpack.c.l.b16 %v226
    %v865 = vunpack.c.h.b16 %v226
    %v866 = vunpack.c.l.b16 %v227
    %v867 = vunpack.c.h.b16 %v227
    %v868 = vunpack.c.l.b16 %v228
    %v869 = vunpack.c.h.b16 %v228
    %v870 = vunpack.c.l.b16 %v229
    %v871 = vunpack.c.h.b16 %v229
    %v872 = vunpack.c.l.b16 %v230
    %v873 = vunpack.c.h.b16 %v230
    %v874 = vunpack.c.l.b16 %v231
    %v875 = vunpack.c.h.b16 %v231
    %v876 = vunpack.c.l.b16 %v232
    %v877 = vunpack.c.h.b16 %v232
    %v878 = vunpack.c.l.b16 %v233
    %v879 = vunpack.c.h.b16 %v233
    %v880 = vunpack.c.l.b16 %v234
    %v881 = vunpack.c.h.b16 %v234
    %v882 = vunpack.c.l.b16 %v235
    %v883 = vunpack.c.h.b16 %v235
    %v884 = vunpack.c.l.b16 %v236
    %v885 = vunpack.c.h.b16 %v236
    %v886 = vunpack.c.l.b16 %v237
    %v887 = vunpack.c.h.b16 %v237
    %v888 = vunpack.c.l.b16 %v238
    %v889 = vunpack.c.h.b16 %v238
    %v890 = vunpack.c.l.b16 %v239
    %v891 = vunpack.c.h.b16 %v239
    %v892 = vunpack.c.l.b16 %v240
    %v893 = vunpack.c.h.b16 %v240
    %v894 = vunpack.c.l.b16 %v241
    %v895 = vunpack.c.h.b16 %v241
    %v896 = vunpack.c.l.b16 %v242
    %v897 = vunpack.c.h.b16 %v242
    %v898 = vunpack.c.l.b16 %v243
    %v899 = vunpack.c.h.b16 %v243
    %v900 = vunpack.c.l.b16 %v244
    %v901 = vunpack.c.h.b16 %v244
    %v902 = vunpack.c.l.b16 %v245
    %v903 = vunpack.c.h.b16 %v245
    %v904 = vunpack.c.l.b16 %v246
    %v905 = vunpack.c.h.b16 %v246
    %v906 = vunpack.c.l.b16 %v247
    %v907 = vunpack.c.h.b16 %v247
    %v908 = vunpack.c.l.b16 %v248
    %v909 = vunpack.c.h.b16 %v248
    %v910 = vunpack.c.l.b16 %v249
    %v911 = vunpack.c.h.b16 %v249
    %v912 = vunpack.c.l.b16 %v250
    %v913 = vunpack.c.h.b16 %v250
    %v914 = vunpack.c.l.b16 %v251
    %v915 = vunpack.c.h.b16 %v251
    %v916 = vunpack.c.l.b16 %v252
    %v917 = vunpack.c.h.b16 %v252
    %v918 = vunpack.c.l.b16 %v253
    %v919 = vunpack.c.h.b16 %v253
    %v920 = vunpack.c.l.b16 %v254
    %v921 = vunpack.c.h.b16 %v254
    %v922 = vunpack.c.l.b16 %v255
    %v923 = vunpack.c.h.b16 %v255
    %v924 = vunpack.c.l.b16 %v256
    %v925 = vunpack.c.h.b16 %v256
    %v926 = vunpack.c.l.b16 %v257
    %v927 = vunpack.c.h.b16 %v257
    %v928 = vunpack.c.l.b16 %v258
    %v929 = vunpack.c.h.b16 %v258
    %v930 = vunpack.c.l.b16 %v259
    %v931 = vunpack.c.h.b16 %v259
    %v932 = vunpack.c.l.b16 %v260
    %v933 = vunpack.c.h.b16 %v260
    %v934 = vunpack.c.l.b16 %v261
    %v935 = vunpack.c.h.b16 %v261
    %v936 = vunpack.c.l.b16 %v262
    %v937 = vunpack.c.h.b16 %v262
    %v938 = vunpack.c.l.b16 %v263
    %v939 = vunpack.c.h.b16 %v263
    %v940 = vunpack.c.l.b16 %v264
    %v941 = vunpack.c.h.b16 %v264
    %v942 = vunpack.c.l.b16 %v265
    %v943 = vunpack.c.h.b16 %v265
    %v944 = vunpack.c.l.b16 %v266
    %v945 = vunpack.c.h.b16 %v266
    %v946 = vunpack.c.l.b16 %v267
    %v947 = vunpack.c.h.b16 %v267
    %v948 = vunpack.c.l.b16 %v268
    %v949 = vunpack.c.h.b16 %v268
    %v950 = vunpack.c.l.b16 %v269
    %v951 = vunpack.c.h.b16 %v269
    %v952 = vunpack.c.l.b16 %v270
    %v953 = vunpack.c.h.b16 %v270
    %v954 = vunpack.c.l.b16 %v271
    %v955 = vunpack.c.h.b16 %v271
    %v956 = vunpack.c.l.b16 %v272
    %v957 = vunpack.c.h.b16 %v272
    %v958 = vunpack.c.l.b16 %v273
    %v959 = vunpack.c.h.b16 %v273
    %v960 = vunpack.c.l.b16 %v274
    %v961 = vunpack.c.h.b16 %v274
    %v962 = vunpack.c.l.b16 %v275
    %v963 = vunpack.c.h.b16 %v275
    %v964 = vunpack.c.l.b16 %v276
    %v965 = vunpack.c.h.b16 %v276
    %v966 = vunpack.c.l.b16 %v277
    %v967 = vunpack.c.h.b16 %v277
    %v968 = vunpack.c.l.b16 %v278
    %v969 = vunpack.c.h.b16 %v278
    %v970 = vunpack.c.l.b16 %v279
    %v971 = vunpack.c.h.b16 %v279
    %v972 = vunpack.c.l.b16 %v280
    %v973 = vunpack.c.h.b16 %v280
    %v974 = vunpack.c.l.b16 %v281
    %v975 = vunpack.c.h.b16 %v281
    %v976 = vunpack.c.l.b16 %v282
    %v977 = vunpack.c.h.b16 %v282
    %v978 = vunpack.c.l.b16 %v283
    %v979 = vunpack.c.h.b16 %v283
    %v980 = vunpack.c.l.b16 %v284
    %v981 = vunpack.c.h.b16 %v284
    %v982 = vunpack.c.l.b16 %v285
    %v983 = vunpack.c.h.b16 %v285
    %v984 = vunpack.c.l.b16 %v286
    %v985 = vunpack.c.h.b16 %v286
    %v986 = vunpack.c.l.b16 %v287
    %v987 = vunpack.c.h.b16 %v287
    %v988 = vunpack.c.l.b16 %v288
    %v989 = vunpack.c.h.b16 %v288
    %v990 = vunpack.c.l.b16 %v289
    %v991 = vunpack.c.h.b16 %v289
    %v992 = vunpack.c.l.b16 %v290
    %v993 = vunpack.c.h.b16 %v290
    %v994 = vunpack.c.l.b16 %v291
    %v995 = vunpack.c.h.b16 %v291
    %v996 = vunpack.c.l.b16 %v292
    %v997 = vunpack.c.h.b16 %v292
    %v998 = vunpack.c.l.b16 %v293
    %v999 = vunpack.c.h.b16 %v293
    %v1000 = vunpack.c.l.b16 %v294
    %v1001 = vunpack.c.h.b16 %v294
    %v1002 = vunpack.c.l.b16 %v295
    %v1003 = vunpack.c.h.b16 %v295
    %v1004 = vunpack.c.l.b16 %v296
    %v1005 = vunpack.c.h.b16 %v296
    %v1006 = vunpack.c.l.b16 %v297
    %v1007 = vunpack.c.h.b16 %v297
    %v1008 = vunpack.c.l.b16 %v298
    %v1009 = vunpack.c.h.b16 %v298
    %v1010 = vunpack.c.l.b16 %v299
    %v1011 = vunpack.c.h.b16 %v299
    %v1012 = vunpack.c.l.b16 %v300
    %v1013 = vunpack.c.h.b16 %v300
    %v1014 = vunpack.c.l.b16 %v301
    %v1015 = vunpack.c.h.b16 %v301
    %v1016 = vunpack.c.l.b16 %v302
    %v1017 = vunpack.c.h.b16 %v302
    %v1018 = vunpack.c.l.b16 %v303
    %v1019 = vunpack.c.h.b16 %v303
    %v1020 = vunpack.c.l.b16 %v304
    %v1021 = vunpack.c.h.b16 %v304
    %v1022 = vunpack.c.l.b16 %v305
    %v1023 = vunpack.c.h.b16 %v305
    %v1024 = vunpack.c.l.b16 %v306
    %v1025 = vunpack.c.h.b16 %v306
    %v1026 = vunpack.c.l.b16 %v307
    %v1027 = vunpack.c.h.b16 %v307
    %v1028 = vunpack.c.l.b16 %v308
    %v1029 = vunpack.c.h.b16 %v308
    %v1030 = vunpack.c.l.b16 %v309
    %v1031 = vunpack.c.h.b16 %v309
    %v1032 = vunpack.c.l.b16 %v310
    %v1033 = vunpack.c.h.b16 %v310
    %v1034 = vunpack.c.l.b16 %v311
    %v1035 = vunpack.c.h.b16 %v311
    %v1036 = vunpack.c.l.b16 %v312
    %v1037 = vunpack.c.h.b16 %v312
    %v1038 = vunpack.c.l.b16 %v313
    %v1039 = vunpack.c.h.b16 %v313
    %v1040 = vunpack.c.l.b16 %v314
    %v1041 = vunpack.c.h.b16 %v314
    %v1042 = vunpack.c.l.b16 %v315
    %v1043 = vunpack.c.h.b16 %v315
    %v1044 = vunpack.c.l.b16 %v316
    %v1045 = vunpack.c.h.b16 %v316
    %v1046 = vunpack.c.l.b16 %v317
    %v1047 = vunpack.c.h.b16 %v317
    %v1048 = vunpack.c.l.b16 %v318
    %v1049 = vunpack.c.h.b16 %v318
    %v1050 = vunpack.c.l.b16 %v319
    %v1051 = vunpack.c.h.b16 %v319
    %v1052 = vunpack.c.l.b16 %v320
    %v1053 = vunpack.c.h.b16 %v320
    %v1054 = vunpack.c.l.b16 %v321
    %v1055 = vunpack.c.h.b16 %v321
    %v1056 = vunpack.c.l.b16 %v322
    %v1057 = vunpack.c.h.b16 %v322
    %v1058 = vunpack.c.l.b16 %v323
    %v1059 = vunpack.c.h.b16 %v323
    %v1060 = vunpack.c.l.b16 %v324
    %v1061 = vunpack.c.h.b16 %v324
    %v1062 = vunpack.c.l.b16 %v325
    %v1063 = vunpack.c.h.b16 %v325
    %v1064 = vunpack.c.l.b16 %v326
    %v1065 = vunpack.c.h.b16 %v326
    %v1066 = vunpack.c.l.b16 %v327
    %v1067 = vunpack.c.h.b16 %v327
    %v1068 = vunpack.c.l.b16 %v328
    %v1069 = vunpack.c.h.b16 %v328
    %v1070 = vunpack.c.l.b16 %v329
    %v1071 = vunpack.c.h.b16 %v329
    %v1072 = vunpack.c.l.b16 %v330
    %v1073 = vunpack.c.h.b16 %v330
    %v1074 = vunpack.c.l.b16 %v331
    %v1075 = vunpack.c.h.b16 %v331
    %v1076 = vunpack.c.l.b16 %v332
    %v1077 = vunpack.c.h.b16 %v332
    %v1078 = vunpack.c.l.b16 %v333
    %v1079 = vunpack.c.h.b16 %v333
    %v1080 = vunpack.c.l.b16 %v334
    %v1081 = vunpack.c.h.b16 %v334
    %v1082 = vunpack.c.l.b16 %v335
    %v1083 = vunpack.c.h.b16 %v335
    %v1084 = vunpack.c.l.b16 %v336
    %v1085 = vunpack.c.h.b16 %v336
    %v1086 = vunpack.c.l.b16 %v337
    %v1087 = vunpack.c.h.b16 %v337
    %v1088 = vunpack.c.l.b16 %v338
    %v1089 = vunpack.c.h.b16 %v338
    %v1090 = vunpack.c.l.b16 %v339
    %v1091 = vunpack.c.h.b16 %v339
    %v1092 = vunpack.c.l.b16 %v340
    %v1093 = vunpack.c.h.b16 %v340
    %v1094 = vunpack.c.l.b16 %v341
    %v1095 = vunpack.c.h.b16 %v341
    %v1096 = vunpack.c.l.b16 %v342
    %v1097 = vunpack.c.h.b16 %v342
    %v1098 = vunpack.c.l.b16 %v343
    %v1099 = vunpack.c.h.b16 %v343
    %v1100 = vunpack.c.l.b16 %v344
    %v1101 = vunpack.c.h.b16 %v344
    %v1102 = vunpack.c.l.b16 %v345
    %v1103 = vunpack.c.h.b16 %v345
    %v1104 = vunpack.c.l.b16 %v346
    %v1105 = vunpack.c.h.b16 %v346
    %v1106 = vunpack.c.l.b16 %v347
    %v1107 = vunpack.c.h.b16 %v347
    %v1108 = vunpack.c.l.b16 %v348
    %v1109 = vunpack.c.h.b16 %v348
    %v1110 = vunpack.c.l.b16 %v349
    %v1111 = vunpack.c.h.b16 %v349
    %v1112 = vunpack.c.l.b16 %v350
    %v1113 = vunpack.c.h.b16 %v350
    %v1114 = vunpack.c.l.b16 %v351
    %v1115 = vunpack.c.h.b16 %v351
    %v1116 = vunpack.c.l.b16 %v352
    %v1117 = vunpack.c.h.b16 %v352
    %v1118 = vunpack.c.l.b16 %v353
    %v1119 = vunpack.c.h.b16 %v353
    %v1120 = vunpack.c.l.b16 %v354
    %v1121 = vunpack.c.h.b16 %v354
    %v1122 = vunpack.c.l.b16 %v355
    %v1123 = vunpack.c.h.b16 %v355
    %v1124 = vunpack.c.l.b16 %v356
    %v1125 = vunpack.c.h.b16 %v356
    %v1126 = vunpack.c.l.b16 %v357
    %v1127 = vunpack.c.h.b16 %v357
    %v1128 = vunpack.c.l.b16 %v358
    %v1129 = vunpack.c.h.b16 %v358
    %v1130 = vunpack.c.l.b16 %v359
    %v1131 = vunpack.c.h.b16 %v359
    %v1132 = vunpack.c.l.b16 %v360
    %v1133 = vunpack.c.h.b16 %v360
    %v1134 = vunpack.c.l.b16 %v361
    %v1135 = vunpack.c.h.b16 %v361
    %v1136 = vunpack.c.l.b16 %v362
    %v1137 = vunpack.c.h.b16 %v362
    %v1138 = vunpack.c.l.b16 %v363
    %v1139 = vunpack.c.h.b16 %v363
    %v1140 = vunpack.c.l.b16 %v364
    %v1141 = vunpack.c.h.b16 %v364
    %v1142 = vunpack.c.l.b16 %v365
    %v1143 = vunpack.c.h.b16 %v365
    %v1144 = vunpack.c.l.b16 %v366
    %v1145 = vunpack.c.h.b16 %v366
    %v1146 = vunpack.c.l.b16 %v367
    %v1147 = vunpack.c.h.b16 %v367
    %v1148 = vunpack.c.l.b16 %v368
    %v1149 = vunpack.c.h.b16 %v368
    %v1150 = vunpack.c.l.b16 %v369
    %v1151 = vunpack.c.h.b16 %v369
    %v1152 = vunpack.c.l.b16 %v370
    %v1153 = vunpack.c.h.b16 %v370
    %v1154 = vunpack.c.l.b16 %v371
    %v1155 = vunpack.c.h.b16 %v371
    %v1156 = vunpack.c.l.b16 %v372
    %v1157 = vunpack.c.h.b16 %v372
    %v1158 = vunpack.c.l.b16 %v373
    %v1159 = vunpack.c.h.b16 %v373
    %v1160 = vunpack.c.l.b16 %v374
    %v1161 = vunpack.c.h.b16 %v374
    %v1162 = vunpack.c.l.b16 %v375
    %v1163 = vunpack.c.h.b16 %v375
    %v1164 = vunpack.c.l.b16 %v376
    %v1165 = vunpack.c.h.b16 %v376
    %v1166 = vunpack.c.l.b16 %v377
    %v1167 = vunpack.c.h.b16 %v377
    %v1168 = vpack.c.b16 %v660, %v656
    %v1169 = vpack.c.b16 %v661, %v657
    %v1170 = vpack.c.b16 %v662, %v658
    %v1171 = vpack.c.b16 %v663, %v659
    %v1172 = vpack.c.b16 %v668, %v664
    %v1173 = vpack.c.b16 %v669, %v665
    %v1174 = vpack.c.b16 %v670, %v666
    %v1175 = vpack.c.b16 %v671, %v667
    %v1176 = vpack.c.b16 %v676, %v672
    %v1177 = vpack.c.b16 %v677, %v673
    %v1178 = vpack.c.b16 %v678, %v674
    %v1179 = vpack.c.b16 %v679, %v675
    %v1180 = vpack.c.b16 %v684, %v680
    %v1181 = vpack.c.b16 %v685, %v681
    %v1182 = vpack.c.b16 %v686, %v682
    %v1183 = vpack.c.b16 %v687, %v683
    %v1184 = vpack.c.b16 %v692, %v688
    %v1185 = vpack.c.b16 %v693, %v689
    %v1186 = vpack.c.b16 %v694, %v690
    %v1187 = vpack.c.b16 %v695, %v691
    %v1188 = vpack.c.b16 %v700, %v696
    %v1189 = vpack.c.b16 %v701, %v697
    %v1190 = vpack.c.b16 %v702, %v698
    %v1191 = vpack.c.b16 %v703, %v699
    %v1192 = vpack.c.b16 %v708, %v704
    %v1193 = vpack.c.b16 %v709, %v705
    %v1194 = vpack.c.b16 %v710, %v706
    %v1195 = vpack.c.b16 %v711, %v707
    %v1196 = vpack.c.b16 %v716, %v712
    %v1197 = vpack.c.b16 %v717, %v713
    %v1198 = vpack.c.b16 %v718, %v714
    %v1199 = vpack.c.b16 %v719, %v715
    %v1200 = vpack.c.b16 %v724, %v720
    %v1201 = vpack.c.b16 %v725, %v721
    %v1202 = vpack.c.b16 %v726, %v722
    %v1203 = vpack.c.b16 %v727, %v723
    %v1204 = vpack.c.b16 %v732, %v728
    %v1205 = vpack.c.b16 %v733, %v729
    %v1206 = vpack.c.b16 %v734, %v730
    %v1207 = vpack.c.b16 %v735, %v731
    %v1208 = vpack.c.b16 %v740, %v736
    %v1209 = vpack.c.b16 %v741, %v737
    %v1210 = vpack.c.b16 %v742, %v738
    %v1211 = vpack.c.b16 %v743, %v739
    %v1212 = vpack.c.b16 %v748, %v744
    %v1213 = vpack.c.b16 %v749, %v745
    %v1214 = vpack.c.b16 %v750, %v746
    %v1215 = vpack.c.b16 %v751, %v747
    %v1216 = vpack.c.b16 %v756, %v752
    %v1217 = vpack.c.b16 %v757, %v753
    %v1218 = vpack.c.b16 %v758, %v754
    %v1219 = vpack.c.b16 %v759, %v755
    %v1220 = vpack.c.b16 %v764, %v760
    %v1221 = vpack.c.b16 %v765, %v761
    %v1222 = vpack.c.b16 %v766, %v762
    %v1223 = vpack.c.b16 %v767, %v763
    %v1224 = vpack.c.b16 %v772, %v768
    %v1225 = vpack.c.b16 %v773, %v769
    %v1226 = vpack.c.b16 %v774, %v770
    %v1227 = vpack.c.b16 %v775, %v771
    %v1228 = vpack.c.b16 %v780, %v776
    %v1229 = vpack.c.b16 %v781, %v777
    %v1230 = vpack.c.b16 %v782, %v778
    %v1231 = vpack.c.b16 %v783, %v779
    %v1232 = vpack.c.b16 %v788, %v784
    %v1233 = vpack.c.b16 %v789, %v785
    %v1234 = vpack.c.b16 %v790, %v786
    %v1235 = vpack.c.b16 %v791, %v787
    %v1236 = vpack.c.b16 %v796, %v792
    %v1237 = vpack.c.b16 %v797, %v793
    %v1238 = vpack.c.b16 %v798, %v794
    %v1239 = vpack.c.b16 %v799, %v795
    %v1240 = vpack.c.b16 %v804, %v800
    %v1241 = vpack.c.b16 %v805, %v801
    %v1242 = vpack.c.b16 %v806, %v802
    %v1243 = vpack.c.b16 %v807, %v803
    %v1244 = vpack.c.b16 %v812, %v808
    %v1245 = vpack.c.b16 %v813, %v809
    %v1246 = vpack.c.b16 %v814, %v810
    %v1247 = vpack.c.b16 %v815, %v811
    %v1248 = vpack.c.b16 %v820, %v816
    %v1249 = vpack.c.b16 %v821, %v817
    %v1250 = vpack.c.b16 %v822, %v818
    %v1251 = vpack.c.b16 %v823, %v819
    %v1252 = vpack.c.b16 %v828, %v824
    %v1253 = vpack.c.b16 %v829, %v825
    %v1254 = vpack.c.b16 %v830, %v826
    %v1255 = vpack.c.b16 %v831, %v827
    %v1256 = vpack.c.b16 %v836, %v832
    %v1257 = vpack.c.b16 %v837, %v833
    %v1258 = vpack.c.b16 %v838, %v834
    %v1259 = vpack.c.b16 %v839, %v835
    %v1260 = vpack.c.b16 %v844, %v840
    %v1261 = vpack.c.b16 %v845, %v841
    %v1262 = vpack.c.b16 %v846, %v842
    %v1263 = vpack.c.b16 %v847, %v843
    %v1264 = vpack.c.b16 %v852, %v848
    %v1265 = vpack.c.b16 %v853, %v849
    %v1266 = vpack.c.b16 %v854, %v850
    %v1267 = vpack.c.b16 %v855, %v851
    %v1268 = vpack.c.b16 %v860, %v856
    %v1269 = vpack.c.b16 %v861, %v857
    %v1270 = vpack.c.b16 %v862, %v858
    %v1271 = vpack.c.b16 %v863, %v859
    %v1272 = vpack.c.b16 %v868, %v864
    %v1273 = vpack.c.b16 %v869, %v865
    %v1274 = vpack.c.b16 %v870, %v866
    %v1275 = vpack.c.b16 %v871, %v867
    %v1276 = vpack.c.b16 %v876, %v872
    %v1277 = vpack.c.b16 %v877, %v873
    %v1278 = vpack.c.b16 %v878, %v874
    %v1279 = vpack.c.b16 %v879, %v875
    %v1280 = vpack.c.b16 %v884, %v880
    %v1281 = vpack.c.b16 %v885, %v881
    %v1282 = vpack.c.b16 %v886, %v882
    %v1283 = vpack.c.b16 %v887, %v883
    %v1284 = vpack.c.b16 %v892, %v888
    %v1285 = vpack.c.b16 %v893, %v889
    %v1286 = vpack.c.b16 %v894, %v890
    %v1287 = vpack.c.b16 %v895, %v891
    %v1288 = vpack.c.b16 %v900, %v896
    %v1289 = vpack.c.b16 %v901, %v897
    %v1290 = vpack.c.b16 %v902, %v898
    %v1291 = vpack.c.b16 %v903, %v899
    %v1292 = vpack.c.b16 %v908, %v904
    %v1293 = vpack.c.b16 %v909, %v905
    %v1294 = vpack.c.b16 %v910, %v906
    %v1295 = vpack.c.b16 %v911, %v907
    %v1296 = vpack.c.b16 %v916, %v912
    %v1297 = vpack.c.b16 %v917, %v913
    %v1298 = vpack.c.b16 %v918, %v914
    %v1299 = vpack.c.b16 %v919, %v915
    %v1300 = vpack.c.b16 %v924, %v920
    %v1301 = vpack.c.b16 %v925, %v921
    %v1302 = vpack.c.b16 %v926, %v922
    %v1303 = vpack.c.b16 %v927, %v923
    %v1304 = vpack.c.b16 %v932, %v928
    %v1305 = vpack.c.b16 %v933, %v929
    %v1306 = vpack.c.b16 %v934, %v930
    %v1307 = vpack.c.b16 %v935, %v931
    %v1308 = vpack.c.b16 %v940, %v936
    %v1309 = vpack.c.b16 %v941, %v937
    %v1310 = vpack.c.b16 %v942, %v938
    %v1311 = vpack.c.b16 %v943, %v939
    %v1312 = vpack.c.b16 %v948, %v944
    %v1313 = vpack.c.b16 %v949, %v945
    %v1314 = vpack.c.b16 %v950, %v946
    %v1315 = vpack.c.b16 %v951, %v947
    %v1316 = vpack.c.b16 %v956, %v952
    %v1317 = vpack.c.b16 %v957, %v953
    %v1318 = vpack.c.b16 %v958, %v954
    %v1319 = vpack.c.b16 %v959, %v955
    %v1320 = vpack.c.b16 %v964, %v960
    %v1321 = vpack.c.b16 %v965, %v961
    %v1322 = vpack.c.b16 %v966, %v962
    %v1323 = vpack.c.b16 %v967, %v963
    %v1324 = vpack.c.b16 %v972, %v968
    %v1325 = vpack.c.b16 %v973, %v969
    %v1326 = vpack.c.b16 %v974, %v970
    %v1327 = vpack.c.b16 %v975, %v971
    %v1328 = vpack.c.b16 %v980, %v976
    %v1329 = vpack.c.b16 %v981, %v977
    %v1330 = vpack.c.b16 %v982, %v978
    %v1331 = vpack.c.b16 %v983, %v979
    %v1332 = vpack.c.b16 %v988, %v984
    %v1333 = vpack.c.b16 %v989, %v985
    %v1334 = vpack.c.b16 %v990, %v986
    %v1335 = vpack.c.b16 %v991, %v987
    %v1336 = vpack.c.b16 %v996, %v992
    %v1337 = vpack.c.b16 %v997, %v993
    %v1338 = vpack.c.b16 %v998, %v994
    %v1339 = vpack.c.b16 %v999, %v995
    %v1340 = vpack.c.b16 %v1004, %v1000
    %v1341 = vpack.c.b16 %v1005, %v1001
    %v1342 = vpack.c.b16 %v1006, %v1002
    %v1343 = vpack.c.b16 %v1007, %v1003
    %v1344 = vpack.c.b16 %v1012, %v1008
    %v1345 = vpack.c.b16 %v1013, %v1009
    %v1346 = vpack.c.b16 %v1014, %v1010
    %v1347 = vpack.c.b16 %v1015, %v1011
    %v1348 = vpack.c.b16 %v1020, %v1016
    %v1349 = vpack.c.b16 %v1021, %v1017
    %v1350 = vpack.c.b16 %v1022, %v1018
    %v1351 = vpack.c.b16 %v1023, %v1019
    %v1352 = vpack.c.b16 %v1028, %v1024
    %v1353 = vpack.c.b16 %v1029, %v1025
    %v1354 = vpack.c.b16 %v1030, %v1026
    %v1355 = vpack.c.b16 %v1031, %v1027
    %v1356 = vpack.c.b16 %v1036, %v1032
    %v1357 = vpack.c.b16 %v1037, %v1033
    %v1358 = vpack.c.b16 %v1038, %v1034
    %v1359 = vpack.c.b16 %v1039, %v1035
    %v1360 = vpack.c.b16 %v1044, %v1040
    %v1361 = vpack.c.b16 %v1045, %v1041
    %v1362 = vpack.c.b16 %v1046, %v1042
    %v1363 = vpack.c.b16 %v1047, %v1043
    %v1364 = vpack.c.b16 %v1052, %v1048
    %v1365 = vpack.c.b16 %v1053, %v1049
    %v1366 = vpack.c.b16 %v1054, %v1050
    %v1367 = vpack.c.b16 %v1055, %v1051
    %v1368 = vpack.c.b16 %v1060, %v1056
    %v1369 = vpack.c.b16 %v1061, %v1057
    %v1370 = vpack.c.b16 %v1062, %v1058
    %v1371 = vpack.c.b16 %v1063, %v1059
    %v1372 = vpack.c.b16 %v1068, %v1064
    %v1373 = vpack.c.b16 %v1069, %v1065
    %v1374 = vpack.c.b16 %v1070, %v1066
    %v1375 = vpack.c.b16 %v1071, %v1067
    %v1376 = vpack.c.b16 %v1076, %v1072
    %v1377 = vpack.c.b16 %v1077, %v1073
    %v1378 = vpack.c.b16 %v1078, %v1074
    %v1379 = vpack.c.b16 %v1079, %v1075
    %v1380 = vpack.c.b16 %v1084, %v1080
    %v1381 = vpack.c.b16 %v1085, %v1081
    %v1382 = vpack.c.b16 %v1086, %v1082
    %v1383 = vpack.c.b16 %v1087, %v1083
    %v1384 = vpack.c.b16 %v1092, %v1088
    %v1385 = vpack.c.b16 %v1093, %v1089
    %v1386 = vpack.c.b16 %v1094, %v1090
    %v1387 = vpack.c.b16 %v1095, %v1091
    %v1388 = vpack.c.b16 %v1100, %v1096
    %v1389 = vpack.c.b16 %v1101, %v1097
    %v1390 = vpack.c.b16 %v1102, %v1098
    %v1391 = vpack.c.b16 %v1103, %v1099
    %v1392 = vpack.c.b16 %v1108, %v1104
    %v1393 = vpack.c.b16 %v1109, %v1105
    %v1394 = vpack.c.b16 %v1110, %v1106
    %v1395 = vpack.c.b16 %v1111, %v1107
    %v1396 = vpack.c.b16 %v1116, %v1112
    %v1397 = vpack.c.b16 %v1117, %v1113
    %v1398 = vpack.c.b16 %v1118, %v1114
    %v1399 = vpack.c.b16 %v1119, %v1115
    %v1400 = vpack.c.b16 %v1124, %v1120
    %v1401 = vpack.c.b16 %v1125, %v1121
    %v1402 = vpack.c.b16 %v1126, %v1122
    %v1403 = vpack.c.b16 %v1127, %v1123
    %v1404 = vpack.c.b16 %v1132, %v1128
    %v1405 = vpack.c.b16 %v1133, %v1129
    %v1406 = vpack.c.b16 %v1134, %v1130
    %v1407 = vpack.c.b16 %v1135, %v1131
    %v1408 = vpack.c.b16 %v1140, %v1136
    %v1409 = vpack.c.b16 %v1141, %v1137
    %v1410 = vpack.c.b16 %v1142, %v1138
    %v1411 = vpack.c.b16 %v1143, %v1139
    %v1412 = vpack.c.b16 %v1148, %v1144
    %v1413 = vpack.c.b16 %v1149, %v1145
    %v1414 = vpack.c.b16 %v1150, %v1146
    %v1415 = vpack.c.b16 %v1151, %v1147
    %v1416 = vpack.c.b16 %v1156, %v1152
    %v1417 = vpack.c.b16 %v1157, %v1153
    %v1418 = vpack.c.b16 %v1158, %v1154
    %v1419 = vpack.c.b16 %v1159, %v1155
    %v1420 = vpack.c.b16 %v1164, %v1160
    %v1421 = vpack.c.b16 %v1165, %v1161
    %v1422 = vpack.c.b16 %v1166, %v1162
    %v1423 = vpack.c.b16 %v1167, %v1163
    %1680 = vmatprep.subr.bf16.mxu0 %v1169
    %1681 = vmatpush1.bf16.msra.mxu0 %v1168
    %1682 = vmatprep.subr.bf16.mxu0 %v1173
    %1683 = vmatpush1.bf16.msra.mxu0 %v1172
    %1684 = vmatprep.subr.bf16.mxu0 %v1177
    %1685 = vmatpush1.bf16.msra.mxu0 %v1176
    %1686 = vmatprep.subr.bf16.mxu0 %v1181
    %1687 = vmatpush1.bf16.msra.mxu0 %v1180
    %1688 = vmatprep.subr.bf16.mxu0 %v1185
    %1689 = vmatpush1.bf16.msra.mxu0 %v1184
    %1690 = vmatprep.subr.bf16.mxu0 %v1189
    %1691 = vmatpush1.bf16.msra.mxu0 %v1188
    %1692 = vmatprep.subr.bf16.mxu0 %v1193
    %1693 = vmatpush1.bf16.msra.mxu0 %v1192
    %1694 = vmatprep.subr.bf16.mxu0 %v1197
    %1695 = vmatpush1.bf16.msra.mxu0 %v1196
    %1696 = vmatprep.subr.bf16.mxu0 %v1201
    %1697 = vmatpush1.bf16.msra.mxu0 %v1200
    %1698 = vmatprep.subr.bf16.mxu0 %v1205
    %1699 = vmatpush1.bf16.msra.mxu0 %v1204
    %1700 = vmatprep.subr.bf16.mxu0 %v1209
    %1701 = vmatpush1.bf16.msra.mxu0 %v1208
    %1702 = vmatprep.subr.bf16.mxu0 %v1213
    %1703 = vmatpush1.bf16.msra.mxu0 %v1212
    %1704 = vmatprep.subr.bf16.mxu0 %v1217
    %1705 = vmatpush1.bf16.msra.mxu0 %v1216
    %1706 = vmatprep.subr.bf16.mxu0 %v1221
    %1707 = vmatpush1.bf16.msra.mxu0 %v1220
    %1708 = vmatprep.subr.bf16.mxu0 %v1225
    %1709 = vmatpush1.bf16.msra.mxu0 %v1224
    %1710 = vmatprep.subr.bf16.mxu0 %v1229
    %1711 = vmatpush1.bf16.msra.mxu0 %v1228
    %1712 = vmatprep.mubr.bf16.mxu0 %v115
    %1713 = vmatmul.mubr.bf16.gmra.mrb[0].mxu0 %v114
    %v1714 = vpop.f32.mrb[0].mxu0
    %v1715 = vadd.f32 %v383, %v1714
    %v1716 = vpop.f32.mrb[0].mxu0
    %v1717 = vadd.f32 %v387, %v1716
    %v1718 = vpop.f32.mrb[0].mxu0
    %v1719 = vpop.f32.mrb[0].mxu0
    %1720 = vdwg.mxu0
    %1721 = vmatprep.subr.bf16.mxu0 %v1233
    %1722 = vmatpush1.bf16.msra.mxu0 %v1232
    %1723 = vmatprep.subr.bf16.mxu0 %v1237
    %1724 = vmatpush1.bf16.msra.mxu0 %v1236
    %1725 = vmatprep.subr.bf16.mxu0 %v1241
    %1726 = vmatpush1.bf16.msra.mxu0 %v1240
    %1727 = vmatprep.subr.bf16.mxu0 %v1245
    %1728 = vmatpush1.bf16.msra.mxu0 %v1244
    %1729 = vmatprep.subr.bf16.mxu0 %v1249
    %1730 = vmatpush1.bf16.msra.mxu0 %v1248
    %1731 = vmatprep.subr.bf16.mxu0 %v1253
    %1732 = vmatpush1.bf16.msra.mxu0 %v1252
    %1733 = vmatprep.subr.bf16.mxu0 %v1257
    %1734 = vmatpush1.bf16.msra.mxu0 %v1256
    %1735 = vmatprep.subr.bf16.mxu0 %v1261
    %1736 = vmatpush1.bf16.msra.mxu0 %v1260
    %1737 = vmatprep.subr.bf16.mxu0 %v1265
    %1738 = vmatpush1.bf16.msra.mxu0 %v1264
    %1739 = vmatprep.subr.bf16.mxu0 %v1269
    %1740 = vmatpush1.bf16.msra.mxu0 %v1268
    %1741 = vmatprep.subr.bf16.mxu0 %v1273
    %1742 = vmatpush1.bf16.msra.mxu0 %v1272
    %1743 = vmatprep.subr.bf16.mxu0 %v1277
    %1744 = vmatpush1.bf16.msra.mxu0 %v1276
    %1745 = vmatprep.subr.bf16.mxu0 %v1281
    %1746 = vmatpush1.bf16.msra.mxu0 %v1280
    %1747 = vmatprep.subr.bf16.mxu0 %v1285
    %1748 = vmatpush1.bf16.msra.mxu0 %v1284
    %1749 = vmatprep.subr.bf16.mxu0 %v1289
    %1750 = vmatpush1.bf16.msra.mxu0 %v1288
    %1751 = vmatprep.subr.bf16.mxu0 %v1293
    %1752 = vmatpush1.bf16.msra.mxu0 %v1292
    %1753 = vmatprep.mubr.bf16.mxu0 %v117
    %1754 = vmatmul.mubr.bf16.gmra.mrb[0].mxu0 %v116
    %v1755 = vpop.f32.mrb[0].mxu0
    %v1756 = vadd.f32 %v1715, %v1755
    %v1757 = vpop.f32.mrb[0].mxu0
    %v1758 = vadd.f32 %v1717, %v1757
    %v1759 = vpop.f32.mrb[0].mxu0
    %v1760 = vpop.f32.mrb[0].mxu0
    %1761 = vdwg.mxu0
    %1762 = vmatprep.subr.bf16.mxu0 %v1297
    %1763 = vmatpush1.bf16.msra.mxu0 %v1296
    %1764 = vmatprep.subr.bf16.mxu0 %v1301
    %1765 = vmatpush1.bf16.msra.mxu0 %v1300
    %1766 = vmatprep.subr.bf16.mxu0 %v1305
    %1767 = vmatpush1.bf16.msra.mxu0 %v1304
    %1768 = vmatprep.subr.bf16.mxu0 %v1309
    %1769 = vmatpush1.bf16.msra.mxu0 %v1308
    %1770 = vmatprep.subr.bf16.mxu0 %v1313
    %1771 = vmatpush1.bf16.msra.mxu0 %v1312
    %1772 = vmatprep.subr.bf16.mxu0 %v1317
    %1773 = vmatpush1.bf16.msra.mxu0 %v1316
    %1774 = vmatprep.subr.bf16.mxu0 %v1321
    %1775 = vmatpush1.bf16.msra.mxu0 %v1320
    %1776 = vmatprep.subr.bf16.mxu0 %v1325
    %1777 = vmatpush1.bf16.msra.mxu0 %v1324
    %1778 = vmatprep.subr.bf16.mxu0 %v1329
    %1779 = vmatpush1.bf16.msra.mxu0 %v1328
    %1780 = vmatprep.subr.bf16.mxu0 %v1333
    %1781 = vmatpush1.bf16.msra.mxu0 %v1332
    %1782 = vmatprep.subr.bf16.mxu0 %v1337
    %1783 = vmatpush1.bf16.msra.mxu0 %v1336
    %1784 = vmatprep.subr.bf16.mxu0 %v1341
    %1785 = vmatpush1.bf16.msra.mxu0 %v1340
    %1786 = vmatprep.subr.bf16.mxu0 %v1345
    %1787 = vmatpush1.bf16.msra.mxu0 %v1344
    %1788 = vmatprep.subr.bf16.mxu0 %v1349
    %1789 = vmatpush1.bf16.msra.mxu0 %v1348
    %1790 = vmatprep.subr.bf16.mxu0 %v1353
    %1791 = vmatpush1.bf16.msra.mxu0 %v1352
    %1792 = vmatprep.subr.bf16.mxu0 %v1357
    %1793 = vmatpush1.bf16.msra.mxu0 %v1356
    %1794 = vmatprep.mubr.bf16.mxu0 %v119
    %1795 = vmatmul.mubr.bf16.gmra.mrb[0].mxu0 %v118
    %v1796 = vpop.f32.mrb[0].mxu0
    %v1797 = vadd.f32 %v1756, %v1796
    %v1798 = vpop.f32.mrb[0].mxu0
    %v1799 = vadd.f32 %v1758, %v1798
    %v1800 = vpop.f32.mrb[0].mxu0
    %v1801 = vpop.f32.mrb[0].mxu0
    %1802 = vdwg.mxu0
    %1803 = vmatprep.subr.bf16.mxu0 %v1361
    %1804 = vmatpush1.bf16.msra.mxu0 %v1360
    %1805 = vmatprep.subr.bf16.mxu0 %v1365
    %1806 = vmatpush1.bf16.msra.mxu0 %v1364
    %1807 = vmatprep.subr.bf16.mxu0 %v1369
    %1808 = vmatpush1.bf16.msra.mxu0 %v1368
    %1809 = vmatprep.subr.bf16.mxu0 %v1373
    %1810 = vmatpush1.bf16.msra.mxu0 %v1372
    %1811 = vmatprep.subr.bf16.mxu0 %v1377
    %1812 = vmatpush1.bf16.msra.mxu0 %v1376
    %1813 = vmatprep.subr.bf16.mxu0 %v1381
    %1814 = vmatpush1.bf16.msra.mxu0 %v1380
    %1815 = vmatprep.subr.bf16.mxu0 %v1385
    %1816 = vmatpush1.bf16.msra.mxu0 %v1384
    %1817 = vmatprep.subr.bf16.mxu0 %v1389
    %1818 = vmatpush1.bf16.msra.mxu0 %v1388
    %1819 = vmatprep.subr.bf16.mxu0 %v1393
    %1820 = vmatpush1.bf16.msra.mxu0 %v1392
    %1821 = vmatprep.subr.bf16.mxu0 %v1397
    %1822 = vmatpush1.bf16.msra.mxu0 %v1396
    %1823 = vmatprep.subr.bf16.mxu0 %v1401
    %1824 = vmatpush1.bf16.msra.mxu0 %v1400
    %1825 = vmatprep.subr.bf16.mxu0 %v1405
    %1826 = vmatpush1.bf16.msra.mxu0 %v1404
    %1827 = vmatprep.subr.bf16.mxu0 %v1409
    %1828 = vmatpush1.bf16.msra.mxu0 %v1408
    %1829 = vmatprep.subr.bf16.mxu0 %v1413
    %1830 = vmatpush1.bf16.msra.mxu0 %v1412
    %1831 = vmatprep.subr.bf16.mxu0 %v1417
    %1832 = vmatpush1.bf16.msra.mxu0 %v1416
    %1833 = vmatprep.subr.bf16.mxu0 %v1421
    %1834 = vmatpush1.bf16.msra.mxu0 %v1420
    %1835 = vmatprep.mubr.bf16.mxu0 %v121
    %1836 = vmatmul.mubr.bf16.gmra.mrb[0].mxu0 %v120
    %v1837 = vpop.f32.mrb[0].mxu0
    %v1838 = vadd.f32 %v1797, %v1837
    %v1839 = vpop.f32.mrb[0].mxu0
    %v1840 = vadd.f32 %v1799, %v1839
    %v1841 = vpop.f32.mrb[0].mxu0
    %v1842 = vpop.f32.mrb[0].mxu0
    %1843 = vdwg.mxu0
    %1844 = vmatprep.subr.bf16.mxu0 %v1171
    %1845 = vmatpush1.bf16.msra.mxu0 %v1170
    %1846 = vmatprep.subr.bf16.mxu0 %v1175
    %1847 = vmatpush1.bf16.msra.mxu0 %v1174
    %1848 = vmatprep.subr.bf16.mxu0 %v1179
    %1849 = vmatpush1.bf16.msra.mxu0 %v1178
    %1850 = vmatprep.subr.bf16.mxu0 %v1183
    %1851 = vmatpush1.bf16.msra.mxu0 %v1182
    %1852 = vmatprep.subr.bf16.mxu0 %v1187
    %1853 = vmatpush1.bf16.msra.mxu0 %v1186
    %1854 = vmatprep.subr.bf16.mxu0 %v1191
    %1855 = vmatpush1.bf16.msra.mxu0 %v1190
    %1856 = vmatprep.subr.bf16.mxu0 %v1195
    %1857 = vmatpush1.bf16.msra.mxu0 %v1194
    %1858 = vmatprep.subr.bf16.mxu0 %v1199
    %1859 = vmatpush1.bf16.msra.mxu0 %v1198
    %1860 = vmatprep.subr.bf16.mxu0 %v1203
    %1861 = vmatpush1.bf16.msra.mxu0 %v1202
    %1862 = vmatprep.subr.bf16.mxu0 %v1207
    %1863 = vmatpush1.bf16.msra.mxu0 %v1206
    %1864 = vmatprep.subr.bf16.mxu0 %v1211
    %1865 = vmatpush1.bf16.msra.mxu0 %v1210
    %1866 = vmatprep.subr.bf16.mxu0 %v1215
    %1867 = vmatpush1.bf16.msra.mxu0 %v1214
    %1868 = vmatprep.subr.bf16.mxu0 %v1219
    %1869 = vmatpush1.bf16.msra.mxu0 %v1218
    %1870 = vmatprep.subr.bf16.mxu0 %v1223
    %1871 = vmatpush1.bf16.msra.mxu0 %v1222
    %1872 = vmatprep.subr.bf16.mxu0 %v1227
    %1873 = vmatpush1.bf16.msra.mxu0 %v1226
    %1874 = vmatprep.subr.bf16.mxu0 %v1231
    %1875 = vmatpush1.bf16.msra.mxu0 %v1230
    %1876 = vmatprep.mubr.bf16.mxu0 %v115
    %1877 = vmatmul.mubr.bf16.gmra.mrb[0].mxu0 %v114
    %v1878 = vpop.f32.mrb[0].mxu0
    %v1879 = vadd.f32 %v391, %v1878
    %v1880 = vpop.f32.mrb[0].mxu0
    %v1881 = vadd.f32 %v395, %v1880
    %v1882 = vpop.f32.mrb[0].mxu0
    %v1883 = vpop.f32.mrb[0].mxu0
    %1884 = vdwg.mxu0
    %1885 = vmatprep.subr.bf16.mxu0 %v1235
    %1886 = vmatpush1.bf16.msra.mxu0 %v1234
    %1887 = vmatprep.subr.bf16.mxu0 %v1239
    %1888 = vmatpush1.bf16.msra.mxu0 %v1238
    %1889 = vmatprep.subr.bf16.mxu0 %v1243
    %1890 = vmatpush1.bf16.msra.mxu0 %v1242
    %1891 = vmatprep.subr.bf16.mxu0 %v1247
    %1892 = vmatpush1.bf16.msra.mxu0 %v1246
    %1893 = vmatprep.subr.bf16.mxu0 %v1251
    %1894 = vmatpush1.bf16.msra.mxu0 %v1250
    %1895 = vmatprep.subr.bf16.mxu0 %v1255
    %1896 = vmatpush1.bf16.msra.mxu0 %v1254
    %1897 = vmatprep.subr.bf16.mxu0 %v1259
    %1898 = vmatpush1.bf16.msra.mxu0 %v1258
    %1899 = vmatprep.subr.bf16.mxu0 %v1263
    %1900 = vmatpush1.bf16.msra.mxu0 %v1262
    %1901 = vmatprep.subr.bf16.mxu0 %v1267
    %1902 = vmatpush1.bf16.msra.mxu0 %v1266
    %1903 = vmatprep.subr.bf16.mxu0 %v1271
    %1904 = vmatpush1.bf16.msra.mxu0 %v1270
    %1905 = vmatprep.subr.bf16.mxu0 %v1275
    %1906 = vmatpush1.bf16.msra.mxu0 %v1274
    %1907 = vmatprep.subr.bf16.mxu0 %v1279
    %1908 = vmatpush1.bf16.msra.mxu0 %v1278
    %1909 = vmatprep.subr.bf16.mxu0 %v1283
    %1910 = vmatpush1.bf16.msra.mxu0 %v1282
    %1911 = vmatprep.subr.bf16.mxu0 %v1287
    %1912 = vmatpush1.bf16.msra.mxu0 %v1286
    %1913 = vmatprep.subr.bf16.mxu0 %v1291
    %1914 = vmatpush1.bf16.msra.mxu0 %v1290
    %1915 = vmatprep.subr.bf16.mxu0 %v1295
    %1916 = vmatpush1.bf16.msra.mxu0 %v1294
    %1917 = vmatprep.mubr.bf16.mxu0 %v117
    %1918 = vmatmul.mubr.bf16.gmra.mrb[0].mxu0 %v116
    %v1919 = vpop.f32.mrb[0].mxu0
    %v1920 = vadd.f32 %v1879, %v1919
    %v1921 = vpop.f32.mrb[0].mxu0
    %v1922 = vadd.f32 %v1881, %v1921
    %v1923 = vpop.f32.mrb[0].mxu0
    %v1924 = vpop.f32.mrb[0].mxu0
    %1925 = vdwg.mxu0
    %1926 = vmatprep.subr.bf16.mxu0 %v1299
    %1927 = vmatpush1.bf16.msra.mxu0 %v1298
    %1928 = vmatprep.subr.bf16.mxu0 %v1303
    %1929 = vmatpush1.bf16.msra.mxu0 %v1302
    %1930 = vmatprep.subr.bf16.mxu0 %v1307
    %1931 = vmatpush1.bf16.msra.mxu0 %v1306
    %1932 = vmatprep.subr.bf16.mxu0 %v1311
    %1933 = vmatpush1.bf16.msra.mxu0 %v1310
    %1934 = vmatprep.subr.bf16.mxu0 %v1315
    %1935 = vmatpush1.bf16.msra.mxu0 %v1314
    %1936 = vmatprep.subr.bf16.mxu0 %v1319
    %1937 = vmatpush1.bf16.msra.mxu0 %v1318
    %1938 = vmatprep.subr.bf16.mxu0 %v1323
    %1939 = vmatpush1.bf16.msra.mxu0 %v1322
    %1940 = vmatprep.subr.bf16.mxu0 %v1327
    %1941 = vmatpush1.bf16.msra.mxu0 %v1326
    %1942 = vmatprep.subr.bf16.mxu0 %v1331
    %1943 = vmatpush1.bf16.msra.mxu0 %v1330
    %1944 = vmatprep.subr.bf16.mxu0 %v1335
    %1945 = vmatpush1.bf16.msra.mxu0 %v1334
    %1946 = vmatprep.subr.bf16.mxu0 %v1339
    %1947 = vmatpush1.bf16.msra.mxu0 %v1338
    %1948 = vmatprep.subr.bf16.mxu0 %v1343
    %1949 = vmatpush1.bf16.msra.mxu0 %v1342
    %1950 = vmatprep.subr.bf16.mxu0 %v1347
    %1951 = vmatpush1.bf16.msra.mxu0 %v1346
    %1952 = vmatprep.subr.bf16.mxu0 %v1351
    %1953 = vmatpush1.bf16.msra.mxu0 %v1350
    %1954 = vmatprep.subr.bf16.mxu0 %v1355
    %1955 = vmatpush1.bf16.msra.mxu0 %v1354
    %1956 = vmatprep.subr.bf16.mxu0 %v1359
    %1957 = vmatpush1.bf16.msra.mxu0 %v1358
    %1958 = vmatprep.mubr.bf16.mxu0 %v119
    %1959 = vmatmul.mubr.bf16.gmra.mrb[0].mxu0 %v118
    %v1960 = vpop.f32.mrb[0].mxu0
    %v1961 = vadd.f32 %v1920, %v1960
    %v1962 = vpop.f32.mrb[0].mxu0
    %v1963 = vadd.f32 %v1922, %v1962
    %v1964 = vpop.f32.mrb[0].mxu0
    %v1965 = vpop.f32.mrb[0].mxu0
    %1966 = vdwg.mxu0
    %1967 = vmatprep.subr.bf16.mxu0 %v1363
    %1968 = vmatpush1.bf16.msra.mxu0 %v1362
    %1969 = vmatprep.subr.bf16.mxu0 %v1367
    %1970 = vmatpush1.bf16.msra.mxu0 %v1366
    %1971 = vmatprep.subr.bf16.mxu0 %v1371
    %1972 = vmatpush1.bf16.msra.mxu0 %v1370
    %1973 = vmatprep.subr.bf16.mxu0 %v1375
    %1974 = vmatpush1.bf16.msra.mxu0 %v1374
    %1975 = vmatprep.subr.bf16.mxu0 %v1379
    %1976 = vmatpush1.bf16.msra.mxu0 %v1378
    %1977 = vmatprep.subr.bf16.mxu0 %v1383
    %1978 = vmatpush1.bf16.msra.mxu0 %v1382
    %1979 = vmatprep.subr.bf16.mxu0 %v1387
    %1980 = vmatpush1.bf16.msra.mxu0 %v1386
    %1981 = vmatprep.subr.bf16.mxu0 %v1391
    %1982 = vmatpush1.bf16.msra.mxu0 %v1390
    %1983 = vmatprep.subr.bf16.mxu0 %v1395
    %1984 = vmatpush1.bf16.msra.mxu0 %v1394
    %1985 = vmatprep.subr.bf16.mxu0 %v1399
    %1986 = vmatpush1.bf16.msra.mxu0 %v1398
    %1987 = vmatprep.subr.bf16.mxu0 %v1403
    %1988 = vmatpush1.bf16.msra.mxu0 %v1402
    %1989 = vmatprep.subr.bf16.mxu0 %v1407
    %1990 = vmatpush1.bf16.msra.mxu0 %v1406
    %1991 = vmatprep.subr.bf16.mxu0 %v1411
    %1992 = vmatpush1.bf16.msra.mxu0 %v1410
    %1993 = vmatprep.subr.bf16.mxu0 %v1415
    %1994 = vmatpush1.bf16.msra.mxu0 %v1414
    %1995 = vmatprep.subr.bf16.mxu0 %v1419
    %1996 = vmatpush1.bf16.msra.mxu0 %v1418
    %1997 = vmatprep.subr.bf16.mxu0 %v1423
    %1998 = vmatpush1.bf16.msra.mxu0 %v1422
    %1999 = vmatprep.mubr.bf16.mxu0 %v121
    %2000 = vmatmul.mubr.bf16.gmra.mrb[0].mxu0 %v120
    %v2001 = vpop.f32.mrb[0].mxu0
    %v2002 = vadd.f32 %v1961, %v2001
    %v2003 = vpop.f32.mrb[0].mxu0
    %v2004 = vadd.f32 %v1963, %v2003
    %v2005 = vpop.f32.mrb[0].mxu0
    %v2006 = vpop.f32.mrb[0].mxu0
    %2007 = vdwg.mxu0
    %v2008 = vmul.f32 %v1838, 0.5
    %v2009 = vmul.f32 %v1840, 0.5
    %v2010 = vmul.f32 %v2002, 0.5
    %v2011 = vmul.f32 %v2004, 0.5
    %v2012 = vmul.f32 %v1838, 0.044715
    %v2013 = vmul.f32 %v1840, 0.044715
    %v2014 = vmul.f32 %v2002, 0.044715
    %v2015 = vmul.f32 %v2004, 0.044715
    %v2016 = vmul.f32 %v2012, %v1838
    %v2017 = vmul.f32 %v2013, %v1840
    %v2018 = vmul.f32 %v2014, %v2002
    %v2019 = vmul.f32 %v2015, %v2004
    %v2020 = vmul.f32 %v2016, %v1838
    %v2021 = vmul.f32 %v2017, %v1840
    %v2022 = vmul.f32 %v2018, %v2002
    %v2023 = vmul.f32 %v2019, %v2004
    %v2024 = vadd.f32 %v1838, %v2020
    %v2025 = vadd.f32 %v1840, %v2021
    %v2026 = vadd.f32 %v2002, %v2022
    %v2027 = vadd.f32 %v2004, %v2023
    %v2028 = vmul.f32 %v2024, 0.7978846
    %v2029 = vmul.f32 %v2025, 0.7978846
    %v2030 = vmul.f32 %v2026, 0.7978846
    %v2031 = vmul.f32 %v2027, 0.7978846
    %v2032 = vtanh.pop %v2028
    %v2033 = vtanh.pop %v2029
    %v2034 = vtanh.pop %v2030
    %v2035 = vtanh.pop %v2031
    %v2036 = vadd.f32 %v2032, 1.0
    %v2037 = vadd.f32 %v2033, 1.0
    %v2038 = vadd.f32 %v2034, 1.0
    %v2039 = vadd.f32 %v2035, 1.0
    %v2040 = vmul.f32 %v2008, %v2036
    %v2041 = vmul.f32 %v2009, %v2037
    %v2042 = vmul.f32 %v2010, %v2038
    %v2043 = vmul.f32 %v2011, %v2039
    %v2044 = vpack.c.bf16 %v2040, %v2040
    %v2045 = vpack.c.bf16 %v2041, %v2041
    %v2046 = vpack.c.bf16 %v2042, %v2042
    %v2047 = vpack.c.bf16 %v2043, %v2043
    %v2048 = vld [vmem:[%s3] sm:$0xff]
    %v2049 = vld [vmem:[%s3 + $0x8] sm:$0xff]
    %v2050 = vld [vmem:[%s3 + $0x10] sm:$0xff]
    %v2051 = vld [vmem:[%s3 + $0x18] sm:$0xff]
    %v2052 = vld [vmem:[%s3 + $0x20] sm:$0xff]
    %v2053 = vld [vmem:[%s3 + $0x28] sm:$0xff]
    %v2054 = vld [vmem:[%s3 + $0x30] sm:$0xff]
    %v2055 = vld [vmem:[%s3 + $0x38] sm:$0xff]
    %v2056 = vld [vmem:[%s3 + $0x40] sm:$0xff]
    %v2057 = vld [vmem:[%s3 + $0x48] sm:$0xff]
    %v2058 = vld [vmem:[%s3 + $0x50] sm:$0xff]
    %v2059 = vld [vmem:[%s3 + $0x58] sm:$0xff]
    %v2060 = vld [vmem:[%s3 + $0x60] sm:$0xff]
    %v2061 = vld [vmem:[%s3 + $0x68] sm:$0xff]
    %v2062 = vld [vmem:[%s3 + $0x70] sm:$0xff]
    %v2063 = vld [vmem:[%s3 + $0x78] sm:$0xff]
    %v2064 = vld [vmem:[%s3 + $0x80] sm:$0xff]
    %v2065 = vld [vmem:[%s3 + $0x88] sm:$0xff]
    %v2066 = vld [vmem:[%s3 + $0x90] sm:$0xff]
    %v2067 = vld [vmem:[%s3 + $0x98] sm:$0xff]
    %v2068 = vld [vmem:[%s3 + $0xa0] sm:$0xff]
    %v2069 = vld [vmem:[%s3 + $0xa8] sm:$0xff]
    %v2070 = vld [vmem:[%s3 + $0xb0] sm:$0xff]
    %v2071 = vld [vmem:[%s3 + $0xb8] sm:$0xff]
    %v2072 = vld [vmem:[%s3 + $0xc0] sm:$0xff]
    %v2073 = vld [vmem:[%s3 + $0xc8] sm:$0xff]
    %v2074 = vld [vmem:[%s3 + $0xd0] sm:$0xff]
    %v2075 = vld [vmem:[%s3 + $0xd8] sm:$0xff]
    %v2076 = vld [vmem:[%s3 + $0xe0] sm:$0xff]
    %v2077 = vld [vmem:[%s3 + $0xe8] sm:$0xff]
    %v2078 = vld [vmem:[%s3 + $0xf0] sm:$0xff]
    %v2079 = vld [vmem:[%s3 + $0xf8] sm:$0xff]
    %v2080 = vld [vmem:[%s3 + $0x100] sm:$0xff]
    %v2081 = vld [vmem:[%s3 + $0x108] sm:$0xff]
    %v2082 = vld [vmem:[%s3 + $0x110] sm:$0xff]
    %v2083 = vld [vmem:[%s3 + $0x118] sm:$0xff]
    %v2084 = vld [vmem:[%s3 + $0x120] sm:$0xff]
    %v2085 = vld [vmem:[%s3 + $0x128] sm:$0xff]
    %v2086 = vld [vmem:[%s3 + $0x130] sm:$0xff]
    %v2087 = vld [vmem:[%s3 + $0x138] sm:$0xff]
    %v2088 = vld [vmem:[%s3 + $0x140] sm:$0xff]
    %v2089 = vld [vmem:[%s3 + $0x148] sm:$0xff]
    %v2090 = vld [vmem:[%s3 + $0x150] sm:$0xff]
    %v2091 = vld [vmem:[%s3 + $0x158] sm:$0xff]
    %v2092 = vld [vmem:[%s3 + $0x160] sm:$0xff]
    %v2093 = vld [vmem:[%s3 + $0x168] sm:$0xff]
    %v2094 = vld [vmem:[%s3 + $0x170] sm:$0xff]
    %v2095 = vld [vmem:[%s3 + $0x178] sm:$0xff]
    %v2096 = vld [vmem:[%s3 + $0x180] sm:$0xff]
    %v2097 = vld [vmem:[%s3 + $0x188] sm:$0xff]
    %v2098 = vld [vmem:[%s3 + $0x190] sm:$0xff]
    %v2099 = vld [vmem:[%s3 + $0x198] sm:$0xff]
    %v2100 = vld [vmem:[%s3 + $0x1a0] sm:$0xff]
    %v2101 = vld [vmem:[%s3 + $0x1a8] sm:$0xff]
    %v2102 = vld [vmem:[%s3 + $0x1b0] sm:$0xff]
    %v2103 = vld [vmem:[%s3 + $0x1b8] sm:$0xff]
    %v2104 = vld [vmem:[%s3 + $0x1c0] sm:$0xff]
    %v2105 = vld [vmem:[%s3 + $0x1c8] sm:$0xff]
    %v2106 = vld [vmem:[%s3 + $0x1d0] sm:$0xff]
    %v2107 = vld [vmem:[%s3 + $0x1d8] sm:$0xff]
    %v2108 = vld [vmem:[%s3 + $0x1e0] sm:$0xff]
    %v2109 = vld [vmem:[%s3 + $0x1e8] sm:$0xff]
    %v2110 = vld [vmem:[%s3 + $0x1f0] sm:$0xff]
    %v2111 = vld [vmem:[%s3 + $0x1f8] sm:$0xff]
    %v2112 = vld [vmem:[%s3 + $0x200] sm:$0xff]
    %v2113 = vld [vmem:[%s3 + $0x208] sm:$0xff]
    %v2114 = vld [vmem:[%s3 + $0x210] sm:$0xff]
    %v2115 = vld [vmem:[%s3 + $0x218] sm:$0xff]
    %v2116 = vld [vmem:[%s3 + $0x220] sm:$0xff]
    %v2117 = vld [vmem:[%s3 + $0x228] sm:$0xff]
    %v2118 = vld [vmem:[%s3 + $0x230] sm:$0xff]
    %v2119 = vld [vmem:[%s3 + $0x238] sm:$0xff]
    %v2120 = vld [vmem:[%s3 + $0x240] sm:$0xff]
    %v2121 = vld [vmem:[%s3 + $0x248] sm:$0xff]
    %v2122 = vld [vmem:[%s3 + $0x250] sm:$0xff]
    %v2123 = vld [vmem:[%s3 + $0x258] sm:$0xff]
    %v2124 = vld [vmem:[%s3 + $0x260] sm:$0xff]
    %v2125 = vld [vmem:[%s3 + $0x268] sm:$0xff]
    %v2126 = vld [vmem:[%s3 + $0x270] sm:$0xff]
    %v2127 = vld [vmem:[%s3 + $0x278] sm:$0xff]
    %v2128 = vld [vmem:[%s3 + $0x280] sm:$0xff]
    %v2129 = vld [vmem:[%s3 + $0x288] sm:$0xff]
    %v2130 = vld [vmem:[%s3 + $0x290] sm:$0xff]
    %v2131 = vld [vmem:[%s3 + $0x298] sm:$0xff]
    %v2132 = vld [vmem:[%s3 + $0x2a0] sm:$0xff]
    %v2133 = vld [vmem:[%s3 + $0x2a8] sm:$0xff]
    %v2134 = vld [vmem:[%s3 + $0x2b0] sm:$0xff]
    %v2135 = vld [vmem:[%s3 + $0x2b8] sm:$0xff]
    %v2136 = vld [vmem:[%s3 + $0x2c0] sm:$0xff]
    %v2137 = vld [vmem:[%s3 + $0x2c8] sm:$0xff]
    %v2138 = vld [vmem:[%s3 + $0x2d0] sm:$0xff]
    %v2139 = vld [vmem:[%s3 + $0x2d8] sm:$0xff]
    %v2140 = vld [vmem:[%s3 + $0x2e0] sm:$0xff]
    %v2141 = vld [vmem:[%s3 + $0x2e8] sm:$0xff]
    %v2142 = vld [vmem:[%s3 + $0x2f0] sm:$0xff]
    %v2143 = vld [vmem:[%s3 + $0x2f8] sm:$0xff]
    %v2144 = vld [vmem:[%s3 + $0x300] sm:$0xff]
    %v2145 = vld [vmem:[%s3 + $0x308] sm:$0xff]
    %v2146 = vld [vmem:[%s3 + $0x310] sm:$0xff]
    %v2147 = vld [vmem:[%s3 + $0x318] sm:$0xff]
    %v2148 = vld [vmem:[%s3 + $0x320] sm:$0xff]
    %v2149 = vld [vmem:[%s3 + $0x328] sm:$0xff]
    %v2150 = vld [vmem:[%s3 + $0x330] sm:$0xff]
    %v2151 = vld [vmem:[%s3 + $0x338] sm:$0xff]
    %v2152 = vld [vmem:[%s3 + $0x340] sm:$0xff]
    %v2153 = vld [vmem:[%s3 + $0x348] sm:$0xff]
    %v2154 = vld [vmem:[%s3 + $0x350] sm:$0xff]
    %v2155 = vld [vmem:[%s3 + $0x358] sm:$0xff]
    %v2156 = vld [vmem:[%s3 + $0x360] sm:$0xff]
    %v2157 = vld [vmem:[%s3 + $0x368] sm:$0xff]
    %v2158 = vld [vmem:[%s3 + $0x370] sm:$0xff]
    %v2159 = vld [vmem:[%s3 + $0x378] sm:$0xff]
    %v2160 = vld [vmem:[%s3 + $0x380] sm:$0xff]
    %v2161 = vld [vmem:[%s3 + $0x388] sm:$0xff]
    %v2162 = vld [vmem:[%s3 + $0x390] sm:$0xff]
    %v2163 = vld [vmem:[%s3 + $0x398] sm:$0xff]
    %v2164 = vld [vmem:[%s3 + $0x3a0] sm:$0xff]
    %v2165 = vld [vmem:[%s3 + $0x3a8] sm:$0xff]
    %v2166 = vld [vmem:[%s3 + $0x3b0] sm:$0xff]
    %v2167 = vld [vmem:[%s3 + $0x3b8] sm:$0xff]
    %v2168 = vld [vmem:[%s3 + $0x3c0] sm:$0xff]
    %v2169 = vld [vmem:[%s3 + $0x3c8] sm:$0xff]
    %v2170 = vld [vmem:[%s3 + $0x3d0] sm:$0xff]
    %v2171 = vld [vmem:[%s3 + $0x3d8] sm:$0xff]
    %v2172 = vld [vmem:[%s3 + $0x3e0] sm:$0xff]
    %v2173 = vld [vmem:[%s3 + $0x3e8] sm:$0xff]
    %v2174 = vld [vmem:[%s3 + $0x3f0] sm:$0xff]
    %v2175 = vld [vmem:[%s3 + $0x3f8] sm:$0xff]
    %v2176 = vld [vmem:[%s4] sm:$0xf]
    %v2178 = vlaneseq
    %v2179 = vshrl.u32 %v2178, 7
    %v2180 = vsub.s32 0, %v2179
    %v2181 = vrot.slane %v2176, %v2180
    %v2182 = vlaneseq
    %v2183 = vshrl.u32 %v2182, 7
    %v2184 = vsub.s32 1, %v2183
    %v2185 = vrot.slane %v2176, %v2184
    %v2186 = vlaneseq
    %v2187 = vshrl.u32 %v2186, 7
    %v2188 = vsub.s32 2, %v2187
    %v2189 = vrot.slane %v2176, %v2188
    %v2190 = vlaneseq
    %v2191 = vshrl.u32 %v2190, 7
    %v2192 = vsub.s32 3, %v2191
    %v2193 = vrot.slane %v2176, %v2192
    %v2326 = vunpack.c.l.b16 %v2048
    %v2327 = vunpack.c.h.b16 %v2048
    %v2328 = vunpack.c.l.b16 %v2049
    %v2329 = vunpack.c.h.b16 %v2049
    %v2330 = vunpack.c.l.b16 %v2050
    %v2331 = vunpack.c.h.b16 %v2050
    %v2332 = vunpack.c.l.b16 %v2051
    %v2333 = vunpack.c.h.b16 %v2051
    %v2334 = vunpack.c.l.b16 %v2052
    %v2335 = vunpack.c.h.b16 %v2052
    %v2336 = vunpack.c.l.b16 %v2053
    %v2337 = vunpack.c.h.b16 %v2053
    %v2338 = vunpack.c.l.b16 %v2054
    %v2339 = vunpack.c.h.b16 %v2054
    %v2340 = vunpack.c.l.b16 %v2055
    %v2341 = vunpack.c.h.b16 %v2055
    %v2342 = vunpack.c.l.b16 %v2056
    %v2343 = vunpack.c.h.b16 %v2056
    %v2344 = vunpack.c.l.b16 %v2057
    %v2345 = vunpack.c.h.b16 %v2057
    %v2346 = vunpack.c.l.b16 %v2058
    %v2347 = vunpack.c.h.b16 %v2058
    %v2348 = vunpack.c.l.b16 %v2059
    %v2349 = vunpack.c.h.b16 %v2059
    %v2350 = vunpack.c.l.b16 %v2060
    %v2351 = vunpack.c.h.b16 %v2060
    %v2352 = vunpack.c.l.b16 %v2061
    %v2353 = vunpack.c.h.b16 %v2061
    %v2354 = vunpack.c.l.b16 %v2062
    %v2355 = vunpack.c.h.b16 %v2062
    %v2356 = vunpack.c.l.b16 %v2063
    %v2357 = vunpack.c.h.b16 %v2063
    %v2358 = vunpack.c.l.b16 %v2064
    %v2359 = vunpack.c.h.b16 %v2064
    %v2360 = vunpack.c.l.b16 %v2065
    %v2361 = vunpack.c.h.b16 %v2065
    %v2362 = vunpack.c.l.b16 %v2066
    %v2363 = vunpack.c.h.b16 %v2066
    %v2364 = vunpack.c.l.b16 %v2067
    %v2365 = vunpack.c.h.b16 %v2067
    %v2366 = vunpack.c.l.b16 %v2068
    %v2367 = vunpack.c.h.b16 %v2068
    %v2368 = vunpack.c.l.b16 %v2069
    %v2369 = vunpack.c.h.b16 %v2069
    %v2370 = vunpack.c.l.b16 %v2070
    %v2371 = vunpack.c.h.b16 %v2070
    %v2372 = vunpack.c.l.b16 %v2071
    %v2373 = vunpack.c.h.b16 %v2071
    %v2374 = vunpack.c.l.b16 %v2072
    %v2375 = vunpack.c.h.b16 %v2072
    %v2376 = vunpack.c.l.b16 %v2073
    %v2377 = vunpack.c.h.b16 %v2073
    %v2378 = vunpack.c.l.b16 %v2074
    %v2379 = vunpack.c.h.b16 %v2074
    %v2380 = vunpack.c.l.b16 %v2075
    %v2381 = vunpack.c.h.b16 %v2075
    %v2382 = vunpack.c.l.b16 %v2076
    %v2383 = vunpack.c.h.b16 %v2076
    %v2384 = vunpack.c.l.b16 %v2077
    %v2385 = vunpack.c.h.b16 %v2077
    %v2386 = vunpack.c.l.b16 %v2078
    %v2387 = vunpack.c.h.b16 %v2078
    %v2388 = vunpack.c.l.b16 %v2079
    %v2389 = vunpack.c.h.b16 %v2079
    %v2390 = vunpack.c.l.b16 %v2080
    %v2391 = vunpack.c.h.b16 %v2080
    %v2392 = vunpack.c.l.b16 %v2081
    %v2393 = vunpack.c.h.b16 %v2081
    %v2394 = vunpack.c.l.b16 %v2082
    %v2395 = vunpack.c.h.b16 %v2082
    %v2396 = vunpack.c.l.b16 %v2083
    %v2397 = vunpack.c.h.b16 %v2083
    %v2398 = vunpack.c.l.b16 %v2084
    %v2399 = vunpack.c.h.b16 %v2084
    %v2400 = vunpack.c.l.b16 %v2085
    %v2401 = vunpack.c.h.b16 %v2085
    %v2402 = vunpack.c.l.b16 %v2086
    %v2403 = vunpack.c.h.b16 %v2086
    %v2404 = vunpack.c.l.b16 %v2087
    %v2405 = vunpack.c.h.b16 %v2087
    %v2406 = vunpack.c.l.b16 %v2088
    %v2407 = vunpack.c.h.b16 %v2088
    %v2408 = vunpack.c.l.b16 %v2089
    %v2409 = vunpack.c.h.b16 %v2089
    %v2410 = vunpack.c.l.b16 %v2090
    %v2411 = vunpack.c.h.b16 %v2090
    %v2412 = vunpack.c.l.b16 %v2091
    %v2413 = vunpack.c.h.b16 %v2091
    %v2414 = vunpack.c.l.b16 %v2092
    %v2415 = vunpack.c.h.b16 %v2092
    %v2416 = vunpack.c.l.b16 %v2093
    %v2417 = vunpack.c.h.b16 %v2093
    %v2418 = vunpack.c.l.b16 %v2094
    %v2419 = vunpack.c.h.b16 %v2094
    %v2420 = vunpack.c.l.b16 %v2095
    %v2421 = vunpack.c.h.b16 %v2095
    %v2422 = vunpack.c.l.b16 %v2096
    %v2423 = vunpack.c.h.b16 %v2096
    %v2424 = vunpack.c.l.b16 %v2097
    %v2425 = vunpack.c.h.b16 %v2097
    %v2426 = vunpack.c.l.b16 %v2098
    %v2427 = vunpack.c.h.b16 %v2098
    %v2428 = vunpack.c.l.b16 %v2099
    %v2429 = vunpack.c.h.b16 %v2099
    %v2430 = vunpack.c.l.b16 %v2100
    %v2431 = vunpack.c.h.b16 %v2100
    %v2432 = vunpack.c.l.b16 %v2101
    %v2433 = vunpack.c.h.b16 %v2101
    %v2434 = vunpack.c.l.b16 %v2102
    %v2435 = vunpack.c.h.b16 %v2102
    %v2436 = vunpack.c.l.b16 %v2103
    %v2437 = vunpack.c.h.b16 %v2103
    %v2438 = vunpack.c.l.b16 %v2104
    %v2439 = vunpack.c.h.b16 %v2104
    %v2440 = vunpack.c.l.b16 %v2105
    %v2441 = vunpack.c.h.b16 %v2105
    %v2442 = vunpack.c.l.b16 %v2106
    %v2443 = vunpack.c.h.b16 %v2106
    %v2444 = vunpack.c.l.b16 %v2107
    %v2445 = vunpack.c.h.b16 %v2107
    %v2446 = vunpack.c.l.b16 %v2108
    %v2447 = vunpack.c.h.b16 %v2108
    %v2448 = vunpack.c.l.b16 %v2109
    %v2449 = vunpack.c.h.b16 %v2109
    %v2450 = vunpack.c.l.b16 %v2110
    %v2451 = vunpack.c.h.b16 %v2110
    %v2452 = vunpack.c.l.b16 %v2111
    %v2453 = vunpack.c.h.b16 %v2111
    %v2454 = vunpack.c.l.b16 %v2112
    %v2455 = vunpack.c.h.b16 %v2112
    %v2456 = vunpack.c.l.b16 %v2113
    %v2457 = vunpack.c.h.b16 %v2113
    %v2458 = vunpack.c.l.b16 %v2114
    %v2459 = vunpack.c.h.b16 %v2114
    %v2460 = vunpack.c.l.b16 %v2115
    %v2461 = vunpack.c.h.b16 %v2115
    %v2462 = vunpack.c.l.b16 %v2116
    %v2463 = vunpack.c.h.b16 %v2116
    %v2464 = vunpack.c.l.b16 %v2117
    %v2465 = vunpack.c.h.b16 %v2117
    %v2466 = vunpack.c.l.b16 %v2118
    %v2467 = vunpack.c.h.b16 %v2118
    %v2468 = vunpack.c.l.b16 %v2119
    %v2469 = vunpack.c.h.b16 %v2119
    %v2470 = vunpack.c.l.b16 %v2120
    %v2471 = vunpack.c.h.b16 %v2120
    %v2472 = vunpack.c.l.b16 %v2121
    %v2473 = vunpack.c.h.b16 %v2121
    %v2474 = vunpack.c.l.b16 %v2122
    %v2475 = vunpack.c.h.b16 %v2122
    %v2476 = vunpack.c.l.b16 %v2123
    %v2477 = vunpack.c.h.b16 %v2123
    %v2478 = vunpack.c.l.b16 %v2124
    %v2479 = vunpack.c.h.b16 %v2124
    %v2480 = vunpack.c.l.b16 %v2125
    %v2481 = vunpack.c.h.b16 %v2125
    %v2482 = vunpack.c.l.b16 %v2126
    %v2483 = vunpack.c.h.b16 %v2126
    %v2484 = vunpack.c.l.b16 %v2127
    %v2485 = vunpack.c.h.b16 %v2127
    %v2486 = vunpack.c.l.b16 %v2128
    %v2487 = vunpack.c.h.b16 %v2128
    %v2488 = vunpack.c.l.b16 %v2129
    %v2489 = vunpack.c.h.b16 %v2129
    %v2490 = vunpack.c.l.b16 %v2130
    %v2491 = vunpack.c.h.b16 %v2130
    %v2492 = vunpack.c.l.b16 %v2131
    %v2493 = vunpack.c.h.b16 %v2131
    %v2494 = vunpack.c.l.b16 %v2132
    %v2495 = vunpack.c.h.b16 %v2132
    %v2496 = vunpack.c.l.b16 %v2133
    %v2497 = vunpack.c.h.b16 %v2133
    %v2498 = vunpack.c.l.b16 %v2134
    %v2499 = vunpack.c.h.b16 %v2134
    %v2500 = vunpack.c.l.b16 %v2135
    %v2501 = vunpack.c.h.b16 %v2135
    %v2502 = vunpack.c.l.b16 %v2136
    %v2503 = vunpack.c.h.b16 %v2136
    %v2504 = vunpack.c.l.b16 %v2137
    %v2505 = vunpack.c.h.b16 %v2137
    %v2506 = vunpack.c.l.b16 %v2138
    %v2507 = vunpack.c.h.b16 %v2138
    %v2508 = vunpack.c.l.b16 %v2139
    %v2509 = vunpack.c.h.b16 %v2139
    %v2510 = vunpack.c.l.b16 %v2140
    %v2511 = vunpack.c.h.b16 %v2140
    %v2512 = vunpack.c.l.b16 %v2141
    %v2513 = vunpack.c.h.b16 %v2141
    %v2514 = vunpack.c.l.b16 %v2142
    %v2515 = vunpack.c.h.b16 %v2142
    %v2516 = vunpack.c.l.b16 %v2143
    %v2517 = vunpack.c.h.b16 %v2143
    %v2518 = vunpack.c.l.b16 %v2144
    %v2519 = vunpack.c.h.b16 %v2144
    %v2520 = vunpack.c.l.b16 %v2145
    %v2521 = vunpack.c.h.b16 %v2145
    %v2522 = vunpack.c.l.b16 %v2146
    %v2523 = vunpack.c.h.b16 %v2146
    %v2524 = vunpack.c.l.b16 %v2147
    %v2525 = vunpack.c.h.b16 %v2147
    %v2526 = vunpack.c.l.b16 %v2148
    %v2527 = vunpack.c.h.b16 %v2148
    %v2528 = vunpack.c.l.b16 %v2149
    %v2529 = vunpack.c.h.b16 %v2149
    %v2530 = vunpack.c.l.b16 %v2150
    %v2531 = vunpack.c.h.b16 %v2150
    %v2532 = vunpack.c.l.b16 %v2151
    %v2533 = vunpack.c.h.b16 %v2151
    %v2534 = vunpack.c.l.b16 %v2152
    %v2535 = vunpack.c.h.b16 %v2152
    %v2536 = vunpack.c.l.b16 %v2153
    %v2537 = vunpack.c.h.b16 %v2153
    %v2538 = vunpack.c.l.b16 %v2154
    %v2539 = vunpack.c.h.b16 %v2154
    %v2540 = vunpack.c.l.b16 %v2155
    %v2541 = vunpack.c.h.b16 %v2155
    %v2542 = vunpack.c.l.b16 %v2156
    %v2543 = vunpack.c.h.b16 %v2156
    %v2544 = vunpack.c.l.b16 %v2157
    %v2545 = vunpack.c.h.b16 %v2157
    %v2546 = vunpack.c.l.b16 %v2158
    %v2547 = vunpack.c.h.b16 %v2158
    %v2548 = vunpack.c.l.b16 %v2159
    %v2549 = vunpack.c.h.b16 %v2159
    %v2550 = vunpack.c.l.b16 %v2160
    %v2551 = vunpack.c.h.b16 %v2160
    %v2552 = vunpack.c.l.b16 %v2161
    %v2553 = vunpack.c.h.b16 %v2161
    %v2554 = vunpack.c.l.b16 %v2162
    %v2555 = vunpack.c.h.b16 %v2162
    %v2556 = vunpack.c.l.b16 %v2163
    %v2557 = vunpack.c.h.b16 %v2163
    %v2558 = vunpack.c.l.b16 %v2164
    %v2559 = vunpack.c.h.b16 %v2164
    %v2560 = vunpack.c.l.b16 %v2165
    %v2561 = vunpack.c.h.b16 %v2165
    %v2562 = vunpack.c.l.b16 %v2166
    %v2563 = vunpack.c.h.b16 %v2166
    %v2564 = vunpack.c.l.b16 %v2167
    %v2565 = vunpack.c.h.b16 %v2167
    %v2566 = vunpack.c.l.b16 %v2168
    %v2567 = vunpack.c.h.b16 %v2168
    %v2568 = vunpack.c.l.b16 %v2169
    %v2569 = vunpack.c.h.b16 %v2169
    %v2570 = vunpack.c.l.b16 %v2170
    %v2571 = vunpack.c.h.b16 %v2170
    %v2572 = vunpack.c.l.b16 %v2171
    %v2573 = vunpack.c.h.b16 %v2171
    %v2574 = vunpack.c.l.b16 %v2172
    %v2575 = vunpack.c.h.b16 %v2172
    %v2576 = vunpack.c.l.b16 %v2173
    %v2577 = vunpack.c.h.b16 %v2173
    %v2578 = vunpack.c.l.b16 %v2174
    %v2579 = vunpack.c.h.b16 %v2174
    %v2580 = vunpack.c.l.b16 %v2175
    %v2581 = vunpack.c.h.b16 %v2175
    %v2582 = vpack.c.b16 %v2330, %v2326
    %v2583 = vpack.c.b16 %v2331, %v2327
    %v2584 = vpack.c.b16 %v2332, %v2328
    %v2585 = vpack.c.b16 %v2333, %v2329
    %v2586 = vpack.c.b16 %v2338, %v2334
    %v2587 = vpack.c.b16 %v2339, %v2335
    %v2588 = vpack.c.b16 %v2340, %v2336
    %v2589 = vpack.c.b16 %v2341, %v2337
    %v2590 = vpack.c.b16 %v2346, %v2342
    %v2591 = vpack.c.b16 %v2347, %v2343
    %v2592 = vpack.c.b16 %v2348, %v2344
    %v2593 = vpack.c.b16 %v2349, %v2345
    %v2594 = vpack.c.b16 %v2354, %v2350
    %v2595 = vpack.c.b16 %v2355, %v2351
    %v2596 = vpack.c.b16 %v2356, %v2352
    %v2597 = vpack.c.b16 %v2357, %v2353
    %v2598 = vpack.c.b16 %v2362, %v2358
    %v2599 = vpack.c.b16 %v2363, %v2359
    %v2600 = vpack.c.b16 %v2364, %v2360
    %v2601 = vpack.c.b16 %v2365, %v2361
    %v2602 = vpack.c.b16 %v2370, %v2366
    %v2603 = vpack.c.b16 %v2371, %v2367
    %v2604 = vpack.c.b16 %v2372, %v2368
    %v2605 = vpack.c.b16 %v2373, %v2369
    %v2606 = vpack.c.b16 %v2378, %v2374
    %v2607 = vpack.c.b16 %v2379, %v2375
    %v2608 = vpack.c.b16 %v2380, %v2376
    %v2609 = vpack.c.b16 %v2381, %v2377
    %v2610 = vpack.c.b16 %v2386, %v2382
    %v2611 = vpack.c.b16 %v2387, %v2383
    %v2612 = vpack.c.b16 %v2388, %v2384
    %v2613 = vpack.c.b16 %v2389, %v2385
    %v2614 = vpack.c.b16 %v2394, %v2390
    %v2615 = vpack.c.b16 %v2395, %v2391
    %v2616 = vpack.c.b16 %v2396, %v2392
    %v2617 = vpack.c.b16 %v2397, %v2393
    %v2618 = vpack.c.b16 %v2402, %v2398
    %v2619 = vpack.c.b16 %v2403, %v2399
    %v2620 = vpack.c.b16 %v2404, %v2400
    %v2621 = vpack.c.b16 %v2405, %v2401
    %v2622 = vpack.c.b16 %v2410, %v2406
    %v2623 = vpack.c.b16 %v2411, %v2407
    %v2624 = vpack.c.b16 %v2412, %v2408
    %v2625 = vpack.c.b16 %v2413, %v2409
    %v2626 = vpack.c.b16 %v2418, %v2414
    %v2627 = vpack.c.b16 %v2419, %v2415
    %v2628 = vpack.c.b16 %v2420, %v2416
    %v2629 = vpack.c.b16 %v2421, %v2417
    %v2630 = vpack.c.b16 %v2426, %v2422
    %v2631 = vpack.c.b16 %v2427, %v2423
    %v2632 = vpack.c.b16 %v2428, %v2424
    %v2633 = vpack.c.b16 %v2429, %v2425
    %v2634 = vpack.c.b16 %v2434, %v2430
    %v2635 = vpack.c.b16 %v2435, %v2431
    %v2636 = vpack.c.b16 %v2436, %v2432
    %v2637 = vpack.c.b16 %v2437, %v2433
    %v2638 = vpack.c.b16 %v2442, %v2438
    %v2639 = vpack.c.b16 %v2443, %v2439
    %v2640 = vpack.c.b16 %v2444, %v2440
    %v2641 = vpack.c.b16 %v2445, %v2441
    %v2642 = vpack.c.b16 %v2450, %v2446
    %v2643 = vpack.c.b16 %v2451, %v2447
    %v2644 = vpack.c.b16 %v2452, %v2448
    %v2645 = vpack.c.b16 %v2453, %v2449
    %v2646 = vpack.c.b16 %v2458, %v2454
    %v2647 = vpack.c.b16 %v2459, %v2455
    %v2648 = vpack.c.b16 %v2460, %v2456
    %v2649 = vpack.c.b16 %v2461, %v2457
    %v2650 = vpack.c.b16 %v2466, %v2462
    %v2651 = vpack.c.b16 %v2467, %v2463
    %v2652 = vpack.c.b16 %v2468, %v2464
    %v2653 = vpack.c.b16 %v2469, %v2465
    %v2654 = vpack.c.b16 %v2474, %v2470
    %v2655 = vpack.c.b16 %v2475, %v2471
    %v2656 = vpack.c.b16 %v2476, %v2472
    %v2657 = vpack.c.b16 %v2477, %v2473
    %v2658 = vpack.c.b16 %v2482, %v2478
    %v2659 = vpack.c.b16 %v2483, %v2479
    %v2660 = vpack.c.b16 %v2484, %v2480
    %v2661 = vpack.c.b16 %v2485, %v2481
    %v2662 = vpack.c.b16 %v2490, %v2486
    %v2663 = vpack.c.b16 %v2491, %v2487
    %v2664 = vpack.c.b16 %v2492, %v2488
    %v2665 = vpack.c.b16 %v2493, %v2489
    %v2666 = vpack.c.b16 %v2498, %v2494
    %v2667 = vpack.c.b16 %v2499, %v2495
    %v2668 = vpack.c.b16 %v2500, %v2496
    %v2669 = vpack.c.b16 %v2501, %v2497
    %v2670 = vpack.c.b16 %v2506, %v2502
    %v2671 = vpack.c.b16 %v2507, %v2503
    %v2672 = vpack.c.b16 %v2508, %v2504
    %v2673 = vpack.c.b16 %v2509, %v2505
    %v2674 = vpack.c.b16 %v2514, %v2510
    %v2675 = vpack.c.b16 %v2515, %v2511
    %v2676 = vpack.c.b16 %v2516, %v2512
    %v2677 = vpack.c.b16 %v2517, %v2513
    %v2678 = vpack.c.b16 %v2522, %v2518
    %v2679 = vpack.c.b16 %v2523, %v2519
    %v2680 = vpack.c.b16 %v2524, %v2520
    %v2681 = vpack.c.b16 %v2525, %v2521
    %v2682 = vpack.c.b16 %v2530, %v2526
    %v2683 = vpack.c.b16 %v2531, %v2527
    %v2684 = vpack.c.b16 %v2532, %v2528
    %v2685 = vpack.c.b16 %v2533, %v2529
    %v2686 = vpack.c.b16 %v2538, %v2534
    %v2687 = vpack.c.b16 %v2539, %v2535
    %v2688 = vpack.c.b16 %v2540, %v2536
    %v2689 = vpack.c.b16 %v2541, %v2537
    %v2690 = vpack.c.b16 %v2546, %v2542
    %v2691 = vpack.c.b16 %v2547, %v2543
    %v2692 = vpack.c.b16 %v2548, %v2544
    %v2693 = vpack.c.b16 %v2549, %v2545
    %v2694 = vpack.c.b16 %v2554, %v2550
    %v2695 = vpack.c.b16 %v2555, %v2551
    %v2696 = vpack.c.b16 %v2556, %v2552
    %v2697 = vpack.c.b16 %v2557, %v2553
    %v2698 = vpack.c.b16 %v2562, %v2558
    %v2699 = vpack.c.b16 %v2563, %v2559
    %v2700 = vpack.c.b16 %v2564, %v2560
    %v2701 = vpack.c.b16 %v2565, %v2561
    %v2702 = vpack.c.b16 %v2570, %v2566
    %v2703 = vpack.c.b16 %v2571, %v2567
    %v2704 = vpack.c.b16 %v2572, %v2568
    %v2705 = vpack.c.b16 %v2573, %v2569
    %v2706 = vpack.c.b16 %v2578, %v2574
    %v2707 = vpack.c.b16 %v2579, %v2575
    %v2708 = vpack.c.b16 %v2580, %v2576
    %v2709 = vpack.c.b16 %v2581, %v2577
    %2838 = vmatprep.subr.bf16.mxu0 %v2583
    %2839 = vmatpush1.bf16.msra.mxu0 %v2582
    %2840 = vmatprep.subr.bf16.mxu0 %v2587
    %2841 = vmatpush1.bf16.msra.mxu0 %v2586
    %2842 = vmatprep.subr.bf16.mxu0 %v2591
    %2843 = vmatpush1.bf16.msra.mxu0 %v2590
    %2844 = vmatprep.subr.bf16.mxu0 %v2595
    %2845 = vmatpush1.bf16.msra.mxu0 %v2594
    %2846 = vmatprep.subr.bf16.mxu0 %v2599
    %2847 = vmatpush1.bf16.msra.mxu0 %v2598
    %2848 = vmatprep.subr.bf16.mxu0 %v2603
    %2849 = vmatpush1.bf16.msra.mxu0 %v2602
    %2850 = vmatprep.subr.bf16.mxu0 %v2607
    %2851 = vmatpush1.bf16.msra.mxu0 %v2606
    %2852 = vmatprep.subr.bf16.mxu0 %v2611
    %2853 = vmatpush1.bf16.msra.mxu0 %v2610
    %2854 = vmatprep.subr.bf16.mxu0 %v2615
    %2855 = vmatpush1.bf16.msra.mxu0 %v2614
    %2856 = vmatprep.subr.bf16.mxu0 %v2619
    %2857 = vmatpush1.bf16.msra.mxu0 %v2618
    %2858 = vmatprep.subr.bf16.mxu0 %v2623
    %2859 = vmatpush1.bf16.msra.mxu0 %v2622
    %2860 = vmatprep.subr.bf16.mxu0 %v2627
    %2861 = vmatpush1.bf16.msra.mxu0 %v2626
    %2862 = vmatprep.subr.bf16.mxu0 %v2631
    %2863 = vmatpush1.bf16.msra.mxu0 %v2630
    %2864 = vmatprep.subr.bf16.mxu0 %v2635
    %2865 = vmatpush1.bf16.msra.mxu0 %v2634
    %2866 = vmatprep.subr.bf16.mxu0 %v2639
    %2867 = vmatpush1.bf16.msra.mxu0 %v2638
    %2868 = vmatprep.subr.bf16.mxu0 %v2643
    %2869 = vmatpush1.bf16.msra.mxu0 %v2642
    %2870 = vmatprep.mubr.bf16.mxu0 %v2045
    %2871 = vmatmul.mubr.bf16.gmra.mrb[0].mxu0 %v2044
    %v2872 = vpop.f32.mrb[0].mxu0
    %v2873 = vadd.f32 %v2181, %v2872
    %v2874 = vpop.f32.mrb[0].mxu0
    %v2875 = vadd.f32 %v2185, %v2874
    %v2876 = vpop.f32.mrb[0].mxu0
    %v2877 = vpop.f32.mrb[0].mxu0
    %2878 = vdwg.mxu0
    %2879 = vmatprep.subr.bf16.mxu0 %v2647
    %2880 = vmatpush1.bf16.msra.mxu0 %v2646
    %2881 = vmatprep.subr.bf16.mxu0 %v2651
    %2882 = vmatpush1.bf16.msra.mxu0 %v2650
    %2883 = vmatprep.subr.bf16.mxu0 %v2655
    %2884 = vmatpush1.bf16.msra.mxu0 %v2654
    %2885 = vmatprep.subr.bf16.mxu0 %v2659
    %2886 = vmatpush1.bf16.msra.mxu0 %v2658
    %2887 = vmatprep.subr.bf16.mxu0 %v2663
    %2888 = vmatpush1.bf16.msra.mxu0 %v2662
    %2889 = vmatprep.subr.bf16.mxu0 %v2667
    %2890 = vmatpush1.bf16.msra.mxu0 %v2666
    %2891 = vmatprep.subr.bf16.mxu0 %v2671
    %2892 = vmatpush1.bf16.msra.mxu0 %v2670
    %2893 = vmatprep.subr.bf16.mxu0 %v2675
    %2894 = vmatpush1.bf16.msra.mxu0 %v2674
    %2895 = vmatprep.subr.bf16.mxu0 %v2679
    %2896 = vmatpush1.bf16.msra.mxu0 %v2678
    %2897 = vmatprep.subr.bf16.mxu0 %v2683
    %2898 = vmatpush1.bf16.msra.mxu0 %v2682
    %2899 = vmatprep.subr.bf16.mxu0 %v2687
    %2900 = vmatpush1.bf16.msra.mxu0 %v2686
    %2901 = vmatprep.subr.bf16.mxu0 %v2691
    %2902 = vmatpush1.bf16.msra.mxu0 %v2690
    %2903 = vmatprep.subr.bf16.mxu0 %v2695
    %2904 = vmatpush1.bf16.msra.mxu0 %v2694
    %2905 = vmatprep.subr.bf16.mxu0 %v2699
    %2906 = vmatpush1.bf16.msra.mxu0 %v2698
    %2907 = vmatprep.subr.bf16.mxu0 %v2703
    %2908 = vmatpush1.bf16.msra.mxu0 %v2702
    %2909 = vmatprep.subr.bf16.mxu0 %v2707
    %2910 = vmatpush1.bf16.msra.mxu0 %v2706
    %2911 = vmatprep.mubr.bf16.mxu0 %v2047
    %2912 = vmatmul.mubr.bf16.gmra.mrb[0].mxu0 %v2046
    %v2913 = vpop.f32.mrb[0].mxu0
    %v2914 = vadd.f32 %v2873, %v2913
    %v2915 = vpop.f32.mrb[0].mxu0
    %v2916 = vadd.f32 %v2875, %v2915
    %v2917 = vpop.f32.mrb[0].mxu0
    %v2918 = vpop.f32.mrb[0].mxu0
    %2919 = vdwg.mxu0
    %2920 = vmatprep.subr.bf16.mxu0 %v2585
    %2921 = vmatpush1.bf16.msra.mxu0 %v2584
    %2922 = vmatprep.subr.bf16.mxu0 %v2589
    %2923 = vmatpush1.bf16.msra.mxu0 %v2588
    %2924 = vmatprep.subr.bf16.mxu0 %v2593
    %2925 = vmatpush1.bf16.msra.mxu0 %v2592
    %2926 = vmatprep.subr.bf16.mxu0 %v2597
    %2927 = vmatpush1.bf16.msra.mxu0 %v2596
    %2928 = vmatprep.subr.bf16.mxu0 %v2601
    %2929 = vmatpush1.bf16.msra.mxu0 %v2600
    %2930 = vmatprep.subr.bf16.mxu0 %v2605
    %2931 = vmatpush1.bf16.msra.mxu0 %v2604
    %2932 = vmatprep.subr.bf16.mxu0 %v2609
    %2933 = vmatpush1.bf16.msra.mxu0 %v2608
    %2934 = vmatprep.subr.bf16.mxu0 %v2613
    %2935 = vmatpush1.bf16.msra.mxu0 %v2612
    %2936 = vmatprep.subr.bf16.mxu0 %v2617
    %2937 = vmatpush1.bf16.msra.mxu0 %v2616
    %2938 = vmatprep.subr.bf16.mxu0 %v2621
    %2939 = vmatpush1.bf16.msra.mxu0 %v2620
    %2940 = vmatprep.subr.bf16.mxu0 %v2625
    %2941 = vmatpush1.bf16.msra.mxu0 %v2624
    %2942 = vmatprep.subr.bf16.mxu0 %v2629
    %2943 = vmatpush1.bf16.msra.mxu0 %v2628
    %2944 = vmatprep.subr.bf16.mxu0 %v2633
    %2945 = vmatpush1.bf16.msra.mxu0 %v2632
    %2946 = vmatprep.subr.bf16.mxu0 %v2637
    %2947 = vmatpush1.bf16.msra.mxu0 %v2636
    %2948 = vmatprep.subr.bf16.mxu0 %v2641
    %2949 = vmatpush1.bf16.msra.mxu0 %v2640
    %2950 = vmatprep.subr.bf16.mxu0 %v2645
    %2951 = vmatpush1.bf16.msra.mxu0 %v2644
    %2952 = vmatprep.mubr.bf16.mxu0 %v2045
    %2953 = vmatmul.mubr.bf16.gmra.mrb[0].mxu0 %v2044
    %v2954 = vpop.f32.mrb[0].mxu0
    %v2955 = vadd.f32 %v2189, %v2954
    %v2956 = vpop.f32.mrb[0].mxu0
    %v2957 = vadd.f32 %v2193, %v2956
    %v2958 = vpop.f32.mrb[0].mxu0
    %v2959 = vpop.f32.mrb[0].mxu0
    %2960 = vdwg.mxu0
    %2961 = vmatprep.subr.bf16.mxu0 %v2649
    %2962 = vmatpush1.bf16.msra.mxu0 %v2648
    %2963 = vmatprep.subr.bf16.mxu0 %v2653
    %2964 = vmatpush1.bf16.msra.mxu0 %v2652
    %2965 = vmatprep.subr.bf16.mxu0 %v2657
    %2966 = vmatpush1.bf16.msra.mxu0 %v2656
    %2967 = vmatprep.subr.bf16.mxu0 %v2661
    %2968 = vmatpush1.bf16.msra.mxu0 %v2660
    %2969 = vmatprep.subr.bf16.mxu0 %v2665
    %2970 = vmatpush1.bf16.msra.mxu0 %v2664
    %2971 = vmatprep.subr.bf16.mxu0 %v2669
    %2972 = vmatpush1.bf16.msra.mxu0 %v2668
    %2973 = vmatprep.subr.bf16.mxu0 %v2673
    %2974 = vmatpush1.bf16.msra.mxu0 %v2672
    %2975 = vmatprep.subr.bf16.mxu0 %v2677
    %2976 = vmatpush1.bf16.msra.mxu0 %v2676
    %2977 = vmatprep.subr.bf16.mxu0 %v2681
    %2978 = vmatpush1.bf16.msra.mxu0 %v2680
    %2979 = vmatprep.subr.bf16.mxu0 %v2685
    %2980 = vmatpush1.bf16.msra.mxu0 %v2684
    %2981 = vmatprep.subr.bf16.mxu0 %v2689
    %2982 = vmatpush1.bf16.msra.mxu0 %v2688
    %2983 = vmatprep.subr.bf16.mxu0 %v2693
    %2984 = vmatpush1.bf16.msra.mxu0 %v2692
    %2985 = vmatprep.subr.bf16.mxu0 %v2697
    %2986 = vmatpush1.bf16.msra.mxu0 %v2696
    %2987 = vmatprep.subr.bf16.mxu0 %v2701
    %2988 = vmatpush1.bf16.msra.mxu0 %v2700
    %2989 = vmatprep.subr.bf16.mxu0 %v2705
    %2990 = vmatpush1.bf16.msra.mxu0 %v2704
    %2991 = vmatprep.subr.bf16.mxu0 %v2709
    %2992 = vmatpush1.bf16.msra.mxu0 %v2708
    %2993 = vmatprep.mubr.bf16.mxu0 %v2047
    %2994 = vmatmul.mubr.bf16.gmra.mrb[0].mxu0 %v2046
    %v2995 = vpop.f32.mrb[0].mxu0
    %v2996 = vadd.f32 %v2955, %v2995
    %v2997 = vpop.f32.mrb[0].mxu0
    %v2998 = vadd.f32 %v2957, %v2997
    %v2999 = vpop.f32.mrb[0].mxu0
    %v3000 = vpop.f32.mrb[0].mxu0
    %3001 = vdwg.mxu0
    %v3002 = vmul.f32 %v2914, 0.5
    %v3003 = vmul.f32 %v2916, 0.5
    %v3004 = vmul.f32 %v2996, 0.5
    %v3005 = vmul.f32 %v2998, 0.5
    %v3006 = vmul.f32 %v2914, 0.044715
    %v3007 = vmul.f32 %v2916, 0.044715
    %v3008 = vmul.f32 %v2996, 0.044715
    %v3009 = vmul.f32 %v2998, 0.044715
    %v3010 = vmul.f32 %v3006, %v2914
    %v3011 = vmul.f32 %v3007, %v2916
    %v3012 = vmul.f32 %v3008, %v2996
    %v3013 = vmul.f32 %v3009, %v2998
    %v3014 = vmul.f32 %v3010, %v2914
    %v3015 = vmul.f32 %v3011, %v2916
    %v3016 = vmul.f32 %v3012, %v2996
    %v3017 = vmul.f32 %v3013, %v2998
    %v3018 = vadd.f32 %v2914, %v3014
    %v3019 = vadd.f32 %v2916, %v3015
    %v3020 = vadd.f32 %v2996, %v3016
    %v3021 = vadd.f32 %v2998, %v3017
    %v3022 = vmul.f32 %v3018, 0.7978846
    %v3023 = vmul.f32 %v3019, 0.7978846
    %v3024 = vmul.f32 %v3020, 0.7978846
    %v3025 = vmul.f32 %v3021, 0.7978846
    %v3026 = vtanh.pop %v3022
    %v3027 = vtanh.pop %v3023
    %v3028 = vtanh.pop %v3024
    %v3029 = vtanh.pop %v3025
    %v3030 = vadd.f32 %v3026, 1.0
    %v3031 = vadd.f32 %v3027, 1.0
    %v3032 = vadd.f32 %v3028, 1.0
    %v3033 = vadd.f32 %v3029, 1.0
    %v3034 = vmul.f32 %v3002, %v3030
    %v3035 = vmul.f32 %v3003, %v3031
    %v3036 = vmul.f32 %v3004, %v3032
    %v3037 = vmul.f32 %v3005, %v3033
    %v3038 = vpack.c.bf16 %v3034, %v3034
    %v3039 = vpack.c.bf16 %v3035, %v3035
    %v3040 = vpack.c.bf16 %v3036, %v3036
    %v3041 = vpack.c.bf16 %v3037, %v3037
    %v3042 = vld [vmem:[#allocation5] sm:$0xff]
    %v3043 = vld [vmem:[#allocation5 + $0x8] sm:$0xff]
    %v3044 = vld [vmem:[#allocation5 + $0x10] sm:$0xff]
    %v3045 = vld [vmem:[#allocation5 + $0x18] sm:$0xff]
    %v3046 = vld [vmem:[#allocation5 + $0x20] sm:$0xff]
    %v3047 = vld [vmem:[#allocation5 + $0x28] sm:$0xff]
    %v3048 = vld [vmem:[#allocation5 + $0x30] sm:$0xff]
    %v3049 = vld [vmem:[#allocation5 + $0x38] sm:$0xff]
    %v3050 = vld [vmem:[#allocation5 + $0x40] sm:$0xff]
    %v3051 = vld [vmem:[#allocation5 + $0x48] sm:$0xff]
    %v3052 = vld [vmem:[#allocation5 + $0x50] sm:$0xff]
    %v3053 = vld [vmem:[#allocation5 + $0x58] sm:$0xff]
    %v3054 = vld [vmem:[#allocation5 + $0x60] sm:$0xff]
    %v3055 = vld [vmem:[#allocation5 + $0x68] sm:$0xff]
    %v3056 = vld [vmem:[#allocation5 + $0x70] sm:$0xff]
    %v3057 = vld [vmem:[#allocation5 + $0x78] sm:$0xff]
    %v3058 = vld [vmem:[#allocation5 + $0x80] sm:$0xff]
    %v3059 = vld [vmem:[#allocation5 + $0x88] sm:$0xff]
    %v3060 = vld [vmem:[#allocation5 + $0x90] sm:$0xff]
    %v3061 = vld [vmem:[#allocation5 + $0x98] sm:$0xff]
    %v3062 = vld [vmem:[#allocation5 + $0xa0] sm:$0xff]
    %v3063 = vld [vmem:[#allocation5 + $0xa8] sm:$0xff]
    %v3064 = vld [vmem:[#allocation5 + $0xb0] sm:$0xff]
    %v3065 = vld [vmem:[#allocation5 + $0xb8] sm:$0xff]
    %v3066 = vld [vmem:[#allocation5 + $0xc0] sm:$0xff]
    %v3067 = vld [vmem:[#allocation5 + $0xc8] sm:$0xff]
    %v3068 = vld [vmem:[#allocation5 + $0xd0] sm:$0xff]
    %v3069 = vld [vmem:[#allocation5 + $0xd8] sm:$0xff]
    %v3070 = vld [vmem:[#allocation5 + $0xe0] sm:$0xff]
    %v3071 = vld [vmem:[#allocation5 + $0xe8] sm:$0xff]
    %v3072 = vld [vmem:[#allocation5 + $0xf0] sm:$0xff]
    %v3073 = vld [vmem:[#allocation5 + $0xf8] sm:$0xff]
    %v3074 = vld [vmem:[#allocation5 + $0x100] sm:$0xff]
    %v3075 = vld [vmem:[#allocation5 + $0x108] sm:$0xff]
    %v3076 = vld [vmem:[#allocation5 + $0x110] sm:$0xff]
    %v3077 = vld [vmem:[#allocation5 + $0x118] sm:$0xff]
    %v3078 = vld [vmem:[#allocation5 + $0x120] sm:$0xff]
    %v3079 = vld [vmem:[#allocation5 + $0x128] sm:$0xff]
    %v3080 = vld [vmem:[#allocation5 + $0x130] sm:$0xff]
    %v3081 = vld [vmem:[#allocation5 + $0x138] sm:$0xff]
    %v3082 = vld [vmem:[#allocation5 + $0x140] sm:$0xff]
    %v3083 = vld [vmem:[#allocation5 + $0x148] sm:$0xff]
    %v3084 = vld [vmem:[#allocation5 + $0x150] sm:$0xff]
    %v3085 = vld [vmem:[#allocation5 + $0x158] sm:$0xff]
    %v3086 = vld [vmem:[#allocation5 + $0x160] sm:$0xff]
    %v3087 = vld [vmem:[#allocation5 + $0x168] sm:$0xff]
    %v3088 = vld [vmem:[#allocation5 + $0x170] sm:$0xff]
    %v3089 = vld [vmem:[#allocation5 + $0x178] sm:$0xff]
    %v3090 = vld [vmem:[#allocation5 + $0x180] sm:$0xff]
    %v3091 = vld [vmem:[#allocation5 + $0x188] sm:$0xff]
    %v3092 = vld [vmem:[#allocation5 + $0x190] sm:$0xff]
    %v3093 = vld [vmem:[#allocation5 + $0x198] sm:$0xff]
    %v3094 = vld [vmem:[#allocation5 + $0x1a0] sm:$0xff]
    %v3095 = vld [vmem:[#allocation5 + $0x1a8] sm:$0xff]
    %v3096 = vld [vmem:[#allocation5 + $0x1b0] sm:$0xff]
    %v3097 = vld [vmem:[#allocation5 + $0x1b8] sm:$0xff]
    %v3098 = vld [vmem:[#allocation5 + $0x1c0] sm:$0xff]
    %v3099 = vld [vmem:[#allocation5 + $0x1c8] sm:$0xff]
    %v3100 = vld [vmem:[#allocation5 + $0x1d0] sm:$0xff]
    %v3101 = vld [vmem:[#allocation5 + $0x1d8] sm:$0xff]
    %v3102 = vld [vmem:[#allocation5 + $0x1e0] sm:$0xff]
    %v3103 = vld [vmem:[#allocation5 + $0x1e8] sm:$0xff]
    %v3104 = vld [vmem:[#allocation5 + $0x1f0] sm:$0xff]
    %v3105 = vld [vmem:[#allocation5 + $0x1f8] sm:$0xff]
    %v3106 = vld [vmem:[%s6] sm:$0x3]
    %v3108 = vlaneseq
    %v3109 = vshrl.u32 %v3108, 7
    %v3110 = vsub.s32 0, %v3109
    %v3111 = vrot.slane %v3106, %v3110
    %v3112 = vlaneseq
    %v3113 = vshrl.u32 %v3112, 7
    %v3114 = vsub.s32 1, %v3113
    %v3115 = vrot.slane %v3106, %v3114
    %v3182 = vunpack.c.l.b16 %v3042
    %v3183 = vunpack.c.h.b16 %v3042
    %v3184 = vunpack.c.l.b16 %v3043
    %v3185 = vunpack.c.h.b16 %v3043
    %v3186 = vunpack.c.l.b16 %v3044
    %v3187 = vunpack.c.h.b16 %v3044
    %v3188 = vunpack.c.l.b16 %v3045
    %v3189 = vunpack.c.h.b16 %v3045
    %v3190 = vunpack.c.l.b16 %v3046
    %v3191 = vunpack.c.h.b16 %v3046
    %v3192 = vunpack.c.l.b16 %v3047
    %v3193 = vunpack.c.h.b16 %v3047
    %v3194 = vunpack.c.l.b16 %v3048
    %v3195 = vunpack.c.h.b16 %v3048
    %v3196 = vunpack.c.l.b16 %v3049
    %v3197 = vunpack.c.h.b16 %v3049
    %v3198 = vunpack.c.l.b16 %v3050
    %v3199 = vunpack.c.h.b16 %v3050
    %v3200 = vunpack.c.l.b16 %v3051
    %v3201 = vunpack.c.h.b16 %v3051
    %v3202 = vunpack.c.l.b16 %v3052
    %v3203 = vunpack.c.h.b16 %v3052
    %v3204 = vunpack.c.l.b16 %v3053
    %v3205 = vunpack.c.h.b16 %v3053
    %v3206 = vunpack.c.l.b16 %v3054
    %v3207 = vunpack.c.h.b16 %v3054
    %v3208 = vunpack.c.l.b16 %v3055
    %v3209 = vunpack.c.h.b16 %v3055
    %v3210 = vunpack.c.l.b16 %v3056
    %v3211 = vunpack.c.h.b16 %v3056
    %v3212 = vunpack.c.l.b16 %v3057
    %v3213 = vunpack.c.h.b16 %v3057
    %v3214 = vunpack.c.l.b16 %v3058
    %v3215 = vunpack.c.h.b16 %v3058
    %v3216 = vunpack.c.l.b16 %v3059
    %v3217 = vunpack.c.h.b16 %v3059
    %v3218 = vunpack.c.l.b16 %v3060
    %v3219 = vunpack.c.h.b16 %v3060
    %v3220 = vunpack.c.l.b16 %v3061
    %v3221 = vunpack.c.h.b16 %v3061
    %v3222 = vunpack.c.l.b16 %v3062
    %v3223 = vunpack.c.h.b16 %v3062
    %v3224 = vunpack.c.l.b16 %v3063
    %v3225 = vunpack.c.h.b16 %v3063
    %v3226 = vunpack.c.l.b16 %v3064
    %v3227 = vunpack.c.h.b16 %v3064
    %v3228 = vunpack.c.l.b16 %v3065
    %v3229 = vunpack.c.h.b16 %v3065
    %v3230 = vunpack.c.l.b16 %v3066
    %v3231 = vunpack.c.h.b16 %v3066
    %v3232 = vunpack.c.l.b16 %v3067
    %v3233 = vunpack.c.h.b16 %v3067
    %v3234 = vunpack.c.l.b16 %v3068
    %v3235 = vunpack.c.h.b16 %v3068
    %v3236 = vunpack.c.l.b16 %v3069
    %v3237 = vunpack.c.h.b16 %v3069
    %v3238 = vunpack.c.l.b16 %v3070
    %v3239 = vunpack.c.h.b16 %v3070
    %v3240 = vunpack.c.l.b16 %v3071
    %v3241 = vunpack.c.h.b16 %v3071
    %v3242 = vunpack.c.l.b16 %v3072
    %v3243 = vunpack.c.h.b16 %v3072
    %v3244 = vunpack.c.l.b16 %v3073
    %v3245 = vunpack.c.h.b16 %v3073
    %v3246 = vunpack.c.l.b16 %v3074
    %v3247 = vunpack.c.h.b16 %v3074
    %v3248 = vunpack.c.l.b16 %v3075
    %v3249 = vunpack.c.h.b16 %v3075
    %v3250 = vunpack.c.l.b16 %v3076
    %v3251 = vunpack.c.h.b16 %v3076
    %v3252 = vunpack.c.l.b16 %v3077
    %v3253 = vunpack.c.h.b16 %v3077
    %v3254 = vunpack.c.l.b16 %v3078
    %v3255 = vunpack.c.h.b16 %v3078
    %v3256 = vunpack.c.l.b16 %v3079
    %v3257 = vunpack.c.h.b16 %v3079
    %v3258 = vunpack.c.l.b16 %v3080
    %v3259 = vunpack.c.h.b16 %v3080
    %v3260 = vunpack.c.l.b16 %v3081
    %v3261 = vunpack.c.h.b16 %v3081
    %v3262 = vunpack.c.l.b16 %v3082
    %v3263 = vunpack.c.h.b16 %v3082
    %v3264 = vunpack.c.l.b16 %v3083
    %v3265 = vunpack.c.h.b16 %v3083
    %v3266 = vunpack.c.l.b16 %v3084
    %v3267 = vunpack.c.h.b16 %v3084
    %v3268 = vunpack.c.l.b16 %v3085
    %v3269 = vunpack.c.h.b16 %v3085
    %v3270 = vunpack.c.l.b16 %v3086
    %v3271 = vunpack.c.h.b16 %v3086
    %v3272 = vunpack.c.l.b16 %v3087
    %v3273 = vunpack.c.h.b16 %v3087
    %v3274 = vunpack.c.l.b16 %v3088
    %v3275 = vunpack.c.h.b16 %v3088
    %v3276 = vunpack.c.l.b16 %v3089
    %v3277 = vunpack.c.h.b16 %v3089
    %v3278 = vunpack.c.l.b16 %v3090
    %v3279 = vunpack.c.h.b16 %v3090
    %v3280 = vunpack.c.l.b16 %v3091
    %v3281 = vunpack.c.h.b16 %v3091
    %v3282 = vunpack.c.l.b16 %v3092
    %v3283 = vunpack.c.h.b16 %v3092
    %v3284 = vunpack.c.l.b16 %v3093
    %v3285 = vunpack.c.h.b16 %v3093
    %v3286 = vunpack.c.l.b16 %v3094
    %v3287 = vunpack.c.h.b16 %v3094
    %v3288 = vunpack.c.l.b16 %v3095
    %v3289 = vunpack.c.h.b16 %v3095
    %v3290 = vunpack.c.l.b16 %v3096
    %v3291 = vunpack.c.h.b16 %v3096
    %v3292 = vunpack.c.l.b16 %v3097
    %v3293 = vunpack.c.h.b16 %v3097
    %v3294 = vunpack.c.l.b16 %v3098
    %v3295 = vunpack.c.h.b16 %v3098
    %v3296 = vunpack.c.l.b16 %v3099
    %v3297 = vunpack.c.h.b16 %v3099
    %v3298 = vunpack.c.l.b16 %v3100
    %v3299 = vunpack.c.h.b16 %v3100
    %v3300 = vunpack.c.l.b16 %v3101
    %v3301 = vunpack.c.h.b16 %v3101
    %v3302 = vunpack.c.l.b16 %v3102
    %v3303 = vunpack.c.h.b16 %v3102
    %v3304 = vunpack.c.l.b16 %v3103
    %v3305 = vunpack.c.h.b16 %v3103
    %v3306 = vunpack.c.l.b16 %v3104
    %v3307 = vunpack.c.h.b16 %v3104
    %v3308 = vunpack.c.l.b16 %v3105
    %v3309 = vunpack.c.h.b16 %v3105
    %v3310 = vpack.c.b16 %v3184, %v3182
    %v3311 = vpack.c.b16 %v3185, %v3183
    %v3312 = vpack.c.b16 %v3188, %v3186
    %v3313 = vpack.c.b16 %v3189, %v3187
    %v3314 = vpack.c.b16 %v3192, %v3190
    %v3315 = vpack.c.b16 %v3193, %v3191
    %v3316 = vpack.c.b16 %v3196, %v3194
    %v3317 = vpack.c.b16 %v3197, %v3195
    %v3318 = vpack.c.b16 %v3200, %v3198
    %v3319 = vpack.c.b16 %v3201, %v3199
    %v3320 = vpack.c.b16 %v3204, %v3202
    %v3321 = vpack.c.b16 %v3205, %v3203
    %v3322 = vpack.c.b16 %v3208, %v3206
    %v3323 = vpack.c.b16 %v3209, %v3207
    %v3324 = vpack.c.b16 %v3212, %v3210
    %v3325 = vpack.c.b16 %v3213, %v3211
    %v3326 = vpack.c.b16 %v3216, %v3214
    %v3327 = vpack.c.b16 %v3217, %v3215
    %v3328 = vpack.c.b16 %v3220, %v3218
    %v3329 = vpack.c.b16 %v3221, %v3219
    %v3330 = vpack.c.b16 %v3224, %v3222
    %v3331 = vpack.c.b16 %v3225, %v3223
    %v3332 = vpack.c.b16 %v3228, %v3226
    %v3333 = vpack.c.b16 %v3229, %v3227
    %v3334 = vpack.c.b16 %v3232, %v3230
    %v3335 = vpack.c.b16 %v3233, %v3231
    %v3336 = vpack.c.b16 %v3236, %v3234
    %v3337 = vpack.c.b16 %v3237, %v3235
    %v3338 = vpack.c.b16 %v3240, %v3238
    %v3339 = vpack.c.b16 %v3241, %v3239
    %v3340 = vpack.c.b16 %v3244, %v3242
    %v3341 = vpack.c.b16 %v3245, %v3243
    %v3342 = vpack.c.b16 %v3248, %v3246
    %v3343 = vpack.c.b16 %v3249, %v3247
    %v3344 = vpack.c.b16 %v3252, %v3250
    %v3345 = vpack.c.b16 %v3253, %v3251
    %v3346 = vpack.c.b16 %v3256, %v3254
    %v3347 = vpack.c.b16 %v3257, %v3255
    %v3348 = vpack.c.b16 %v3260, %v3258
    %v3349 = vpack.c.b16 %v3261, %v3259
    %v3350 = vpack.c.b16 %v3264, %v3262
    %v3351 = vpack.c.b16 %v3265, %v3263
    %v3352 = vpack.c.b16 %v3268, %v3266
    %v3353 = vpack.c.b16 %v3269, %v3267
    %v3354 = vpack.c.b16 %v3272, %v3270
    %v3355 = vpack.c.b16 %v3273, %v3271
    %v3356 = vpack.c.b16 %v3276, %v3274
    %v3357 = vpack.c.b16 %v3277, %v3275
    %v3358 = vpack.c.b16 %v3280, %v3278
    %v3359 = vpack.c.b16 %v3281, %v3279
    %v3360 = vpack.c.b16 %v3284, %v3282
    %v3361 = vpack.c.b16 %v3285, %v3283
    %v3362 = vpack.c.b16 %v3288, %v3286
    %v3363 = vpack.c.b16 %v3289, %v3287
    %v3364 = vpack.c.b16 %v3292, %v3290
    %v3365 = vpack.c.b16 %v3293, %v3291
    %v3366 = vpack.c.b16 %v3296, %v3294
    %v3367 = vpack.c.b16 %v3297, %v3295
    %v3368 = vpack.c.b16 %v3300, %v3298
    %v3369 = vpack.c.b16 %v3301, %v3299
    %v3370 = vpack.c.b16 %v3304, %v3302
    %v3371 = vpack.c.b16 %v3305, %v3303
    %v3372 = vpack.c.b16 %v3308, %v3306
    %v3373 = vpack.c.b16 %v3309, %v3307
    %3438 = vmatprep.subr.bf16.mxu0 %v3311
    %3439 = vmatpush1.bf16.msra.mxu0 %v3310
    %3440 = vmatprep.subr.bf16.mxu0 %v3313
    %3441 = vmatpush1.bf16.msra.mxu0 %v3312
    %3442 = vmatprep.subr.bf16.mxu0 %v3315
    %3443 = vmatpush1.bf16.msra.mxu0 %v3314
    %3444 = vmatprep.subr.bf16.mxu0 %v3317
    %3445 = vmatpush1.bf16.msra.mxu0 %v3316
    %3446 = vmatprep.subr.bf16.mxu0 %v3319
    %3447 = vmatpush1.bf16.msra.mxu0 %v3318
    %3448 = vmatprep.subr.bf16.mxu0 %v3321
    %3449 = vmatpush1.bf16.msra.mxu0 %v3320
    %3450 = vmatprep.subr.bf16.mxu0 %v3323
    %3451 = vmatpush1.bf16.msra.mxu0 %v3322
    %3452 = vmatprep.subr.bf16.mxu0 %v3325
    %3453 = vmatpush1.bf16.msra.mxu0 %v3324
    %3454 = vmatprep.subr.bf16.mxu0 %v3327
    %3455 = vmatpush1.bf16.msra.mxu0 %v3326
    %3456 = vmatprep.subr.bf16.mxu0 %v3329
    %3457 = vmatpush1.bf16.msra.mxu0 %v3328
    %3458 = vmatprep.subr.bf16.mxu0 %v3331
    %3459 = vmatpush1.bf16.msra.mxu0 %v3330
    %3460 = vmatprep.subr.bf16.mxu0 %v3333
    %3461 = vmatpush1.bf16.msra.mxu0 %v3332
    %3462 = vmatprep.subr.bf16.mxu0 %v3335
    %3463 = vmatpush1.bf16.msra.mxu0 %v3334
    %3464 = vmatprep.subr.bf16.mxu0 %v3337
    %3465 = vmatpush1.bf16.msra.mxu0 %v3336
    %3466 = vmatprep.subr.bf16.mxu0 %v3339
    %3467 = vmatpush1.bf16.msra.mxu0 %v3338
    %3468 = vmatprep.subr.bf16.mxu0 %v3341
    %3469 = vmatpush1.bf16.msra.mxu0 %v3340
    %3470 = vmatprep.mubr.bf16.mxu0 %v3039
    %3471 = vmatmul.mubr.bf16.gmra.mrb[0].mxu0 %v3038
    %v3472 = vpop.f32.mrb[0].mxu0
    %v3473 = vadd.f32 %v3111, %v3472
    %v3474 = vpop.f32.mrb[0].mxu0
    %v3475 = vadd.f32 %v3115, %v3474
    %v3476 = vpop.f32.mrb[0].mxu0
    %v3477 = vpop.f32.mrb[0].mxu0
    %3478 = vdwg.mxu0
    %3479 = vmatprep.subr.bf16.mxu0 %v3343
    %3480 = vmatpush1.bf16.msra.mxu0 %v3342
    %3481 = vmatprep.subr.bf16.mxu0 %v3345
    %3482 = vmatpush1.bf16.msra.mxu0 %v3344
    %3483 = vmatprep.subr.bf16.mxu0 %v3347
    %3484 = vmatpush1.bf16.msra.mxu0 %v3346
    %3485 = vmatprep.subr.bf16.mxu0 %v3349
    %3486 = vmatpush1.bf16.msra.mxu0 %v3348
    %3487 = vmatprep.subr.bf16.mxu0 %v3351
    %3488 = vmatpush1.bf16.msra.mxu0 %v3350
    %3489 = vmatprep.subr.bf16.mxu0 %v3353
    %3490 = vmatpush1.bf16.msra.mxu0 %v3352
    %3491 = vmatprep.subr.bf16.mxu0 %v3355
    %3492 = vmatpush1.bf16.msra.mxu0 %v3354
    %3493 = vmatprep.subr.bf16.mxu0 %v3357
    %3494 = vmatpush1.bf16.msra.mxu0 %v3356
    %3495 = vmatprep.subr.bf16.mxu0 %v3359
    %3496 = vmatpush1.bf16.msra.mxu0 %v3358
    %3497 = vmatprep.subr.bf16.mxu0 %v3361
    %3498 = vmatpush1.bf16.msra.mxu0 %v3360
    %3499 = vmatprep.subr.bf16.mxu0 %v3363
    %3500 = vmatpush1.bf16.msra.mxu0 %v3362
    %3501 = vmatprep.subr.bf16.mxu0 %v3365
    %3502 = vmatpush1.bf16.msra.mxu0 %v3364
    %3503 = vmatprep.subr.bf16.mxu0 %v3367
    %3504 = vmatpush1.bf16.msra.mxu0 %v3366
    %3505 = vmatprep.subr.bf16.mxu0 %v3369
    %3506 = vmatpush1.bf16.msra.mxu0 %v3368
    %3507 = vmatprep.subr.bf16.mxu0 %v3371
    %3508 = vmatpush1.bf16.msra.mxu0 %v3370
    %3509 = vmatprep.subr.bf16.mxu0 %v3373
    %3510 = vmatpush1.bf16.msra.mxu0 %v3372
    %3511 = vmatprep.mubr.bf16.mxu0 %v3041
    %3512 = vmatmul.mubr.bf16.gmra.mrb[0].mxu0 %v3040
    %v3513 = vpop.f32.mrb[0].mxu0
    %v3514 = vadd.f32 %v3473, %v3513
    %v3515 = vpop.f32.mrb[0].mxu0
    %v3516 = vadd.f32 %v3475, %v3515
    %v3517 = vpop.f32.mrb[0].mxu0
    %v3518 = vpop.f32.mrb[0].mxu0
    %3519 = vdwg.mxu0
    %v3520 = vmul.f32 %v3514, 0.5
    %v3521 = vmul.f32 %v3516, 0.5
    %v3522 = vmul.f32 %v3514, 0.044715
    %v3523 = vmul.f32 %v3516, 0.044715
    %v3524 = vmul.f32 %v3522, %v3514
    %v3525 = vmul.f32 %v3523, %v3516
    %v3526 = vmul.f32 %v3524, %v3514
    %v3527 = vmul.f32 %v3525, %v3516
    %v3528 = vadd.f32 %v3514, %v3526
    %v3529 = vadd.f32 %v3516, %v3527
    %v3530 = vmul.f32 %v3528, 0.7978846
    %v3531 = vmul.f32 %v3529, 0.7978846
    %v3532 = vtanh.pop %v3530
    %v3533 = vtanh.pop %v3531
    %v3534 = vadd.f32 %v3532, 1.0
    %v3535 = vadd.f32 %v3533, 1.0
    %v3536 = vmul.f32 %v3520, %v3534
    %v3537 = vmul.f32 %v3521, %v3535
    %v3538 = vpack.c.bf16 %v3536, %v3536
    %v3539 = vpack.c.bf16 %v3537, %v3537
    %v3540 = vld [vmem:[%s7] sm:$0xff]
    %v3541 = vld [vmem:[%s7 + $0x8] sm:$0xff]
    %v3542 = vld [vmem:[%s7 + $0x10] sm:$0xff]
    %v3543 = vld [vmem:[%s7 + $0x18] sm:$0xff]
    %v3544 = vld [vmem:[%s7 + $0x20] sm:$0xff]
    %v3545 = vld [vmem:[%s7 + $0x28] sm:$0xff]
    %v3546 = vld [vmem:[%s7 + $0x30] sm:$0xff]
    %v3547 = vld [vmem:[%s7 + $0x38] sm:$0xff]
    %v3548 = vld [vmem:[%s7 + $0x40] sm:$0xff]
    %v3549 = vld [vmem:[%s7 + $0x48] sm:$0xff]
    %v3550 = vld [vmem:[%s7 + $0x50] sm:$0xff]
    %v3551 = vld [vmem:[%s7 + $0x58] sm:$0xff]
    %v3552 = vld [vmem:[%s7 + $0x60] sm:$0xff]
    %v3553 = vld [vmem:[%s7 + $0x68] sm:$0xff]
    %v3554 = vld [vmem:[%s7 + $0x70] sm:$0xff]
    %v3555 = vld [vmem:[%s7 + $0x78] sm:$0xff]
    %v3556 = vld [vmem:[%s7 + $0x80] sm:$0xff]
    %v3557 = vld [vmem:[%s7 + $0x88] sm:$0xff]
    %v3558 = vld [vmem:[%s7 + $0x90] sm:$0xff]
    %v3559 = vld [vmem:[%s7 + $0x98] sm:$0xff]
    %v3560 = vld [vmem:[%s7 + $0xa0] sm:$0xff]
    %v3561 = vld [vmem:[%s7 + $0xa8] sm:$0xff]
    %v3562 = vld [vmem:[%s7 + $0xb0] sm:$0xff]
    %v3563 = vld [vmem:[%s7 + $0xb8] sm:$0xff]
    %v3564 = vld [vmem:[%s7 + $0xc0] sm:$0xff]
    %v3565 = vld [vmem:[%s7 + $0xc8] sm:$0xff]
    %v3566 = vld [vmem:[%s7 + $0xd0] sm:$0xff]
    %v3567 = vld [vmem:[%s7 + $0xd8] sm:$0xff]
    %v3568 = vld [vmem:[%s7 + $0xe0] sm:$0xff]
    %v3569 = vld [vmem:[%s7 + $0xe8] sm:$0xff]
    %v3570 = vld [vmem:[%s7 + $0xf0] sm:$0xff]
    %v3571 = vld [vmem:[%s7 + $0xf8] sm:$0xff]
    %v3572 = vld [vmem:[%s8] sm:$0x3]
    %v3574 = vlaneseq
    %v3575 = vshrl.u32 %v3574, 7
    %v3576 = vsub.s32 0, %v3575
    %v3577 = vrot.slane %v3572, %v3576
    %v3578 = vlaneseq
    %v3579 = vshrl.u32 %v3578, 7
    %v3580 = vsub.s32 1, %v3579
    %v3581 = vrot.slane %v3572, %v3580
    %v3616 = vunpack.c.l.b16 %v3540
    %v3617 = vunpack.c.h.b16 %v3540
    %v3618 = vunpack.c.l.b16 %v3541
    %v3619 = vunpack.c.h.b16 %v3541
    %v3620 = vunpack.c.l.b16 %v3542
    %v3621 = vunpack.c.h.b16 %v3542
    %v3622 = vunpack.c.l.b16 %v3543
    %v3623 = vunpack.c.h.b16 %v3543
    %v3624 = vunpack.c.l.b16 %v3544
    %v3625 = vunpack.c.h.b16 %v3544
    %v3626 = vunpack.c.l.b16 %v3545
    %v3627 = vunpack.c.h.b16 %v3545
    %v3628 = vunpack.c.l.b16 %v3546
    %v3629 = vunpack.c.h.b16 %v3546
    %v3630 = vunpack.c.l.b16 %v3547
    %v3631 = vunpack.c.h.b16 %v3547
    %v3632 = vunpack.c.l.b16 %v3548
    %v3633 = vunpack.c.h.b16 %v3548
    %v3634 = vunpack.c.l.b16 %v3549
    %v3635 = vunpack.c.h.b16 %v3549
    %v3636 = vunpack.c.l.b16 %v3550
    %v3637 = vunpack.c.h.b16 %v3550
    %v3638 = vunpack.c.l.b16 %v3551
    %v3639 = vunpack.c.h.b16 %v3551
    %v3640 = vunpack.c.l.b16 %v3552
    %v3641 = vunpack.c.h.b16 %v3552
    %v3642 = vunpack.c.l.b16 %v3553
    %v3643 = vunpack.c.h.b16 %v3553
    %v3644 = vunpack.c.l.b16 %v3554
    %v3645 = vunpack.c.h.b16 %v3554
    %v3646 = vunpack.c.l.b16 %v3555
    %v3647 = vunpack.c.h.b16 %v3555
    %v3648 = vunpack.c.l.b16 %v3556
    %v3649 = vunpack.c.h.b16 %v3556
    %v3650 = vunpack.c.l.b16 %v3557
    %v3651 = vunpack.c.h.b16 %v3557
    %v3652 = vunpack.c.l.b16 %v3558
    %v3653 = vunpack.c.h.b16 %v3558
    %v3654 = vunpack.c.l.b16 %v3559
    %v3655 = vunpack.c.h.b16 %v3559
    %v3656 = vunpack.c.l.b16 %v3560
    %v3657 = vunpack.c.h.b16 %v3560
    %v3658 = vunpack.c.l.b16 %v3561
    %v3659 = vunpack.c.h.b16 %v3561
    %v3660 = vunpack.c.l.b16 %v3562
    %v3661 = vunpack.c.h.b16 %v3562
    %v3662 = vunpack.c.l.b16 %v3563
    %v3663 = vunpack.c.h.b16 %v3563
    %v3664 = vunpack.c.l.b16 %v3564
    %v3665 = vunpack.c.h.b16 %v3564
    %v3666 = vunpack.c.l.b16 %v3565
    %v3667 = vunpack.c.h.b16 %v3565
    %v3668 = vunpack.c.l.b16 %v3566
    %v3669 = vunpack.c.h.b16 %v3566
    %v3670 = vunpack.c.l.b16 %v3567
    %v3671 = vunpack.c.h.b16 %v3567
    %v3672 = vunpack.c.l.b16 %v3568
    %v3673 = vunpack.c.h.b16 %v3568
    %v3674 = vunpack.c.l.b16 %v3569
    %v3675 = vunpack.c.h.b16 %v3569
    %v3676 = vunpack.c.l.b16 %v3570
    %v3677 = vunpack.c.h.b16 %v3570
    %v3678 = vunpack.c.l.b16 %v3571
    %v3679 = vunpack.c.h.b16 %v3571
    %v3680 = vpack.c.b16 %v3618, %v3616
    %v3681 = vpack.c.b16 %v3619, %v3617
    %v3682 = vpack.c.b16 %v3622, %v3620
    %v3683 = vpack.c.b16 %v3623, %v3621
    %v3684 = vpack.c.b16 %v3626, %v3624
    %v3685 = vpack.c.b16 %v3627, %v3625
    %v3686 = vpack.c.b16 %v3630, %v3628
    %v3687 = vpack.c.b16 %v3631, %v3629
    %v3688 = vpack.c.b16 %v3634, %v3632
    %v3689 = vpack.c.b16 %v3635, %v3633
    %v3690 = vpack.c.b16 %v3638, %v3636
    %v3691 = vpack.c.b16 %v3639, %v3637
    %v3692 = vpack.c.b16 %v3642, %v3640
    %v3693 = vpack.c.b16 %v3643, %v3641
    %v3694 = vpack.c.b16 %v3646, %v3644
    %v3695 = vpack.c.b16 %v3647, %v3645
    %v3696 = vpack.c.b16 %v3650, %v3648
    %v3697 = vpack.c.b16 %v3651, %v3649
    %v3698 = vpack.c.b16 %v3654, %v3652
    %v3699 = vpack.c.b16 %v3655, %v3653
    %v3700 = vpack.c.b16 %v3658, %v3656
    %v3701 = vpack.c.b16 %v3659, %v3657
    %v3702 = vpack.c.b16 %v3662, %v3660
    %v3703 = vpack.c.b16 %v3663, %v3661
    %v3704 = vpack.c.b16 %v3666, %v3664
    %v3705 = vpack.c.b16 %v3667, %v3665
    %v3706 = vpack.c.b16 %v3670, %v3668
    %v3707 = vpack.c.b16 %v3671, %v3669
    %v3708 = vpack.c.b16 %v3674, %v3672
    %v3709 = vpack.c.b16 %v3675, %v3673
    %v3710 = vpack.c.b16 %v3678, %v3676
    %v3711 = vpack.c.b16 %v3679, %v3677
    %3744 = vmatprep.subr.bf16.mxu0 %v3681
    %3745 = vmatpush1.bf16.msra.mxu0 %v3680
    %3746 = vmatprep.subr.bf16.mxu0 %v3683
    %3747 = vmatpush1.bf16.msra.mxu0 %v3682
    %3748 = vmatprep.subr.bf16.mxu0 %v3685
    %3749 = vmatpush1.bf16.msra.mxu0 %v3684
    %3750 = vmatprep.subr.bf16.mxu0 %v3687
    %3751 = vmatpush1.bf16.msra.mxu0 %v3686
    %3752 = vmatprep.subr.bf16.mxu0 %v3689
    %3753 = vmatpush1.bf16.msra.mxu0 %v3688
    %3754 = vmatprep.subr.bf16.mxu0 %v3691
    %3755 = vmatpush1.bf16.msra.mxu0 %v3690
    %3756 = vmatprep.subr.bf16.mxu0 %v3693
    %3757 = vmatpush1.bf16.msra.mxu0 %v3692
    %3758 = vmatprep.subr.bf16.mxu0 %v3695
    %3759 = vmatpush1.bf16.msra.mxu0 %v3694
    %3760 = vmatprep.subr.bf16.mxu0 %v3697
    %3761 = vmatpush1.bf16.msra.mxu0 %v3696
    %3762 = vmatprep.subr.bf16.mxu0 %v3699
    %3763 = vmatpush1.bf16.msra.mxu0 %v3698
    %3764 = vmatprep.subr.bf16.mxu0 %v3701
    %3765 = vmatpush1.bf16.msra.mxu0 %v3700
    %3766 = vmatprep.subr.bf16.mxu0 %v3703
    %3767 = vmatpush1.bf16.msra.mxu0 %v3702
    %3768 = vmatprep.subr.bf16.mxu0 %v3705
    %3769 = vmatpush1.bf16.msra.mxu0 %v3704
    %3770 = vmatprep.subr.bf16.mxu0 %v3707
    %3771 = vmatpush1.bf16.msra.mxu0 %v3706
    %3772 = vmatprep.subr.bf16.mxu0 %v3709
    %3773 = vmatpush1.bf16.msra.mxu0 %v3708
    %3774 = vmatprep.subr.bf16.mxu0 %v3711
    %3775 = vmatpush1.bf16.msra.mxu0 %v3710
    %3776 = vmatprep.mubr.bf16.mxu0 %v3539
    %3777 = vmatmul.mubr.bf16.gmra.mrb[0].mxu0 %v3538
    %v3778 = vpop.f32.mrb[0].mxu0
    %v3779 = vadd.f32 %v3577, %v3778
    %v3780 = vpop.f32.mrb[0].mxu0
    %v3781 = vadd.f32 %v3581, %v3780
    %v3782 = vpop.f32.mrb[0].mxu0
    %v3783 = vpop.f32.mrb[0].mxu0
    %3784 = vdwg.mxu0
    %v3785 = vmul.f32 %v3779, 0.5
    %v3786 = vmul.f32 %v3781, 0.5
    %v3787 = vmul.f32 %v3779, 0.044715
    %v3788 = vmul.f32 %v3781, 0.044715
    %v3789 = vmul.f32 %v3787, %v3779
    %v3790 = vmul.f32 %v3788, %v3781
    %v3791 = vmul.f32 %v3789, %v3779
    %v3792 = vmul.f32 %v3790, %v3781
    %v3793 = vadd.f32 %v3779, %v3791
    %v3794 = vadd.f32 %v3781, %v3792
    %v3795 = vmul.f32 %v3793, 0.7978846
    %v3796 = vmul.f32 %v3794, 0.7978846
    %v3797 = vtanh.pop %v3795
    %v3798 = vtanh.pop %v3796
    %v3799 = vadd.f32 %v3797, 1.0
    %v3800 = vadd.f32 %v3798, 1.0
    %v3801 = vmul.f32 %v3785, %v3799
    %v3802 = vmul.f32 %v3786, %v3800
    %v3803 = vpack.c.bf16 %v3801, %v3801
    %v3804 = vpack.c.bf16 %v3802, %v3802
    %v3805 = vld [vmem:[%s9] sm:$0xf]
    %v3806 = vld [vmem:[%s9 + $0x4] sm:$0xf]
    %v3807 = vld [vmem:[%s9 + $0x8] sm:$0xf]
    %v3808 = vld [vmem:[%s9 + $0xc] sm:$0xf]
    %v3809 = vld [vmem:[%s9 + $0x10] sm:$0xf]
    %v3810 = vld [vmem:[%s9 + $0x14] sm:$0xf]
    %v3811 = vld [vmem:[%s9 + $0x18] sm:$0xf]
    %v3812 = vld [vmem:[%s9 + $0x1c] sm:$0xf]
    %v3813 = vld [vmem:[%s9 + $0x20] sm:$0xf]
    %v3814 = vld [vmem:[%s9 + $0x24] sm:$0xf]
    %v3815 = vld [vmem:[%s9 + $0x28] sm:$0xf]
    %v3816 = vld [vmem:[%s9 + $0x2c] sm:$0xf]
    %v3817 = vld [vmem:[%s9 + $0x30] sm:$0xf]
    %v3818 = vld [vmem:[%s9 + $0x34] sm:$0xf]
    %v3819 = vld [vmem:[%s9 + $0x38] sm:$0xf]
    %v3820 = vld [vmem:[%s9 + $0x3c] sm:$0xf]
    %v3821 = vld [vmem:[%s9 + $0x40] sm:$0xf]
    %v3822 = vld [vmem:[%s9 + $0x44] sm:$0xf]
    %v3823 = vld [vmem:[%s9 + $0x48] sm:$0xf]
    %v3824 = vld [vmem:[%s9 + $0x4c] sm:$0xf]
    %v3825 = vld [vmem:[%s9 + $0x50] sm:$0xf]
    %v3826 = vld [vmem:[%s9 + $0x54] sm:$0xf]
    %v3827 = vld [vmem:[%s9 + $0x58] sm:$0xf]
    %v3828 = vld [vmem:[%s9 + $0x5c] sm:$0xf]
    %v3829 = vld [vmem:[%s9 + $0x60] sm:$0xf]
    %v3830 = vld [vmem:[%s9 + $0x64] sm:$0xf]
    %v3831 = vld [vmem:[%s9 + $0x68] sm:$0xf]
    %v3832 = vld [vmem:[%s9 + $0x6c] sm:$0xf]
    %v3833 = vld [vmem:[%s9 + $0x70] sm:$0xf]
    %v3834 = vld [vmem:[%s9 + $0x74] sm:$0xf]
    %v3835 = vld [vmem:[%s9 + $0x78] sm:$0xf]
    %v3836 = vld [vmem:[%s9 + $0x7c] sm:$0xf]
    %v3837 = vld [vmem:[%s10] sm:$0x1]
    %v3839 = vlaneseq
    %v3840 = vshrl.u32 %v3839, 7
    %v3841 = vsub.s32 0, %v3840
    %v3842 = vrot.slane %v3837, %v3841
    %v3876 = vunpack.c.l.b16 %v3805
    %v3877 = vunpack.c.l.b16 %v3806
    %v3878 = vunpack.c.l.b16 %v3807
    %v3879 = vunpack.c.l.b16 %v3808
    %v3880 = vunpack.c.l.b16 %v3809
    %v3881 = vunpack.c.l.b16 %v3810
    %v3882 = vunpack.c.l.b16 %v3811
    %v3883 = vunpack.c.l.b16 %v3812
    %v3884 = vunpack.c.l.b16 %v3813
    %v3885 = vunpack.c.l.b16 %v3814
    %v3886 = vunpack.c.l.b16 %v3815
    %v3887 = vunpack.c.l.b16 %v3816
    %v3888 = vunpack.c.l.b16 %v3817
    %v3889 = vunpack.c.l.b16 %v3818
    %v3890 = vunpack.c.l.b16 %v3819
    %v3891 = vunpack.c.l.b16 %v3820
    %v3892 = vunpack.c.l.b16 %v3821
    %v3893 = vunpack.c.l.b16 %v3822
    %v3894 = vunpack.c.l.b16 %v3823
    %v3895 = vunpack.c.l.b16 %v3824
    %v3896 = vunpack.c.l.b16 %v3825
    %v3897 = vunpack.c.l.b16 %v3826
    %v3898 = vunpack.c.l.b16 %v3827
    %v3899 = vunpack.c.l.b16 %v3828
    %v3900 = vunpack.c.l.b16 %v3829
    %v3901 = vunpack.c.l.b16 %v3830
    %v3902 = vunpack.c.l.b16 %v3831
    %v3903 = vunpack.c.l.b16 %v3832
    %v3904 = vunpack.c.l.b16 %v3833
    %v3905 = vunpack.c.l.b16 %v3834
    %v3906 = vunpack.c.l.b16 %v3835
    %v3907 = vunpack.c.l.b16 %v3836
    %v3908 = vpack.c.b16 %v3877, %v3876
    %v3909 = vpack.c.b16 %v3879, %v3878
    %v3910 = vpack.c.b16 %v3881, %v3880
    %v3911 = vpack.c.b16 %v3883, %v3882
    %v3912 = vpack.c.b16 %v3885, %v3884
    %v3913 = vpack.c.b16 %v3887, %v3886
    %v3914 = vpack.c.b16 %v3889, %v3888
    %v3915 = vpack.c.b16 %v3891, %v3890
    %v3916 = vpack.c.b16 %v3893, %v3892
    %v3917 = vpack.c.b16 %v3895, %v3894
    %v3918 = vpack.c.b16 %v3897, %v3896
    %v3919 = vpack.c.b16 %v3899, %v3898
    %v3920 = vpack.c.b16 %v3901, %v3900
    %v3921 = vpack.c.b16 %v3903, %v3902
    %v3922 = vpack.c.b16 %v3905, %v3904
    %v3923 = vpack.c.b16 %v3907, %v3906
    %3940 = vmatprep.subr.bf16.mxu0 0
    %3941 = vmatpush1.bf16.msra.mxu0 %v3908
    %3942 = vmatprep.subr.bf16.mxu0 0
    %3943 = vmatpush1.bf16.msra.mxu0 %v3909
    %3944 = vmatprep.subr.bf16.mxu0 0
    %3945 = vmatpush1.bf16.msra.mxu0 %v3910
    %3946 = vmatprep.subr.bf16.mxu0 0
    %3947 = vmatpush1.bf16.msra.mxu0 %v3911
    %3948 = vmatprep.subr.bf16.mxu0 0
    %3949 = vmatpush1.bf16.msra.mxu0 %v3912
    %3950 = vmatprep.subr.bf16.mxu0 0
    %3951 = vmatpush1.bf16.msra.mxu0 %v3913
    %3952 = vmatprep.subr.bf16.mxu0 0
    %3953 = vmatpush1.bf16.msra.mxu0 %v3914
    %3954 = vmatprep.subr.bf16.mxu0 0
    %3955 = vmatpush1.bf16.msra.mxu0 %v3915
    %3956 = vmatprep.subr.bf16.mxu0 0
    %3957 = vmatpush1.bf16.msra.mxu0 %v3916
    %3958 = vmatprep.subr.bf16.mxu0 0
    %3959 = vmatpush1.bf16.msra.mxu0 %v3917
    %3960 = vmatprep.subr.bf16.mxu0 0
    %3961 = vmatpush1.bf16.msra.mxu0 %v3918
    %3962 = vmatprep.subr.bf16.mxu0 0
    %3963 = vmatpush1.bf16.msra.mxu0 %v3919
    %3964 = vmatprep.subr.bf16.mxu0 0
    %3965 = vmatpush1.bf16.msra.mxu0 %v3920
    %3966 = vmatprep.subr.bf16.mxu0 0
    %3967 = vmatpush1.bf16.msra.mxu0 %v3921
    %3968 = vmatprep.subr.bf16.mxu0 0
    %3969 = vmatpush1.bf16.msra.mxu0 %v3922
    %3970 = vmatprep.subr.bf16.mxu0 0
    %3971 = vmatpush1.bf16.msra.mxu0 %v3923
    %3972 = vmatprep.mubr.bf16.mxu0 %v3804
    %3973 = vmatmul.mubr.bf16.gmra.mrb[0].mxu0 %v3803
    %v3974 = vpop.f32.mrb[0].mxu0
    %v3975 = vadd.f32 %v3842, %v3974
    %v3976 = vpop.f32.mrb[0].mxu0
    %v3977 = vpop.f32.mrb[0].mxu0
    %v3978 = vpop.f32.mrb[0].mxu0
    %3979 = vdwg.mxu0
    %vm3980 = vcmask 254976
    %3981 = vst.msk [vmem:[#allocation7] sm:$0x3] %vm3980, %v3975
    // Predicated region
    $region54: #{local_conv_encoder.1} parent=1 // pred_check
      _
    $region55: #{local_conv_encoder.1} parent=1 // pred_check_branch
      %3983 = sbr.rel (0) target = $region57
    $region56: #{local_conv_encoder.1} parent=1 // pred_region
      %s3985 = ssub.s32 32, 32
      %3986 = vsyncadd [#allocation4], %s3985
      %s3988 = sshll.u32 [#allocation7], 4
      %s3989 = int_to_ptr.vmem [resolvable:$true] %s3988
      %3991 = dma.vmem_to_hbm [thread:$0]  %s3989, 32, %s11, [#allocation4]
    $region57: #{local_conv_encoder.1} parent=1 // pred_fallthru
      _
    // Predicated region
    $region58: #{local_conv_encoder.1} parent=1 // pred_check
      _
    $region59: #{local_conv_encoder.1} parent=1 // pred_check_branch
      %3993 = sbr.rel (0) target = $region61
    $region60: #{local_conv_encoder.1} parent=1 // pred_region
      %3994 = dma.done [#allocation4], 32
    $region61: #{local_conv_encoder.1} parent=1 // pred_fallthru
      _
    %3995 = vsyncpa [#allocation3], 1
    %3996 = vsyncpa [#allocation6], 1
    %3997 = vsyncpa [#allocation4], 1

// kernel: local_conv_encoder.1
$region0: #{local_conv_encoder.1}
  #allocation0 [shape = 'u32[]', space=smem, size = 0x4, offset = 0x4, fixed_abs, tag = 'smem constant byte address 0x4 - core index']
  #allocation1 [shape = 'u32[144,128]{1,0:T(1,128)}', space=vmem, size = 0x12000, scoped, tag = 'internal scratch']
  %s0 = inlined_call_operand.vmem [shape: f32[2,1024], index: 0, kind: input, shape index: {}]
  %s1 = inlined_call_operand.hbm [shape: bf16[1024,512], index: 1, kind: input, shape index: {}]
  %s2 = inlined_call_operand.vmem [shape: f32[1,512], index: 2, kind: input, shape index: {}]
  %s3 = inlined_call_operand.vmem [shape: bf16[512,512], index: 3, kind: input, shape index: {}]
  %s4 = inlined_call_operand.vmem [shape: f32[1,512], index: 4, kind: input, shape index: {}]
  %s5 = inlined_call_operand.hbm [shape: bf16[512,256], index: 5, kind: input, shape index: {}]
  %s6 = inlined_call_operand.vmem [shape: f32[1,256], index: 6, kind: input, shape index: {}]
  %s7 = inlined_call_operand.vmem [shape: bf16[256,256], index: 7, kind: input, shape index: {}]
  %s8 = inlined_call_operand.vmem [shape: f32[1,256], index: 8, kind: input, shape index: {}]
  %s9 = inlined_call_operand.vmem [shape: bf16[256,32], index: 9, kind: input, shape index: {}]
  %s10 = inlined_call_operand.vmem [shape: f32[1,32], index: 10, kind: input, shape index: {}]
  %s11 = inlined_call_operand.hbm [shape: f32[2,32], index: 11, kind: output, shape index: {}]
  %s12 = sld [smem:[#allocation0]]
  $region62: #{local_conv_encoder.1} parent=0
    _
  %s14 = ssub.s32 1, %s12
  %s15 = scalar_select 0, %s14, %s12
  $region1: #{local_conv_encoder.1} parent=0
    #allocation2 [shape = 'u8[1048576]{0}', space=vmem, size = 0x100000, scoped, tag = 'input window, operand 1, single buffered']
    #allocation3 [shape = 's32[1]{0}', space=sflag, size = 0x4, scoped, tag = 'scoped memory for local_conv_encoder.1']
    #allocation4 [shape = 's32[1]{0}', space=sflag, size = 0x4, scoped, tag = 'scoped memory for local_conv_encoder.1']
    #allocation5 [shape = 'u8[262144]{0}', space=vmem, size = 0x40000, scoped, tag = 'input window, operand 5, single buffered']
    #allocation6 [shape = 's32[1]{0}', space=sflag, size = 0x4, scoped, tag = 'scoped memory for local_conv_encoder.1']
    #allocation7 [shape = 'u8[1024]{0}', space=vmem, size = 0x400, scoped, tag = 'output window, operand 0, single buffered']
    %16 = vsyncpa [#allocation3], 0
    %17 = vsyncpa [#allocation6], 0
    %18 = vsyncpa [#allocation4], 0
    // Predicated region
    $region2: #{local_conv_encoder.1} parent=1 // pred_check
      _
    $region3: #{local_conv_encoder.1} parent=1 // pred_check_branch
      %20 = sbr.rel (0) target = $region5
    $region4: #{local_conv_encoder.1} parent=1 // pred_region
      _
    $region5: #{local_conv_encoder.1} parent=1 // pred_fallthru
      _
    // Predicated region
    $region6: #{local_conv_encoder.1} parent=1 // pred_check
      _
    $region7: #{local_conv_encoder.1} parent=1 // pred_check_branch
      %22 = sbr.rel (0) target = $region9
    $region8: #{local_conv_encoder.1} parent=1 // pred_region
      %s24 = ssub.s32 32768, 32768
      %25 = vsyncadd [#allocation3], %s24
      %s26 = sshll.u32 [#allocation2], 4
      %s27 = int_to_ptr.vmem [resolvable:$true] %s26
      %32 = dma.hbm_to_vmem [thread:$0]  %s1, 32768, %s27, [#allocation3], 256, 256, 16
    $region9: #{local_conv_encoder.1} parent=1 // pred_fallthru
      _
    // Predicated region
    $region10: #{local_conv_encoder.1} parent=1 // pred_check
      _
    $region11: #{local_conv_encoder.1} parent=1 // pred_check_branch
      %34 = sbr.rel (0) target = $region13
    $region12: #{local_conv_encoder.1} parent=1 // pred_region
      _
    $region13: #{local_conv_encoder.1} parent=1 // pred_fallthru
      _
    // Predicated region
    $region14: #{local_conv_encoder.1} parent=1 // pred_check
      _
    $region15: #{local_conv_encoder.1} parent=1 // pred_check_branch
      %36 = sbr.rel (0) target = $region17
    $region16: #{local_conv_encoder.1} parent=1 // pred_region
      _
    $region17: #{local_conv_encoder.1} parent=1 // pred_fallthru
      _
    // Predicated region
    $region18: #{local_conv_encoder.1} parent=1 // pred_check
      _
    $region19: #{local_conv_encoder.1} parent=1 // pred_check_branch
      %38 = sbr.rel (0) target = $region21
    $region20: #{local_conv_encoder.1} parent=1 // pred_region
      _
    $region21: #{local_conv_encoder.1} parent=1 // pred_fallthru
      _
    // Predicated region
    $region22: #{local_conv_encoder.1} parent=1 // pred_check
      _
    $region23: #{local_conv_encoder.1} parent=1 // pred_check_branch
      %40 = sbr.rel (0) target = $region25
    $region24: #{local_conv_encoder.1} parent=1 // pred_region
      %s42 = ssub.s32 8192, 8192
      %43 = vsyncadd [#allocation6], %s42
      %s44 = sshll.u32 [#allocation5], 4
      %s45 = int_to_ptr.vmem [resolvable:$true] %s44
      %50 = dma.hbm_to_vmem [thread:$0]  %s5, 8192, %s45, [#allocation6], 128, 128, 8
    $region25: #{local_conv_encoder.1} parent=1 // pred_fallthru
      _
    // Predicated region
    $region26: #{local_conv_encoder.1} parent=1 // pred_check
      _
    $region27: #{local_conv_encoder.1} parent=1 // pred_check_branch
      %52 = sbr.rel (0) target = $region29
    $region28: #{local_conv_encoder.1} parent=1 // pred_region
      _
    $region29: #{local_conv_encoder.1} parent=1 // pred_fallthru
      _
    // Predicated region
    $region30: #{local_conv_encoder.1} parent=1 // pred_check
      _
    $region31: #{local_conv_encoder.1} parent=1 // pred_check_branch
      %54 = sbr.rel (0) target = $region33
    $region32: #{local_conv_encoder.1} parent=1 // pred_region
      _
    $region33: #{local_conv_encoder.1} parent=1 // pred_fallthru
      _
    // Predicated region
    $region34: #{local_conv_encoder.1} parent=1 // pred_check
      _
    $region35: #{local_conv_encoder.1} parent=1 // pred_check_branch
      %56 = sbr.rel (0) target = $region37
    $region36: #{local_conv_encoder.1} parent=1 // pred_region
      _
    $region37: #{local_conv_encoder.1} parent=1 // pred_fallthru
      _
    // Predicated region
    $region38: #{local_conv_encoder.1} parent=1 // pred_check
      _
    $region39: #{local_conv_encoder.1} parent=1 // pred_check_branch
      %58 = sbr.rel (0) target = $region41
    $region40: #{local_conv_encoder.1} parent=1 // pred_region
      _
    $region41: #{local_conv_encoder.1} parent=1 // pred_fallthru
      _
    // Predicated region
    $region42: #{local_conv_encoder.1} parent=1 // pred_check
      _
    $region43: #{local_conv_encoder.1} parent=1 // pred_check_branch
      %60 = sbr.rel (0) target = $region45
    $region44: #{local_conv_encoder.1} parent=1 // pred_region
      _
    $region45: #{local_conv_encoder.1} parent=1 // pred_fallthru
      _
    // Predicated region
    $region46: #{local_conv_encoder.1} parent=1 // pred_check
      _
    $region47: #{local_conv_encoder.1} parent=1 // pred_check_branch
      %62 = sbr.rel (0) target = $region49
    $region48: #{local_conv_encoder.1} parent=1 // pred_region
      %63 = dma.done [#allocation3], 32768
    $region49: #{local_conv_encoder.1} parent=1 // pred_fallthru
      _
    // Predicated region
    $region50: #{local_conv_encoder.1} parent=1 // pred_check
      _
    $region51: #{local_conv_encoder.1} parent=1 // pred_check_branch
      %65 = sbr.rel (0) target = $region53
    $region52: #{local_conv_encoder.1} parent=1 // pred_region
      %66 = dma.done [#allocation6], 8192
    $region53: #{local_conv_encoder.1} parent=1 // pred_fallthru
      _
    %v68 = vld [vmem:[%s0] sm:$0xff]
    %v69 = vld [vmem:[%s0 + $0x8] sm:$0xff]
    %v72 = vcombine.high %v68, %v68
    %v74 = vunpack.c.l.s4 1983009808
    %v75 = vunpack.c.0.s8 %v74
    %v76 = vlaneseq
    %v77 = vshrl.u32 %v76, 7
    %v78 = vsub.s32 %v75, %v77
    %v79 = vrot.slane %v68, %v78
    %v81 = vunpack.c.l.s4 1983009808
    %v82 = vunpack.c.0.s8 %v81
    %v83 = vlaneseq
    %v84 = vshrl.u32 %v83, 7
    %v85 = vsub.s32 %v82, %v84
    %v86 = vrot.slane %v72, %v85
    %v87 = vcombine.high %v79, %v79
    %v88 = vcombine.high %v86, %v86
    %v89 = vcombine.high %v69, %v69
    %v91 = vunpack.c.l.s4 1983009808
    %v92 = vunpack.c.0.s8 %v91
    %v93 = vlaneseq
    %v94 = vshrl.u32 %v93, 7
    %v95 = vsub.s32 %v92, %v94
    %v96 = vrot.slane %v69, %v95
    %v98 = vunpack.c.l.s4 1983009808
    %v99 = vunpack.c.0.s8 %v98
    %v100 = vlaneseq
    %v101 = vshrl.u32 %v100, 7
    %v102 = vsub.s32 %v99, %v101
    %v103 = vrot.slane %v89, %v102
    %v104 = vcombine.high %v96, %v96
    %v105 = vcombine.high %v103, %v103
    %v114 = vpack.c.bf16 %v79, %v79
    %v115 = vpack.c.bf16 %v87, %v87
    %v116 = vpack.c.bf16 %v86, %v86
    %v117 = vpack.c.bf16 %v88, %v88
    %v118 = vpack.c.bf16 %v96, %v96
    %v119 = vpack.c.bf16 %v104, %v104
    %v120 = vpack.c.bf16 %v103, %v103
    %v121 = vpack.c.bf16 %v105, %v105
    %v122 = vld [vmem:[#allocation2] sm:$0xff]
    %v123 = vld [vmem:[#allocation2 + $0x8] sm:$0xff]
    %v124 = vld [vmem:[#allocation2 + $0x10] sm:$0xff]
    %v125 = vld [vmem:[#allocation2 + $0x18] sm:$0xff]
    %v126 = vld [vmem:[#allocation2 + $0x20] sm:$0xff]
    %v127 = vld [vmem:[#allocation2 + $0x28] sm:$0xff]
    %v128 = vld [vmem:[#allocation2 + $0x30] sm:$0xff]
    %v129 = vld [vmem:[#allocation2 + $0x38] sm:$0xff]
    %v130 = vld [vmem:[#allocation2 + $0x40] sm:$0xff]
    %v131 = vld [vmem:[#allocation2 + $0x48] sm:$0xff]
    %v132 = vld [vmem:[#allocation2 + $0x50] sm:$0xff]
    %v133 = vld [vmem:[#allocation2 + $0x58] sm:$0xff]
    %v134 = vld [vmem:[#allocation2 + $0x60] sm:$0xff]
    %v135 = vld [vmem:[#allocation2 + $0x68] sm:$0xff]
    %v136 = vld [vmem:[#allocation2 + $0x70] sm:$0xff]
    %v137 = vld [vmem:[#allocation2 + $0x78] sm:$0xff]
    %v138 = vld [vmem:[#allocation2 + $0x80] sm:$0xff]
    %v139 = vld [vmem:[#allocation2 + $0x88] sm:$0xff]
    %v140 = vld [vmem:[#allocation2 + $0x90] sm:$0xff]
    %v141 = vld [vmem:[#allocation2 + $0x98] sm:$0xff]
    %v142 = vld [vmem:[#allocation2 + $0xa0] sm:$0xff]
    %v143 = vld [vmem:[#allocation2 + $0xa8] sm:$0xff]
    %v144 = vld [vmem:[#allocation2 + $0xb0] sm:$0xff]
    %v145 = vld [vmem:[#allocation2 + $0xb8] sm:$0xff]
    %v146 = vld [vmem:[#allocation2 + $0xc0] sm:$0xff]
    %v147 = vld [vmem:[#allocation2 + $0xc8] sm:$0xff]
    %v148 = vld [vmem:[#allocation2 + $0xd0] sm:$0xff]
    %v149 = vld [vmem:[#allocation2 + $0xd8] sm:$0xff]
    %v150 = vld [vmem:[#allocation2 + $0xe0] sm:$0xff]
    %v151 = vld [vmem:[#allocation2 + $0xe8] sm:$0xff]
    %v152 = vld [vmem:[#allocation2 + $0xf0] sm:$0xff]
    %v153 = vld [vmem:[#allocation2 + $0xf8] sm:$0xff]
    %v154 = vld [vmem:[#allocation2 + $0x100] sm:$0xff]
    %v155 = vld [vmem:[#allocation2 + $0x108] sm:$0xff]
    %v156 = vld [vmem:[#allocation2 + $0x110] sm:$0xff]
    %v157 = vld [vmem:[#allocation2 + $0x118] sm:$0xff]
    %v158 = vld [vmem:[#allocation2 + $0x120] sm:$0xff]
    %v159 = vld [vmem:[#allocation2 + $0x128] sm:$0xff]
    %v160 = vld [vmem:[#allocation2 + $0x130] sm:$0xff]
    %v161 = vld [vmem:[#allocation2 + $0x138] sm:$0xff]
    %v162 = vld [vmem:[#allocation2 + $0x140] sm:$0xff]
    %v163 = vld [vmem:[#allocation2 + $0x148] sm:$0xff]
    %v164 = vld [vmem:[#allocation2 + $0x150] sm:$0xff]
    %v165 = vld [vmem:[#allocation2 + $0x158] sm:$0xff]
    %v166 = vld [vmem:[#allocation2 + $0x160] sm:$0xff]
    %v167 = vld [vmem:[#allocation2 + $0x168] sm:$0xff]
    %v168 = vld [vmem:[#allocation2 + $0x170] sm:$0xff]
    %v169 = vld [vmem:[#allocation2 + $0x178] sm:$0xff]
    %v170 = vld [vmem:[#allocation2 + $0x180] sm:$0xff]
    %v171 = vld [vmem:[#allocation2 + $0x188] sm:$0xff]
    %v172 = vld [vmem:[#allocation2 + $0x190] sm:$0xff]
    %v173 = vld [vmem:[#allocation2 + $0x198] sm:$0xff]
    %v174 = vld [vmem:[#allocation2 + $0x1a0] sm:$0xff]
    %v175 = vld [vmem:[#allocation2 + $0x1a8] sm:$0xff]
    %v176 = vld [vmem:[#allocation2 + $0x1b0] sm:$0xff]
    %v177 = vld [vmem:[#allocation2 + $0x1b8] sm:$0xff]
    %v178 = vld [vmem:[#allocation2 + $0x1c0] sm:$0xff]
    %v179 = vld [vmem:[#allocation2 + $0x1c8] sm:$0xff]
    %v180 = vld [vmem:[#allocation2 + $0x1d0] sm:$0xff]
    %v181 = vld [vmem:[#allocation2 + $0x1d8] sm:$0xff]
    %v182 = vld [vmem:[#allocation2 + $0x1e0] sm:$0xff]
    %v183 = vld [vmem:[#allocation2 + $0x1e8] sm:$0xff]
    %v184 = vld [vmem:[#allocation2 + $0x1f0] sm:$0xff]
    %v185 = vld [vmem:[#allocation2 + $0x1f8] sm:$0xff]
    %v186 = vld [vmem:[#allocation2 + $0x200] sm:$0xff]
    %v187 = vld [vmem:[#allocation2 + $0x208] sm:$0xff]
    %v188 = vld [vmem:[#allocation2 + $0x210] sm:$0xff]
    %v189 = vld [vmem:[#allocation2 + $0x218] sm:$0xff]
    %v190 = vld [vmem:[#allocation2 + $0x220] sm:$0xff]
    %v191 = vld [vmem:[#allocation2 + $0x228] sm:$0xff]
    %v192 = vld [vmem:[#allocation2 + $0x230] sm:$0xff]
    %v193 = vld [vmem:[#allocation2 + $0x238] sm:$0xff]
    %v194 = vld [vmem:[#allocation2 + $0x240] sm:$0xff]
    %v195 = vld [vmem:[#allocation2 + $0x248] sm:$0xff]
    %v196 = vld [vmem:[#allocation2 + $0x250] sm:$0xff]
    %v197 = vld [vmem:[#allocation2 + $0x258] sm:$0xff]
    %v198 = vld [vmem:[#allocation2 + $0x260] sm:$0xff]
    %v199 = vld [vmem:[#allocation2 + $0x268] sm:$0xff]
    %v200 = vld [vmem:[#allocation2 + $0x270] sm:$0xff]
    %v201 = vld [vmem:[#allocation2 + $0x278] sm:$0xff]
    %v202 = vld [vmem:[#allocation2 + $0x280] sm:$0xff]
    %v203 = vld [vmem:[#allocation2 + $0x288] sm:$0xff]
    %v204 = vld [vmem:[#allocation2 + $0x290] sm:$0xff]
    %v205 = vld [vmem:[#allocation2 + $0x298] sm:$0xff]
    %v206 = vld [vmem:[#allocation2 + $0x2a0] sm:$0xff]
    %v207 = vld [vmem:[#allocation2 + $0x2a8] sm:$0xff]
    %v208 = vld [vmem:[#allocation2 + $0x2b0] sm:$0xff]
    %v209 = vld [vmem:[#allocation2 + $0x2b8] sm:$0xff]
    %v210 = vld [vmem:[#allocation2 + $0x2c0] sm:$0xff]
    %v211 = vld [vmem:[#allocation2 + $0x2c8] sm:$0xff]
    %v212 = vld [vmem:[#allocation2 + $0x2d0] sm:$0xff]
    %v213 = vld [vmem:[#allocation2 + $0x2d8] sm:$0xff]
    %v214 = vld [vmem:[#allocation2 + $0x2e0] sm:$0xff]
    %v215 = vld [vmem:[#allocation2 + $0x2e8] sm:$0xff]
    %v216 = vld [vmem:[#allocation2 + $0x2f0] sm:$0xff]
    %v217 = vld [vmem:[#allocation2 + $0x2f8] sm:$0xff]
    %v218 = vld [vmem:[#allocation2 + $0x300] sm:$0xff]
    %v219 = vld [vmem:[#allocation2 + $0x308] sm:$0xff]
    %v220 = vld [vmem:[#allocation2 + $0x310] sm:$0xff]
    %v221 = vld [vmem:[#allocation2 + $0x318] sm:$0xff]
    %v222 = vld [vmem:[#allocation2 + $0x320] sm:$0xff]
    %v223 = vld [vmem:[#allocation2 + $0x328] sm:$0xff]
    %v224 = vld [vmem:[#allocation2 + $0x330] sm:$0xff]
    %v225 = vld [vmem:[#allocation2 + $0x338] sm:$0xff]
    %v226 = vld [vmem:[#allocation2 + $0x340] sm:$0xff]
    %v227 = vld [vmem:[#allocation2 + $0x348] sm:$0xff]
    %v228 = vld [vmem:[#allocation2 + $0x350] sm:$0xff]
    %v229 = vld [vmem:[#allocation2 + $0x358] sm:$0xff]
    %v230 = vld [vmem:[#allocation2 + $0x360] sm:$0xff]
    %v231 = vld [vmem:[#allocation2 + $0x368] sm:$0xff]
    %v232 = vld [vmem:[#allocation2 + $0x370] sm:$0xff]
    %v233 = vld [vmem:[#allocation2 + $0x378] sm:$0xff]
    %v234 = vld [vmem:[#allocation2 + $0x380] sm:$0xff]
    %v235 = vld [vmem:[#allocation2 + $0x388] sm:$0xff]
    %v236 = vld [vmem:[#allocation2 + $0x390] sm:$0xff]
    %v237 = vld [vmem:[#allocation2 + $0x398] sm:$0xff]
    %v238 = vld [vmem:[#allocation2 + $0x3a0] sm:$0xff]
    %v239 = vld [vmem:[#allocation2 + $0x3a8] sm:$0xff]
    %v240 = vld [vmem:[#allocation2 + $0x3b0] sm:$0xff]
    %v241 = vld [vmem:[#allocation2 + $0x3b8] sm:$0xff]
    %v242 = vld [vmem:[#allocation2 + $0x3c0] sm:$0xff]
    %v243 = vld [vmem:[#allocation2 + $0x3c8] sm:$0xff]
    %v244 = vld [vmem:[#allocation2 + $0x3d0] sm:$0xff]
    %v245 = vld [vmem:[#allocation2 + $0x3d8] sm:$0xff]
    %v246 = vld [vmem:[#allocation2 + $0x3e0] sm:$0xff]
    %v247 = vld [vmem:[#allocation2 + $0x3e8] sm:$0xff]
    %v248 = vld [vmem:[#allocation2 + $0x3f0] sm:$0xff]
    %v249 = vld [vmem:[#allocation2 + $0x3f8] sm:$0xff]
    %v250 = vld [vmem:[#allocation2 + $0x400] sm:$0xff]
    %v251 = vld [vmem:[#allocation2 + $0x408] sm:$0xff]
    %v252 = vld [vmem:[#allocation2 + $0x410] sm:$0xff]
    %v253 = vld [vmem:[#allocation2 + $0x418] sm:$0xff]
    %v254 = vld [vmem:[#allocation2 + $0x420] sm:$0xff]
    %v255 = vld [vmem:[#allocation2 + $0x428] sm:$0xff]
    %v256 = vld [vmem:[#allocation2 + $0x430] sm:$0xff]
    %v257 = vld [vmem:[#allocation2 + $0x438] sm:$0xff]
    %v258 = vld [vmem:[#allocation2 + $0x440] sm:$0xff]
    %v259 = vld [vmem:[#allocation2 + $0x448] sm:$0xff]
    %v260 = vld [vmem:[#allocation2 + $0x450] sm:$0xff]
    %v261 = vld [vmem:[#allocation2 + $0x458] sm:$0xff]
    %v262 = vld [vmem:[#allocation2 + $0x460] sm:$0xff]
    %v263 = vld [vmem:[#allocation2 + $0x468] sm:$0xff]
    %v264 = vld [vmem:[#allocation2 + $0x470] sm:$0xff]
    %v265 = vld [vmem:[#allocation2 + $0x478] sm:$0xff]
    %v266 = vld [vmem:[#allocation2 + $0x480] sm:$0xff]
    %v267 = vld [vmem:[#allocation2 + $0x488] sm:$0xff]
    %v268 = vld [vmem:[#allocation2 + $0x490] sm:$0xff]
    %v269 = vld [vmem:[#allocation2 + $0x498] sm:$0xff]
    %v270 = vld [vmem:[#allocation2 + $0x4a0] sm:$0xff]
    %v271 = vld [vmem:[#allocation2 + $0x4a8] sm:$0xff]
    %v272 = vld [vmem:[#allocation2 + $0x4b0] sm:$0xff]
    %v273 = vld [vmem:[#allocation2 + $0x4b8] sm:$0xff]
    %v274 = vld [vmem:[#allocation2 + $0x4c0] sm:$0xff]
    %v275 = vld [vmem:[#allocation2 + $0x4c8] sm:$0xff]
    %v276 = vld [vmem:[#allocation2 + $0x4d0] sm:$0xff]
    %v277 = vld [vmem:[#allocation2 + $0x4d8] sm:$0xff]
    %v278 = vld [vmem:[#allocation2 + $0x4e0] sm:$0xff]
    %v279 = vld [vmem:[#allocation2 + $0x4e8] sm:$0xff]
    %v280 = vld [vmem:[#allocation2 + $0x4f0] sm:$0xff]
    %v281 = vld [vmem:[#allocation2 + $0x4f8] sm:$0xff]
    %v282 = vld [vmem:[#allocation2 + $0x500] sm:$0xff]
    %v283 = vld [vmem:[#allocation2 + $0x508] sm:$0xff]
    %v284 = vld [vmem:[#allocation2 + $0x510] sm:$0xff]
    %v285 = vld [vmem:[#allocation2 + $0x518] sm:$0xff]
    %v286 = vld [vmem:[#allocation2 + $0x520] sm:$0xff]
    %v287 = vld [vmem:[#allocation2 + $0x528] sm:$0xff]
    %v288 = vld [vmem:[#allocation2 + $0x530] sm:$0xff]
    %v289 = vld [vmem:[#allocation2 + $0x538] sm:$0xff]
    %v290 = vld [vmem:[#allocation2 + $0x540] sm:$0xff]
    %v291 = vld [vmem:[#allocation2 + $0x548] sm:$0xff]
    %v292 = vld [vmem:[#allocation2 + $0x550] sm:$0xff]
    %v293 = vld [vmem:[#allocation2 + $0x558] sm:$0xff]
    %v294 = vld [vmem:[#allocation2 + $0x560] sm:$0xff]
    %v295 = vld [vmem:[#allocation2 + $0x568] sm:$0xff]
    %v296 = vld [vmem:[#allocation2 + $0x570] sm:$0xff]
    %v297 = vld [vmem:[#allocation2 + $0x578] sm:$0xff]
    %v298 = vld [vmem:[#allocation2 + $0x580] sm:$0xff]
    %v299 = vld [vmem:[#allocation2 + $0x588] sm:$0xff]
    %v300 = vld [vmem:[#allocation2 + $0x590] sm:$0xff]
    %v301 = vld [vmem:[#allocation2 + $0x598] sm:$0xff]
    %v302 = vld [vmem:[#allocation2 + $0x5a0] sm:$0xff]
    %v303 = vld [vmem:[#allocation2 + $0x5a8] sm:$0xff]
    %v304 = vld [vmem:[#allocation2 + $0x5b0] sm:$0xff]
    %v305 = vld [vmem:[#allocation2 + $0x5b8] sm:$0xff]
    %v306 = vld [vmem:[#allocation2 + $0x5c0] sm:$0xff]
    %v307 = vld [vmem:[#allocation2 + $0x5c8] sm:$0xff]
    %v308 = vld [vmem:[#allocation2 + $0x5d0] sm:$0xff]
    %v309 = vld [vmem:[#allocation2 + $0x5d8] sm:$0xff]
    %v310 = vld [vmem:[#allocation2 + $0x5e0] sm:$0xff]
    %v311 = vld [vmem:[#allocation2 + $0x5e8] sm:$0xff]
    %v312 = vld [vmem:[#allocation2 + $0x5f0] sm:$0xff]
    %v313 = vld [vmem:[#allocation2 + $0x5f8] sm:$0xff]
    %v314 = vld [vmem:[#allocation2 + $0x600] sm:$0xff]
    %v315 = vld [vmem:[#allocation2 + $0x608] sm:$0xff]
    %v316 = vld [vmem:[#allocation2 + $0x610] sm:$0xff]
    %v317 = vld [vmem:[#allocation2 + $0x618] sm:$0xff]
    %v318 = vld [vmem:[#allocation2 + $0x620] sm:$0xff]
    %v319 = vld [vmem:[#allocation2 + $0x628] sm:$0xff]
    %v320 = vld [vmem:[#allocation2 + $0x630] sm:$0xff]
    %v321 = vld [vmem:[#allocation2 + $0x638] sm:$0xff]
    %v322 = vld [vmem:[#allocation2 + $0x640] sm:$0xff]
    %v323 = vld [vmem:[#allocation2 + $0x648] sm:$0xff]
    %v324 = vld [vmem:[#allocation2 + $0x650] sm:$0xff]
    %v325 = vld [vmem:[#allocation2 + $0x658] sm:$0xff]
    %v326 = vld [vmem:[#allocation2 + $0x660] sm:$0xff]
    %v327 = vld [vmem:[#allocation2 + $0x668] sm:$0xff]
    %v328 = vld [vmem:[#allocation2 + $0x670] sm:$0xff]
    %v329 = vld [vmem:[#allocation2 + $0x678] sm:$0xff]
    %v330 = vld [vmem:[#allocation2 + $0x680] sm:$0xff]
    %v331 = vld [vmem:[#allocation2 + $0x688] sm:$0xff]
    %v332 = vld [vmem:[#allocation2 + $0x690] sm:$0xff]
    %v333 = vld [vmem:[#allocation2 + $0x698] sm:$0xff]
    %v334 = vld [vmem:[#allocation2 + $0x6a0] sm:$0xff]
    %v335 = vld [vmem:[#allocation2 + $0x6a8] sm:$0xff]
    %v336 = vld [vmem:[#allocation2 + $0x6b0] sm:$0xff]
    %v337 = vld [vmem:[#allocation2 + $0x6b8] sm:$0xff]
    %v338 = vld [vmem:[#allocation2 + $0x6c0] sm:$0xff]
    %v339 = vld [vmem:[#allocation2 + $0x6c8] sm:$0xff]
    %v340 = vld [vmem:[#allocation2 + $0x6d0] sm:$0xff]
    %v341 = vld [vmem:[#allocation2 + $0x6d8] sm:$0xff]
    %v342 = vld [vmem:[#allocation2 + $0x6e0] sm:$0xff]
    %v343 = vld [vmem:[#allocation2 + $0x6e8] sm:$0xff]
    %v344 = vld [vmem:[#allocation2 + $0x6f0] sm:$0xff]
    %v345 = vld [vmem:[#allocation2 + $0x6f8] sm:$0xff]
    %v346 = vld [vmem:[#allocation2 + $0x700] sm:$0xff]
    %v347 = vld [vmem:[#allocation2 + $0x708] sm:$0xff]
    %v348 = vld [vmem:[#allocation2 + $0x710] sm:$0xff]
    %v349 = vld [vmem:[#allocation2 + $0x718] sm:$0xff]
    %v350 = vld [vmem:[#allocation2 + $0x720] sm:$0xff]
    %v351 = vld [vmem:[#allocation2 + $0x728] sm:$0xff]
    %v352 = vld [vmem:[#allocation2 + $0x730] sm:$0xff]
    %v353 = vld [vmem:[#allocation2 + $0x738] sm:$0xff]
    %v354 = vld [vmem:[#allocation2 + $0x740] sm:$0xff]
    %v355 = vld [vmem:[#allocation2 + $0x748] sm:$0xff]
    %v356 = vld [vmem:[#allocation2 + $0x750] sm:$0xff]
    %v357 = vld [vmem:[#allocation2 + $0x758] sm:$0xff]
    %v358 = vld [vmem:[#allocation2 + $0x760] sm:$0xff]
    %v359 = vld [vmem:[#allocation2 + $0x768] sm:$0xff]
    %v360 = vld [vmem:[#allocation2 + $0x770] sm:$0xff]
    %v361 = vld [vmem:[#allocation2 + $0x778] sm:$0xff]
    %v362 = vld [vmem:[#allocation2 + $0x780] sm:$0xff]
    %v363 = vld [vmem:[#allocation2 + $0x788] sm:$0xff]
    %v364 = vld [vmem:[#allocation2 + $0x790] sm:$0xff]
    %v365 = vld [vmem:[#allocation2 + $0x798] sm:$0xff]
    %v366 = vld [vmem:[#allocation2 + $0x7a0] sm:$0xff]
    %v367 = vld [vmem:[#allocation2 + $0x7a8] sm:$0xff]
    %v368 = vld [vmem:[#allocation2 + $0x7b0] sm:$0xff]
    %v369 = vld [vmem:[#allocation2 + $0x7b8] sm:$0xff]
    %v370 = vld [vmem:[#allocation2 + $0x7c0] sm:$0xff]
    %v371 = vld [vmem:[#allocation2 + $0x7c8] sm:$0xff]
    %v372 = vld [vmem:[#allocation2 + $0x7d0] sm:$0xff]
    %v373 = vld [vmem:[#allocation2 + $0x7d8] sm:$0xff]
    %v374 = vld [vmem:[#allocation2 + $0x7e0] sm:$0xff]
    %v375 = vld [vmem:[#allocation2 + $0x7e8] sm:$0xff]
    %v376 = vld [vmem:[#allocation2 + $0x7f0] sm:$0xff]
    %v377 = vld [vmem:[#allocation2 + $0x7f8] sm:$0xff]
    %v378 = vld [vmem:[%s2] sm:$0xf]
    %v380 = vlaneseq
    %v381 = vshrl.u32 %v380, 7
    %v382 = vsub.s32 0, %v381
    %v383 = vrot.slane %v378, %v382
    %v384 = vlaneseq
    %v385 = vshrl.u32 %v384, 7
    %v386 = vsub.s32 1, %v385
    %v387 = vrot.slane %v378, %v386
    %v388 = vlaneseq
    %v389 = vshrl.u32 %v388, 7
    %v390 = vsub.s32 2, %v389
    %v391 = vrot.slane %v378, %v390
    %v392 = vlaneseq
    %v393 = vshrl.u32 %v392, 7
    %v394 = vsub.s32 3, %v393
    %v395 = vrot.slane %v378, %v394
    %v656 = vunpack.c.l.b16 %v122
    %v657 = vunpack.c.h.b16 %v122
    %v658 = vunpack.c.l.b16 %v123
    %v659 = vunpack.c.h.b16 %v123
    %v660 = vunpack.c.l.b16 %v124
    %v661 = vunpack.c.h.b16 %v124
    %v662 = vunpack.c.l.b16 %v125
    %v663 = vunpack.c.h.b16 %v125
    %v664 = vunpack.c.l.b16 %v126
    %v665 = vunpack.c.h.b16 %v126
    %v666 = vunpack.c.l.b16 %v127
    %v667 = vunpack.c.h.b16 %v127
    %v668 = vunpack.c.l.b16 %v128
    %v669 = vunpack.c.h.b16 %v128
    %v670 = vunpack.c.l.b16 %v129
    %v671 = vunpack.c.h.b16 %v129
    %v672 = vunpack.c.l.b16 %v130
    %v673 = vunpack.c.h.b16 %v130
    %v674 = vunpack.c.l.b16 %v131
    %v675 = vunpack.c.h.b16 %v131
    %v676 = vunpack.c.l.b16 %v132
    %v677 = vunpack.c.h.b16 %v132
    %v678 = vunpack.c.l.b16 %v133
    %v679 = vunpack.c.h.b16 %v133
    %v680 = vunpack.c.l.b16 %v134
    %v681 = vunpack.c.h.b16 %v134
    %v682 = vunpack.c.l.b16 %v135
    %v683 = vunpack.c.h.b16 %v135
    %v684 = vunpack.c.l.b16 %v136
    %v685 = vunpack.c.h.b16 %v136
    %v686 = vunpack.c.l.b16 %v137
    %v687 = vunpack.c.h.b16 %v137
    %v688 = vunpack.c.l.b16 %v138
    %v689 = vunpack.c.h.b16 %v138
    %v690 = vunpack.c.l.b16 %v139
    %v691 = vunpack.c.h.b16 %v139
    %v692 = vunpack.c.l.b16 %v140
    %v693 = vunpack.c.h.b16 %v140
    %v694 = vunpack.c.l.b16 %v141
    %v695 = vunpack.c.h.b16 %v141
    %v696 = vunpack.c.l.b16 %v142
    %v697 = vunpack.c.h.b16 %v142
    %v698 = vunpack.c.l.b16 %v143
    %v699 = vunpack.c.h.b16 %v143
    %v700 = vunpack.c.l.b16 %v144
    %v701 = vunpack.c.h.b16 %v144
    %v702 = vunpack.c.l.b16 %v145
    %v703 = vunpack.c.h.b16 %v145
    %v704 = vunpack.c.l.b16 %v146
    %v705 = vunpack.c.h.b16 %v146
    %v706 = vunpack.c.l.b16 %v147
    %v707 = vunpack.c.h.b16 %v147
    %v708 = vunpack.c.l.b16 %v148
    %v709 = vunpack.c.h.b16 %v148
    %v710 = vunpack.c.l.b16 %v149
    %v711 = vunpack.c.h.b16 %v149
    %v712 = vunpack.c.l.b16 %v150
    %v713 = vunpack.c.h.b16 %v150
    %v714 = vunpack.c.l.b16 %v151
    %v715 = vunpack.c.h.b16 %v151
    %v716 = vunpack.c.l.b16 %v152
    %v717 = vunpack.c.h.b16 %v152
    %v718 = vunpack.c.l.b16 %v153
    %v719 = vunpack.c.h.b16 %v153
    %v720 = vunpack.c.l.b16 %v154
    %v721 = vunpack.c.h.b16 %v154
    %v722 = vunpack.c.l.b16 %v155
    %v723 = vunpack.c.h.b16 %v155
    %v724 = vunpack.c.l.b16 %v156
    %v725 = vunpack.c.h.b16 %v156
    %v726 = vunpack.c.l.b16 %v157
    %v727 = vunpack.c.h.b16 %v157
    %v728 = vunpack.c.l.b16 %v158
    %v729 = vunpack.c.h.b16 %v158
    %v730 = vunpack.c.l.b16 %v159
    %v731 = vunpack.c.h.b16 %v159
    %v732 = vunpack.c.l.b16 %v160
    %v733 = vunpack.c.h.b16 %v160
    %v734 = vunpack.c.l.b16 %v161
    %v735 = vunpack.c.h.b16 %v161
    %v736 = vunpack.c.l.b16 %v162
    %v737 = vunpack.c.h.b16 %v162
    %v738 = vunpack.c.l.b16 %v163
    %v739 = vunpack.c.h.b16 %v163
    %v740 = vunpack.c.l.b16 %v164
    %v741 = vunpack.c.h.b16 %v164
    %v742 = vunpack.c.l.b16 %v165
    %v743 = vunpack.c.h.b16 %v165
    %v744 = vunpack.c.l.b16 %v166
    %v745 = vunpack.c.h.b16 %v166
    %v746 = vunpack.c.l.b16 %v167
    %v747 = vunpack.c.h.b16 %v167
    %v748 = vunpack.c.l.b16 %v168
    %v749 = vunpack.c.h.b16 %v168
    %v750 = vunpack.c.l.b16 %v169
    %v751 = vunpack.c.h.b16 %v169
    %v752 = vunpack.c.l.b16 %v170
    %v753 = vunpack.c.h.b16 %v170
    %v754 = vunpack.c.l.b16 %v171
    %v755 = vunpack.c.h.b16 %v171
    %v756 = vunpack.c.l.b16 %v172
    %v757 = vunpack.c.h.b16 %v172
    %v758 = vunpack.c.l.b16 %v173
    %v759 = vunpack.c.h.b16 %v173
    %v760 = vunpack.c.l.b16 %v174
    %v761 = vunpack.c.h.b16 %v174
    %v762 = vunpack.c.l.b16 %v175
    %v763 = vunpack.c.h.b16 %v175
    %v764 = vunpack.c.l.b16 %v176
    %v765 = vunpack.c.h.b16 %v176
    %v766 = vunpack.c.l.b16 %v177
    %v767 = vunpack.c.h.b16 %v177
    %v768 = vunpack.c.l.b16 %v178
    %v769 = vunpack.c.h.b16 %v178
    %v770 = vunpack.c.l.b16 %v179
    %v771 = vunpack.c.h.b16 %v179
    %v772 = vunpack.c.l.b16 %v180
    %v773 = vunpack.c.h.b16 %v180
    %v774 = vunpack.c.l.b16 %v181
    %v775 = vunpack.c.h.b16 %v181
    %v776 = vunpack.c.l.b16 %v182
    %v777 = vunpack.c.h.b16 %v182
    %v778 = vunpack.c.l.b16 %v183
    %v779 = vunpack.c.h.b16 %v183
    %v780 = vunpack.c.l.b16 %v184
    %v781 = vunpack.c.h.b16 %v184
    %v782 = vunpack.c.l.b16 %v185
    %v783 = vunpack.c.h.b16 %v185
    %v784 = vunpack.c.l.b16 %v186
    %v785 = vunpack.c.h.b16 %v186
    %v786 = vunpack.c.l.b16 %v187
    %v787 = vunpack.c.h.b16 %v187
    %v788 = vunpack.c.l.b16 %v188
    %v789 = vunpack.c.h.b16 %v188
    %v790 = vunpack.c.l.b16 %v189
    %v791 = vunpack.c.h.b16 %v189
    %v792 = vunpack.c.l.b16 %v190
    %v793 = vunpack.c.h.b16 %v190
    %v794 = vunpack.c.l.b16 %v191
    %v795 = vunpack.c.h.b16 %v191
    %v796 = vunpack.c.l.b16 %v192
    %v797 = vunpack.c.h.b16 %v192
    %v798 = vunpack.c.l.b16 %v193
    %v799 = vunpack.c.h.b16 %v193
    %v800 = vunpack.c.l.b16 %v194
    %v801 = vunpack.c.h.b16 %v194
    %v802 = vunpack.c.l.b16 %v195
    %v803 = vunpack.c.h.b16 %v195
    %v804 = vunpack.c.l.b16 %v196
    %v805 = vunpack.c.h.b16 %v196
    %v806 = vunpack.c.l.b16 %v197
    %v807 = vunpack.c.h.b16 %v197
    %v808 = vunpack.c.l.b16 %v198
    %v809 = vunpack.c.h.b16 %v198
    %v810 = vunpack.c.l.b16 %v199
    %v811 = vunpack.c.h.b16 %v199
    %v812 = vunpack.c.l.b16 %v200
    %v813 = vunpack.c.h.b16 %v200
    %v814 = vunpack.c.l.b16 %v201
    %v815 = vunpack.c.h.b16 %v201
    %v816 = vunpack.c.l.b16 %v202
    %v817 = vunpack.c.h.b16 %v202
    %v818 = vunpack.c.l.b16 %v203
    %v819 = vunpack.c.h.b16 %v203
    %v820 = vunpack.c.l.b16 %v204
    %v821 = vunpack.c.h.b16 %v204
    %v822 = vunpack.c.l.b16 %v205
    %v823 = vunpack.c.h.b16 %v205
    %v824 = vunpack.c.l.b16 %v206
    %v825 = vunpack.c.h.b16 %v206
    %v826 = vunpack.c.l.b16 %v207
    %v827 = vunpack.c.h.b16 %v207
    %v828 = vunpack.c.l.b16 %v208
    %v829 = vunpack.c.h.b16 %v208
    %v830 = vunpack.c.l.b16 %v209
    %v831 = vunpack.c.h.b16 %v209
    %v832 = vunpack.c.l.b16 %v210
    %v833 = vunpack.c.h.b16 %v210
    %v834 = vunpack.c.l.b16 %v211
    %v835 = vunpack.c.h.b16 %v211
    %v836 = vunpack.c.l.b16 %v212
    %v837 = vunpack.c.h.b16 %v212
    %v838 = vunpack.c.l.b16 %v213
    %v839 = vunpack.c.h.b16 %v213
    %v840 = vunpack.c.l.b16 %v214
    %v841 = vunpack.c.h.b16 %v214
    %v842 = vunpack.c.l.b16 %v215
    %v843 = vunpack.c.h.b16 %v215
    %v844 = vunpack.c.l.b16 %v216
    %v845 = vunpack.c.h.b16 %v216
    %v846 = vunpack.c.l.b16 %v217
    %v847 = vunpack.c.h.b16 %v217
    %v848 = vunpack.c.l.b16 %v218
    %v849 = vunpack.c.h.b16 %v218
    %v850 = vunpack.c.l.b16 %v219
    %v851 = vunpack.c.h.b16 %v219
    %v852 = vunpack.c.l.b16 %v220
    %v853 = vunpack.c.h.b16 %v220
    %v854 = vunpack.c.l.b16 %v221
    %v855 = vunpack.c.h.b16 %v221
    %v856 = vunpack.c.l.b16 %v222
    %v857 = vunpack.c.h.b16 %v222
    %v858 = vunpack.c.l.b16 %v223
    %v859 = vunpack.c.h.b16 %v223
    %v860 = vunpack.c.l.b16 %v224
    %v861 = vunpack.c.h.b16 %v224
    %v862 = vunpack.c.l.b16 %v225
    %v863 = vunpack.c.h.b16 %v225
    %v864 = vunpack.c.l.b16 %v226
    %v865 = vunpack.c.h.b16 %v226
    %v866 = vunpack.c.l.b16 %v227
    %v867 = vunpack.c.h.b16 %v227
    %v868 = vunpack.c.l.b16 %v228
    %v869 = vunpack.c.h.b16 %v228
    %v870 = vunpack.c.l.b16 %v229
    %v871 = vunpack.c.h.b16 %v229
    %v872 = vunpack.c.l.b16 %v230
    %v873 = vunpack.c.h.b16 %v230
    %v874 = vunpack.c.l.b16 %v231
    %v875 = vunpack.c.h.b16 %v231
    %v876 = vunpack.c.l.b16 %v232
    %v877 = vunpack.c.h.b16 %v232
    %v878 = vunpack.c.l.b16 %v233
    %v879 = vunpack.c.h.b16 %v233
    %v880 = vunpack.c.l.b16 %v234
    %v881 = vunpack.c.h.b16 %v234
    %v882 = vunpack.c.l.b16 %v235
    %v883 = vunpack.c.h.b16 %v235
    %v884 = vunpack.c.l.b16 %v236
    %v885 = vunpack.c.h.b16 %v236
    %v886 = vunpack.c.l.b16 %v237
    %v887 = vunpack.c.h.b16 %v237
    %v888 = vunpack.c.l.b16 %v238
    %v889 = vunpack.c.h.b16 %v238
    %v890 = vunpack.c.l.b16 %v239
    %v891 = vunpack.c.h.b16 %v239
    %v892 = vunpack.c.l.b16 %v240
    %v893 = vunpack.c.h.b16 %v240
    %v894 = vunpack.c.l.b16 %v241
    %v895 = vunpack.c.h.b16 %v241
    %v896 = vunpack.c.l.b16 %v242
    %v897 = vunpack.c.h.b16 %v242
    %v898 = vunpack.c.l.b16 %v243
    %v899 = vunpack.c.h.b16 %v243
    %v900 = vunpack.c.l.b16 %v244
    %v901 = vunpack.c.h.b16 %v244
    %v902 = vunpack.c.l.b16 %v245
    %v903 = vunpack.c.h.b16 %v245
    %v904 = vunpack.c.l.b16 %v246
    %v905 = vunpack.c.h.b16 %v246
    %v906 = vunpack.c.l.b16 %v247
    %v907 = vunpack.c.h.b16 %v247
    %v908 = vunpack.c.l.b16 %v248
    %v909 = vunpack.c.h.b16 %v248
    %v910 = vunpack.c.l.b16 %v249
    %v911 = vunpack.c.h.b16 %v249
    %v912 = vunpack.c.l.b16 %v250
    %v913 = vunpack.c.h.b16 %v250
    %v914 = vunpack.c.l.b16 %v251
    %v915 = vunpack.c.h.b16 %v251
    %v916 = vunpack.c.l.b16 %v252
    %v917 = vunpack.c.h.b16 %v252
    %v918 = vunpack.c.l.b16 %v253
    %v919 = vunpack.c.h.b16 %v253
    %v920 = vunpack.c.l.b16 %v254
    %v921 = vunpack.c.h.b16 %v254
    %v922 = vunpack.c.l.b16 %v255
    %v923 = vunpack.c.h.b16 %v255
    %v924 = vunpack.c.l.b16 %v256
    %v925 = vunpack.c.h.b16 %v256
    %v926 = vunpack.c.l.b16 %v257
    %v927 = vunpack.c.h.b16 %v257
    %v928 = vunpack.c.l.b16 %v258
    %v929 = vunpack.c.h.b16 %v258
    %v930 = vunpack.c.l.b16 %v259
    %v931 = vunpack.c.h.b16 %v259
    %v932 = vunpack.c.l.b16 %v260
    %v933 = vunpack.c.h.b16 %v260
    %v934 = vunpack.c.l.b16 %v261
    %v935 = vunpack.c.h.b16 %v261
    %v936 = vunpack.c.l.b16 %v262
    %v937 = vunpack.c.h.b16 %v262
    %v938 = vunpack.c.l.b16 %v263
    %v939 = vunpack.c.h.b16 %v263
    %v940 = vunpack.c.l.b16 %v264
    %v941 = vunpack.c.h.b16 %v264
    %v942 = vunpack.c.l.b16 %v265
    %v943 = vunpack.c.h.b16 %v265
    %v944 = vunpack.c.l.b16 %v266
    %v945 = vunpack.c.h.b16 %v266
    %v946 = vunpack.c.l.b16 %v267
    %v947 = vunpack.c.h.b16 %v267
    %v948 = vunpack.c.l.b16 %v268
    %v949 = vunpack.c.h.b16 %v268
    %v950 = vunpack.c.l.b16 %v269
    %v951 = vunpack.c.h.b16 %v269
    %v952 = vunpack.c.l.b16 %v270
    %v953 = vunpack.c.h.b16 %v270
    %v954 = vunpack.c.l.b16 %v271
    %v955 = vunpack.c.h.b16 %v271
    %v956 = vunpack.c.l.b16 %v272
    %v957 = vunpack.c.h.b16 %v272
    %v958 = vunpack.c.l.b16 %v273
    %v959 = vunpack.c.h.b16 %v273
    %v960 = vunpack.c.l.b16 %v274
    %v961 = vunpack.c.h.b16 %v274
    %v962 = vunpack.c.l.b16 %v275
    %v963 = vunpack.c.h.b16 %v275
    %v964 = vunpack.c.l.b16 %v276
    %v965 = vunpack.c.h.b16 %v276
    %v966 = vunpack.c.l.b16 %v277
    %v967 = vunpack.c.h.b16 %v277
    %v968 = vunpack.c.l.b16 %v278
    %v969 = vunpack.c.h.b16 %v278
    %v970 = vunpack.c.l.b16 %v279
    %v971 = vunpack.c.h.b16 %v279
    %v972 = vunpack.c.l.b16 %v280
    %v973 = vunpack.c.h.b16 %v280
    %v974 = vunpack.c.l.b16 %v281
    %v975 = vunpack.c.h.b16 %v281
    %v976 = vunpack.c.l.b16 %v282
    %v977 = vunpack.c.h.b16 %v282
    %v978 = vunpack.c.l.b16 %v283
    %v979 = vunpack.c.h.b16 %v283
    %v980 = vunpack.c.l.b16 %v284
    %v981 = vunpack.c.h.b16 %v284
    %v982 = vunpack.c.l.b16 %v285
    %v983 = vunpack.c.h.b16 %v285
    %v984 = vunpack.c.l.b16 %v286
    %v985 = vunpack.c.h.b16 %v286
    %v986 = vunpack.c.l.b16 %v287
    %v987 = vunpack.c.h.b16 %v287
    %v988 = vunpack.c.l.b16 %v288
    %v989 = vunpack.c.h.b16 %v288
    %v990 = vunpack.c.l.b16 %v289
    %v991 = vunpack.c.h.b16 %v289
    %v992 = vunpack.c.l.b16 %v290
    %v993 = vunpack.c.h.b16 %v290
    %v994 = vunpack.c.l.b16 %v291
    %v995 = vunpack.c.h.b16 %v291
    %v996 = vunpack.c.l.b16 %v292
    %v997 = vunpack.c.h.b16 %v292
    %v998 = vunpack.c.l.b16 %v293
    %v999 = vunpack.c.h.b16 %v293
    %v1000 = vunpack.c.l.b16 %v294
    %v1001 = vunpack.c.h.b16 %v294
    %v1002 = vunpack.c.l.b16 %v295
    %v1003 = vunpack.c.h.b16 %v295
    %v1004 = vunpack.c.l.b16 %v296
    %v1005 = vunpack.c.h.b16 %v296
    %v1006 = vunpack.c.l.b16 %v297
    %v1007 = vunpack.c.h.b16 %v297
    %v1008 = vunpack.c.l.b16 %v298
    %v1009 = vunpack.c.h.b16 %v298
    %v1010 = vunpack.c.l.b16 %v299
    %v1011 = vunpack.c.h.b16 %v299
    %v1012 = vunpack.c.l.b16 %v300
    %v1013 = vunpack.c.h.b16 %v300
    %v1014 = vunpack.c.l.b16 %v301
    %v1015 = vunpack.c.h.b16 %v301
    %v1016 = vunpack.c.l.b16 %v302
    %v1017 = vunpack.c.h.b16 %v302
    %v1018 = vunpack.c.l.b16 %v303
    %v1019 = vunpack.c.h.b16 %v303
    %v1020 = vunpack.c.l.b16 %v304
    %v1021 = vunpack.c.h.b16 %v304
    %v1022 = vunpack.c.l.b16 %v305
    %v1023 = vunpack.c.h.b16 %v305
    %v1024 = vunpack.c.l.b16 %v306
    %v1025 = vunpack.c.h.b16 %v306
    %v1026 = vunpack.c.l.b16 %v307
    %v1027 = vunpack.c.h.b16 %v307
    %v1028 = vunpack.c.l.b16 %v308
    %v1029 = vunpack.c.h.b16 %v308
    %v1030 = vunpack.c.l.b16 %v309
    %v1031 = vunpack.c.h.b16 %v309
    %v1032 = vunpack.c.l.b16 %v310
    %v1033 = vunpack.c.h.b16 %v310
    %v1034 = vunpack.c.l.b16 %v311
    %v1035 = vunpack.c.h.b16 %v311
    %v1036 = vunpack.c.l.b16 %v312
    %v1037 = vunpack.c.h.b16 %v312
    %v1038 = vunpack.c.l.b16 %v313
    %v1039 = vunpack.c.h.b16 %v313
    %v1040 = vunpack.c.l.b16 %v314
    %v1041 = vunpack.c.h.b16 %v314
    %v1042 = vunpack.c.l.b16 %v315
    %v1043 = vunpack.c.h.b16 %v315
    %v1044 = vunpack.c.l.b16 %v316
    %v1045 = vunpack.c.h.b16 %v316
    %v1046 = vunpack.c.l.b16 %v317
    %v1047 = vunpack.c.h.b16 %v317
    %v1048 = vunpack.c.l.b16 %v318
    %v1049 = vunpack.c.h.b16 %v318
    %v1050 = vunpack.c.l.b16 %v319
    %v1051 = vunpack.c.h.b16 %v319
    %v1052 = vunpack.c.l.b16 %v320
    %v1053 = vunpack.c.h.b16 %v320
    %v1054 = vunpack.c.l.b16 %v321
    %v1055 = vunpack.c.h.b16 %v321
    %v1056 = vunpack.c.l.b16 %v322
    %v1057 = vunpack.c.h.b16 %v322
    %v1058 = vunpack.c.l.b16 %v323
    %v1059 = vunpack.c.h.b16 %v323
    %v1060 = vunpack.c.l.b16 %v324
    %v1061 = vunpack.c.h.b16 %v324
    %v1062 = vunpack.c.l.b16 %v325
    %v1063 = vunpack.c.h.b16 %v325
    %v1064 = vunpack.c.l.b16 %v326
    %v1065 = vunpack.c.h.b16 %v326
    %v1066 = vunpack.c.l.b16 %v327
    %v1067 = vunpack.c.h.b16 %v327
    %v1068 = vunpack.c.l.b16 %v328
    %v1069 = vunpack.c.h.b16 %v328
    %v1070 = vunpack.c.l.b16 %v329
    %v1071 = vunpack.c.h.b16 %v329
    %v1072 = vunpack.c.l.b16 %v330
    %v1073 = vunpack.c.h.b16 %v330
    %v1074 = vunpack.c.l.b16 %v331
    %v1075 = vunpack.c.h.b16 %v331
    %v1076 = vunpack.c.l.b16 %v332
    %v1077 = vunpack.c.h.b16 %v332
    %v1078 = vunpack.c.l.b16 %v333
    %v1079 = vunpack.c.h.b16 %v333
    %v1080 = vunpack.c.l.b16 %v334
    %v1081 = vunpack.c.h.b16 %v334
    %v1082 = vunpack.c.l.b16 %v335
    %v1083 = vunpack.c.h.b16 %v335
    %v1084 = vunpack.c.l.b16 %v336
    %v1085 = vunpack.c.h.b16 %v336
    %v1086 = vunpack.c.l.b16 %v337
    %v1087 = vunpack.c.h.b16 %v337
    %v1088 = vunpack.c.l.b16 %v338
    %v1089 = vunpack.c.h.b16 %v338
    %v1090 = vunpack.c.l.b16 %v339
    %v1091 = vunpack.c.h.b16 %v339
    %v1092 = vunpack.c.l.b16 %v340
    %v1093 = vunpack.c.h.b16 %v340
    %v1094 = vunpack.c.l.b16 %v341
    %v1095 = vunpack.c.h.b16 %v341
    %v1096 = vunpack.c.l.b16 %v342
    %v1097 = vunpack.c.h.b16 %v342
    %v1098 = vunpack.c.l.b16 %v343
    %v1099 = vunpack.c.h.b16 %v343
    %v1100 = vunpack.c.l.b16 %v344
    %v1101 = vunpack.c.h.b16 %v344
    %v1102 = vunpack.c.l.b16 %v345
    %v1103 = vunpack.c.h.b16 %v345
    %v1104 = vunpack.c.l.b16 %v346
    %v1105 = vunpack.c.h.b16 %v346
    %v1106 = vunpack.c.l.b16 %v347
    %v1107 = vunpack.c.h.b16 %v347
    %v1108 = vunpack.c.l.b16 %v348
    %v1109 = vunpack.c.h.b16 %v348
    %v1110 = vunpack.c.l.b16 %v349
    %v1111 = vunpack.c.h.b16 %v349
    %v1112 = vunpack.c.l.b16 %v350
    %v1113 = vunpack.c.h.b16 %v350
    %v1114 = vunpack.c.l.b16 %v351
    %v1115 = vunpack.c.h.b16 %v351
    %v1116 = vunpack.c.l.b16 %v352
    %v1117 = vunpack.c.h.b16 %v352
    %v1118 = vunpack.c.l.b16 %v353
    %v1119 = vunpack.c.h.b16 %v353
    %v1120 = vunpack.c.l.b16 %v354
    %v1121 = vunpack.c.h.b16 %v354
    %v1122 = vunpack.c.l.b16 %v355
    %v1123 = vunpack.c.h.b16 %v355
    %v1124 = vunpack.c.l.b16 %v356
    %v1125 = vunpack.c.h.b16 %v356
    %v1126 = vunpack.c.l.b16 %v357
    %v1127 = vunpack.c.h.b16 %v357
    %v1128 = vunpack.c.l.b16 %v358
    %v1129 = vunpack.c.h.b16 %v358
    %v1130 = vunpack.c.l.b16 %v359
    %v1131 = vunpack.c.h.b16 %v359
    %v1132 = vunpack.c.l.b16 %v360
    %v1133 = vunpack.c.h.b16 %v360
    %v1134 = vunpack.c.l.b16 %v361
    %v1135 = vunpack.c.h.b16 %v361
    %v1136 = vunpack.c.l.b16 %v362
    %v1137 = vunpack.c.h.b16 %v362
    %v1138 = vunpack.c.l.b16 %v363
    %v1139 = vunpack.c.h.b16 %v363
    %v1140 = vunpack.c.l.b16 %v364
    %v1141 = vunpack.c.h.b16 %v364
    %v1142 = vunpack.c.l.b16 %v365
    %v1143 = vunpack.c.h.b16 %v365
    %v1144 = vunpack.c.l.b16 %v366
    %v1145 = vunpack.c.h.b16 %v366
    %v1146 = vunpack.c.l.b16 %v367
    %v1147 = vunpack.c.h.b16 %v367
    %v1148 = vunpack.c.l.b16 %v368
    %v1149 = vunpack.c.h.b16 %v368
    %v1150 = vunpack.c.l.b16 %v369
    %v1151 = vunpack.c.h.b16 %v369
    %v1152 = vunpack.c.l.b16 %v370
    %v1153 = vunpack.c.h.b16 %v370
    %v1154 = vunpack.c.l.b16 %v371
    %v1155 = vunpack.c.h.b16 %v371
    %v1156 = vunpack.c.l.b16 %v372
    %v1157 = vunpack.c.h.b16 %v372
    %v1158 = vunpack.c.l.b16 %v373
    %v1159 = vunpack.c.h.b16 %v373
    %v1160 = vunpack.c.l.b16 %v374
    %v1161 = vunpack.c.h.b16 %v374
    %v1162 = vunpack.c.l.b16 %v375
    %v1163 = vunpack.c.h.b16 %v375
    %v1164 = vunpack.c.l.b16 %v376
    %v1165 = vunpack.c.h.b16 %v376
    %v1166 = vunpack.c.l.b16 %v377
    %v1167 = vunpack.c.h.b16 %v377
    %v1168 = vpack.c.b16 %v660, %v656
    %v1169 = vpack.c.b16 %v661, %v657
    %v1170 = vpack.c.b16 %v662, %v658
    %v1171 = vpack.c.b16 %v663, %v659
    %v1172 = vpack.c.b16 %v668, %v664
    %v1173 = vpack.c.b16 %v669, %v665
    %v1174 = vpack.c.b16 %v670, %v666
    %v1175 = vpack.c.b16 %v671, %v667
    %v1176 = vpack.c.b16 %v676, %v672
    %v1177 = vpack.c.b16 %v677, %v673
    %v1178 = vpack.c.b16 %v678, %v674
    %v1179 = vpack.c.b16 %v679, %v675
    %v1180 = vpack.c.b16 %v684, %v680
    %v1181 = vpack.c.b16 %v685, %v681
    %v1182 = vpack.c.b16 %v686, %v682
    %v1183 = vpack.c.b16 %v687, %v683
    %v1184 = vpack.c.b16 %v692, %v688
    %v1185 = vpack.c.b16 %v693, %v689
    %v1186 = vpack.c.b16 %v694, %v690
    %v1187 = vpack.c.b16 %v695, %v691
    %v1188 = vpack.c.b16 %v700, %v696
    %v1189 = vpack.c.b16 %v701, %v697
    %v1190 = vpack.c.b16 %v702, %v698
    %v1191 = vpack.c.b16 %v703, %v699
    %v1192 = vpack.c.b16 %v708, %v704
    %v1193 = vpack.c.b16 %v709, %v705
    %v1194 = vpack.c.b16 %v710, %v706
    %v1195 = vpack.c.b16 %v711, %v707
    %v1196 = vpack.c.b16 %v716, %v712
    %v1197 = vpack.c.b16 %v717, %v713
    %v1198 = vpack.c.b16 %v718, %v714
    %v1199 = vpack.c.b16 %v719, %v715
    %v1200 = vpack.c.b16 %v724, %v720
    %v1201 = vpack.c.b16 %v725, %v721
    %v1202 = vpack.c.b16 %v726, %v722
    %v1203 = vpack.c.b16 %v727, %v723
    %v1204 = vpack.c.b16 %v732, %v728
    %v1205 = vpack.c.b16 %v733, %v729
    %v1206 = vpack.c.b16 %v734, %v730
    %v1207 = vpack.c.b16 %v735, %v731
    %v1208 = vpack.c.b16 %v740, %v736
    %v1209 = vpack.c.b16 %v741, %v737
    %v1210 = vpack.c.b16 %v742, %v738
    %v1211 = vpack.c.b16 %v743, %v739
    %v1212 = vpack.c.b16 %v748, %v744
    %v1213 = vpack.c.b16 %v749, %v745
    %v1214 = vpack.c.b16 %v750, %v746
    %v1215 = vpack.c.b16 %v751, %v747
    %v1216 = vpack.c.b16 %v756, %v752
    %v1217 = vpack.c.b16 %v757, %v753
    %v1218 = vpack.c.b16 %v758, %v754
    %v1219 = vpack.c.b16 %v759, %v755
    %v1220 = vpack.c.b16 %v764, %v760
    %v1221 = vpack.c.b16 %v765, %v761
    %v1222 = vpack.c.b16 %v766, %v762
    %v1223 = vpack.c.b16 %v767, %v763
    %v1224 = vpack.c.b16 %v772, %v768
    %v1225 = vpack.c.b16 %v773, %v769
    %v1226 = vpack.c.b16 %v774, %v770
    %v1227 = vpack.c.b16 %v775, %v771
    %v1228 = vpack.c.b16 %v780, %v776
    %v1229 = vpack.c.b16 %v781, %v777
    %v1230 = vpack.c.b16 %v782, %v778
    %v1231 = vpack.c.b16 %v783, %v779
    %v1232 = vpack.c.b16 %v788, %v784
    %v1233 = vpack.c.b16 %v789, %v785
    %v1234 = vpack.c.b16 %v790, %v786
    %v1235 = vpack.c.b16 %v791, %v787
    %v1236 = vpack.c.b16 %v796, %v792
    %v1237 = vpack.c.b16 %v797, %v793
    %v1238 = vpack.c.b16 %v798, %v794
    %v1239 = vpack.c.b16 %v799, %v795
    %v1240 = vpack.c.b16 %v804, %v800
    %v1241 = vpack.c.b16 %v805, %v801
    %v1242 = vpack.c.b16 %v806, %v802
    %v1243 = vpack.c.b16 %v807, %v803
    %v1244 = vpack.c.b16 %v812, %v808
    %v1245 = vpack.c.b16 %v813, %v809
    %v1246 = vpack.c.b16 %v814, %v810
    %v1247 = vpack.c.b16 %v815, %v811
    %v1248 = vpack.c.b16 %v820, %v816
    %v1249 = vpack.c.b16 %v821, %v817
    %v1250 = vpack.c.b16 %v822, %v818
    %v1251 = vpack.c.b16 %v823, %v819
    %v1252 = vpack.c.b16 %v828, %v824
    %v1253 = vpack.c.b16 %v829, %v825
    %v1254 = vpack.c.b16 %v830, %v826
    %v1255 = vpack.c.b16 %v831, %v827
    %v1256 = vpack.c.b16 %v836, %v832
    %v1257 = vpack.c.b16 %v837, %v833
    %v1258 = vpack.c.b16 %v838, %v834
    %v1259 = vpack.c.b16 %v839, %v835
    %v1260 = vpack.c.b16 %v844, %v840
    %v1261 = vpack.c.b16 %v845, %v841
    %v1262 = vpack.c.b16 %v846, %v842
    %v1263 = vpack.c.b16 %v847, %v843
    %v1264 = vpack.c.b16 %v852, %v848
    %v1265 = vpack.c.b16 %v853, %v849
    %v1266 = vpack.c.b16 %v854, %v850
    %v1267 = vpack.c.b16 %v855, %v851
    %v1268 = vpack.c.b16 %v860, %v856
    %v1269 = vpack.c.b16 %v861, %v857
    %v1270 = vpack.c.b16 %v862, %v858
    %v1271 = vpack.c.b16 %v863, %v859
    %v1272 = vpack.c.b16 %v868, %v864
    %v1273 = vpack.c.b16 %v869, %v865
    %v1274 = vpack.c.b16 %v870, %v866
    %v1275 = vpack.c.b16 %v871, %v867
    %v1276 = vpack.c.b16 %v876, %v872
    %v1277 = vpack.c.b16 %v877, %v873
    %v1278 = vpack.c.b16 %v878, %v874
    %v1279 = vpack.c.b16 %v879, %v875
    %v1280 = vpack.c.b16 %v884, %v880
    %v1281 = vpack.c.b16 %v885, %v881
    %v1282 = vpack.c.b16 %v886, %v882
    %v1283 = vpack.c.b16 %v887, %v883
    %v1284 = vpack.c.b16 %v892, %v888
    %v1285 = vpack.c.b16 %v893, %v889
    %v1286 = vpack.c.b16 %v894, %v890
    %v1287 = vpack.c.b16 %v895, %v891
    %v1288 = vpack.c.b16 %v900, %v896
    %v1289 = vpack.c.b16 %v901, %v897
    %v1290 = vpack.c.b16 %v902, %v898
    %v1291 = vpack.c.b16 %v903, %v899
    %v1292 = vpack.c.b16 %v908, %v904
    %v1293 = vpack.c.b16 %v909, %v905
    %v1294 = vpack.c.b16 %v910, %v906
    %v1295 = vpack.c.b16 %v911, %v907
    %v1296 = vpack.c.b16 %v916, %v912
    %v1297 = vpack.c.b16 %v917, %v913
    %v1298 = vpack.c.b16 %v918, %v914
    %v1299 = vpack.c.b16 %v919, %v915
    %v1300 = vpack.c.b16 %v924, %v920
    %v1301 = vpack.c.b16 %v925, %v921
    %v1302 = vpack.c.b16 %v926, %v922
    %v1303 = vpack.c.b16 %v927, %v923
    %v1304 = vpack.c.b16 %v932, %v928
    %v1305 = vpack.c.b16 %v933, %v929
    %v1306 = vpack.c.b16 %v934, %v930
    %v1307 = vpack.c.b16 %v935, %v931
    %v1308 = vpack.c.b16 %v940, %v936
    %v1309 = vpack.c.b16 %v941, %v937
    %v1310 = vpack.c.b16 %v942, %v938
    %v1311 = vpack.c.b16 %v943, %v939
    %v1312 = vpack.c.b16 %v948, %v944
    %v1313 = vpack.c.b16 %v949, %v945
    %v1314 = vpack.c.b16 %v950, %v946
    %v1315 = vpack.c.b16 %v951, %v947
    %v1316 = vpack.c.b16 %v956, %v952
    %v1317 = vpack.c.b16 %v957, %v953
    %v1318 = vpack.c.b16 %v958, %v954
    %v1319 = vpack.c.b16 %v959, %v955
    %v1320 = vpack.c.b16 %v964, %v960
    %v1321 = vpack.c.b16 %v965, %v961
    %v1322 = vpack.c.b16 %v966, %v962
    %v1323 = vpack.c.b16 %v967, %v963
    %v1324 = vpack.c.b16 %v972, %v968
    %v1325 = vpack.c.b16 %v973, %v969
    %v1326 = vpack.c.b16 %v974, %v970
    %v1327 = vpack.c.b16 %v975, %v971
    %v1328 = vpack.c.b16 %v980, %v976
    %v1329 = vpack.c.b16 %v981, %v977
    %v1330 = vpack.c.b16 %v982, %v978
    %v1331 = vpack.c.b16 %v983, %v979
    %v1332 = vpack.c.b16 %v988, %v984
    %v1333 = vpack.c.b16 %v989, %v985
    %v1334 = vpack.c.b16 %v990, %v986
    %v1335 = vpack.c.b16 %v991, %v987
    %v1336 = vpack.c.b16 %v996, %v992
    %v1337 = vpack.c.b16 %v997, %v993
    %v1338 = vpack.c.b16 %v998, %v994
    %v1339 = vpack.c.b16 %v999, %v995
    %v1340 = vpack.c.b16 %v1004, %v1000
    %v1341 = vpack.c.b16 %v1005, %v1001
    %v1342 = vpack.c.b16 %v1006, %v1002
    %v1343 = vpack.c.b16 %v1007, %v1003
    %v1344 = vpack.c.b16 %v1012, %v1008
    %v1345 = vpack.c.b16 %v1013, %v1009
    %v1346 = vpack.c.b16 %v1014, %v1010
    %v1347 = vpack.c.b16 %v1015, %v1011
    %v1348 = vpack.c.b16 %v1020, %v1016
    %v1349 = vpack.c.b16 %v1021, %v1017
    %v1350 = vpack.c.b16 %v1022, %v1018
    %v1351 = vpack.c.b16 %v1023, %v1019
    %v1352 = vpack.c.b16 %v1028, %v1024
    %v1353 = vpack.c.b16 %v1029, %v1025
    %v1354 = vpack.c.b16 %v1030, %v1026
    %v1355 = vpack.c.b16 %v1031, %v1027
    %v1356 = vpack.c.b16 %v1036, %v1032
    %v1357 = vpack.c.b16 %v1037, %v1033
    %v1358 = vpack.c.b16 %v1038, %v1034
    %v1359 = vpack.c.b16 %v1039, %v1035
    %v1360 = vpack.c.b16 %v1044, %v1040
    %v1361 = vpack.c.b16 %v1045, %v1041
    %v1362 = vpack.c.b16 %v1046, %v1042
    %v1363 = vpack.c.b16 %v1047, %v1043
    %v1364 = vpack.c.b16 %v1052, %v1048
    %v1365 = vpack.c.b16 %v1053, %v1049
    %v1366 = vpack.c.b16 %v1054, %v1050
    %v1367 = vpack.c.b16 %v1055, %v1051
    %v1368 = vpack.c.b16 %v1060, %v1056
    %v1369 = vpack.c.b16 %v1061, %v1057
    %v1370 = vpack.c.b16 %v1062, %v1058
    %v1371 = vpack.c.b16 %v1063, %v1059
    %v1372 = vpack.c.b16 %v1068, %v1064
    %v1373 = vpack.c.b16 %v1069, %v1065
    %v1374 = vpack.c.b16 %v1070, %v1066
    %v1375 = vpack.c.b16 %v1071, %v1067
    %v1376 = vpack.c.b16 %v1076, %v1072
    %v1377 = vpack.c.b16 %v1077, %v1073
    %v1378 = vpack.c.b16 %v1078, %v1074
    %v1379 = vpack.c.b16 %v1079, %v1075
    %v1380 = vpack.c.b16 %v1084, %v1080
    %v1381 = vpack.c.b16 %v1085, %v1081
    %v1382 = vpack.c.b16 %v1086, %v1082
    %v1383 = vpack.c.b16 %v1087, %v1083
    %v1384 = vpack.c.b16 %v1092, %v1088
    %v1385 = vpack.c.b16 %v1093, %v1089
    %v1386 = vpack.c.b16 %v1094, %v1090
    %v1387 = vpack.c.b16 %v1095, %v1091
    %v1388 = vpack.c.b16 %v1100, %v1096
    %v1389 = vpack.c.b16 %v1101, %v1097
    %v1390 = vpack.c.b16 %v1102, %v1098
    %v1391 = vpack.c.b16 %v1103, %v1099
    %v1392 = vpack.c.b16 %v1108, %v1104
    %v1393 = vpack.c.b16 %v1109, %v1105
    %v1394 = vpack.c.b16 %v1110, %v1106
    %v1395 = vpack.c.b16 %v1111, %v1107
    %v1396 = vpack.c.b16 %v1116, %v1112
    %v1397 = vpack.c.b16 %v1117, %v1113
    %v1398 = vpack.c.b16 %v1118, %v1114
    %v1399 = vpack.c.b16 %v1119, %v1115
    %v1400 = vpack.c.b16 %v1124, %v1120
    %v1401 = vpack.c.b16 %v1125, %v1121
    %v1402 = vpack.c.b16 %v1126, %v1122
    %v1403 = vpack.c.b16 %v1127, %v1123
    %v1404 = vpack.c.b16 %v1132, %v1128
    %v1405 = vpack.c.b16 %v1133, %v1129
    %v1406 = vpack.c.b16 %v1134, %v1130
    %v1407 = vpack.c.b16 %v1135, %v1131
    %v1408 = vpack.c.b16 %v1140, %v1136
    %v1409 = vpack.c.b16 %v1141, %v1137
    %v1410 = vpack.c.b16 %v1142, %v1138
    %v1411 = vpack.c.b16 %v1143, %v1139
    %v1412 = vpack.c.b16 %v1148, %v1144
    %v1413 = vpack.c.b16 %v1149, %v1145
    %v1414 = vpack.c.b16 %v1150, %v1146
    %v1415 = vpack.c.b16 %v1151, %v1147
    %v1416 = vpack.c.b16 %v1156, %v1152
    %v1417 = vpack.c.b16 %v1157, %v1153
    %v1418 = vpack.c.b16 %v1158, %v1154
    %v1419 = vpack.c.b16 %v1159, %v1155
    %v1420 = vpack.c.b16 %v1164, %v1160
    %v1421 = vpack.c.b16 %v1165, %v1161
    %v1422 = vpack.c.b16 %v1166, %v1162
    %v1423 = vpack.c.b16 %v1167, %v1163
    %1680 = vmatprep.subr.bf16.mxu0 %v1169
    %1681 = vmatpush1.bf16.msra.mxu0 %v1168
    %1682 = vmatprep.subr.bf16.mxu0 %v1173
    %1683 = vmatpush1.bf16.msra.mxu0 %v1172
    %1684 = vmatprep.subr.bf16.mxu0 %v1177
    %1685 = vmatpush1.bf16.msra.mxu0 %v1176
    %1686 = vmatprep.subr.bf16.mxu0 %v1181
    %1687 = vmatpush1.bf16.msra.mxu0 %v1180
    %1688 = vmatprep.subr.bf16.mxu0 %v1185
    %1689 = vmatpush1.bf16.msra.mxu0 %v1184
    %1690 = vmatprep.subr.bf16.mxu0 %v1189
    %1691 = vmatpush1.bf16.msra.mxu0 %v1188
    %1692 = vmatprep.subr.bf16.mxu0 %v1193
    %1693 = vmatpush1.bf16.msra.mxu0 %v1192
    %1694 = vmatprep.subr.bf16.mxu0 %v1197
    %1695 = vmatpush1.bf16.msra.mxu0 %v1196
    %1696 = vmatprep.subr.bf16.mxu0 %v1201
    %1697 = vmatpush1.bf16.msra.mxu0 %v1200
    %1698 = vmatprep.subr.bf16.mxu0 %v1205
    %1699 = vmatpush1.bf16.msra.mxu0 %v1204
    %1700 = vmatprep.subr.bf16.mxu0 %v1209
    %1701 = vmatpush1.bf16.msra.mxu0 %v1208
    %1702 = vmatprep.subr.bf16.mxu0 %v1213
    %1703 = vmatpush1.bf16.msra.mxu0 %v1212
    %1704 = vmatprep.subr.bf16.mxu0 %v1217
    %1705 = vmatpush1.bf16.msra.mxu0 %v1216
    %1706 = vmatprep.subr.bf16.mxu0 %v1221
    %1707 = vmatpush1.bf16.msra.mxu0 %v1220
    %1708 = vmatprep.subr.bf16.mxu0 %v1225
    %1709 = vmatpush1.bf16.msra.mxu0 %v1224
    %1710 = vmatprep.subr.bf16.mxu0 %v1229
    %1711 = vmatpush1.bf16.msra.mxu0 %v1228
    %1712 = vmatprep.mubr.bf16.mxu0 %v115
    %1713 = vmatmul.mubr.bf16.gmra.mrb[0].mxu0 %v114
    %v1714 = vpop.f32.mrb[0].mxu0
    %v1715 = vadd.f32 %v383, %v1714
    %v1716 = vpop.f32.mrb[0].mxu0
    %v1717 = vadd.f32 %v387, %v1716
    %v1718 = vpop.f32.mrb[0].mxu0
    %v1719 = vpop.f32.mrb[0].mxu0
    %1720 = vdwg.mxu0
    %1721 = vmatprep.subr.bf16.mxu0 %v1233
    %1722 = vmatpush1.bf16.msra.mxu0 %v1232
    %1723 = vmatprep.subr.bf16.mxu0 %v1237
    %1724 = vmatpush1.bf16.msra.mxu0 %v1236
    %1725 = vmatprep.subr.bf16.mxu0 %v1241
    %1726 = vmatpush1.bf16.msra.mxu0 %v1240
    %1727 = vmatprep.subr.bf16.mxu0 %v1245
    %1728 = vmatpush1.bf16.msra.mxu0 %v1244
    %1729 = vmatprep.subr.bf16.mxu0 %v1249
    %1730 = vmatpush1.bf16.msra.mxu0 %v1248
    %1731 = vmatprep.subr.bf16.mxu0 %v1253
    %1732 = vmatpush1.bf16.msra.mxu0 %v1252
    %1733 = vmatprep.subr.bf16.mxu0 %v1257
    %1734 = vmatpush1.bf16.msra.mxu0 %v1256
    %1735 = vmatprep.subr.bf16.mxu0 %v1261
    %1736 = vmatpush1.bf16.msra.mxu0 %v1260
    %1737 = vmatprep.subr.bf16.mxu0 %v1265
    %1738 = vmatpush1.bf16.msra.mxu0 %v1264
    %1739 = vmatprep.subr.bf16.mxu0 %v1269
    %1740 = vmatpush1.bf16.msra.mxu0 %v1268
    %1741 = vmatprep.subr.bf16.mxu0 %v1273
    %1742 = vmatpush1.bf16.msra.mxu0 %v1272
    %1743 = vmatprep.subr.bf16.mxu0 %v1277
    %1744 = vmatpush1.bf16.msra.mxu0 %v1276
    %1745 = vmatprep.subr.bf16.mxu0 %v1281
    %1746 = vmatpush1.bf16.msra.mxu0 %v1280
    %1747 = vmatprep.subr.bf16.mxu0 %v1285
    %1748 = vmatpush1.bf16.msra.mxu0 %v1284
    %1749 = vmatprep.subr.bf16.mxu0 %v1289
    %1750 = vmatpush1.bf16.msra.mxu0 %v1288
    %1751 = vmatprep.subr.bf16.mxu0 %v1293
    %1752 = vmatpush1.bf16.msra.mxu0 %v1292
    %1753 = vmatprep.mubr.bf16.mxu0 %v117
    %1754 = vmatmul.mubr.bf16.gmra.mrb[0].mxu0 %v116
    %v1755 = vpop.f32.mrb[0].mxu0
    %v1756 = vadd.f32 %v1715, %v1755
    %v1757 = vpop.f32.mrb[0].mxu0
    %v1758 = vadd.f32 %v1717, %v1757
    %v1759 = vpop.f32.mrb[0].mxu0
    %v1760 = vpop.f32.mrb[0].mxu0
    %1761 = vdwg.mxu0
    %1762 = vmatprep.subr.bf16.mxu0 %v1297
    %1763 = vmatpush1.bf16.msra.mxu0 %v1296
    %1764 = vmatprep.subr.bf16.mxu0 %v1301
    %1765 = vmatpush1.bf16.msra.mxu0 %v1300
    %1766 = vmatprep.subr.bf16.mxu0 %v1305
    %1767 = vmatpush1.bf16.msra.mxu0 %v1304
    %1768 = vmatprep.subr.bf16.mxu0 %v1309
    %1769 = vmatpush1.bf16.msra.mxu0 %v1308
    %1770 = vmatprep.subr.bf16.mxu0 %v1313
    %1771 = vmatpush1.bf16.msra.mxu0 %v1312
    %1772 = vmatprep.subr.bf16.mxu0 %v1317
    %1773 = vmatpush1.bf16.msra.mxu0 %v1316
    %1774 = vmatprep.subr.bf16.mxu0 %v1321
    %1775 = vmatpush1.bf16.msra.mxu0 %v1320
    %1776 = vmatprep.subr.bf16.mxu0 %v1325
    %1777 = vmatpush1.bf16.msra.mxu0 %v1324
    %1778 = vmatprep.subr.bf16.mxu0 %v1329
    %1779 = vmatpush1.bf16.msra.mxu0 %v1328
    %1780 = vmatprep.subr.bf16.mxu0 %v1333
    %1781 = vmatpush1.bf16.msra.mxu0 %v1332
    %1782 = vmatprep.subr.bf16.mxu0 %v1337
    %1783 = vmatpush1.bf16.msra.mxu0 %v1336
    %1784 = vmatprep.subr.bf16.mxu0 %v1341
    %1785 = vmatpush1.bf16.msra.mxu0 %v1340
    %1786 = vmatprep.subr.bf16.mxu0 %v1345
    %1787 = vmatpush1.bf16.msra.mxu0 %v1344
    %1788 = vmatprep.subr.bf16.mxu0 %v1349
    %1789 = vmatpush1.bf16.msra.mxu0 %v1348
    %1790 = vmatprep.subr.bf16.mxu0 %v1353
    %1791 = vmatpush1.bf16.msra.mxu0 %v1352
    %1792 = vmatprep.subr.bf16.mxu0 %v1357
    %1793 = vmatpush1.bf16.msra.mxu0 %v1356
    %1794 = vmatprep.mubr.bf16.mxu0 %v119
    %1795 = vmatmul.mubr.bf16.gmra.mrb[0].mxu0 %v118
    %v1796 = vpop.f32.mrb[0].mxu0
    %v1797 = vadd.f32 %v1756, %v1796
    %v1798 = vpop.f32.mrb[0].mxu0
    %v1799 = vadd.f32 %v1758, %v1798
    %v1800 = vpop.f32.mrb[0].mxu0
    %v1801 = vpop.f32.mrb[0].mxu0
    %1802 = vdwg.mxu0
    %1803 = vmatprep.subr.bf16.mxu0 %v1361
    %1804 = vmatpush1.bf16.msra.mxu0 %v1360
    %1805 = vmatprep.subr.bf16.mxu0 %v1365
    %1806 = vmatpush1.bf16.msra.mxu0 %v1364
    %1807 = vmatprep.subr.bf16.mxu0 %v1369
    %1808 = vmatpush1.bf16.msra.mxu0 %v1368
    %1809 = vmatprep.subr.bf16.mxu0 %v1373
    %1810 = vmatpush1.bf16.msra.mxu0 %v1372
    %1811 = vmatprep.subr.bf16.mxu0 %v1377
    %1812 = vmatpush1.bf16.msra.mxu0 %v1376
    %1813 = vmatprep.subr.bf16.mxu0 %v1381
    %1814 = vmatpush1.bf16.msra.mxu0 %v1380
    %1815 = vmatprep.subr.bf16.mxu0 %v1385
    %1816 = vmatpush1.bf16.msra.mxu0 %v1384
    %1817 = vmatprep.subr.bf16.mxu0 %v1389
    %1818 = vmatpush1.bf16.msra.mxu0 %v1388
    %1819 = vmatprep.subr.bf16.mxu0 %v1393
    %1820 = vmatpush1.bf16.msra.mxu0 %v1392
    %1821 = vmatprep.subr.bf16.mxu0 %v1397
    %1822 = vmatpush1.bf16.msra.mxu0 %v1396
    %1823 = vmatprep.subr.bf16.mxu0 %v1401
    %1824 = vmatpush1.bf16.msra.mxu0 %v1400
    %1825 = vmatprep.subr.bf16.mxu0 %v1405
    %1826 = vmatpush1.bf16.msra.mxu0 %v1404
    %1827 = vmatprep.subr.bf16.mxu0 %v1409
    %1828 = vmatpush1.bf16.msra.mxu0 %v1408
    %1829 = vmatprep.subr.bf16.mxu0 %v1413
    %1830 = vmatpush1.bf16.msra.mxu0 %v1412
    %1831 = vmatprep.subr.bf16.mxu0 %v1417
    %1832 = vmatpush1.bf16.msra.mxu0 %v1416
    %1833 = vmatprep.subr.bf16.mxu0 %v1421
    %1834 = vmatpush1.bf16.msra.mxu0 %v1420
    %1835 = vmatprep.mubr.bf16.mxu0 %v121
    %1836 = vmatmul.mubr.bf16.gmra.mrb[0].mxu0 %v120
    %v1837 = vpop.f32.mrb[0].mxu0
    %v1838 = vadd.f32 %v1797, %v1837
    %v1839 = vpop.f32.mrb[0].mxu0
    %v1840 = vadd.f32 %v1799, %v1839
    %v1841 = vpop.f32.mrb[0].mxu0
    %v1842 = vpop.f32.mrb[0].mxu0
    %1843 = vdwg.mxu0
    %1844 = vmatprep.subr.bf16.mxu0 %v1171
    %1845 = vmatpush1.bf16.msra.mxu0 %v1170
    %1846 = vmatprep.subr.bf16.mxu0 %v1175
    %1847 = vmatpush1.bf16.msra.mxu0 %v1174
    %1848 = vmatprep.subr.bf16.mxu0 %v1179
    %1849 = vmatpush1.bf16.msra.mxu0 %v1178
    %1850 = vmatprep.subr.bf16.mxu0 %v1183
    %1851 = vmatpush1.bf16.msra.mxu0 %v1182
    %1852 = vmatprep.subr.bf16.mxu0 %v1187
    %1853 = vmatpush1.bf16.msra.mxu0 %v1186
    %1854 = vmatprep.subr.bf16.mxu0 %v1191
    %1855 = vmatpush1.bf16.msra.mxu0 %v1190
    %1856 = vmatprep.subr.bf16.mxu0 %v1195
    %1857 = vmatpush1.bf16.msra.mxu0 %v1194
    %1858 = vmatprep.subr.bf16.mxu0 %v1199
    %1859 = vmatpush1.bf16.msra.mxu0 %v1198
    %1860 = vmatprep.subr.bf16.mxu0 %v1203
    %1861 = vmatpush1.bf16.msra.mxu0 %v1202
    %1862 = vmatprep.subr.bf16.mxu0 %v1207
    %1863 = vmatpush1.bf16.msra.mxu0 %v1206
    %1864 = vmatprep.subr.bf16.mxu0 %v1211
    %1865 = vmatpush1.bf16.msra.mxu0 %v1210
    %1866 = vmatprep.subr.bf16.mxu0 %v1215
    %1867 = vmatpush1.bf16.msra.mxu0 %v1214
    %1868 = vmatprep.subr.bf16.mxu0 %v1219
    %1869 = vmatpush1.bf16.msra.mxu0 %v1218
    %1870 = vmatprep.subr.bf16.mxu0 %v1223
    %1871 = vmatpush1.bf16.msra.mxu0 %v1222
    %1872 = vmatprep.subr.bf16.mxu0 %v1227
    %1873 = vmatpush1.bf16.msra.mxu0 %v1226
    %1874 = vmatprep.subr.bf16.mxu0 %v1231
    %1875 = vmatpush1.bf16.msra.mxu0 %v1230
    %1876 = vmatprep.mubr.bf16.mxu0 %v115
    %1877 = vmatmul.mubr.bf16.gmra.mrb[0].mxu0 %v114
    %v1878 = vpop.f32.mrb[0].mxu0
    %v1879 = vadd.f32 %v391, %v1878
    %v1880 = vpop.f32.mrb[0].mxu0
    %v1881 = vadd.f32 %v395, %v1880
    %v1882 = vpop.f32.mrb[0].mxu0
    %v1883 = vpop.f32.mrb[0].mxu0
    %1884 = vdwg.mxu0
    %1885 = vmatprep.subr.bf16.mxu0 %v1235
    %1886 = vmatpush1.bf16.msra.mxu0 %v1234
    %1887 = vmatprep.subr.bf16.mxu0 %v1239
    %1888 = vmatpush1.bf16.msra.mxu0 %v1238
    %1889 = vmatprep.subr.bf16.mxu0 %v1243
    %1890 = vmatpush1.bf16.msra.mxu0 %v1242
    %1891 = vmatprep.subr.bf16.mxu0 %v1247
    %1892 = vmatpush1.bf16.msra.mxu0 %v1246
    %1893 = vmatprep.subr.bf16.mxu0 %v1251
    %1894 = vmatpush1.bf16.msra.mxu0 %v1250
    %1895 = vmatprep.subr.bf16.mxu0 %v1255
    %1896 = vmatpush1.bf16.msra.mxu0 %v1254
    %1897 = vmatprep.subr.bf16.mxu0 %v1259
    %1898 = vmatpush1.bf16.msra.mxu0 %v1258
    %1899 = vmatprep.subr.bf16.mxu0 %v1263
    %1900 = vmatpush1.bf16.msra.mxu0 %v1262
    %1901 = vmatprep.subr.bf16.mxu0 %v1267
    %1902 = vmatpush1.bf16.msra.mxu0 %v1266
    %1903 = vmatprep.subr.bf16.mxu0 %v1271
    %1904 = vmatpush1.bf16.msra.mxu0 %v1270
    %1905 = vmatprep.subr.bf16.mxu0 %v1275
    %1906 = vmatpush1.bf16.msra.mxu0 %v1274
    %1907 = vmatprep.subr.bf16.mxu0 %v1279
    %1908 = vmatpush1.bf16.msra.mxu0 %v1278
    %1909 = vmatprep.subr.bf16.mxu0 %v1283
    %1910 = vmatpush1.bf16.msra.mxu0 %v1282
    %1911 = vmatprep.subr.bf16.mxu0 %v1287
    %1912 = vmatpush1.bf16.msra.mxu0 %v1286
    %1913 = vmatprep.subr.bf16.mxu0 %v1291
    %1914 = vmatpush1.bf16.msra.mxu0 %v1290
    %1915 = vmatprep.subr.bf16.mxu0 %v1295
    %1916 = vmatpush1.bf16.msra.mxu0 %v1294
    %1917 = vmatprep.mubr.bf16.mxu0 %v117
    %1918 = vmatmul.mubr.bf16.gmra.mrb[0].mxu0 %v116
    %v1919 = vpop.f32.mrb[0].mxu0
    %v1920 = vadd.f32 %v1879, %v1919
    %v1921 = vpop.f32.mrb[0].mxu0
    %v1922 = vadd.f32 %v1881, %v1921
    %v1923 = vpop.f32.mrb[0].mxu0
    %v1924 = vpop.f32.mrb[0].mxu0
    %1925 = vdwg.mxu0
    %1926 = vmatprep.subr.bf16.mxu0 %v1299
    %1927 = vmatpush1.bf16.msra.mxu0 %v1298
    %1928 = vmatprep.subr.bf16.mxu0 %v1303
    %1929 = vmatpush1.bf16.msra.mxu0 %v1302
    %1930 = vmatprep.subr.bf16.mxu0 %v1307
    %1931 = vmatpush1.bf16.msra.mxu0 %v1306
    %1932 = vmatprep.subr.bf16.mxu0 %v1311
    %1933 = vmatpush1.bf16.msra.mxu0 %v1310
    %1934 = vmatprep.subr.bf16.mxu0 %v1315
    %1935 = vmatpush1.bf16.msra.mxu0 %v1314
    %1936 = vmatprep.subr.bf16.mxu0 %v1319
    %1937 = vmatpush1.bf16.msra.mxu0 %v1318
    %1938 = vmatprep.subr.bf16.mxu0 %v1323
    %1939 = vmatpush1.bf16.msra.mxu0 %v1322
    %1940 = vmatprep.subr.bf16.mxu0 %v1327
    %1941 = vmatpush1.bf16.msra.mxu0 %v1326
    %1942 = vmatprep.subr.bf16.mxu0 %v1331
    %1943 = vmatpush1.bf16.msra.mxu0 %v1330
    %1944 = vmatprep.subr.bf16.mxu0 %v1335
    %1945 = vmatpush1.bf16.msra.mxu0 %v1334
    %1946 = vmatprep.subr.bf16.mxu0 %v1339
    %1947 = vmatpush1.bf16.msra.mxu0 %v1338
    %1948 = vmatprep.subr.bf16.mxu0 %v1343
    %1949 = vmatpush1.bf16.msra.mxu0 %v1342
    %1950 = vmatprep.subr.bf16.mxu0 %v1347
    %1951 = vmatpush1.bf16.msra.mxu0 %v1346
    %1952 = vmatprep.subr.bf16.mxu0 %v1351
    %1953 = vmatpush1.bf16.msra.mxu0 %v1350
    %1954 = vmatprep.subr.bf16.mxu0 %v1355
    %1955 = vmatpush1.bf16.msra.mxu0 %v1354
    %1956 = vmatprep.subr.bf16.mxu0 %v1359
    %1957 = vmatpush1.bf16.msra.mxu0 %v1358
    %1958 = vmatprep.mubr.bf16.mxu0 %v119
    %1959 = vmatmul.mubr.bf16.gmra.mrb[0].mxu0 %v118
    %v1960 = vpop.f32.mrb[0].mxu0
    %v1961 = vadd.f32 %v1920, %v1960
    %v1962 = vpop.f32.mrb[0].mxu0
    %v1963 = vadd.f32 %v1922, %v1962
    %v1964 = vpop.f32.mrb[0].mxu0
    %v1965 = vpop.f32.mrb[0].mxu0
    %1966 = vdwg.mxu0
    %1967 = vmatprep.subr.bf16.mxu0 %v1363
    %1968 = vmatpush1.bf16.msra.mxu0 %v1362
    %1969 = vmatprep.subr.bf16.mxu0 %v1367
    %1970 = vmatpush1.bf16.msra.mxu0 %v1366
    %1971 = vmatprep.subr.bf16.mxu0 %v1371
    %1972 = vmatpush1.bf16.msra.mxu0 %v1370
    %1973 = vmatprep.subr.bf16.mxu0 %v1375
    %1974 = vmatpush1.bf16.msra.mxu0 %v1374
    %1975 = vmatprep.subr.bf16.mxu0 %v1379
    %1976 = vmatpush1.bf16.msra.mxu0 %v1378
    %1977 = vmatprep.subr.bf16.mxu0 %v1383
    %1978 = vmatpush1.bf16.msra.mxu0 %v1382
    %1979 = vmatprep.subr.bf16.mxu0 %v1387
    %1980 = vmatpush1.bf16.msra.mxu0 %v1386
    %1981 = vmatprep.subr.bf16.mxu0 %v1391
    %1982 = vmatpush1.bf16.msra.mxu0 %v1390
    %1983 = vmatprep.subr.bf16.mxu0 %v1395
    %1984 = vmatpush1.bf16.msra.mxu0 %v1394
    %1985 = vmatprep.subr.bf16.mxu0 %v1399
    %1986 = vmatpush1.bf16.msra.mxu0 %v1398
    %1987 = vmatprep.subr.bf16.mxu0 %v1403
    %1988 = vmatpush1.bf16.msra.mxu0 %v1402
    %1989 = vmatprep.subr.bf16.mxu0 %v1407
    %1990 = vmatpush1.bf16.msra.mxu0 %v1406
    %1991 = vmatprep.subr.bf16.mxu0 %v1411
    %1992 = vmatpush1.bf16.msra.mxu0 %v1410
    %1993 = vmatprep.subr.bf16.mxu0 %v1415
    %1994 = vmatpush1.bf16.msra.mxu0 %v1414
    %1995 = vmatprep.subr.bf16.mxu0 %v1419
    %1996 = vmatpush1.bf16.msra.mxu0 %v1418
    %1997 = vmatprep.subr.bf16.mxu0 %v1423
    %1998 = vmatpush1.bf16.msra.mxu0 %v1422
    %1999 = vmatprep.mubr.bf16.mxu0 %v121
    %2000 = vmatmul.mubr.bf16.gmra.mrb[0].mxu0 %v120
    %v2001 = vpop.f32.mrb[0].mxu0
    %v2002 = vadd.f32 %v1961, %v2001
    %v2003 = vpop.f32.mrb[0].mxu0
    %v2004 = vadd.f32 %v1963, %v2003
    %v2005 = vpop.f32.mrb[0].mxu0
    %v2006 = vpop.f32.mrb[0].mxu0
    %2007 = vdwg.mxu0
    %v2008 = vmul.f32 %v1838, 0.5
    %v2009 = vmul.f32 %v1840, 0.5
    %v2010 = vmul.f32 %v2002, 0.5
    %v2011 = vmul.f32 %v2004, 0.5
    %v2012 = vmul.f32 %v1838, 0.044715
    %v2013 = vmul.f32 %v1840, 0.044715
    %v2014 = vmul.f32 %v2002, 0.044715
    %v2015 = vmul.f32 %v2004, 0.044715
    %v2016 = vmul.f32 %v2012, %v1838
    %v2017 = vmul.f32 %v2013, %v1840
    %v2018 = vmul.f32 %v2014, %v2002
    %v2019 = vmul.f32 %v2015, %v2004
    %v2020 = vmul.f32 %v2016, %v1838
    %v2021 = vmul.f32 %v2017, %v1840
    %v2022 = vmul.f32 %v2018, %v2002
    %v2023 = vmul.f32 %v2019, %v2004
    %v2024 = vadd.f32 %v1838, %v2020
    %v2025 = vadd.f32 %v1840, %v2021
    %v2026 = vadd.f32 %v2002, %v2022
    %v2027 = vadd.f32 %v2004, %v2023
    %v2028 = vmul.f32 %v2024, 0.7978846
    %v2029 = vmul.f32 %v2025, 0.7978846
    %v2030 = vmul.f32 %v2026, 0.7978846
    %v2031 = vmul.f32 %v2027, 0.7978846
    %v2032 = vtanh.pop %v2028
    %v2033 = vtanh.pop %v2029
    %v2034 = vtanh.pop %v2030
    %v2035 = vtanh.pop %v2031
    %v2036 = vadd.f32 %v2032, 1.0
    %v2037 = vadd.f32 %v2033, 1.0
    %v2038 = vadd.f32 %v2034, 1.0
    %v2039 = vadd.f32 %v2035, 1.0
    %v2040 = vmul.f32 %v2008, %v2036
    %v2041 = vmul.f32 %v2009, %v2037
    %v2042 = vmul.f32 %v2010, %v2038
    %v2043 = vmul.f32 %v2011, %v2039
    %v2044 = vpack.c.bf16 %v2040, %v2040
    %v2045 = vpack.c.bf16 %v2041, %v2041
    %v2046 = vpack.c.bf16 %v2042, %v2042
    %v2047 = vpack.c.bf16 %v2043, %v2043
    %v2048 = vld [vmem:[%s3] sm:$0xff]
    %v2049 = vld [vmem:[%s3 + $0x8] sm:$0xff]
    %v2050 = vld [vmem:[%s3 + $0x10] sm:$0xff]
    %v2051 = vld [vmem:[%s3 + $0x18] sm:$0xff]
    %v2052 = vld [vmem:[%s3 + $0x20] sm:$0xff]
    %v2053 = vld [vmem:[%s3 + $0x28] sm:$0xff]
    %v2054 = vld [vmem:[%s3 + $0x30] sm:$0xff]
    %v2055 = vld [vmem:[%s3 + $0x38] sm:$0xff]
    %v2056 = vld [vmem:[%s3 + $0x40] sm:$0xff]
    %v2057 = vld [vmem:[%s3 + $0x48] sm:$0xff]
    %v2058 = vld [vmem:[%s3 + $0x50] sm:$0xff]
    %v2059 = vld [vmem:[%s3 + $0x58] sm:$0xff]
    %v2060 = vld [vmem:[%s3 + $0x60] sm:$0xff]
    %v2061 = vld [vmem:[%s3 + $0x68] sm:$0xff]
    %v2062 = vld [vmem:[%s3 + $0x70] sm:$0xff]
    %v2063 = vld [vmem:[%s3 + $0x78] sm:$0xff]
    %v2064 = vld [vmem:[%s3 + $0x80] sm:$0xff]
    %v2065 = vld [vmem:[%s3 + $0x88] sm:$0xff]
    %v2066 = vld [vmem:[%s3 + $0x90] sm:$0xff]
    %v2067 = vld [vmem:[%s3 + $0x98] sm:$0xff]
    %v2068 = vld [vmem:[%s3 + $0xa0] sm:$0xff]
    %v2069 = vld [vmem:[%s3 + $0xa8] sm:$0xff]
    %v2070 = vld [vmem:[%s3 + $0xb0] sm:$0xff]
    %v2071 = vld [vmem:[%s3 + $0xb8] sm:$0xff]
    %v2072 = vld [vmem:[%s3 + $0xc0] sm:$0xff]
    %v2073 = vld [vmem:[%s3 + $0xc8] sm:$0xff]
    %v2074 = vld [vmem:[%s3 + $0xd0] sm:$0xff]
    %v2075 = vld [vmem:[%s3 + $0xd8] sm:$0xff]
    %v2076 = vld [vmem:[%s3 + $0xe0] sm:$0xff]
    %v2077 = vld [vmem:[%s3 + $0xe8] sm:$0xff]
    %v2078 = vld [vmem:[%s3 + $0xf0] sm:$0xff]
    %v2079 = vld [vmem:[%s3 + $0xf8] sm:$0xff]
    %v2080 = vld [vmem:[%s3 + $0x100] sm:$0xff]
    %v2081 = vld [vmem:[%s3 + $0x108] sm:$0xff]
    %v2082 = vld [vmem:[%s3 + $0x110] sm:$0xff]
    %v2083 = vld [vmem:[%s3 + $0x118] sm:$0xff]
    %v2084 = vld [vmem:[%s3 + $0x120] sm:$0xff]
    %v2085 = vld [vmem:[%s3 + $0x128] sm:$0xff]
    %v2086 = vld [vmem:[%s3 + $0x130] sm:$0xff]
    %v2087 = vld [vmem:[%s3 + $0x138] sm:$0xff]
    %v2088 = vld [vmem:[%s3 + $0x140] sm:$0xff]
    %v2089 = vld [vmem:[%s3 + $0x148] sm:$0xff]
    %v2090 = vld [vmem:[%s3 + $0x150] sm:$0xff]
    %v2091 = vld [vmem:[%s3 + $0x158] sm:$0xff]
    %v2092 = vld [vmem:[%s3 + $0x160] sm:$0xff]
    %v2093 = vld [vmem:[%s3 + $0x168] sm:$0xff]
    %v2094 = vld [vmem:[%s3 + $0x170] sm:$0xff]
    %v2095 = vld [vmem:[%s3 + $0x178] sm:$0xff]
    %v2096 = vld [vmem:[%s3 + $0x180] sm:$0xff]
    %v2097 = vld [vmem:[%s3 + $0x188] sm:$0xff]
    %v2098 = vld [vmem:[%s3 + $0x190] sm:$0xff]
    %v2099 = vld [vmem:[%s3 + $0x198] sm:$0xff]
    %v2100 = vld [vmem:[%s3 + $0x1a0] sm:$0xff]
    %v2101 = vld [vmem:[%s3 + $0x1a8] sm:$0xff]
    %v2102 = vld [vmem:[%s3 + $0x1b0] sm:$0xff]
    %v2103 = vld [vmem:[%s3 + $0x1b8] sm:$0xff]
    %v2104 = vld [vmem:[%s3 + $0x1c0] sm:$0xff]
    %v2105 = vld [vmem:[%s3 + $0x1c8] sm:$0xff]
    %v2106 = vld [vmem:[%s3 + $0x1d0] sm:$0xff]
    %v2107 = vld [vmem:[%s3 + $0x1d8] sm:$0xff]
    %v2108 = vld [vmem:[%s3 + $0x1e0] sm:$0xff]
    %v2109 = vld [vmem:[%s3 + $0x1e8] sm:$0xff]
    %v2110 = vld [vmem:[%s3 + $0x1f0] sm:$0xff]
    %v2111 = vld [vmem:[%s3 + $0x1f8] sm:$0xff]
    %v2112 = vld [vmem:[%s3 + $0x200] sm:$0xff]
    %v2113 = vld [vmem:[%s3 + $0x208] sm:$0xff]
    %v2114 = vld [vmem:[%s3 + $0x210] sm:$0xff]
    %v2115 = vld [vmem:[%s3 + $0x218] sm:$0xff]
    %v2116 = vld [vmem:[%s3 + $0x220] sm:$0xff]
    %v2117 = vld [vmem:[%s3 + $0x228] sm:$0xff]
    %v2118 = vld [vmem:[%s3 + $0x230] sm:$0xff]
    %v2119 = vld [vmem:[%s3 + $0x238] sm:$0xff]
    %v2120 = vld [vmem:[%s3 + $0x240] sm:$0xff]
    %v2121 = vld [vmem:[%s3 + $0x248] sm:$0xff]
    %v2122 = vld [vmem:[%s3 + $0x250] sm:$0xff]
    %v2123 = vld [vmem:[%s3 + $0x258] sm:$0xff]
    %v2124 = vld [vmem:[%s3 + $0x260] sm:$0xff]
    %v2125 = vld [vmem:[%s3 + $0x268] sm:$0xff]
    %v2126 = vld [vmem:[%s3 + $0x270] sm:$0xff]
    %v2127 = vld [vmem:[%s3 + $0x278] sm:$0xff]
    %v2128 = vld [vmem:[%s3 + $0x280] sm:$0xff]
    %v2129 = vld [vmem:[%s3 + $0x288] sm:$0xff]
    %v2130 = vld [vmem:[%s3 + $0x290] sm:$0xff]
    %v2131 = vld [vmem:[%s3 + $0x298] sm:$0xff]
    %v2132 = vld [vmem:[%s3 + $0x2a0] sm:$0xff]
    %v2133 = vld [vmem:[%s3 + $0x2a8] sm:$0xff]
    %v2134 = vld [vmem:[%s3 + $0x2b0] sm:$0xff]
    %v2135 = vld [vmem:[%s3 + $0x2b8] sm:$0xff]
    %v2136 = vld [vmem:[%s3 + $0x2c0] sm:$0xff]
    %v2137 = vld [vmem:[%s3 + $0x2c8] sm:$0xff]
    %v2138 = vld [vmem:[%s3 + $0x2d0] sm:$0xff]
    %v2139 = vld [vmem:[%s3 + $0x2d8] sm:$0xff]
    %v2140 = vld [vmem:[%s3 + $0x2e0] sm:$0xff]
    %v2141 = vld [vmem:[%s3 + $0x2e8] sm:$0xff]
    %v2142 = vld [vmem:[%s3 + $0x2f0] sm:$0xff]
    %v2143 = vld [vmem:[%s3 + $0x2f8] sm:$0xff]
    %v2144 = vld [vmem:[%s3 + $0x300] sm:$0xff]
    %v2145 = vld [vmem:[%s3 + $0x308] sm:$0xff]
    %v2146 = vld [vmem:[%s3 + $0x310] sm:$0xff]
    %v2147 = vld [vmem:[%s3 + $0x318] sm:$0xff]
    %v2148 = vld [vmem:[%s3 + $0x320] sm:$0xff]
    %v2149 = vld [vmem:[%s3 + $0x328] sm:$0xff]
    %v2150 = vld [vmem:[%s3 + $0x330] sm:$0xff]
    %v2151 = vld [vmem:[%s3 + $0x338] sm:$0xff]
    %v2152 = vld [vmem:[%s3 + $0x340] sm:$0xff]
    %v2153 = vld [vmem:[%s3 + $0x348] sm:$0xff]
    %v2154 = vld [vmem:[%s3 + $0x350] sm:$0xff]
    %v2155 = vld [vmem:[%s3 + $0x358] sm:$0xff]
    %v2156 = vld [vmem:[%s3 + $0x360] sm:$0xff]
    %v2157 = vld [vmem:[%s3 + $0x368] sm:$0xff]
    %v2158 = vld [vmem:[%s3 + $0x370] sm:$0xff]
    %v2159 = vld [vmem:[%s3 + $0x378] sm:$0xff]
    %v2160 = vld [vmem:[%s3 + $0x380] sm:$0xff]
    %v2161 = vld [vmem:[%s3 + $0x388] sm:$0xff]
    %v2162 = vld [vmem:[%s3 + $0x390] sm:$0xff]
    %v2163 = vld [vmem:[%s3 + $0x398] sm:$0xff]
    %v2164 = vld [vmem:[%s3 + $0x3a0] sm:$0xff]
    %v2165 = vld [vmem:[%s3 + $0x3a8] sm:$0xff]
    %v2166 = vld [vmem:[%s3 + $0x3b0] sm:$0xff]
    %v2167 = vld [vmem:[%s3 + $0x3b8] sm:$0xff]
    %v2168 = vld [vmem:[%s3 + $0x3c0] sm:$0xff]
    %v2169 = vld [vmem:[%s3 + $0x3c8] sm:$0xff]
    %v2170 = vld [vmem:[%s3 + $0x3d0] sm:$0xff]
    %v2171 = vld [vmem:[%s3 + $0x3d8] sm:$0xff]
    %v2172 = vld [vmem:[%s3 + $0x3e0] sm:$0xff]
    %v2173 = vld [vmem:[%s3 + $0x3e8] sm:$0xff]
    %v2174 = vld [vmem:[%s3 + $0x3f0] sm:$0xff]
    %v2175 = vld [vmem:[%s3 + $0x3f8] sm:$0xff]
    %v2176 = vld [vmem:[%s4] sm:$0xf]
    %v2178 = vlaneseq
    %v2179 = vshrl.u32 %v2178, 7
    %v2180 = vsub.s32 0, %v2179
    %v2181 = vrot.slane %v2176, %v2180
    %v2182 = vlaneseq
    %v2183 = vshrl.u32 %v2182, 7
    %v2184 = vsub.s32 1, %v2183
    %v2185 = vrot.slane %v2176, %v2184
    %v2186 = vlaneseq
    %v2187 = vshrl.u32 %v2186, 7
    %v2188 = vsub.s32 2, %v2187
    %v2189 = vrot.slane %v2176, %v2188
    %v2190 = vlaneseq
    %v2191 = vshrl.u32 %v2190, 7
    %v2192 = vsub.s32 3, %v2191
    %v2193 = vrot.slane %v2176, %v2192
    %v2326 = vunpack.c.l.b16 %v2048
    %v2327 = vunpack.c.h.b16 %v2048
    %v2328 = vunpack.c.l.b16 %v2049
    %v2329 = vunpack.c.h.b16 %v2049
    %v2330 = vunpack.c.l.b16 %v2050
    %v2331 = vunpack.c.h.b16 %v2050
    %v2332 = vunpack.c.l.b16 %v2051
    %v2333 = vunpack.c.h.b16 %v2051
    %v2334 = vunpack.c.l.b16 %v2052
    %v2335 = vunpack.c.h.b16 %v2052
    %v2336 = vunpack.c.l.b16 %v2053
    %v2337 = vunpack.c.h.b16 %v2053
    %v2338 = vunpack.c.l.b16 %v2054
    %v2339 = vunpack.c.h.b16 %v2054
    %v2340 = vunpack.c.l.b16 %v2055
    %v2341 = vunpack.c.h.b16 %v2055
    %v2342 = vunpack.c.l.b16 %v2056
    %v2343 = vunpack.c.h.b16 %v2056
    %v2344 = vunpack.c.l.b16 %v2057
    %v2345 = vunpack.c.h.b16 %v2057
    %v2346 = vunpack.c.l.b16 %v2058
    %v2347 = vunpack.c.h.b16 %v2058
    %v2348 = vunpack.c.l.b16 %v2059
    %v2349 = vunpack.c.h.b16 %v2059
    %v2350 = vunpack.c.l.b16 %v2060
    %v2351 = vunpack.c.h.b16 %v2060
    %v2352 = vunpack.c.l.b16 %v2061
    %v2353 = vunpack.c.h.b16 %v2061
    %v2354 = vunpack.c.l.b16 %v2062
    %v2355 = vunpack.c.h.b16 %v2062
    %v2356 = vunpack.c.l.b16 %v2063
    %v2357 = vunpack.c.h.b16 %v2063
    %v2358 = vunpack.c.l.b16 %v2064
    %v2359 = vunpack.c.h.b16 %v2064
    %v2360 = vunpack.c.l.b16 %v2065
    %v2361 = vunpack.c.h.b16 %v2065
    %v2362 = vunpack.c.l.b16 %v2066
    %v2363 = vunpack.c.h.b16 %v2066
    %v2364 = vunpack.c.l.b16 %v2067
    %v2365 = vunpack.c.h.b16 %v2067
    %v2366 = vunpack.c.l.b16 %v2068
    %v2367 = vunpack.c.h.b16 %v2068
    %v2368 = vunpack.c.l.b16 %v2069
    %v2369 = vunpack.c.h.b16 %v2069
    %v2370 = vunpack.c.l.b16 %v2070
    %v2371 = vunpack.c.h.b16 %v2070
    %v2372 = vunpack.c.l.b16 %v2071
    %v2373 = vunpack.c.h.b16 %v2071
    %v2374 = vunpack.c.l.b16 %v2072
    %v2375 = vunpack.c.h.b16 %v2072
    %v2376 = vunpack.c.l.b16 %v2073
    %v2377 = vunpack.c.h.b16 %v2073
    %v2378 = vunpack.c.l.b16 %v2074
    %v2379 = vunpack.c.h.b16 %v2074
    %v2380 = vunpack.c.l.b16 %v2075
    %v2381 = vunpack.c.h.b16 %v2075
    %v2382 = vunpack.c.l.b16 %v2076
    %v2383 = vunpack.c.h.b16 %v2076
    %v2384 = vunpack.c.l.b16 %v2077
    %v2385 = vunpack.c.h.b16 %v2077
    %v2386 = vunpack.c.l.b16 %v2078
    %v2387 = vunpack.c.h.b16 %v2078
    %v2388 = vunpack.c.l.b16 %v2079
    %v2389 = vunpack.c.h.b16 %v2079
    %v2390 = vunpack.c.l.b16 %v2080
    %v2391 = vunpack.c.h.b16 %v2080
    %v2392 = vunpack.c.l.b16 %v2081
    %v2393 = vunpack.c.h.b16 %v2081
    %v2394 = vunpack.c.l.b16 %v2082
    %v2395 = vunpack.c.h.b16 %v2082
    %v2396 = vunpack.c.l.b16 %v2083
    %v2397 = vunpack.c.h.b16 %v2083
    %v2398 = vunpack.c.l.b16 %v2084
    %v2399 = vunpack.c.h.b16 %v2084
    %v2400 = vunpack.c.l.b16 %v2085
    %v2401 = vunpack.c.h.b16 %v2085
    %v2402 = vunpack.c.l.b16 %v2086
    %v2403 = vunpack.c.h.b16 %v2086
    %v2404 = vunpack.c.l.b16 %v2087
    %v2405 = vunpack.c.h.b16 %v2087
    %v2406 = vunpack.c.l.b16 %v2088
    %v2407 = vunpack.c.h.b16 %v2088
    %v2408 = vunpack.c.l.b16 %v2089
    %v2409 = vunpack.c.h.b16 %v2089
    %v2410 = vunpack.c.l.b16 %v2090
    %v2411 = vunpack.c.h.b16 %v2090
    %v2412 = vunpack.c.l.b16 %v2091
    %v2413 = vunpack.c.h.b16 %v2091
    %v2414 = vunpack.c.l.b16 %v2092
    %v2415 = vunpack.c.h.b16 %v2092
    %v2416 = vunpack.c.l.b16 %v2093
    %v2417 = vunpack.c.h.b16 %v2093
    %v2418 = vunpack.c.l.b16 %v2094
    %v2419 = vunpack.c.h.b16 %v2094
    %v2420 = vunpack.c.l.b16 %v2095
    %v2421 = vunpack.c.h.b16 %v2095
    %v2422 = vunpack.c.l.b16 %v2096
    %v2423 = vunpack.c.h.b16 %v2096
    %v2424 = vunpack.c.l.b16 %v2097
    %v2425 = vunpack.c.h.b16 %v2097
    %v2426 = vunpack.c.l.b16 %v2098
    %v2427 = vunpack.c.h.b16 %v2098
    %v2428 = vunpack.c.l.b16 %v2099
    %v2429 = vunpack.c.h.b16 %v2099
    %v2430 = vunpack.c.l.b16 %v2100
    %v2431 = vunpack.c.h.b16 %v2100
    %v2432 = vunpack.c.l.b16 %v2101
    %v2433 = vunpack.c.h.b16 %v2101
    %v2434 = vunpack.c.l.b16 %v2102
    %v2435 = vunpack.c.h.b16 %v2102
    %v2436 = vunpack.c.l.b16 %v2103
    %v2437 = vunpack.c.h.b16 %v2103
    %v2438 = vunpack.c.l.b16 %v2104
    %v2439 = vunpack.c.h.b16 %v2104
    %v2440 = vunpack.c.l.b16 %v2105
    %v2441 = vunpack.c.h.b16 %v2105
    %v2442 = vunpack.c.l.b16 %v2106
    %v2443 = vunpack.c.h.b16 %v2106
    %v2444 = vunpack.c.l.b16 %v2107
    %v2445 = vunpack.c.h.b16 %v2107
    %v2446 = vunpack.c.l.b16 %v2108
    %v2447 = vunpack.c.h.b16 %v2108
    %v2448 = vunpack.c.l.b16 %v2109
    %v2449 = vunpack.c.h.b16 %v2109
    %v2450 = vunpack.c.l.b16 %v2110
    %v2451 = vunpack.c.h.b16 %v2110
    %v2452 = vunpack.c.l.b16 %v2111
    %v2453 = vunpack.c.h.b16 %v2111
    %v2454 = vunpack.c.l.b16 %v2112
    %v2455 = vunpack.c.h.b16 %v2112
    %v2456 = vunpack.c.l.b16 %v2113
    %v2457 = vunpack.c.h.b16 %v2113
    %v2458 = vunpack.c.l.b16 %v2114
    %v2459 = vunpack.c.h.b16 %v2114
    %v2460 = vunpack.c.l.b16 %v2115
    %v2461 = vunpack.c.h.b16 %v2115
    %v2462 = vunpack.c.l.b16 %v2116
    %v2463 = vunpack.c.h.b16 %v2116
    %v2464 = vunpack.c.l.b16 %v2117
    %v2465 = vunpack.c.h.b16 %v2117
    %v2466 = vunpack.c.l.b16 %v2118
    %v2467 = vunpack.c.h.b16 %v2118
    %v2468 = vunpack.c.l.b16 %v2119
    %v2469 = vunpack.c.h.b16 %v2119
    %v2470 = vunpack.c.l.b16 %v2120
    %v2471 = vunpack.c.h.b16 %v2120
    %v2472 = vunpack.c.l.b16 %v2121
    %v2473 = vunpack.c.h.b16 %v2121
    %v2474 = vunpack.c.l.b16 %v2122
    %v2475 = vunpack.c.h.b16 %v2122
    %v2476 = vunpack.c.l.b16 %v2123
    %v2477 = vunpack.c.h.b16 %v2123
    %v2478 = vunpack.c.l.b16 %v2124
    %v2479 = vunpack.c.h.b16 %v2124
    %v2480 = vunpack.c.l.b16 %v2125
    %v2481 = vunpack.c.h.b16 %v2125
    %v2482 = vunpack.c.l.b16 %v2126
    %v2483 = vunpack.c.h.b16 %v2126
    %v2484 = vunpack.c.l.b16 %v2127
    %v2485 = vunpack.c.h.b16 %v2127
    %v2486 = vunpack.c.l.b16 %v2128
    %v2487 = vunpack.c.h.b16 %v2128
    %v2488 = vunpack.c.l.b16 %v2129
    %v2489 = vunpack.c.h.b16 %v2129
    %v2490 = vunpack.c.l.b16 %v2130
    %v2491 = vunpack.c.h.b16 %v2130
    %v2492 = vunpack.c.l.b16 %v2131
    %v2493 = vunpack.c.h.b16 %v2131
    %v2494 = vunpack.c.l.b16 %v2132
    %v2495 = vunpack.c.h.b16 %v2132
    %v2496 = vunpack.c.l.b16 %v2133
    %v2497 = vunpack.c.h.b16 %v2133
    %v2498 = vunpack.c.l.b16 %v2134
    %v2499 = vunpack.c.h.b16 %v2134
    %v2500 = vunpack.c.l.b16 %v2135
    %v2501 = vunpack.c.h.b16 %v2135
    %v2502 = vunpack.c.l.b16 %v2136
    %v2503 = vunpack.c.h.b16 %v2136
    %v2504 = vunpack.c.l.b16 %v2137
    %v2505 = vunpack.c.h.b16 %v2137
    %v2506 = vunpack.c.l.b16 %v2138
    %v2507 = vunpack.c.h.b16 %v2138
    %v2508 = vunpack.c.l.b16 %v2139
    %v2509 = vunpack.c.h.b16 %v2139
    %v2510 = vunpack.c.l.b16 %v2140
    %v2511 = vunpack.c.h.b16 %v2140
    %v2512 = vunpack.c.l.b16 %v2141
    %v2513 = vunpack.c.h.b16 %v2141
    %v2514 = vunpack.c.l.b16 %v2142
    %v2515 = vunpack.c.h.b16 %v2142
    %v2516 = vunpack.c.l.b16 %v2143
    %v2517 = vunpack.c.h.b16 %v2143
    %v2518 = vunpack.c.l.b16 %v2144
    %v2519 = vunpack.c.h.b16 %v2144
    %v2520 = vunpack.c.l.b16 %v2145
    %v2521 = vunpack.c.h.b16 %v2145
    %v2522 = vunpack.c.l.b16 %v2146
    %v2523 = vunpack.c.h.b16 %v2146
    %v2524 = vunpack.c.l.b16 %v2147
    %v2525 = vunpack.c.h.b16 %v2147
    %v2526 = vunpack.c.l.b16 %v2148
    %v2527 = vunpack.c.h.b16 %v2148
    %v2528 = vunpack.c.l.b16 %v2149
    %v2529 = vunpack.c.h.b16 %v2149
    %v2530 = vunpack.c.l.b16 %v2150
    %v2531 = vunpack.c.h.b16 %v2150
    %v2532 = vunpack.c.l.b16 %v2151
    %v2533 = vunpack.c.h.b16 %v2151
    %v2534 = vunpack.c.l.b16 %v2152
    %v2535 = vunpack.c.h.b16 %v2152
    %v2536 = vunpack.c.l.b16 %v2153
    %v2537 = vunpack.c.h.b16 %v2153
    %v2538 = vunpack.c.l.b16 %v2154
    %v2539 = vunpack.c.h.b16 %v2154
    %v2540 = vunpack.c.l.b16 %v2155
    %v2541 = vunpack.c.h.b16 %v2155
    %v2542 = vunpack.c.l.b16 %v2156
    %v2543 = vunpack.c.h.b16 %v2156
    %v2544 = vunpack.c.l.b16 %v2157
    %v2545 = vunpack.c.h.b16 %v2157
    %v2546 = vunpack.c.l.b16 %v2158
    %v2547 = vunpack.c.h.b16 %v2158
    %v2548 = vunpack.c.l.b16 %v2159
    %v2549 = vunpack.c.h.b16 %v2159
    %v2550 = vunpack.c.l.b16 %v2160
    %v2551 = vunpack.c.h.b16 %v2160
    %v2552 = vunpack.c.l.b16 %v2161
    %v2553 = vunpack.c.h.b16 %v2161
    %v2554 = vunpack.c.l.b16 %v2162
    %v2555 = vunpack.c.h.b16 %v2162
    %v2556 = vunpack.c.l.b16 %v2163
    %v2557 = vunpack.c.h.b16 %v2163
    %v2558 = vunpack.c.l.b16 %v2164
    %v2559 = vunpack.c.h.b16 %v2164
    %v2560 = vunpack.c.l.b16 %v2165
    %v2561 = vunpack.c.h.b16 %v2165
    %v2562 = vunpack.c.l.b16 %v2166
    %v2563 = vunpack.c.h.b16 %v2166
    %v2564 = vunpack.c.l.b16 %v2167
    %v2565 = vunpack.c.h.b16 %v2167
    %v2566 = vunpack.c.l.b16 %v2168
    %v2567 = vunpack.c.h.b16 %v2168
    %v2568 = vunpack.c.l.b16 %v2169
    %v2569 = vunpack.c.h.b16 %v2169
    %v2570 = vunpack.c.l.b16 %v2170
    %v2571 = vunpack.c.h.b16 %v2170
    %v2572 = vunpack.c.l.b16 %v2171
    %v2573 = vunpack.c.h.b16 %v2171
    %v2574 = vunpack.c.l.b16 %v2172
    %v2575 = vunpack.c.h.b16 %v2172
    %v2576 = vunpack.c.l.b16 %v2173
    %v2577 = vunpack.c.h.b16 %v2173
    %v2578 = vunpack.c.l.b16 %v2174
    %v2579 = vunpack.c.h.b16 %v2174
    %v2580 = vunpack.c.l.b16 %v2175
    %v2581 = vunpack.c.h.b16 %v2175
    %v2582 = vpack.c.b16 %v2330, %v2326
    %v2583 = vpack.c.b16 %v2331, %v2327
    %v2584 = vpack.c.b16 %v2332, %v2328
    %v2585 = vpack.c.b16 %v2333, %v2329
    %v2586 = vpack.c.b16 %v2338, %v2334
    %v2587 = vpack.c.b16 %v2339, %v2335
    %v2588 = vpack.c.b16 %v2340, %v2336
    %v2589 = vpack.c.b16 %v2341, %v2337
    %v2590 = vpack.c.b16 %v2346, %v2342
    %v2591 = vpack.c.b16 %v2347, %v2343
    %v2592 = vpack.c.b16 %v2348, %v2344
    %v2593 = vpack.c.b16 %v2349, %v2345
    %v2594 = vpack.c.b16 %v2354, %v2350
    %v2595 = vpack.c.b16 %v2355, %v2351
    %v2596 = vpack.c.b16 %v2356, %v2352
    %v2597 = vpack.c.b16 %v2357, %v2353
    %v2598 = vpack.c.b16 %v2362, %v2358
    %v2599 = vpack.c.b16 %v2363, %v2359
    %v2600 = vpack.c.b16 %v2364, %v2360
    %v2601 = vpack.c.b16 %v2365, %v2361
    %v2602 = vpack.c.b16 %v2370, %v2366
    %v2603 = vpack.c.b16 %v2371, %v2367
    %v2604 = vpack.c.b16 %v2372, %v2368
    %v2605 = vpack.c.b16 %v2373, %v2369
    %v2606 = vpack.c.b16 %v2378, %v2374
    %v2607 = vpack.c.b16 %v2379, %v2375
    %v2608 = vpack.c.b16 %v2380, %v2376
    %v2609 = vpack.c.b16 %v2381, %v2377
    %v2610 = vpack.c.b16 %v2386, %v2382
    %v2611 = vpack.c.b16 %v2387, %v2383
    %v2612 = vpack.c.b16 %v2388, %v2384
    %v2613 = vpack.c.b16 %v2389, %v2385
    %v2614 = vpack.c.b16 %v2394, %v2390
    %v2615 = vpack.c.b16 %v2395, %v2391
    %v2616 = vpack.c.b16 %v2396, %v2392
    %v2617 = vpack.c.b16 %v2397, %v2393
    %v2618 = vpack.c.b16 %v2402, %v2398
    %v2619 = vpack.c.b16 %v2403, %v2399
    %v2620 = vpack.c.b16 %v2404, %v2400
    %v2621 = vpack.c.b16 %v2405, %v2401
    %v2622 = vpack.c.b16 %v2410, %v2406
    %v2623 = vpack.c.b16 %v2411, %v2407
    %v2624 = vpack.c.b16 %v2412, %v2408
    %v2625 = vpack.c.b16 %v2413, %v2409
    %v2626 = vpack.c.b16 %v2418, %v2414
    %v2627 = vpack.c.b16 %v2419, %v2415
    %v2628 = vpack.c.b16 %v2420, %v2416
    %v2629 = vpack.c.b16 %v2421, %v2417
    %v2630 = vpack.c.b16 %v2426, %v2422
    %v2631 = vpack.c.b16 %v2427, %v2423
    %v2632 = vpack.c.b16 %v2428, %v2424
    %v2633 = vpack.c.b16 %v2429, %v2425
    %v2634 = vpack.c.b16 %v2434, %v2430
    %v2635 = vpack.c.b16 %v2435, %v2431
    %v2636 = vpack.c.b16 %v2436, %v2432
    %v2637 = vpack.c.b16 %v2437, %v2433
    %v2638 = vpack.c.b16 %v2442, %v2438
    %v2639 = vpack.c.b16 %v2443, %v2439
    %v2640 = vpack.c.b16 %v2444, %v2440
    %v2641 = vpack.c.b16 %v2445, %v2441
    %v2642 = vpack.c.b16 %v2450, %v2446
    %v2643 = vpack.c.b16 %v2451, %v2447
    %v2644 = vpack.c.b16 %v2452, %v2448
    %v2645 = vpack.c.b16 %v2453, %v2449
    %v2646 = vpack.c.b16 %v2458, %v2454
    %v2647 = vpack.c.b16 %v2459, %v2455
    %v2648 = vpack.c.b16 %v2460, %v2456
    %v2649 = vpack.c.b16 %v2461, %v2457
    %v2650 = vpack.c.b16 %v2466, %v2462
    %v2651 = vpack.c.b16 %v2467, %v2463
    %v2652 = vpack.c.b16 %v2468, %v2464
    %v2653 = vpack.c.b16 %v2469, %v2465
    %v2654 = vpack.c.b16 %v2474, %v2470
    %v2655 = vpack.c.b16 %v2475, %v2471
    %v2656 = vpack.c.b16 %v2476, %v2472
    %v2657 = vpack.c.b16 %v2477, %v2473
    %v2658 = vpack.c.b16 %v2482, %v2478
    %v2659 = vpack.c.b16 %v2483, %v2479
    %v2660 = vpack.c.b16 %v2484, %v2480
    %v2661 = vpack.c.b16 %v2485, %v2481
    %v2662 = vpack.c.b16 %v2490, %v2486
    %v2663 = vpack.c.b16 %v2491, %v2487
    %v2664 = vpack.c.b16 %v2492, %v2488
    %v2665 = vpack.c.b16 %v2493, %v2489
    %v2666 = vpack.c.b16 %v2498, %v2494
    %v2667 = vpack.c.b16 %v2499, %v2495
    %v2668 = vpack.c.b16 %v2500, %v2496
    %v2669 = vpack.c.b16 %v2501, %v2497
    %v2670 = vpack.c.b16 %v2506, %v2502
    %v2671 = vpack.c.b16 %v2507, %v2503
    %v2672 = vpack.c.b16 %v2508, %v2504
    %v2673 = vpack.c.b16 %v2509, %v2505
    %v2674 = vpack.c.b16 %v2514, %v2510
    %v2675 = vpack.c.b16 %v2515, %v2511
    %v2676 = vpack.c.b16 %v2516, %v2512
    %v2677 = vpack.c.b16 %v2517, %v2513
    %v2678 = vpack.c.b16 %v2522, %v2518
    %v2679 = vpack.c.b16 %v2523, %v2519
    %v2680 = vpack.c.b16 %v2524, %v2520
    %v2681 = vpack.c.b16 %v2525, %v2521
    %v2682 = vpack.c.b16 %v2530, %v2526
    %v2683 = vpack.c.b16 %v2531, %v2527
    %v2684 = vpack.c.b16 %v2532, %v2528
    %v2685 = vpack.c.b16 %v2533, %v2529
    %v2686 = vpack.c.b16 %v2538, %v2534
    %v2687 = vpack.c.b16 %v2539, %v2535
    %v2688 = vpack.c.b16 %v2540, %v2536
    %v2689 = vpack.c.b16 %v2541, %v2537
    %v2690 = vpack.c.b16 %v2546, %v2542
    %v2691 = vpack.c.b16 %v2547, %v2543
    %v2692 = vpack.c.b16 %v2548, %v2544
    %v2693 = vpack.c.b16 %v2549, %v2545
    %v2694 = vpack.c.b16 %v2554, %v2550
    %v2695 = vpack.c.b16 %v2555, %v2551
    %v2696 = vpack.c.b16 %v2556, %v2552
    %v2697 = vpack.c.b16 %v2557, %v2553
    %v2698 = vpack.c.b16 %v2562, %v2558
    %v2699 = vpack.c.b16 %v2563, %v2559
    %v2700 = vpack.c.b16 %v2564, %v2560
    %v2701 = vpack.c.b16 %v2565, %v2561
    %v2702 = vpack.c.b16 %v2570, %v2566
    %v2703 = vpack.c.b16 %v2571, %v2567
    %v2704 = vpack.c.b16 %v2572, %v2568
    %v2705 = vpack.c.b16 %v2573, %v2569
    %v2706 = vpack.c.b16 %v2578, %v2574
    %v2707 = vpack.c.b16 %v2579, %v2575
    %v2708 = vpack.c.b16 %v2580, %v2576
    %v2709 = vpack.c.b16 %v2581, %v2577
    %2838 = vmatprep.subr.bf16.mxu0 %v2583
    %2839 = vmatpush1.bf16.msra.mxu0 %v2582
    %2840 = vmatprep.subr.bf16.mxu0 %v2587
    %2841 = vmatpush1.bf16.msra.mxu0 %v2586
    %2842 = vmatprep.subr.bf16.mxu0 %v2591
    %2843 = vmatpush1.bf16.msra.mxu0 %v2590
    %2844 = vmatprep.subr.bf16.mxu0 %v2595
    %2845 = vmatpush1.bf16.msra.mxu0 %v2594
    %2846 = vmatprep.subr.bf16.mxu0 %v2599
    %2847 = vmatpush1.bf16.msra.mxu0 %v2598
    %2848 = vmatprep.subr.bf16.mxu0 %v2603
    %2849 = vmatpush1.bf16.msra.mxu0 %v2602
    %2850 = vmatprep.subr.bf16.mxu0 %v2607
    %2851 = vmatpush1.bf16.msra.mxu0 %v2606
    %2852 = vmatprep.subr.bf16.mxu0 %v2611
    %2853 = vmatpush1.bf16.msra.mxu0 %v2610
    %2854 = vmatprep.subr.bf16.mxu0 %v2615
    %2855 = vmatpush1.bf16.msra.mxu0 %v2614
    %2856 = vmatprep.subr.bf16.mxu0 %v2619
    %2857 = vmatpush1.bf16.msra.mxu0 %v2618
    %2858 = vmatprep.subr.bf16.mxu0 %v2623
    %2859 = vmatpush1.bf16.msra.mxu0 %v2622
    %2860 = vmatprep.subr.bf16.mxu0 %v2627
    %2861 = vmatpush1.bf16.msra.mxu0 %v2626
    %2862 = vmatprep.subr.bf16.mxu0 %v2631
    %2863 = vmatpush1.bf16.msra.mxu0 %v2630
    %2864 = vmatprep.subr.bf16.mxu0 %v2635
    %2865 = vmatpush1.bf16.msra.mxu0 %v2634
    %2866 = vmatprep.subr.bf16.mxu0 %v2639
    %2867 = vmatpush1.bf16.msra.mxu0 %v2638
    %2868 = vmatprep.subr.bf16.mxu0 %v2643
    %2869 = vmatpush1.bf16.msra.mxu0 %v2642
    %2870 = vmatprep.mubr.bf16.mxu0 %v2045
    %2871 = vmatmul.mubr.bf16.gmra.mrb[0].mxu0 %v2044
    %v2872 = vpop.f32.mrb[0].mxu0
    %v2873 = vadd.f32 %v2181, %v2872
    %v2874 = vpop.f32.mrb[0].mxu0
    %v2875 = vadd.f32 %v2185, %v2874
    %v2876 = vpop.f32.mrb[0].mxu0
    %v2877 = vpop.f32.mrb[0].mxu0
    %2878 = vdwg.mxu0
    %2879 = vmatprep.subr.bf16.mxu0 %v2647
    %2880 = vmatpush1.bf16.msra.mxu0 %v2646
    %2881 = vmatprep.subr.bf16.mxu0 %v2651
    %2882 = vmatpush1.bf16.msra.mxu0 %v2650
    %2883 = vmatprep.subr.bf16.mxu0 %v2655
    %2884 = vmatpush1.bf16.msra.mxu0 %v2654
    %2885 = vmatprep.subr.bf16.mxu0 %v2659
    %2886 = vmatpush1.bf16.msra.mxu0 %v2658
    %2887 = vmatprep.subr.bf16.mxu0 %v2663
    %2888 = vmatpush1.bf16.msra.mxu0 %v2662
    %2889 = vmatprep.subr.bf16.mxu0 %v2667
    %2890 = vmatpush1.bf16.msra.mxu0 %v2666
    %2891 = vmatprep.subr.bf16.mxu0 %v2671
    %2892 = vmatpush1.bf16.msra.mxu0 %v2670
    %2893 = vmatprep.subr.bf16.mxu0 %v2675
    %2894 = vmatpush1.bf16.msra.mxu0 %v2674
    %2895 = vmatprep.subr.bf16.mxu0 %v2679
    %2896 = vmatpush1.bf16.msra.mxu0 %v2678
    %2897 = vmatprep.subr.bf16.mxu0 %v2683
    %2898 = vmatpush1.bf16.msra.mxu0 %v2682
    %2899 = vmatprep.subr.bf16.mxu0 %v2687
    %2900 = vmatpush1.bf16.msra.mxu0 %v2686
    %2901 = vmatprep.subr.bf16.mxu0 %v2691
    %2902 = vmatpush1.bf16.msra.mxu0 %v2690
    %2903 = vmatprep.subr.bf16.mxu0 %v2695
    %2904 = vmatpush1.bf16.msra.mxu0 %v2694
    %2905 = vmatprep.subr.bf16.mxu0 %v2699
    %2906 = vmatpush1.bf16.msra.mxu0 %v2698
    %2907 = vmatprep.subr.bf16.mxu0 %v2703
    %2908 = vmatpush1.bf16.msra.mxu0 %v2702
    %2909 = vmatprep.subr.bf16.mxu0 %v2707
    %2910 = vmatpush1.bf16.msra.mxu0 %v2706
    %2911 = vmatprep.mubr.bf16.mxu0 %v2047
    %2912 = vmatmul.mubr.bf16.gmra.mrb[0].mxu0 %v2046
    %v2913 = vpop.f32.mrb[0].mxu0
    %v2914 = vadd.f32 %v2873, %v2913
    %v2915 = vpop.f32.mrb[0].mxu0
    %v2916 = vadd.f32 %v2875, %v2915
    %v2917 = vpop.f32.mrb[0].mxu0
    %v2918 = vpop.f32.mrb[0].mxu0
    %2919 = vdwg.mxu0
    %2920 = vmatprep.subr.bf16.mxu0 %v2585
    %2921 = vmatpush1.bf16.msra.mxu0 %v2584
    %2922 = vmatprep.subr.bf16.mxu0 %v2589
    %2923 = vmatpush1.bf16.msra.mxu0 %v2588
    %2924 = vmatprep.subr.bf16.mxu0 %v2593
    %2925 = vmatpush1.bf16.msra.mxu0 %v2592
    %2926 = vmatprep.subr.bf16.mxu0 %v2597
    %2927 = vmatpush1.bf16.msra.mxu0 %v2596
    %2928 = vmatprep.subr.bf16.mxu0 %v2601
    %2929 = vmatpush1.bf16.msra.mxu0 %v2600
    %2930 = vmatprep.subr.bf16.mxu0 %v2605
    %2931 = vmatpush1.bf16.msra.mxu0 %v2604
    %2932 = vmatprep.subr.bf16.mxu0 %v2609
    %2933 = vmatpush1.bf16.msra.mxu0 %v2608
    %2934 = vmatprep.subr.bf16.mxu0 %v2613
    %2935 = vmatpush1.bf16.msra.mxu0 %v2612
    %2936 = vmatprep.subr.bf16.mxu0 %v2617
    %2937 = vmatpush1.bf16.msra.mxu0 %v2616
    %2938 = vmatprep.subr.bf16.mxu0 %v2621
    %2939 = vmatpush1.bf16.msra.mxu0 %v2620
    %2940 = vmatprep.subr.bf16.mxu0 %v2625
    %2941 = vmatpush1.bf16.msra.mxu0 %v2624
    %2942 = vmatprep.subr.bf16.mxu0 %v2629
    %2943 = vmatpush1.bf16.msra.mxu0 %v2628
    %2944 = vmatprep.subr.bf16.mxu0 %v2633
    %2945 = vmatpush1.bf16.msra.mxu0 %v2632
    %2946 = vmatprep.subr.bf16.mxu0 %v2637
    %2947 = vmatpush1.bf16.msra.mxu0 %v2636
    %2948 = vmatprep.subr.bf16.mxu0 %v2641
    %2949 = vmatpush1.bf16.msra.mxu0 %v2640
    %2950 = vmatprep.subr.bf16.mxu0 %v2645
    %2951 = vmatpush1.bf16.msra.mxu0 %v2644
    %2952 = vmatprep.mubr.bf16.mxu0 %v2045
    %2953 = vmatmul.mubr.bf16.gmra.mrb[0].mxu0 %v2044
    %v2954 = vpop.f32.mrb[0].mxu0
    %v2955 = vadd.f32 %v2189, %v2954
    %v2956 = vpop.f32.mrb[0].mxu0
    %v2957 = vadd.f32 %v2193, %v2956
    %v2958 = vpop.f32.mrb[0].mxu0
    %v2959 = vpop.f32.mrb[0].mxu0
    %2960 = vdwg.mxu0
    %2961 = vmatprep.subr.bf16.mxu0 %v2649
    %2962 = vmatpush1.bf16.msra.mxu0 %v2648
    %2963 = vmatprep.subr.bf16.mxu0 %v2653
    %2964 = vmatpush1.bf16.msra.mxu0 %v2652
    %2965 = vmatprep.subr.bf16.mxu0 %v2657
    %2966 = vmatpush1.bf16.msra.mxu0 %v2656
    %2967 = vmatprep.subr.bf16.mxu0 %v2661
    %2968 = vmatpush1.bf16.msra.mxu0 %v2660
    %2969 = vmatprep.subr.bf16.mxu0 %v2665
    %2970 = vmatpush1.bf16.msra.mxu0 %v2664
    %2971 = vmatprep.subr.bf16.mxu0 %v2669
    %2972 = vmatpush1.bf16.msra.mxu0 %v2668
    %2973 = vmatprep.subr.bf16.mxu0 %v2673
    %2974 = vmatpush1.bf16.msra.mxu0 %v2672
    %2975 = vmatprep.subr.bf16.mxu0 %v2677
    %2976 = vmatpush1.bf16.msra.mxu0 %v2676
    %2977 = vmatprep.subr.bf16.mxu0 %v2681
    %2978 = vmatpush1.bf16.msra.mxu0 %v2680
    %2979 = vmatprep.subr.bf16.mxu0 %v2685
    %2980 = vmatpush1.bf16.msra.mxu0 %v2684
    %2981 = vmatprep.subr.bf16.mxu0 %v2689
    %2982 = vmatpush1.bf16.msra.mxu0 %v2688
    %2983 = vmatprep.subr.bf16.mxu0 %v2693
    %2984 = vmatpush1.bf16.msra.mxu0 %v2692
    %2985 = vmatprep.subr.bf16.mxu0 %v2697
    %2986 = vmatpush1.bf16.msra.mxu0 %v2696
    %2987 = vmatprep.subr.bf16.mxu0 %v2701
    %2988 = vmatpush1.bf16.msra.mxu0 %v2700
    %2989 = vmatprep.subr.bf16.mxu0 %v2705
    %2990 = vmatpush1.bf16.msra.mxu0 %v2704
    %2991 = vmatprep.subr.bf16.mxu0 %v2709
    %2992 = vmatpush1.bf16.msra.mxu0 %v2708
    %2993 = vmatprep.mubr.bf16.mxu0 %v2047
    %2994 = vmatmul.mubr.bf16.gmra.mrb[0].mxu0 %v2046
    %v2995 = vpop.f32.mrb[0].mxu0
    %v2996 = vadd.f32 %v2955, %v2995
    %v2997 = vpop.f32.mrb[0].mxu0
    %v2998 = vadd.f32 %v2957, %v2997
    %v2999 = vpop.f32.mrb[0].mxu0
    %v3000 = vpop.f32.mrb[0].mxu0
    %3001 = vdwg.mxu0
    %v3002 = vmul.f32 %v2914, 0.5
    %v3003 = vmul.f32 %v2916, 0.5
    %v3004 = vmul.f32 %v2996, 0.5
    %v3005 = vmul.f32 %v2998, 0.5
    %v3006 = vmul.f32 %v2914, 0.044715
    %v3007 = vmul.f32 %v2916, 0.044715
    %v3008 = vmul.f32 %v2996, 0.044715
    %v3009 = vmul.f32 %v2998, 0.044715
    %v3010 = vmul.f32 %v3006, %v2914
    %v3011 = vmul.f32 %v3007, %v2916
    %v3012 = vmul.f32 %v3008, %v2996
    %v3013 = vmul.f32 %v3009, %v2998
    %v3014 = vmul.f32 %v3010, %v2914
    %v3015 = vmul.f32 %v3011, %v2916
    %v3016 = vmul.f32 %v3012, %v2996
    %v3017 = vmul.f32 %v3013, %v2998
    %v3018 = vadd.f32 %v2914, %v3014
    %v3019 = vadd.f32 %v2916, %v3015
    %v3020 = vadd.f32 %v2996, %v3016
    %v3021 = vadd.f32 %v2998, %v3017
    %v3022 = vmul.f32 %v3018, 0.7978846
    %v3023 = vmul.f32 %v3019, 0.7978846
    %v3024 = vmul.f32 %v3020, 0.7978846
    %v3025 = vmul.f32 %v3021, 0.7978846
    %v3026 = vtanh.pop %v3022
    %v3027 = vtanh.pop %v3023
    %v3028 = vtanh.pop %v3024
    %v3029 = vtanh.pop %v3025
    %v3030 = vadd.f32 %v3026, 1.0
    %v3031 = vadd.f32 %v3027, 1.0
    %v3032 = vadd.f32 %v3028, 1.0
    %v3033 = vadd.f32 %v3029, 1.0
    %v3034 = vmul.f32 %v3002, %v3030
    %v3035 = vmul.f32 %v3003, %v3031
    %v3036 = vmul.f32 %v3004, %v3032
    %v3037 = vmul.f32 %v3005, %v3033
    %v3038 = vpack.c.bf16 %v3034, %v3034
    %v3039 = vpack.c.bf16 %v3035, %v3035
    %v3040 = vpack.c.bf16 %v3036, %v3036
    %v3041 = vpack.c.bf16 %v3037, %v3037
    %v3042 = vld [vmem:[#allocation5] sm:$0xff]
    %v3043 = vld [vmem:[#allocation5 + $0x8] sm:$0xff]
    %v3044 = vld [vmem:[#allocation5 + $0x10] sm:$0xff]
    %v3045 = vld [vmem:[#allocation5 + $0x18] sm:$0xff]
    %v3046 = vld [vmem:[#allocation5 + $0x20] sm:$0xff]
    %v3047 = vld [vmem:[#allocation5 + $0x28] sm:$0xff]
    %v3048 = vld [vmem:[#allocation5 + $0x30] sm:$0xff]
    %v3049 = vld [vmem:[#allocation5 + $0x38] sm:$0xff]
    %v3050 = vld [vmem:[#allocation5 + $0x40] sm:$0xff]
    %v3051 = vld [vmem:[#allocation5 + $0x48] sm:$0xff]
    %v3052 = vld [vmem:[#allocation5 + $0x50] sm:$0xff]
    %v3053 = vld [vmem:[#allocation5 + $0x58] sm:$0xff]
    %v3054 = vld [vmem:[#allocation5 + $0x60] sm:$0xff]
    %v3055 = vld [vmem:[#allocation5 + $0x68] sm:$0xff]
    %v3056 = vld [vmem:[#allocation5 + $0x70] sm:$0xff]
    %v3057 = vld [vmem:[#allocation5 + $0x78] sm:$0xff]
    %v3058 = vld [vmem:[#allocation5 + $0x80] sm:$0xff]
    %v3059 = vld [vmem:[#allocation5 + $0x88] sm:$0xff]
    %v3060 = vld [vmem:[#allocation5 + $0x90] sm:$0xff]
    %v3061 = vld [vmem:[#allocation5 + $0x98] sm:$0xff]
    %v3062 = vld [vmem:[#allocation5 + $0xa0] sm:$0xff]
    %v3063 = vld [vmem:[#allocation5 + $0xa8] sm:$0xff]
    %v3064 = vld [vmem:[#allocation5 + $0xb0] sm:$0xff]
    %v3065 = vld [vmem:[#allocation5 + $0xb8] sm:$0xff]
    %v3066 = vld [vmem:[#allocation5 + $0xc0] sm:$0xff]
    %v3067 = vld [vmem:[#allocation5 + $0xc8] sm:$0xff]
    %v3068 = vld [vmem:[#allocation5 + $0xd0] sm:$0xff]
    %v3069 = vld [vmem:[#allocation5 + $0xd8] sm:$0xff]
    %v3070 = vld [vmem:[#allocation5 + $0xe0] sm:$0xff]
    %v3071 = vld [vmem:[#allocation5 + $0xe8] sm:$0xff]
    %v3072 = vld [vmem:[#allocation5 + $0xf0] sm:$0xff]
    %v3073 = vld [vmem:[#allocation5 + $0xf8] sm:$0xff]
    %v3074 = vld [vmem:[#allocation5 + $0x100] sm:$0xff]
    %v3075 = vld [vmem:[#allocation5 + $0x108] sm:$0xff]
    %v3076 = vld [vmem:[#allocation5 + $0x110] sm:$0xff]
    %v3077 = vld [vmem:[#allocation5 + $0x118] sm:$0xff]
    %v3078 = vld [vmem:[#allocation5 + $0x120] sm:$0xff]
    %v3079 = vld [vmem:[#allocation5 + $0x128] sm:$0xff]
    %v3080 = vld [vmem:[#allocation5 + $0x130] sm:$0xff]
    %v3081 = vld [vmem:[#allocation5 + $0x138] sm:$0xff]
    %v3082 = vld [vmem:[#allocation5 + $0x140] sm:$0xff]
    %v3083 = vld [vmem:[#allocation5 + $0x148] sm:$0xff]
    %v3084 = vld [vmem:[#allocation5 + $0x150] sm:$0xff]
    %v3085 = vld [vmem:[#allocation5 + $0x158] sm:$0xff]
    %v3086 = vld [vmem:[#allocation5 + $0x160] sm:$0xff]
    %v3087 = vld [vmem:[#allocation5 + $0x168] sm:$0xff]
    %v3088 = vld [vmem:[#allocation5 + $0x170] sm:$0xff]
    %v3089 = vld [vmem:[#allocation5 + $0x178] sm:$0xff]
    %v3090 = vld [vmem:[#allocation5 + $0x180] sm:$0xff]
    %v3091 = vld [vmem:[#allocation5 + $0x188] sm:$0xff]
    %v3092 = vld [vmem:[#allocation5 + $0x190] sm:$0xff]
    %v3093 = vld [vmem:[#allocation5 + $0x198] sm:$0xff]
    %v3094 = vld [vmem:[#allocation5 + $0x1a0] sm:$0xff]
    %v3095 = vld [vmem:[#allocation5 + $0x1a8] sm:$0xff]
    %v3096 = vld [vmem:[#allocation5 + $0x1b0] sm:$0xff]
    %v3097 = vld [vmem:[#allocation5 + $0x1b8] sm:$0xff]
    %v3098 = vld [vmem:[#allocation5 + $0x1c0] sm:$0xff]
    %v3099 = vld [vmem:[#allocation5 + $0x1c8] sm:$0xff]
    %v3100 = vld [vmem:[#allocation5 + $0x1d0] sm:$0xff]
    %v3101 = vld [vmem:[#allocation5 + $0x1d8] sm:$0xff]
    %v3102 = vld [vmem:[#allocation5 + $0x1e0] sm:$0xff]
    %v3103 = vld [vmem:[#allocation5 + $0x1e8] sm:$0xff]
    %v3104 = vld [vmem:[#allocation5 + $0x1f0] sm:$0xff]
    %v3105 = vld [vmem:[#allocation5 + $0x1f8] sm:$0xff]
    %v3106 = vld [vmem:[%s6] sm:$0x3]
    %v3108 = vlaneseq
    %v3109 = vshrl.u32 %v3108, 7
    %v3110 = vsub.s32 0, %v3109
    %v3111 = vrot.slane %v3106, %v3110
    %v3112 = vlaneseq
    %v3113 = vshrl.u32 %v3112, 7
    %v3114 = vsub.s32 1, %v3113
    %v3115 = vrot.slane %v3106, %v3114
    %v3182 = vunpack.c.l.b16 %v3042
    %v3183 = vunpack.c.h.b16 %v3042
    %v3184 = vunpack.c.l.b16 %v3043
    %v3185 = vunpack.c.h.b16 %v3043
    %v3186 = vunpack.c.l.b16 %v3044
    %v3187 = vunpack.c.h.b16 %v3044
    %v3188 = vunpack.c.l.b16 %v3045
    %v3189 = vunpack.c.h.b16 %v3045
    %v3190 = vunpack.c.l.b16 %v3046
    %v3191 = vunpack.c.h.b16 %v3046
    %v3192 = vunpack.c.l.b16 %v3047
    %v3193 = vunpack.c.h.b16 %v3047
    %v3194 = vunpack.c.l.b16 %v3048
    %v3195 = vunpack.c.h.b16 %v3048
    %v3196 = vunpack.c.l.b16 %v3049
    %v3197 = vunpack.c.h.b16 %v3049
    %v3198 = vunpack.c.l.b16 %v3050
    %v3199 = vunpack.c.h.b16 %v3050
    %v3200 = vunpack.c.l.b16 %v3051
    %v3201 = vunpack.c.h.b16 %v3051
    %v3202 = vunpack.c.l.b16 %v3052
    %v3203 = vunpack.c.h.b16 %v3052
    %v3204 = vunpack.c.l.b16 %v3053
    %v3205 = vunpack.c.h.b16 %v3053
    %v3206 = vunpack.c.l.b16 %v3054
    %v3207 = vunpack.c.h.b16 %v3054
    %v3208 = vunpack.c.l.b16 %v3055
    %v3209 = vunpack.c.h.b16 %v3055
    %v3210 = vunpack.c.l.b16 %v3056
    %v3211 = vunpack.c.h.b16 %v3056
    %v3212 = vunpack.c.l.b16 %v3057
    %v3213 = vunpack.c.h.b16 %v3057
    %v3214 = vunpack.c.l.b16 %v3058
    %v3215 = vunpack.c.h.b16 %v3058
    %v3216 = vunpack.c.l.b16 %v3059
    %v3217 = vunpack.c.h.b16 %v3059
    %v3218 = vunpack.c.l.b16 %v3060
    %v3219 = vunpack.c.h.b16 %v3060
    %v3220 = vunpack.c.l.b16 %v3061
    %v3221 = vunpack.c.h.b16 %v3061
    %v3222 = vunpack.c.l.b16 %v3062
    %v3223 = vunpack.c.h.b16 %v3062
    %v3224 = vunpack.c.l.b16 %v3063
    %v3225 = vunpack.c.h.b16 %v3063
    %v3226 = vunpack.c.l.b16 %v3064
    %v3227 = vunpack.c.h.b16 %v3064
    %v3228 = vunpack.c.l.b16 %v3065
    %v3229 = vunpack.c.h.b16 %v3065
    %v3230 = vunpack.c.l.b16 %v3066
    %v3231 = vunpack.c.h.b16 %v3066
    %v3232 = vunpack.c.l.b16 %v3067
    %v3233 = vunpack.c.h.b16 %v3067
    %v3234 = vunpack.c.l.b16 %v3068
    %v3235 = vunpack.c.h.b16 %v3068
    %v3236 = vunpack.c.l.b16 %v3069
    %v3237 = vunpack.c.h.b16 %v3069
    %v3238 = vunpack.c.l.b16 %v3070
    %v3239 = vunpack.c.h.b16 %v3070
    %v3240 = vunpack.c.l.b16 %v3071
    %v3241 = vunpack.c.h.b16 %v3071
    %v3242 = vunpack.c.l.b16 %v3072
    %v3243 = vunpack.c.h.b16 %v3072
    %v3244 = vunpack.c.l.b16 %v3073
    %v3245 = vunpack.c.h.b16 %v3073
    %v3246 = vunpack.c.l.b16 %v3074
    %v3247 = vunpack.c.h.b16 %v3074
    %v3248 = vunpack.c.l.b16 %v3075
    %v3249 = vunpack.c.h.b16 %v3075
    %v3250 = vunpack.c.l.b16 %v3076
    %v3251 = vunpack.c.h.b16 %v3076
    %v3252 = vunpack.c.l.b16 %v3077
    %v3253 = vunpack.c.h.b16 %v3077
    %v3254 = vunpack.c.l.b16 %v3078
    %v3255 = vunpack.c.h.b16 %v3078
    %v3256 = vunpack.c.l.b16 %v3079
    %v3257 = vunpack.c.h.b16 %v3079
    %v3258 = vunpack.c.l.b16 %v3080
    %v3259 = vunpack.c.h.b16 %v3080
    %v3260 = vunpack.c.l.b16 %v3081
    %v3261 = vunpack.c.h.b16 %v3081
    %v3262 = vunpack.c.l.b16 %v3082
    %v3263 = vunpack.c.h.b16 %v3082
    %v3264 = vunpack.c.l.b16 %v3083
    %v3265 = vunpack.c.h.b16 %v3083
    %v3266 = vunpack.c.l.b16 %v3084
    %v3267 = vunpack.c.h.b16 %v3084
    %v3268 = vunpack.c.l.b16 %v3085
    %v3269 = vunpack.c.h.b16 %v3085
    %v3270 = vunpack.c.l.b16 %v3086
    %v3271 = vunpack.c.h.b16 %v3086
    %v3272 = vunpack.c.l.b16 %v3087
    %v3273 = vunpack.c.h.b16 %v3087
    %v3274 = vunpack.c.l.b16 %v3088
    %v3275 = vunpack.c.h.b16 %v3088
    %v3276 = vunpack.c.l.b16 %v3089
    %v3277 = vunpack.c.h.b16 %v3089
    %v3278 = vunpack.c.l.b16 %v3090
    %v3279 = vunpack.c.h.b16 %v3090
    %v3280 = vunpack.c.l.b16 %v3091
    %v3281 = vunpack.c.h.b16 %v3091
    %v3282 = vunpack.c.l.b16 %v3092
    %v3283 = vunpack.c.h.b16 %v3092
    %v3284 = vunpack.c.l.b16 %v3093
    %v3285 = vunpack.c.h.b16 %v3093
    %v3286 = vunpack.c.l.b16 %v3094
    %v3287 = vunpack.c.h.b16 %v3094
    %v3288 = vunpack.c.l.b16 %v3095
    %v3289 = vunpack.c.h.b16 %v3095
    %v3290 = vunpack.c.l.b16 %v3096
    %v3291 = vunpack.c.h.b16 %v3096
    %v3292 = vunpack.c.l.b16 %v3097
    %v3293 = vunpack.c.h.b16 %v3097
    %v3294 = vunpack.c.l.b16 %v3098
    %v3295 = vunpack.c.h.b16 %v3098
    %v3296 = vunpack.c.l.b16 %v3099
    %v3297 = vunpack.c.h.b16 %v3099
    %v3298 = vunpack.c.l.b16 %v3100
    %v3299 = vunpack.c.h.b16 %v3100
    %v3300 = vunpack.c.l.b16 %v3101
    %v3301 = vunpack.c.h.b16 %v3101
    %v3302 = vunpack.c.l.b16 %v3102
    %v3303 = vunpack.c.h.b16 %v3102
    %v3304 = vunpack.c.l.b16 %v3103
    %v3305 = vunpack.c.h.b16 %v3103
    %v3306 = vunpack.c.l.b16 %v3104
    %v3307 = vunpack.c.h.b16 %v3104
    %v3308 = vunpack.c.l.b16 %v3105
    %v3309 = vunpack.c.h.b16 %v3105
    %v3310 = vpack.c.b16 %v3184, %v3182
    %v3311 = vpack.c.b16 %v3185, %v3183
    %v3312 = vpack.c.b16 %v3188, %v3186
    %v3313 = vpack.c.b16 %v3189, %v3187
    %v3314 = vpack.c.b16 %v3192, %v3190
    %v3315 = vpack.c.b16 %v3193, %v3191
    %v3316 = vpack.c.b16 %v3196, %v3194
    %v3317 = vpack.c.b16 %v3197, %v3195
    %v3318 = vpack.c.b16 %v3200, %v3198
    %v3319 = vpack.c.b16 %v3201, %v3199
    %v3320 = vpack.c.b16 %v3204, %v3202
    %v3321 = vpack.c.b16 %v3205, %v3203
    %v3322 = vpack.c.b16 %v3208, %v3206
    %v3323 = vpack.c.b16 %v3209, %v3207
    %v3324 = vpack.c.b16 %v3212, %v3210
    %v3325 = vpack.c.b16 %v3213, %v3211
    %v3326 = vpack.c.b16 %v3216, %v3214
    %v3327 = vpack.c.b16 %v3217, %v3215
    %v3328 = vpack.c.b16 %v3220, %v3218
    %v3329 = vpack.c.b16 %v3221, %v3219
    %v3330 = vpack.c.b16 %v3224, %v3222
    %v3331 = vpack.c.b16 %v3225, %v3223
    %v3332 = vpack.c.b16 %v3228, %v3226
    %v3333 = vpack.c.b16 %v3229, %v3227
    %v3334 = vpack.c.b16 %v3232, %v3230
    %v3335 = vpack.c.b16 %v3233, %v3231
    %v3336 = vpack.c.b16 %v3236, %v3234
    %v3337 = vpack.c.b16 %v3237, %v3235
    %v3338 = vpack.c.b16 %v3240, %v3238
    %v3339 = vpack.c.b16 %v3241, %v3239
    %v3340 = vpack.c.b16 %v3244, %v3242
    %v3341 = vpack.c.b16 %v3245, %v3243
    %v3342 = vpack.c.b16 %v3248, %v3246
    %v3343 = vpack.c.b16 %v3249, %v3247
    %v3344 = vpack.c.b16 %v3252, %v3250
    %v3345 = vpack.c.b16 %v3253, %v3251
    %v3346 = vpack.c.b16 %v3256, %v3254
    %v3347 = vpack.c.b16 %v3257, %v3255
    %v3348 = vpack.c.b16 %v3260, %v3258
    %v3349 = vpack.c.b16 %v3261, %v3259
    %v3350 = vpack.c.b16 %v3264, %v3262
    %v3351 = vpack.c.b16 %v3265, %v3263
    %v3352 = vpack.c.b16 %v3268, %v3266
    %v3353 = vpack.c.b16 %v3269, %v3267
    %v3354 = vpack.c.b16 %v3272, %v3270
    %v3355 = vpack.c.b16 %v3273, %v3271
    %v3356 = vpack.c.b16 %v3276, %v3274
    %v3357 = vpack.c.b16 %v3277, %v3275
    %v3358 = vpack.c.b16 %v3280, %v3278
    %v3359 = vpack.c.b16 %v3281, %v3279
    %v3360 = vpack.c.b16 %v3284, %v3282
    %v3361 = vpack.c.b16 %v3285, %v3283
    %v3362 = vpack.c.b16 %v3288, %v3286
    %v3363 = vpack.c.b16 %v3289, %v3287
    %v3364 = vpack.c.b16 %v3292, %v3290
    %v3365 = vpack.c.b16 %v3293, %v3291
    %v3366 = vpack.c.b16 %v3296, %v3294
    %v3367 = vpack.c.b16 %v3297, %v3295
    %v3368 = vpack.c.b16 %v3300, %v3298
    %v3369 = vpack.c.b16 %v3301, %v3299
    %v3370 = vpack.c.b16 %v3304, %v3302
    %v3371 = vpack.c.b16 %v3305, %v3303
    %v3372 = vpack.c.b16 %v3308, %v3306
    %v3373 = vpack.c.b16 %v3309, %v3307
    %3438 = vmatprep.subr.bf16.mxu0 %v3311
    %3439 = vmatpush1.bf16.msra.mxu0 %v3310
    %3440 = vmatprep.subr.bf16.mxu0 %v3313
    %3441 = vmatpush1.bf16.msra.mxu0 %v3312
    %3442 = vmatprep.subr.bf16.mxu0 %v3315
    %3443 = vmatpush1.bf16.msra.mxu0 %v3314
    %3444 = vmatprep.subr.bf16.mxu0 %v3317
    %3445 = vmatpush1.bf16.msra.mxu0 %v3316
    %3446 = vmatprep.subr.bf16.mxu0 %v3319
    %3447 = vmatpush1.bf16.msra.mxu0 %v3318
    %3448 = vmatprep.subr.bf16.mxu0 %v3321
    %3449 = vmatpush1.bf16.msra.mxu0 %v3320
    %3450 = vmatprep.subr.bf16.mxu0 %v3323
    %3451 = vmatpush1.bf16.msra.mxu0 %v3322
    %3452 = vmatprep.subr.bf16.mxu0 %v3325
    %3453 = vmatpush1.bf16.msra.mxu0 %v3324
    %3454 = vmatprep.subr.bf16.mxu0 %v3327
    %3455 = vmatpush1.bf16.msra.mxu0 %v3326
    %3456 = vmatprep.subr.bf16.mxu0 %v3329
    %3457 = vmatpush1.bf16.msra.mxu0 %v3328
    %3458 = vmatprep.subr.bf16.mxu0 %v3331
    %3459 = vmatpush1.bf16.msra.mxu0 %v3330
    %3460 = vmatprep.subr.bf16.mxu0 %v3333
    %3461 = vmatpush1.bf16.msra.mxu0 %v3332
    %3462 = vmatprep.subr.bf16.mxu0 %v3335
    %3463 = vmatpush1.bf16.msra.mxu0 %v3334
    %3464 = vmatprep.subr.bf16.mxu0 %v3337
    %3465 = vmatpush1.bf16.msra.mxu0 %v3336
    %3466 = vmatprep.subr.bf16.mxu0 %v3339
    %3467 = vmatpush1.bf16.msra.mxu0 %v3338
    %3468 = vmatprep.subr.bf16.mxu0 %v3341
    %3469 = vmatpush1.bf16.msra.mxu0 %v3340
    %3470 = vmatprep.mubr.bf16.mxu0 %v3039
    %3471 = vmatmul.mubr.bf16.gmra.mrb[0].mxu0 %v3038
    %v3472 = vpop.f32.mrb[0].mxu0
    %v3473 = vadd.f32 %v3111, %v3472
    %v3474 = vpop.f32.mrb[0].mxu0
    %v3475 = vadd.f32 %v3115, %v3474
    %v3476 = vpop.f32.mrb[0].mxu0
    %v3477 = vpop.f32.mrb[0].mxu0
    %3478 = vdwg.mxu0
    %3479 = vmatprep.subr.bf16.mxu0 %v3343
    %3480 = vmatpush1.bf16.msra.mxu0 %v3342
    %3481 = vmatprep.subr.bf16.mxu0 %v3345
    %3482 = vmatpush1.bf16.msra.mxu0 %v3344
    %3483 = vmatprep.subr.bf16.mxu0 %v3347
    %3484 = vmatpush1.bf16.msra.mxu0 %v3346
    %3485 = vmatprep.subr.bf16.mxu0 %v3349
    %3486 = vmatpush1.bf16.msra.mxu0 %v3348
    %3487 = vmatprep.subr.bf16.mxu0 %v3351
    %3488 = vmatpush1.bf16.msra.mxu0 %v3350
    %3489 = vmatprep.subr.bf16.mxu0 %v3353
    %3490 = vmatpush1.bf16.msra.mxu0 %v3352
    %3491 = vmatprep.subr.bf16.mxu0 %v3355
    %3492 = vmatpush1.bf16.msra.mxu0 %v3354
    %3493 = vmatprep.subr.bf16.mxu0 %v3357
    %3494 = vmatpush1.bf16.msra.mxu0 %v3356
    %3495 = vmatprep.subr.bf16.mxu0 %v3359
    %3496 = vmatpush1.bf16.msra.mxu0 %v3358
    %3497 = vmatprep.subr.bf16.mxu0 %v3361
    %3498 = vmatpush1.bf16.msra.mxu0 %v3360
    %3499 = vmatprep.subr.bf16.mxu0 %v3363
    %3500 = vmatpush1.bf16.msra.mxu0 %v3362
    %3501 = vmatprep.subr.bf16.mxu0 %v3365
    %3502 = vmatpush1.bf16.msra.mxu0 %v3364
    %3503 = vmatprep.subr.bf16.mxu0 %v3367
    %3504 = vmatpush1.bf16.msra.mxu0 %v3366
    %3505 = vmatprep.subr.bf16.mxu0 %v3369
    %3506 = vmatpush1.bf16.msra.mxu0 %v3368
    %3507 = vmatprep.subr.bf16.mxu0 %v3371
    %3508 = vmatpush1.bf16.msra.mxu0 %v3370
    %3509 = vmatprep.subr.bf16.mxu0 %v3373
    %3510 = vmatpush1.bf16.msra.mxu0 %v3372
    %3511 = vmatprep.mubr.bf16.mxu0 %v3041
    %3512 = vmatmul.mubr.bf16.gmra.mrb[0].mxu0 %v3040
    %v3513 = vpop.f32.mrb[0].mxu0
    %v3514 = vadd.f32 %v3473, %v3513
    %v3515 = vpop.f32.mrb[0].mxu0
    %v3516 = vadd.f32 %v3475, %v3515
    %v3517 = vpop.f32.mrb[0].mxu0
    %v3518 = vpop.f32.mrb[0].mxu0
    %3519 = vdwg.mxu0
    %v3520 = vmul.f32 %v3514, 0.5
    %v3521 = vmul.f32 %v3516, 0.5
    %v3522 = vmul.f32 %v3514, 0.044715
    %v3523 = vmul.f32 %v3516, 0.044715
    %v3524 = vmul.f32 %v3522, %v3514
    %v3525 = vmul.f32 %v3523, %v3516
    %v3526 = vmul.f32 %v3524, %v3514
    %v3527 = vmul.f32 %v3525, %v3516
    %v3528 = vadd.f32 %v3514, %v3526
    %v3529 = vadd.f32 %v3516, %v3527
    %v3530 = vmul.f32 %v3528, 0.7978846
    %v3531 = vmul.f32 %v3529, 0.7978846
    %v3532 = vtanh.pop %v3530
    %v3533 = vtanh.pop %v3531
    %v3534 = vadd.f32 %v3532, 1.0
    %v3535 = vadd.f32 %v3533, 1.0
    %v3536 = vmul.f32 %v3520, %v3534
    %v3537 = vmul.f32 %v3521, %v3535
    %v3538 = vpack.c.bf16 %v3536, %v3536
    %v3539 = vpack.c.bf16 %v3537, %v3537
    %v3540 = vld [vmem:[%s7] sm:$0xff]
    %v3541 = vld [vmem:[%s7 + $0x8] sm:$0xff]
    %v3542 = vld [vmem:[%s7 + $0x10] sm:$0xff]
    %v3543 = vld [vmem:[%s7 + $0x18] sm:$0xff]
    %v3544 = vld [vmem:[%s7 + $0x20] sm:$0xff]
    %v3545 = vld [vmem:[%s7 + $0x28] sm:$0xff]
    %v3546 = vld [vmem:[%s7 + $0x30] sm:$0xff]
    %v3547 = vld [vmem:[%s7 + $0x38] sm:$0xff]
    %v3548 = vld [vmem:[%s7 + $0x40] sm:$0xff]
    %v3549 = vld [vmem:[%s7 + $0x48] sm:$0xff]
    %v3550 = vld [vmem:[%s7 + $0x50] sm:$0xff]
    %v3551 = vld [vmem:[%s7 + $0x58] sm:$0xff]
    %v3552 = vld [vmem:[%s7 + $0x60] sm:$0xff]
    %v3553 = vld [vmem:[%s7 + $0x68] sm:$0xff]
    %v3554 = vld [vmem:[%s7 + $0x70] sm:$0xff]
    %v3555 = vld [vmem:[%s7 + $0x78] sm:$0xff]
    %v3556 = vld [vmem:[%s7 + $0x80] sm:$0xff]
    %v3557 = vld [vmem:[%s7 + $0x88] sm:$0xff]
    %v3558 = vld [vmem:[%s7 + $0x90] sm:$0xff]
    %v3559 = vld [vmem:[%s7 + $0x98] sm:$0xff]
    %v3560 = vld [vmem:[%s7 + $0xa0] sm:$0xff]
    %v3561 = vld [vmem:[%s7 + $0xa8] sm:$0xff]
    %v3562 = vld [vmem:[%s7 + $0xb0] sm:$0xff]
    %v3563 = vld [vmem:[%s7 + $0xb8] sm:$0xff]
    %v3564 = vld [vmem:[%s7 + $0xc0] sm:$0xff]
    %v3565 = vld [vmem:[%s7 + $0xc8] sm:$0xff]
    %v3566 = vld [vmem:[%s7 + $0xd0] sm:$0xff]
    %v3567 = vld [vmem:[%s7 + $0xd8] sm:$0xff]
    %v3568 = vld [vmem:[%s7 + $0xe0] sm:$0xff]
    %v3569 = vld [vmem:[%s7 + $0xe8] sm:$0xff]
    %v3570 = vld [vmem:[%s7 + $0xf0] sm:$0xff]
    %v3571 = vld [vmem:[%s7 + $0xf8] sm:$0xff]
    %v3572 = vld [vmem:[%s8] sm:$0x3]
    %v3574 = vlaneseq
    %v3575 = vshrl.u32 %v3574, 7
    %v3576 = vsub.s32 0, %v3575
    %v3577 = vrot.slane %v3572, %v3576
    %v3578 = vlaneseq
    %v3579 = vshrl.u32 %v3578, 7
    %v3580 = vsub.s32 1, %v3579
    %v3581 = vrot.slane %v3572, %v3580
    %v3616 = vunpack.c.l.b16 %v3540
    %v3617 = vunpack.c.h.b16 %v3540
    %v3618 = vunpack.c.l.b16 %v3541
    %v3619 = vunpack.c.h.b16 %v3541
    %v3620 = vunpack.c.l.b16 %v3542
    %v3621 = vunpack.c.h.b16 %v3542
    %v3622 = vunpack.c.l.b16 %v3543
    %v3623 = vunpack.c.h.b16 %v3543
    %v3624 = vunpack.c.l.b16 %v3544
    %v3625 = vunpack.c.h.b16 %v3544
    %v3626 = vunpack.c.l.b16 %v3545
    %v3627 = vunpack.c.h.b16 %v3545
    %v3628 = vunpack.c.l.b16 %v3546
    %v3629 = vunpack.c.h.b16 %v3546
    %v3630 = vunpack.c.l.b16 %v3547
    %v3631 = vunpack.c.h.b16 %v3547
    %v3632 = vunpack.c.l.b16 %v3548
    %v3633 = vunpack.c.h.b16 %v3548
    %v3634 = vunpack.c.l.b16 %v3549
    %v3635 = vunpack.c.h.b16 %v3549
    %v3636 = vunpack.c.l.b16 %v3550
    %v3637 = vunpack.c.h.b16 %v3550
    %v3638 = vunpack.c.l.b16 %v3551
    %v3639 = vunpack.c.h.b16 %v3551
    %v3640 = vunpack.c.l.b16 %v3552
    %v3641 = vunpack.c.h.b16 %v3552
    %v3642 = vunpack.c.l.b16 %v3553
    %v3643 = vunpack.c.h.b16 %v3553
    %v3644 = vunpack.c.l.b16 %v3554
    %v3645 = vunpack.c.h.b16 %v3554
    %v3646 = vunpack.c.l.b16 %v3555
    %v3647 = vunpack.c.h.b16 %v3555
    %v3648 = vunpack.c.l.b16 %v3556
    %v3649 = vunpack.c.h.b16 %v3556
    %v3650 = vunpack.c.l.b16 %v3557
    %v3651 = vunpack.c.h.b16 %v3557
    %v3652 = vunpack.c.l.b16 %v3558
    %v3653 = vunpack.c.h.b16 %v3558
    %v3654 = vunpack.c.l.b16 %v3559
    %v3655 = vunpack.c.h.b16 %v3559
    %v3656 = vunpack.c.l.b16 %v3560
    %v3657 = vunpack.c.h.b16 %v3560
    %v3658 = vunpack.c.l.b16 %v3561
    %v3659 = vunpack.c.h.b16 %v3561
    %v3660 = vunpack.c.l.b16 %v3562
    %v3661 = vunpack.c.h.b16 %v3562
    %v3662 = vunpack.c.l.b16 %v3563
    %v3663 = vunpack.c.h.b16 %v3563
    %v3664 = vunpack.c.l.b16 %v3564
    %v3665 = vunpack.c.h.b16 %v3564
    %v3666 = vunpack.c.l.b16 %v3565
    %v3667 = vunpack.c.h.b16 %v3565
    %v3668 = vunpack.c.l.b16 %v3566
    %v3669 = vunpack.c.h.b16 %v3566
    %v3670 = vunpack.c.l.b16 %v3567
    %v3671 = vunpack.c.h.b16 %v3567
    %v3672 = vunpack.c.l.b16 %v3568
    %v3673 = vunpack.c.h.b16 %v3568
    %v3674 = vunpack.c.l.b16 %v3569
    %v3675 = vunpack.c.h.b16 %v3569
    %v3676 = vunpack.c.l.b16 %v3570
    %v3677 = vunpack.c.h.b16 %v3570
    %v3678 = vunpack.c.l.b16 %v3571
    %v3679 = vunpack.c.h.b16 %v3571
    %v3680 = vpack.c.b16 %v3618, %v3616
    %v3681 = vpack.c.b16 %v3619, %v3617
    %v3682 = vpack.c.b16 %v3622, %v3620
    %v3683 = vpack.c.b16 %v3623, %v3621
    %v3684 = vpack.c.b16 %v3626, %v3624
    %v3685 = vpack.c.b16 %v3627, %v3625
    %v3686 = vpack.c.b16 %v3630, %v3628
    %v3687 = vpack.c.b16 %v3631, %v3629
    %v3688 = vpack.c.b16 %v3634, %v3632
    %v3689 = vpack.c.b16 %v3635, %v3633
    %v3690 = vpack.c.b16 %v3638, %v3636
    %v3691 = vpack.c.b16 %v3639, %v3637
    %v3692 = vpack.c.b16 %v3642, %v3640
    %v3693 = vpack.c.b16 %v3643, %v3641
    %v3694 = vpack.c.b16 %v3646, %v3644
    %v3695 = vpack.c.b16 %v3647, %v3645
    %v3696 = vpack.c.b16 %v3650, %v3648
    %v3697 = vpack.c.b16 %v3651, %v3649
    %v3698 = vpack.c.b16 %v3654, %v3652
    %v3699 = vpack.c.b16 %v3655, %v3653
    %v3700 = vpack.c.b16 %v3658, %v3656
    %v3701 = vpack.c.b16 %v3659, %v3657
    %v3702 = vpack.c.b16 %v3662, %v3660
    %v3703 = vpack.c.b16 %v3663, %v3661
    %v3704 = vpack.c.b16 %v3666, %v3664
    %v3705 = vpack.c.b16 %v3667, %v3665
    %v3706 = vpack.c.b16 %v3670, %v3668
    %v3707 = vpack.c.b16 %v3671, %v3669
    %v3708 = vpack.c.b16 %v3674, %v3672
    %v3709 = vpack.c.b16 %v3675, %v3673
    %v3710 = vpack.c.b16 %v3678, %v3676
    %v3711 = vpack.c.b16 %v3679, %v3677
    %3744 = vmatprep.subr.bf16.mxu0 %v3681
    %3745 = vmatpush1.bf16.msra.mxu0 %v3680
    %3746 = vmatprep.subr.bf16.mxu0 %v3683
    %3747 = vmatpush1.bf16.msra.mxu0 %v3682
    %3748 = vmatprep.subr.bf16.mxu0 %v3685
    %3749 = vmatpush1.bf16.msra.mxu0 %v3684
    %3750 = vmatprep.subr.bf16.mxu0 %v3687
    %3751 = vmatpush1.bf16.msra.mxu0 %v3686
    %3752 = vmatprep.subr.bf16.mxu0 %v3689
    %3753 = vmatpush1.bf16.msra.mxu0 %v3688
    %3754 = vmatprep.subr.bf16.mxu0 %v3691
    %3755 = vmatpush1.bf16.msra.mxu0 %v3690
    %3756 = vmatprep.subr.bf16.mxu0 %v3693
    %3757 = vmatpush1.bf16.msra.mxu0 %v3692
    %3758 = vmatprep.subr.bf16.mxu0 %v3695
    %3759 = vmatpush1.bf16.msra.mxu0 %v3694
    %3760 = vmatprep.subr.bf16.mxu0 %v3697
    %3761 = vmatpush1.bf16.msra.mxu0 %v3696
    %3762 = vmatprep.subr.bf16.mxu0 %v3699
    %3763 = vmatpush1.bf16.msra.mxu0 %v3698
    %3764 = vmatprep.subr.bf16.mxu0 %v3701
    %3765 = vmatpush1.bf16.msra.mxu0 %v3700
    %3766 = vmatprep.subr.bf16.mxu0 %v3703
    %3767 = vmatpush1.bf16.msra.mxu0 %v3702
    %3768 = vmatprep.subr.bf16.mxu0 %v3705
    %3769 = vmatpush1.bf16.msra.mxu0 %v3704
    %3770 = vmatprep.subr.bf16.mxu0 %v3707
    %3771 = vmatpush1.bf16.msra.mxu0 %v3706
    %3772 = vmatprep.subr.bf16.mxu0 %v3709
    %3773 = vmatpush1.bf16.msra.mxu0 %v3708
    %3774 = vmatprep.subr.bf16.mxu0 %v3711
    %3775 = vmatpush1.bf16.msra.mxu0 %v3710
    %3776 = vmatprep.mubr.bf16.mxu0 %v3539
    %3777 = vmatmul.mubr.bf16.gmra.mrb[0].mxu0 %v3538
    %v3778 = vpop.f32.mrb[0].mxu0
    %v3779 = vadd.f32 %v3577, %v3778
    %v3780 = vpop.f32.mrb[0].mxu0
    %v3781 = vadd.f32 %v3581, %v3780
    %v3782 = vpop.f32.mrb[0].mxu0
    %v3783 = vpop.f32.mrb[0].mxu0
    %3784 = vdwg.mxu0
    %v3785 = vmul.f32 %v3779, 0.5
    %v3786 = vmul.f32 %v3781, 0.5
    %v3787 = vmul.f32 %v3779, 0.044715
    %v3788 = vmul.f32 %v3781, 0.044715
    %v3789 = vmul.f32 %v3787, %v3779
    %v3790 = vmul.f32 %v3788, %v3781
    %v3791 = vmul.f32 %v3789, %v3779
    %v3792 = vmul.f32 %v3790, %v3781
    %v3793 = vadd.f32 %v3779, %v3791
    %v3794 = vadd.f32 %v3781, %v3792
    %v3795 = vmul.f32 %v3793, 0.7978846
    %v3796 = vmul.f32 %v3794, 0.7978846
    %v3797 = vtanh.pop %v3795
    %v3798 = vtanh.pop %v3796
    %v3799 = vadd.f32 %v3797, 1.0
    %v3800 = vadd.f32 %v3798, 1.0
    %v3801 = vmul.f32 %v3785, %v3799
    %v3802 = vmul.f32 %v3786, %v3800
    %v3803 = vpack.c.bf16 %v3801, %v3801
    %v3804 = vpack.c.bf16 %v3802, %v3802
    %v3805 = vld [vmem:[%s9] sm:$0xf]
    %v3806 = vld [vmem:[%s9 + $0x4] sm:$0xf]
    %v3807 = vld [vmem:[%s9 + $0x8] sm:$0xf]
    %v3808 = vld [vmem:[%s9 + $0xc] sm:$0xf]
    %v3809 = vld [vmem:[%s9 + $0x10] sm:$0xf]
    %v3810 = vld [vmem:[%s9 + $0x14] sm:$0xf]
    %v3811 = vld [vmem:[%s9 + $0x18] sm:$0xf]
    %v3812 = vld [vmem:[%s9 + $0x1c] sm:$0xf]
    %v3813 = vld [vmem:[%s9 + $0x20] sm:$0xf]
    %v3814 = vld [vmem:[%s9 + $0x24] sm:$0xf]
    %v3815 = vld [vmem:[%s9 + $0x28] sm:$0xf]
    %v3816 = vld [vmem:[%s9 + $0x2c] sm:$0xf]
    %v3817 = vld [vmem:[%s9 + $0x30] sm:$0xf]
    %v3818 = vld [vmem:[%s9 + $0x34] sm:$0xf]
    %v3819 = vld [vmem:[%s9 + $0x38] sm:$0xf]
    %v3820 = vld [vmem:[%s9 + $0x3c] sm:$0xf]
    %v3821 = vld [vmem:[%s9 + $0x40] sm:$0xf]
    %v3822 = vld [vmem:[%s9 + $0x44] sm:$0xf]
    %v3823 = vld [vmem:[%s9 + $0x48] sm:$0xf]
    %v3824 = vld [vmem:[%s9 + $0x4c] sm:$0xf]
    %v3825 = vld [vmem:[%s9 + $0x50] sm:$0xf]
    %v3826 = vld [vmem:[%s9 + $0x54] sm:$0xf]
    %v3827 = vld [vmem:[%s9 + $0x58] sm:$0xf]
    %v3828 = vld [vmem:[%s9 + $0x5c] sm:$0xf]
    %v3829 = vld [vmem:[%s9 + $0x60] sm:$0xf]
    %v3830 = vld [vmem:[%s9 + $0x64] sm:$0xf]
    %v3831 = vld [vmem:[%s9 + $0x68] sm:$0xf]
    %v3832 = vld [vmem:[%s9 + $0x6c] sm:$0xf]
    %v3833 = vld [vmem:[%s9 + $0x70] sm:$0xf]
    %v3834 = vld [vmem:[%s9 + $0x74] sm:$0xf]
    %v3835 = vld [vmem:[%s9 + $0x78] sm:$0xf]
    %v3836 = vld [vmem:[%s9 + $0x7c] sm:$0xf]
    %v3837 = vld [vmem:[%s10] sm:$0x1]
    %v3839 = vlaneseq
    %v3840 = vshrl.u32 %v3839, 7
    %v3841 = vsub.s32 0, %v3840
    %v3842 = vrot.slane %v3837, %v3841
    %v3876 = vunpack.c.l.b16 %v3805
    %v3877 = vunpack.c.l.b16 %v3806
    %v3878 = vunpack.c.l.b16 %v3807
    %v3879 = vunpack.c.l.b16 %v3808
    %v3880 = vunpack.c.l.b16 %v3809
    %v3881 = vunpack.c.l.b16 %v3810
    %v3882 = vunpack.c.l.b16 %v3811
    %v3883 = vunpack.c.l.b16 %v3812
    %v3884 = vunpack.c.l.b16 %v3813
    %v3885 = vunpack.c.l.b16 %v3814
    %v3886 = vunpack.c.l.b16 %v3815
    %v3887 = vunpack.c.l.b16 %v3816
    %v3888 = vunpack.c.l.b16 %v3817
    %v3889 = vunpack.c.l.b16 %v3818
    %v3890 = vunpack.c.l.b16 %v3819
    %v3891 = vunpack.c.l.b16 %v3820
    %v3892 = vunpack.c.l.b16 %v3821
    %v3893 = vunpack.c.l.b16 %v3822
    %v3894 = vunpack.c.l.b16 %v3823
    %v3895 = vunpack.c.l.b16 %v3824
    %v3896 = vunpack.c.l.b16 %v3825
    %v3897 = vunpack.c.l.b16 %v3826
    %v3898 = vunpack.c.l.b16 %v3827
    %v3899 = vunpack.c.l.b16 %v3828
    %v3900 = vunpack.c.l.b16 %v3829
    %v3901 = vunpack.c.l.b16 %v3830
    %v3902 = vunpack.c.l.b16 %v3831
    %v3903 = vunpack.c.l.b16 %v3832
    %v3904 = vunpack.c.l.b16 %v3833
    %v3905 = vunpack.c.l.b16 %v3834
    %v3906 = vunpack.c.l.b16 %v3835
    %v3907 = vunpack.c.l.b16 %v3836
    %v3908 = vpack.c.b16 %v3877, %v3876
    %v3909 = vpack.c.b16 %v3879, %v3878
    %v3910 = vpack.c.b16 %v3881, %v3880
    %v3911 = vpack.c.b16 %v3883, %v3882
    %v3912 = vpack.c.b16 %v3885, %v3884
    %v3913 = vpack.c.b16 %v3887, %v3886
    %v3914 = vpack.c.b16 %v3889, %v3888
    %v3915 = vpack.c.b16 %v3891, %v3890
    %v3916 = vpack.c.b16 %v3893, %v3892
    %v3917 = vpack.c.b16 %v3895, %v3894
    %v3918 = vpack.c.b16 %v3897, %v3896
    %v3919 = vpack.c.b16 %v3899, %v3898
    %v3920 = vpack.c.b16 %v3901, %v3900
    %v3921 = vpack.c.b16 %v3903, %v3902
    %v3922 = vpack.c.b16 %v3905, %v3904
    %v3923 = vpack.c.b16 %v3907, %v3906
    %3940 = vmatprep.subr.bf16.mxu0 0
    %3941 = vmatpush1.bf16.msra.mxu0 %v3908
    %3942 = vmatprep.subr.bf16.mxu0 0
    %3943 = vmatpush1.bf16.msra.mxu0 %v3909
    %3944 = vmatprep.subr.bf16.mxu0 0
    %3945 = vmatpush1.bf16.msra.mxu0 %v3910
    %3946 = vmatprep.subr.bf16.mxu0 0
    %3947 = vmatpush1.bf16.msra.mxu0 %v3911
    %3948 = vmatprep.subr.bf16.mxu0 0
    %3949 = vmatpush1.bf16.msra.mxu0 %v3912
    %3950 = vmatprep.subr.bf16.mxu0 0
    %3951 = vmatpush1.bf16.msra.mxu0 %v3913
    %3952 = vmatprep.subr.bf16.mxu0 0
    %3953 = vmatpush1.bf16.msra.mxu0 %v3914
    %3954 = vmatprep.subr.bf16.mxu0 0
    %3955 = vmatpush1.bf16.msra.mxu0 %v3915
    %3956 = vmatprep.subr.bf16.mxu0 0
    %3957 = vmatpush1.bf16.msra.mxu0 %v3916
    %3958 = vmatprep.subr.bf16.mxu0 0
    %3959 = vmatpush1.bf16.msra.mxu0 %v3917
    %3960 = vmatprep.subr.bf16.mxu0 0
    %3961 = vmatpush1.bf16.msra.mxu0 %v3918
    %3962 = vmatprep.subr.bf16.mxu0 0
    %3963 = vmatpush1.bf16.msra.mxu0 %v3919
    %3964 = vmatprep.subr.bf16.mxu0 0
    %3965 = vmatpush1.bf16.msra.mxu0 %v3920
    %3966 = vmatprep.subr.bf16.mxu0 0
    %3967 = vmatpush1.bf16.msra.mxu0 %v3921
    %3968 = vmatprep.subr.bf16.mxu0 0
    %3969 = vmatpush1.bf16.msra.mxu0 %v3922
    %3970 = vmatprep.subr.bf16.mxu0 0
    %3971 = vmatpush1.bf16.msra.mxu0 %v3923
    %3972 = vmatprep.mubr.bf16.mxu0 %v3804
    %3973 = vmatmul.mubr.bf16.gmra.mrb[0].mxu0 %v3803
    %v3974 = vpop.f32.mrb[0].mxu0
    %v3975 = vadd.f32 %v3842, %v3974
    %v3976 = vpop.f32.mrb[0].mxu0
    %v3977 = vpop.f32.mrb[0].mxu0
    %v3978 = vpop.f32.mrb[0].mxu0
    %3979 = vdwg.mxu0
    %vm3980 = vcmask 254976
    %3981 = vst.msk [vmem:[#allocation7] sm:$0x3] %vm3980, %v3975
    // Predicated region
    $region54: #{local_conv_encoder.1} parent=1 // pred_check
      _
    $region55: #{local_conv_encoder.1} parent=1 // pred_check_branch
      %3983 = sbr.rel (0) target = $region57
    $region56: #{local_conv_encoder.1} parent=1 // pred_region
      %s3985 = ssub.s32 32, 32
      %3986 = vsyncadd [#allocation4], %s3985
      %s3988 = sshll.u32 [#allocation7], 4
      %s3989 = int_to_ptr.vmem [resolvable:$true] %s3988
      %3991 = dma.vmem_to_hbm [thread:$0]  %s3989, 32, %s11, [#allocation4]
    $region57: #{local_conv_encoder.1} parent=1 // pred_fallthru
      _
    // Predicated region
    $region58: #{local_conv_encoder.1} parent=1 // pred_check
      _
    $region59: #{local_conv_encoder.1} parent=1 // pred_check_branch
      %3993 = sbr.rel (0) target = $region61
    $region60: #{local_conv_encoder.1} parent=1 // pred_region
      %3994 = dma.done [#allocation4], 32
    $region61: #{local_conv_encoder.1} parent=1 // pred_fallthru
      _
    %3995 = vsyncpa [#allocation3], 1
    %3996 = vsyncpa [#allocation6], 1
    %3997 = vsyncpa [#allocation4], 1

</llo_original>
